<compile_context>
chip_gen: v6e
topology: v6e:2x2x1
jax: 0.10.0
libtpu: 0.0.40
codegen_flags: <defaults>
</compile_context>

<pallas_src>
import math
import numpy as np
import jax
import jax.numpy as jnp
from jax.experimental import pallas as pl
from jax.experimental.pallas import tpu as pltpu  # noqa: F401

# ---- static configuration (small shapes consistent with the module) ----
B = 2          # batch
N = 8          # sequence length
D = 64         # d_model
H = 8          # num_heads
DK = D // H    # d_k
DV = D // H    # d_v
DINT = 128     # d_intermediate
L = 3          # num_layers (distinct weights per layer, as in StackedEncoder)
EPS = 1e-5     # torch nn.LayerNorm default
BN = B * N


def _layer_norm(x, g, b, eps=EPS):
    mu = jnp.mean(x, axis=-1, keepdims=True)
    xc = x - mu
    var = jnp.mean(xc * xc, axis=-1, keepdims=True)
    return xc * jax.lax.rsqrt(var + eps) * g + b


def _gelu(x):
    return x * 0.5 * (1.0 + jax.lax.erf(x / math.sqrt(2.0)))


def stacked_encoder_kernel(x_ref, fill_ref,
                           ln_attn_g_ref, ln_attn_b_ref,
                           wqkv_ref, wo_ref,
                           ln_ffn_g_ref, ln_ffn_b_ref,
                           ffn_ln_g_ref, ffn_ln_b_ref,
                           w1_ref, b1_ref, w2_ref, b2_ref,
                           o_ref):
    x = x_ref[...]                                          # [BN, D] f32

    # Host-precomputed score fill values (hoisted out of the layer loop):
    #    0.0  -> keep score
    #  -1e10  -> masked query row (matches torch masked_fill_ with [B,N,1] mask)
    #  -2e10  -> cross-batch pair (exp underflows to exactly 0 after max-sub)
    fill = jnp.broadcast_to(fill_ref[...][None], (H, BN, BN))
    use_fill = fill < -0.5

    inv_sqrt_dk = 1.0 / math.sqrt(DK)

    for layer in range(L):                                  # static unroll
        # ---------------- multi-head attention (pre-LN) ----------------
        a = _layer_norm(x, ln_attn_g_ref[layer], ln_attn_b_ref[layer])
        qkv = jnp.dot(a.astype(jnp.bfloat16), wqkv_ref[layer],
                      preferred_element_type=jnp.float32)   # [BN, 3D] f32

        # Q -> standard per-head stack [H, BN, DK].
        q_heads = jnp.stack(
            [qkv[:, h * DK:(h + 1) * DK] for h in range(H)], axis=0)
        # K, V -> transposed per-head stacks [H, DK, BN] via ONE 2-D transpose
        # and a layout-preserving reshape (no per-head lane slicing).
        kv_t = qkv[:, D:].T.reshape(2 * H, DK, BN)
        k_t = kv_t[:H]
        v_t = kv_t[H:]

        # All heads & both batch elements in one batched matmul each.
        s = jnp.einsum('hid,hdj->hij', q_heads, k_t,
                       preferred_element_type=jnp.float32) * inv_sqrt_dk
        s = jnp.where(use_fill, fill, s)
        s = s - jnp.max(s, axis=-1, keepdims=True)
        p = jnp.exp(s)
        p = p * pl.reciprocal(jnp.sum(p, axis=-1, keepdims=True), approx=True)

        ctx_t = jnp.einsum('hdj,hij->hdi', v_t, p,
                           preferred_element_type=jnp.float32)   # [H, DV, BN]
        # Head merge = layout-preserving reshape + ONE 2-D transpose (no concat).
        ctx = ctx_t.reshape(H * DV, BN).T                        # [BN, H*DV]
        mha = jnp.dot(ctx.astype(jnp.bfloat16), wo_ref[layer],
                      preferred_element_type=jnp.float32)        # [BN, D]

        attn = x + mha                                  # dropout = identity (eval)

        # ---- FFN path: ln_ffn, then FFN's own LayerNorm/Linear/gelu/Linear ----
        r = _layer_norm(attn, ln_ffn_g_ref[layer], ln_ffn_b_ref[layer])
        r = _layer_norm(r, ffn_ln_g_ref[layer], ffn_ln_b_ref[layer])
        r = jnp.dot(r.astype(jnp.bfloat16), w1_ref[layer],
                    preferred_element_type=jnp.float32) + b1_ref[layer]
        r = _gelu(r)
        r = jnp.dot(r.astype(jnp.bfloat16), w2_ref[layer],
                    preferred_element_type=jnp.float32) + b2_ref[layer]
        x = attn + r                                    # dropout = identity (eval)

    o_ref[...] = x


@jax.jit
def stacked_encoder(x, mask, params):
    """x: [B, N, D] encoder_input; mask: [B, N] with 1.0 = keep, 0.0 = masked."""
    x2 = x.reshape(BN, D)

    # Combined score-fill mask for the batch-folded attention (host-side).
    row_masked = (mask.reshape(BN) == 0.0)                      # masked query rows
    bidx = jnp.arange(BN, dtype=jnp.int32) // N
    same_batch = bidx[:, None] == bidx[None, :]
    fill = jnp.where(same_batch,
                     jnp.where(row_masked[:, None], -1e10, 0.0),
                     -2e10).astype(jnp.float32)                 # [BN, BN]

    args = (x2, fill,
            params['ln_attn_g'], params['ln_attn_b'],
            params['wqkv'], params['wo'],
            params['ln_ffn_g'], params['ln_ffn_b'],
            params['ffn_ln_g'], params['ffn_ln_b'],
            params['w1'], params['b1'], params['w2'], params['b2'])

    out = pl.pallas_call(
        stacked_encoder_kernel,
        out_shape=jax.ShapeDtypeStruct((BN, D), jnp.float32),
        cost_estimate=pl.CostEstimate(flops=3_400_000,
                                      transcendentals=20_000,
                                      bytes_accessed=260_000),
    )(*args)
    # TODO(synk): output kept [B*N, 64] (64-lane masked store); a lane-dense
    # (B, N*D) store would need an in-kernel sublane->lane reshape of marginal value here.
    return out.reshape(B, N, D)


def init_params(key):
    ks = jax.random.split(key, 12)

    def uni(k, shape, fan_in, dtype=jnp.float32):
        bound = 1.0 / math.sqrt(fan_in)
        return jax.random.uniform(k, shape, jnp.float32, -bound, bound).astype(dtype)

    def ln_g(k):
        return jnp.ones((L, 1, D), jnp.float32) + 0.02 * jax.random.normal(k, (L, 1, D), jnp.float32)

    def ln_b(k):
        return 0.02 * jax.random.normal(k, (L, 1, D), jnp.float32)

    return dict(
        ln_attn_g=ln_g(ks[0]), ln_attn_b=ln_b(ks[1]),
        # per-head Wq|Wk|Wv concatenated host-side -> one [D, 3D] weight per layer
        wqkv=uni(ks[2], (L, D, 3 * D), D, jnp.bfloat16),
        wo=uni(ks[3], (L, H * DV, D), H * DV, jnp.bfloat16),
        ln_ffn_g=ln_g(ks[4]), ln_ffn_b=ln_b(ks[5]),
        ffn_ln_g=ln_g(ks[6]), ffn_ln_b=ln_b(ks[7]),
        w1=uni(ks[8], (L, D, DINT), D, jnp.bfloat16), b1=uni(ks[9], (L, 1, DINT), D),
        w2=uni(ks[10], (L, DINT, D), DINT, jnp.bfloat16), b2=uni(ks[11], (L, 1, D), DINT),
    )


def reference_forward(x, mask, params, mxu_bf16=False):
    """Pure-JAX replica of torch StackedEncoder.forward (per-head, unfused).

    mxu_bf16=True additionally rounds matmul inputs to bf16 at exactly the
    points where the Pallas kernel does, for a tight numerical check.
    """
    def mx(a):
        return a.astype(jnp.bfloat16).astype(jnp.float32) if mxu_bf16 else a

    f32 = lambda a: a.astype(jnp.float32)
    m = mask[:, :, None]                                   # [B, N, 1] as in EncoderInput
    out = x
    for l in range(L):
        a = mx(_layer_norm(out, params['ln_attn_g'][l], params['ln_attn_b'][l]))
        wqkv = f32(params['wqkv'][l])
        wq, wk, wv = wqkv[:, :D], wqkv[:, D:2 * D], wqkv[:, 2 * D:]
        heads = []
        for h in range(H):
            q = a @ wq[:, h * DK:(h + 1) * DK]
            k = a @ wk[:, h * DK:(h + 1) * DK]
            v = a @ wv[:, h * DV:(h + 1) * DV]
            w = jnp.einsum('bqe,bke->bqk', q, k) / math.sqrt(DK)
            w = jnp.where(m == 0.0, -1e10, w)
            w = jax.nn.softmax(w, axis=-1)
            heads.append(jnp.einsum('bqk,bke->bqe', w, v))
        mha = mx(jnp.concatenate(heads, axis=-1)) @ f32(params['wo'][l])
        attn = out + mha
        r = _layer_norm(attn, params['ln_ffn_g'][l], params['ln_ffn_b'][l])
        r = _layer_norm(r, params['ffn_ln_g'][l], params['ffn_ln_b'][l])
        r = mx(r) @ f32(params['w1'][l]) + params['b1'][l]
        r = _gelu(r)
        r = mx(r) @ f32(params['w2'][l]) + params['b2'][l]
        out = attn + r
    return out


if __name__ == "__main__":
    key = jax.random.PRNGKey(0)
    kx, kp = jax.random.split(key)
    params = init_params(kp)

    x = jax.random.normal(kx, (B, N, D), jnp.float32)      # encoder_input
    mask = jnp.ones((B, N), jnp.float32)                   # 1.0 = keep, 0.0 = masked
    mask = mask.at[0, 5:].set(0.0)                         # exercise masked query rows
    mask = mask.at[1, 7].set(0.0)

    out = stacked_encoder(x, mask, params)
    out = jax.block_until_ready(out)

    assert out.shape == (B, N, D), out.shape
    assert bool(jnp.all(jnp.isfinite(out)))

    # Tight check vs a reference that rounds MXU operands to bf16 where the kernel does.
    ref_bf16 = reference_forward(x, mask, params, mxu_bf16=True)
    np.testing.assert_allclose(np.asarray(out), np.asarray(ref_bf16), rtol=2e-2, atol=2e-2)
    # Loose check vs the pure-f32 spec (gap fully accounted for by bf16 MXU operands).
    ref_f32 = reference_forward(x, mask, params, mxu_bf16=False)
    np.testing.assert_allclose(np.asarray(out), np.asarray(ref_f32), rtol=1e-1, atol=1e-1)

    print("KERNEL_OK")
</pallas_src>

<mosaic_0001>
module attributes {stable_mosaic.version = 11 : i64} {
  func.func @stacked_encoder_kernel(%arg0: memref<16x64xf32, #tpu.memory_space<vmem>>, %arg1: memref<16x16xf32, #tpu.memory_space<vmem>>, %arg2: memref<3x1x64xf32, #tpu.memory_space<vmem>>, %arg3: memref<3x1x64xf32, #tpu.memory_space<vmem>>, %arg4: memref<3x64x192xbf16, #tpu.memory_space<vmem>>, %arg5: memref<3x64x64xbf16, #tpu.memory_space<vmem>>, %arg6: memref<3x1x64xf32, #tpu.memory_space<vmem>>, %arg7: memref<3x1x64xf32, #tpu.memory_space<vmem>>, %arg8: memref<3x1x64xf32, #tpu.memory_space<vmem>>, %arg9: memref<3x1x64xf32, #tpu.memory_space<vmem>>, %arg10: memref<3x64x128xbf16, #tpu.memory_space<vmem>>, %arg11: memref<3x1x128xf32, #tpu.memory_space<vmem>>, %arg12: memref<3x128x64xbf16, #tpu.memory_space<vmem>>, %arg13: memref<3x1x64xf32, #tpu.memory_space<vmem>>, %arg14: memref<16x64xf32, #tpu.memory_space<vmem>>) attributes {dimension_semantics = [], scalar_prefetch = 0 : i64, scratch_operands = 0 : i64, tpu.core_type = #tpu.core_type<tc>} {
    %c0 = arith.constant 0 : index
    %c0_0 = arith.constant 0 : index
    %0 = vector.load %arg0[%c0, %c0_0] : memref<16x64xf32, #tpu.memory_space<vmem>>, vector<16x64xf32>
    %c0_1 = arith.constant 0 : index
    %c0_2 = arith.constant 0 : index
    %1 = vector.load %arg1[%c0_1, %c0_2] : memref<16x16xf32, #tpu.memory_space<vmem>>, vector<16x16xf32>
    %2 = vector.shape_cast %1 : vector<16x16xf32> to vector<1x16x16xf32>
    %3 = vector.shape_cast %2 : vector<1x16x16xf32> to vector<1x16x16xf32>
    %4 = vector.broadcast %3 : vector<1x16x16xf32> to vector<8x16x16xf32>
    %cst = arith.constant -5.000000e-01 : f32
    %5 = vector.broadcast %cst : f32 to vector<8x16x16xf32>
    %6 = arith.cmpf olt, %4, %5 : vector<8x16x16xf32>
    %c0_3 = arith.constant 0 : index
    %c0_4 = arith.constant 0 : index
    %c0_5 = arith.constant 0 : index
    %7 = vector.load %arg2[%c0_3, %c0_4, %c0_5] : memref<3x1x64xf32, #tpu.memory_space<vmem>>, vector<1x1x64xf32>
    %8 = vector.shape_cast %7 : vector<1x1x64xf32> to vector<1x64xf32>
    %c0_6 = arith.constant 0 : index
    %c0_7 = arith.constant 0 : index
    %c0_8 = arith.constant 0 : index
    %9 = vector.load %arg3[%c0_6, %c0_7, %c0_8] : memref<3x1x64xf32, #tpu.memory_space<vmem>>, vector<1x1x64xf32>
    %10 = vector.shape_cast %9 : vector<1x1x64xf32> to vector<1x64xf32>
    %cst_9 = arith.constant dense<0.000000e+00> : vector<16xf32>
    %11 = vector.multi_reduction <add>, %0, %cst_9 [1] : vector<16x64xf32> to vector<16xf32>
    %12 = vector.shape_cast %11 : vector<16xf32> to vector<16x1xf32>
    %cst_10 = arith.constant 6.400000e+01 : f32
    %13 = vector.broadcast %cst_10 : f32 to vector<16x1xf32>
    %14 = arith.divf %12, %13 : vector<16x1xf32>
    %15 = vector.broadcast %14 : vector<16x1xf32> to vector<16x64xf32>
    %16 = arith.subf %0, %15 : vector<16x64xf32>
    %17 = arith.mulf %16, %16 : vector<16x64xf32>
    %cst_11 = arith.constant dense<0.000000e+00> : vector<16xf32>
    %18 = vector.multi_reduction <add>, %17, %cst_11 [1] : vector<16x64xf32> to vector<16xf32>
    %19 = vector.shape_cast %18 : vector<16xf32> to vector<16x1xf32>
    %cst_12 = arith.constant 6.400000e+01 : f32
    %20 = vector.broadcast %cst_12 : f32 to vector<16x1xf32>
    %21 = arith.divf %19, %20 : vector<16x1xf32>
    %cst_13 = arith.constant 9.99999974E-6 : f32
    %22 = vector.broadcast %cst_13 : f32 to vector<16x1xf32>
    %23 = arith.addf %21, %22 : vector<16x1xf32>
    %24 = math.rsqrt %23 : vector<16x1xf32>
    %25 = vector.broadcast %24 : vector<16x1xf32> to vector<16x64xf32>
    %26 = arith.mulf %16, %25 : vector<16x64xf32>
    %27 = vector.broadcast %8 : vector<1x64xf32> to vector<16x64xf32>
    %28 = arith.mulf %26, %27 : vector<16x64xf32>
    %29 = vector.broadcast %10 : vector<1x64xf32> to vector<16x64xf32>
    %30 = arith.addf %28, %29 : vector<16x64xf32>
    %31 = arith.truncf %30 : vector<16x64xf32> to vector<16x64xbf16>
    %c0_14 = arith.constant 0 : index
    %c0_15 = arith.constant 0 : index
    %c0_16 = arith.constant 0 : index
    %32 = vector.load %arg4[%c0_14, %c0_15, %c0_16] : memref<3x64x192xbf16, #tpu.memory_space<vmem>>, vector<1x64x192xbf16>
    %33 = vector.shape_cast %32 : vector<1x64x192xbf16> to vector<64x192xbf16>
    %cst_17 = arith.constant dense<0.000000e+00> : vector<16x192xf32>
    %34 = tpu.matmul %31, %33, %cst_17 {dimension_numbers = #tpu.dot_dimension_numbers<[1], [0], [0], [1], [0, 0, 1, 1], [], []>} : vector<16x64xbf16>, vector<64x192xbf16>, vector<16x192xf32> -> vector<16x192xf32>
    %35 = vector.extract_strided_slice %34 {offsets = [0, 0], sizes = [16, 8], strides = [1, 1]} : vector<16x192xf32> to vector<16x8xf32>
    %36 = vector.extract_strided_slice %34 {offsets = [0, 8], sizes = [16, 8], strides = [1, 1]} : vector<16x192xf32> to vector<16x8xf32>
    %37 = vector.extract_strided_slice %34 {offsets = [0, 16], sizes = [16, 8], strides = [1, 1]} : vector<16x192xf32> to vector<16x8xf32>
    %38 = vector.extract_strided_slice %34 {offsets = [0, 24], sizes = [16, 8], strides = [1, 1]} : vector<16x192xf32> to vector<16x8xf32>
    %39 = vector.extract_strided_slice %34 {offsets = [0, 32], sizes = [16, 8], strides = [1, 1]} : vector<16x192xf32> to vector<16x8xf32>
    %40 = vector.extract_strided_slice %34 {offsets = [0, 40], sizes = [16, 8], strides = [1, 1]} : vector<16x192xf32> to vector<16x8xf32>
    %41 = vector.extract_strided_slice %34 {offsets = [0, 48], sizes = [16, 8], strides = [1, 1]} : vector<16x192xf32> to vector<16x8xf32>
    %42 = vector.extract_strided_slice %34 {offsets = [0, 56], sizes = [16, 8], strides = [1, 1]} : vector<16x192xf32> to vector<16x8xf32>
    %43 = vector.shape_cast %35 : vector<16x8xf32> to vector<1x16x8xf32>
    %44 = vector.shape_cast %36 : vector<16x8xf32> to vector<1x16x8xf32>
    %45 = vector.shape_cast %37 : vector<16x8xf32> to vector<1x16x8xf32>
    %46 = vector.shape_cast %38 : vector<16x8xf32> to vector<1x16x8xf32>
    %47 = vector.shape_cast %39 : vector<16x8xf32> to vector<1x16x8xf32>
    %48 = vector.shape_cast %40 : vector<16x8xf32> to vector<1x16x8xf32>
    %49 = vector.shape_cast %41 : vector<16x8xf32> to vector<1x16x8xf32>
    %50 = vector.shape_cast %42 : vector<16x8xf32> to vector<1x16x8xf32>
    %51 = tpu.concatenate %43, %44, %45, %46, %47, %48, %49, %50 in 0 : vector<1x16x8xf32>, vector<1x16x8xf32>, vector<1x16x8xf32>, vector<1x16x8xf32>, vector<1x16x8xf32>, vector<1x16x8xf32>, vector<1x16x8xf32>, vector<1x16x8xf32> -> vector<8x16x8xf32>
    %52 = vector.extract_strided_slice %34 {offsets = [0, 64], sizes = [16, 128], strides = [1, 1]} : vector<16x192xf32> to vector<16x128xf32>
    %53 = tpu.transpose %52, [1, 0] : vector<16x128xf32> -> vector<128x16xf32>
    %54 = vector.shape_cast %53 : vector<128x16xf32> to vector<16x8x16xf32>
    %55 = vector.extract_strided_slice %54 {offsets = [0, 0, 0], sizes = [8, 8, 16], strides = [1, 1, 1]} : vector<16x8x16xf32> to vector<8x8x16xf32>
    %56 = vector.extract_strided_slice %54 {offsets = [8, 0, 0], sizes = [8, 8, 16], strides = [1, 1, 1]} : vector<16x8x16xf32> to vector<8x8x16xf32>
    "tpu.trace_start"() <{level = 10 : i32, message = "hid,hdj->hij"}> : () -> ()
    %cst_18 = arith.constant dense<0.000000e+00> : vector<8x16x16xf32>
    %57 = tpu.matmul %51, %55, %cst_18 {dimension_numbers = #tpu.dot_dimension_numbers<[2], [1], [1], [2], [0, 0, 0, 1, 1, 2], [0], [0]>} : vector<8x16x8xf32>, vector<8x8x16xf32>, vector<8x16x16xf32> -> vector<8x16x16xf32>
    "tpu.trace_stop"() : () -> ()
    %cst_19 = arith.constant 0.353553385 : f32
    %58 = vector.broadcast %cst_19 : f32 to vector<8x16x16xf32>
    %59 = arith.mulf %57, %58 : vector<8x16x16xf32>
    %60 = arith.select %6, %4, %59 : vector<8x16x16xi1>, vector<8x16x16xf32>
    %cst_20 = arith.constant dense<0xFF800000> : vector<8x16xf32>
    %61 = vector.multi_reduction <maximumf>, %60, %cst_20 [2] : vector<8x16x16xf32> to vector<8x16xf32>
    %62 = vector.shape_cast %61 : vector<8x16xf32> to vector<8x16x1xf32>
    %63 = vector.broadcast %62 : vector<8x16x1xf32> to vector<8x16x16xf32>
    %64 = arith.subf %60, %63 : vector<8x16x16xf32>
    %65 = math.exp %64 : vector<8x16x16xf32>
    %cst_21 = arith.constant dense<0.000000e+00> : vector<8x16xf32>
    %66 = vector.multi_reduction <add>, %65, %cst_21 [2] : vector<8x16x16xf32> to vector<8x16xf32>
    %67 = vector.shape_cast %66 : vector<8x16xf32> to vector<8x16x1xf32>
    %68 = tpu.reciprocal %67 {approx = true} : vector<8x16x1xf32> -> vector<8x16x1xf32>
    %69 = vector.broadcast %68 : vector<8x16x1xf32> to vector<8x16x16xf32>
    %70 = arith.mulf %65, %69 : vector<8x16x16xf32>
    "tpu.trace_start"() <{level = 10 : i32, message = "hdj,hij->hdi"}> : () -> ()
    %cst_22 = arith.constant dense<0.000000e+00> : vector<8x8x16xf32>
    %71 = tpu.matmul %56, %70, %cst_22 {dimension_numbers = #tpu.dot_dimension_numbers<[2], [2], [1], [1], [0, 0, 0, 1, 1, 1], [0], [0]>} : vector<8x8x16xf32>, vector<8x16x16xf32>, vector<8x8x16xf32> -> vector<8x8x16xf32>
    "tpu.trace_stop"() : () -> ()
    %72 = vector.shape_cast %71 : vector<8x8x16xf32> to vector<64x16xf32>
    %73 = tpu.transpose %72, [1, 0] : vector<64x16xf32> -> vector<16x64xf32>
    %74 = arith.truncf %73 : vector<16x64xf32> to vector<16x64xbf16>
    %c0_23 = arith.constant 0 : index
    %c0_24 = arith.constant 0 : index
    %c0_25 = arith.constant 0 : index
    %75 = vector.load %arg5[%c0_23, %c0_24, %c0_25] : memref<3x64x64xbf16, #tpu.memory_space<vmem>>, vector<1x64x64xbf16>
    %76 = vector.shape_cast %75 : vector<1x64x64xbf16> to vector<64x64xbf16>
    %cst_26 = arith.constant dense<0.000000e+00> : vector<16x64xf32>
    %77 = tpu.matmul %74, %76, %cst_26 {dimension_numbers = #tpu.dot_dimension_numbers<[1], [0], [0], [1], [0, 0, 1, 1], [], []>} : vector<16x64xbf16>, vector<64x64xbf16>, vector<16x64xf32> -> vector<16x64xf32>
    %78 = arith.addf %0, %77 : vector<16x64xf32>
    %c0_27 = arith.constant 0 : index
    %c0_28 = arith.constant 0 : index
    %c0_29 = arith.constant 0 : index
    %79 = vector.load %arg6[%c0_27, %c0_28, %c0_29] : memref<3x1x64xf32, #tpu.memory_space<vmem>>, vector<1x1x64xf32>
    %80 = vector.shape_cast %79 : vector<1x1x64xf32> to vector<1x64xf32>
    %c0_30 = arith.constant 0 : index
    %c0_31 = arith.constant 0 : index
    %c0_32 = arith.constant 0 : index
    %81 = vector.load %arg7[%c0_30, %c0_31, %c0_32] : memref<3x1x64xf32, #tpu.memory_space<vmem>>, vector<1x1x64xf32>
    %82 = vector.shape_cast %81 : vector<1x1x64xf32> to vector<1x64xf32>
    %cst_33 = arith.constant dense<0.000000e+00> : vector<16xf32>
    %83 = vector.multi_reduction <add>, %78, %cst_33 [1] : vector<16x64xf32> to vector<16xf32>
    %84 = vector.shape_cast %83 : vector<16xf32> to vector<16x1xf32>
    %cst_34 = arith.constant 6.400000e+01 : f32
    %85 = vector.broadcast %cst_34 : f32 to vector<16x1xf32>
    %86 = arith.divf %84, %85 : vector<16x1xf32>
    %87 = vector.broadcast %86 : vector<16x1xf32> to vector<16x64xf32>
    %88 = arith.subf %78, %87 : vector<16x64xf32>
    %89 = arith.mulf %88, %88 : vector<16x64xf32>
    %cst_35 = arith.constant dense<0.000000e+00> : vector<16xf32>
    %90 = vector.multi_reduction <add>, %89, %cst_35 [1] : vector<16x64xf32> to vector<16xf32>
    %91 = vector.shape_cast %90 : vector<16xf32> to vector<16x1xf32>
    %cst_36 = arith.constant 6.400000e+01 : f32
    %92 = vector.broadcast %cst_36 : f32 to vector<16x1xf32>
    %93 = arith.divf %91, %92 : vector<16x1xf32>
    %cst_37 = arith.constant 9.99999974E-6 : f32
    %94 = vector.broadcast %cst_37 : f32 to vector<16x1xf32>
    %95 = arith.addf %93, %94 : vector<16x1xf32>
    %96 = math.rsqrt %95 : vector<16x1xf32>
    %97 = vector.broadcast %96 : vector<16x1xf32> to vector<16x64xf32>
    %98 = arith.mulf %88, %97 : vector<16x64xf32>
    %99 = vector.broadcast %80 : vector<1x64xf32> to vector<16x64xf32>
    %100 = arith.mulf %98, %99 : vector<16x64xf32>
    %101 = vector.broadcast %82 : vector<1x64xf32> to vector<16x64xf32>
    %102 = arith.addf %100, %101 : vector<16x64xf32>
    %c0_38 = arith.constant 0 : index
    %c0_39 = arith.constant 0 : index
    %c0_40 = arith.constant 0 : index
    %103 = vector.load %arg8[%c0_38, %c0_39, %c0_40] : memref<3x1x64xf32, #tpu.memory_space<vmem>>, vector<1x1x64xf32>
    %104 = vector.shape_cast %103 : vector<1x1x64xf32> to vector<1x64xf32>
    %c0_41 = arith.constant 0 : index
    %c0_42 = arith.constant 0 : index
    %c0_43 = arith.constant 0 : index
    %105 = vector.load %arg9[%c0_41, %c0_42, %c0_43] : memref<3x1x64xf32, #tpu.memory_space<vmem>>, vector<1x1x64xf32>
    %106 = vector.shape_cast %105 : vector<1x1x64xf32> to vector<1x64xf32>
    %cst_44 = arith.constant dense<0.000000e+00> : vector<16xf32>
    %107 = vector.multi_reduction <add>, %102, %cst_44 [1] : vector<16x64xf32> to vector<16xf32>
    %108 = vector.shape_cast %107 : vector<16xf32> to vector<16x1xf32>
    %cst_45 = arith.constant 6.400000e+01 : f32
    %109 = vector.broadcast %cst_45 : f32 to vector<16x1xf32>
    %110 = arith.divf %108, %109 : vector<16x1xf32>
    %111 = vector.broadcast %110 : vector<16x1xf32> to vector<16x64xf32>
    %112 = arith.subf %102, %111 : vector<16x64xf32>
    %113 = arith.mulf %112, %112 : vector<16x64xf32>
    %cst_46 = arith.constant dense<0.000000e+00> : vector<16xf32>
    %114 = vector.multi_reduction <add>, %113, %cst_46 [1] : vector<16x64xf32> to vector<16xf32>
    %115 = vector.shape_cast %114 : vector<16xf32> to vector<16x1xf32>
    %cst_47 = arith.constant 6.400000e+01 : f32
    %116 = vector.broadcast %cst_47 : f32 to vector<16x1xf32>
    %117 = arith.divf %115, %116 : vector<16x1xf32>
    %cst_48 = arith.constant 9.99999974E-6 : f32
    %118 = vector.broadcast %cst_48 : f32 to vector<16x1xf32>
    %119 = arith.addf %117, %118 : vector<16x1xf32>
    %120 = math.rsqrt %119 : vector<16x1xf32>
    %121 = vector.broadcast %120 : vector<16x1xf32> to vector<16x64xf32>
    %122 = arith.mulf %112, %121 : vector<16x64xf32>
    %123 = vector.broadcast %104 : vector<1x64xf32> to vector<16x64xf32>
    %124 = arith.mulf %122, %123 : vector<16x64xf32>
    %125 = vector.broadcast %106 : vector<1x64xf32> to vector<16x64xf32>
    %126 = arith.addf %124, %125 : vector<16x64xf32>
    %127 = arith.truncf %126 : vector<16x64xf32> to vector<16x64xbf16>
    %c0_49 = arith.constant 0 : index
    %c0_50 = arith.constant 0 : index
    %c0_51 = arith.constant 0 : index
    %128 = vector.load %arg10[%c0_49, %c0_50, %c0_51] : memref<3x64x128xbf16, #tpu.memory_space<vmem>>, vector<1x64x128xbf16>
    %129 = vector.shape_cast %128 : vector<1x64x128xbf16> to vector<64x128xbf16>
    %cst_52 = arith.constant dense<0.000000e+00> : vector<16x128xf32>
    %130 = tpu.matmul %127, %129, %cst_52 {dimension_numbers = #tpu.dot_dimension_numbers<[1], [0], [0], [1], [0, 0, 1, 1], [], []>} : vector<16x64xbf16>, vector<64x128xbf16>, vector<16x128xf32> -> vector<16x128xf32>
    %c0_53 = arith.constant 0 : index
    %c0_54 = arith.constant 0 : index
    %c0_55 = arith.constant 0 : index
    %131 = vector.load %arg11[%c0_53, %c0_54, %c0_55] : memref<3x1x128xf32, #tpu.memory_space<vmem>>, vector<1x1x128xf32>
    %132 = vector.shape_cast %131 : vector<1x1x128xf32> to vector<1x128xf32>
    %133 = vector.broadcast %132 : vector<1x128xf32> to vector<16x128xf32>
    %134 = arith.addf %130, %133 : vector<16x128xf32>
    %cst_56 = arith.constant 5.000000e-01 : f32
    %135 = vector.broadcast %cst_56 : f32 to vector<16x128xf32>
    %136 = arith.mulf %134, %135 : vector<16x128xf32>
    %cst_57 = arith.constant 1.41421354 : f32
    %137 = vector.broadcast %cst_57 : f32 to vector<16x128xf32>
    %138 = arith.divf %134, %137 : vector<16x128xf32>
    %139 = math.erf %138 : vector<16x128xf32>
    %cst_58 = arith.constant 1.000000e+00 : f32
    %140 = vector.broadcast %cst_58 : f32 to vector<16x128xf32>
    %141 = arith.addf %140, %139 : vector<16x128xf32>
    %142 = arith.mulf %136, %141 : vector<16x128xf32>
    %143 = arith.truncf %142 : vector<16x128xf32> to vector<16x128xbf16>
    %c0_59 = arith.constant 0 : index
    %c0_60 = arith.constant 0 : index
    %c0_61 = arith.constant 0 : index
    %144 = vector.load %arg12[%c0_59, %c0_60, %c0_61] : memref<3x128x64xbf16, #tpu.memory_space<vmem>>, vector<1x128x64xbf16>
    %145 = vector.shape_cast %144 : vector<1x128x64xbf16> to vector<128x64xbf16>
    %cst_62 = arith.constant dense<0.000000e+00> : vector<16x64xf32>
    %146 = tpu.matmul %143, %145, %cst_62 {dimension_numbers = #tpu.dot_dimension_numbers<[1], [0], [0], [1], [0, 0, 1, 1], [], []>} : vector<16x128xbf16>, vector<128x64xbf16>, vector<16x64xf32> -> vector<16x64xf32>
    %c0_63 = arith.constant 0 : index
    %c0_64 = arith.constant 0 : index
    %c0_65 = arith.constant 0 : index
    %147 = vector.load %arg13[%c0_63, %c0_64, %c0_65] : memref<3x1x64xf32, #tpu.memory_space<vmem>>, vector<1x1x64xf32>
    %148 = vector.shape_cast %147 : vector<1x1x64xf32> to vector<1x64xf32>
    %149 = vector.broadcast %148 : vector<1x64xf32> to vector<16x64xf32>
    %150 = arith.addf %146, %149 : vector<16x64xf32>
    %151 = arith.addf %78, %150 : vector<16x64xf32>
    %c1 = arith.constant 1 : index
    %c0_66 = arith.constant 0 : index
    %c0_67 = arith.constant 0 : index
    %152 = vector.load %arg2[%c1, %c0_66, %c0_67] : memref<3x1x64xf32, #tpu.memory_space<vmem>>, vector<1x1x64xf32>
    %153 = vector.shape_cast %152 : vector<1x1x64xf32> to vector<1x64xf32>
    %c1_68 = arith.constant 1 : index
    %c0_69 = arith.constant 0 : index
    %c0_70 = arith.constant 0 : index
    %154 = vector.load %arg3[%c1_68, %c0_69, %c0_70] : memref<3x1x64xf32, #tpu.memory_space<vmem>>, vector<1x1x64xf32>
    %155 = vector.shape_cast %154 : vector<1x1x64xf32> to vector<1x64xf32>
    %cst_71 = arith.constant dense<0.000000e+00> : vector<16xf32>
    %156 = vector.multi_reduction <add>, %151, %cst_71 [1] : vector<16x64xf32> to vector<16xf32>
    %157 = vector.shape_cast %156 : vector<16xf32> to vector<16x1xf32>
    %cst_72 = arith.constant 6.400000e+01 : f32
    %158 = vector.broadcast %cst_72 : f32 to vector<16x1xf32>
    %159 = arith.divf %157, %158 : vector<16x1xf32>
    %160 = vector.broadcast %159 : vector<16x1xf32> to vector<16x64xf32>
    %161 = arith.subf %151, %160 : vector<16x64xf32>
    %162 = arith.mulf %161, %161 : vector<16x64xf32>
    %cst_73 = arith.constant dense<0.000000e+00> : vector<16xf32>
    %163 = vector.multi_reduction <add>, %162, %cst_73 [1] : vector<16x64xf32> to vector<16xf32>
    %164 = vector.shape_cast %163 : vector<16xf32> to vector<16x1xf32>
    %cst_74 = arith.constant 6.400000e+01 : f32
    %165 = vector.broadcast %cst_74 : f32 to vector<16x1xf32>
    %166 = arith.divf %164, %165 : vector<16x1xf32>
    %cst_75 = arith.constant 9.99999974E-6 : f32
    %167 = vector.broadcast %cst_75 : f32 to vector<16x1xf32>
    %168 = arith.addf %166, %167 : vector<16x1xf32>
    %169 = math.rsqrt %168 : vector<16x1xf32>
    %170 = vector.broadcast %169 : vector<16x1xf32> to vector<16x64xf32>
    %171 = arith.mulf %161, %170 : vector<16x64xf32>
    %172 = vector.broadcast %153 : vector<1x64xf32> to vector<16x64xf32>
    %173 = arith.mulf %171, %172 : vector<16x64xf32>
    %174 = vector.broadcast %155 : vector<1x64xf32> to vector<16x64xf32>
    %175 = arith.addf %173, %174 : vector<16x64xf32>
    %176 = arith.truncf %175 : vector<16x64xf32> to vector<16x64xbf16>
    %c1_76 = arith.constant 1 : index
    %c0_77 = arith.constant 0 : index
    %c0_78 = arith.constant 0 : index
    %177 = vector.load %arg4[%c1_76, %c0_77, %c0_78] : memref<3x64x192xbf16, #tpu.memory_space<vmem>>, vector<1x64x192xbf16>
    %178 = vector.shape_cast %177 : vector<1x64x192xbf16> to vector<64x192xbf16>
    %cst_79 = arith.constant dense<0.000000e+00> : vector<16x192xf32>
    %179 = tpu.matmul %176, %178, %cst_79 {dimension_numbers = #tpu.dot_dimension_numbers<[1], [0], [0], [1], [0, 0, 1, 1], [], []>} : vector<16x64xbf16>, vector<64x192xbf16>, vector<16x192xf32> -> vector<16x192xf32>
    %180 = vector.extract_strided_slice %179 {offsets = [0, 0], sizes = [16, 8], strides = [1, 1]} : vector<16x192xf32> to vector<16x8xf32>
    %181 = vector.extract_strided_slice %179 {offsets = [0, 8], sizes = [16, 8], strides = [1, 1]} : vector<16x192xf32> to vector<16x8xf32>
    %182 = vector.extract_strided_slice %179 {offsets = [0, 16], sizes = [16, 8], strides = [1, 1]} : vector<16x192xf32> to vector<16x8xf32>
    %183 = vector.extract_strided_slice %179 {offsets = [0, 24], sizes = [16, 8], strides = [1, 1]} : vector<16x192xf32> to vector<16x8xf32>
    %184 = vector.extract_strided_slice %179 {offsets = [0, 32], sizes = [16, 8], strides = [1, 1]} : vector<16x192xf32> to vector<16x8xf32>
    %185 = vector.extract_strided_slice %179 {offsets = [0, 40], sizes = [16, 8], strides = [1, 1]} : vector<16x192xf32> to vector<16x8xf32>
    %186 = vector.extract_strided_slice %179 {offsets = [0, 48], sizes = [16, 8], strides = [1, 1]} : vector<16x192xf32> to vector<16x8xf32>
    %187 = vector.extract_strided_slice %179 {offsets = [0, 56], sizes = [16, 8], strides = [1, 1]} : vector<16x192xf32> to vector<16x8xf32>
    %188 = vector.shape_cast %180 : vector<16x8xf32> to vector<1x16x8xf32>
    %189 = vector.shape_cast %181 : vector<16x8xf32> to vector<1x16x8xf32>
    %190 = vector.shape_cast %182 : vector<16x8xf32> to vector<1x16x8xf32>
    %191 = vector.shape_cast %183 : vector<16x8xf32> to vector<1x16x8xf32>
    %192 = vector.shape_cast %184 : vector<16x8xf32> to vector<1x16x8xf32>
    %193 = vector.shape_cast %185 : vector<16x8xf32> to vector<1x16x8xf32>
    %194 = vector.shape_cast %186 : vector<16x8xf32> to vector<1x16x8xf32>
    %195 = vector.shape_cast %187 : vector<16x8xf32> to vector<1x16x8xf32>
    %196 = tpu.concatenate %188, %189, %190, %191, %192, %193, %194, %195 in 0 : vector<1x16x8xf32>, vector<1x16x8xf32>, vector<1x16x8xf32>, vector<1x16x8xf32>, vector<1x16x8xf32>, vector<1x16x8xf32>, vector<1x16x8xf32>, vector<1x16x8xf32> -> vector<8x16x8xf32>
    %197 = vector.extract_strided_slice %179 {offsets = [0, 64], sizes = [16, 128], strides = [1, 1]} : vector<16x192xf32> to vector<16x128xf32>
    %198 = tpu.transpose %197, [1, 0] : vector<16x128xf32> -> vector<128x16xf32>
    %199 = vector.shape_cast %198 : vector<128x16xf32> to vector<16x8x16xf32>
    %200 = vector.extract_strided_slice %199 {offsets = [0, 0, 0], sizes = [8, 8, 16], strides = [1, 1, 1]} : vector<16x8x16xf32> to vector<8x8x16xf32>
    %201 = vector.extract_strided_slice %199 {offsets = [8, 0, 0], sizes = [8, 8, 16], strides = [1, 1, 1]} : vector<16x8x16xf32> to vector<8x8x16xf32>
    "tpu.trace_start"() <{level = 10 : i32, message = "hid,hdj->hij"}> : () -> ()
    %cst_80 = arith.constant dense<0.000000e+00> : vector<8x16x16xf32>
    %202 = tpu.matmul %196, %200, %cst_80 {dimension_numbers = #tpu.dot_dimension_numbers<[2], [1], [1], [2], [0, 0, 0, 1, 1, 2], [0], [0]>} : vector<8x16x8xf32>, vector<8x8x16xf32>, vector<8x16x16xf32> -> vector<8x16x16xf32>
    "tpu.trace_stop"() : () -> ()
    %cst_81 = arith.constant 0.353553385 : f32
    %203 = vector.broadcast %cst_81 : f32 to vector<8x16x16xf32>
    %204 = arith.mulf %202, %203 : vector<8x16x16xf32>
    %205 = arith.select %6, %4, %204 : vector<8x16x16xi1>, vector<8x16x16xf32>
    %cst_82 = arith.constant dense<0xFF800000> : vector<8x16xf32>
    %206 = vector.multi_reduction <maximumf>, %205, %cst_82 [2] : vector<8x16x16xf32> to vector<8x16xf32>
    %207 = vector.shape_cast %206 : vector<8x16xf32> to vector<8x16x1xf32>
    %208 = vector.broadcast %207 : vector<8x16x1xf32> to vector<8x16x16xf32>
    %209 = arith.subf %205, %208 : vector<8x16x16xf32>
    %210 = math.exp %209 : vector<8x16x16xf32>
    %cst_83 = arith.constant dense<0.000000e+00> : vector<8x16xf32>
    %211 = vector.multi_reduction <add>, %210, %cst_83 [2] : vector<8x16x16xf32> to vector<8x16xf32>
    %212 = vector.shape_cast %211 : vector<8x16xf32> to vector<8x16x1xf32>
    %213 = tpu.reciprocal %212 {approx = true} : vector<8x16x1xf32> -> vector<8x16x1xf32>
    %214 = vector.broadcast %213 : vector<8x16x1xf32> to vector<8x16x16xf32>
    %215 = arith.mulf %210, %214 : vector<8x16x16xf32>
    "tpu.trace_start"() <{level = 10 : i32, message = "hdj,hij->hdi"}> : () -> ()
    %cst_84 = arith.constant dense<0.000000e+00> : vector<8x8x16xf32>
    %216 = tpu.matmul %201, %215, %cst_84 {dimension_numbers = #tpu.dot_dimension_numbers<[2], [2], [1], [1], [0, 0, 0, 1, 1, 1], [0], [0]>} : vector<8x8x16xf32>, vector<8x16x16xf32>, vector<8x8x16xf32> -> vector<8x8x16xf32>
    "tpu.trace_stop"() : () -> ()
    %217 = vector.shape_cast %216 : vector<8x8x16xf32> to vector<64x16xf32>
    %218 = tpu.transpose %217, [1, 0] : vector<64x16xf32> -> vector<16x64xf32>
    %219 = arith.truncf %218 : vector<16x64xf32> to vector<16x64xbf16>
    %c1_85 = arith.constant 1 : index
    %c0_86 = arith.constant 0 : index
    %c0_87 = arith.constant 0 : index
    %220 = vector.load %arg5[%c1_85, %c0_86, %c0_87] : memref<3x64x64xbf16, #tpu.memory_space<vmem>>, vector<1x64x64xbf16>
    %221 = vector.shape_cast %220 : vector<1x64x64xbf16> to vector<64x64xbf16>
    %cst_88 = arith.constant dense<0.000000e+00> : vector<16x64xf32>
    %222 = tpu.matmul %219, %221, %cst_88 {dimension_numbers = #tpu.dot_dimension_numbers<[1], [0], [0], [1], [0, 0, 1, 1], [], []>} : vector<16x64xbf16>, vector<64x64xbf16>, vector<16x64xf32> -> vector<16x64xf32>
    %223 = arith.addf %151, %222 : vector<16x64xf32>
    %c1_89 = arith.constant 1 : index
    %c0_90 = arith.constant 0 : index
    %c0_91 = arith.constant 0 : index
    %224 = vector.load %arg6[%c1_89, %c0_90, %c0_91] : memref<3x1x64xf32, #tpu.memory_space<vmem>>, vector<1x1x64xf32>
    %225 = vector.shape_cast %224 : vector<1x1x64xf32> to vector<1x64xf32>
    %c1_92 = arith.constant 1 : index
    %c0_93 = arith.constant 0 : index
    %c0_94 = arith.constant 0 : index
    %226 = vector.load %arg7[%c1_92, %c0_93, %c0_94] : memref<3x1x64xf32, #tpu.memory_space<vmem>>, vector<1x1x64xf32>
    %227 = vector.shape_cast %226 : vector<1x1x64xf32> to vector<1x64xf32>
    %cst_95 = arith.constant dense<0.000000e+00> : vector<16xf32>
    %228 = vector.multi_reduction <add>, %223, %cst_95 [1] : vector<16x64xf32> to vector<16xf32>
    %229 = vector.shape_cast %228 : vector<16xf32> to vector<16x1xf32>
    %cst_96 = arith.constant 6.400000e+01 : f32
    %230 = vector.broadcast %cst_96 : f32 to vector<16x1xf32>
    %231 = arith.divf %229, %230 : vector<16x1xf32>
    %232 = vector.broadcast %231 : vector<16x1xf32> to vector<16x64xf32>
    %233 = arith.subf %223, %232 : vector<16x64xf32>
    %234 = arith.mulf %233, %233 : vector<16x64xf32>
    %cst_97 = arith.constant dense<0.000000e+00> : vector<16xf32>
    %235 = vector.multi_reduction <add>, %234, %cst_97 [1] : vector<16x64xf32> to vector<16xf32>
    %236 = vector.shape_cast %235 : vector<16xf32> to vector<16x1xf32>
    %cst_98 = arith.constant 6.400000e+01 : f32
    %237 = vector.broadcast %cst_98 : f32 to vector<16x1xf32>
    %238 = arith.divf %236, %237 : vector<16x1xf32>
    %cst_99 = arith.constant 9.99999974E-6 : f32
    %239 = vector.broadcast %cst_99 : f32 to vector<16x1xf32>
    %240 = arith.addf %238, %239 : vector<16x1xf32>
    %241 = math.rsqrt %240 : vector<16x1xf32>
    %242 = vector.broadcast %241 : vector<16x1xf32> to vector<16x64xf32>
    %243 = arith.mulf %233, %242 : vector<16x64xf32>
    %244 = vector.broadcast %225 : vector<1x64xf32> to vector<16x64xf32>
    %245 = arith.mulf %243, %244 : vector<16x64xf32>
    %246 = vector.broadcast %227 : vector<1x64xf32> to vector<16x64xf32>
    %247 = arith.addf %245, %246 : vector<16x64xf32>
    %c1_100 = arith.constant 1 : index
    %c0_101 = arith.constant 0 : index
    %c0_102 = arith.constant 0 : index
    %248 = vector.load %arg8[%c1_100, %c0_101, %c0_102] : memref<3x1x64xf32, #tpu.memory_space<vmem>>, vector<1x1x64xf32>
    %249 = vector.shape_cast %248 : vector<1x1x64xf32> to vector<1x64xf32>
    %c1_103 = arith.constant 1 : index
    %c0_104 = arith.constant 0 : index
    %c0_105 = arith.constant 0 : index
    %250 = vector.load %arg9[%c1_103, %c0_104, %c0_105] : memref<3x1x64xf32, #tpu.memory_space<vmem>>, vector<1x1x64xf32>
    %251 = vector.shape_cast %250 : vector<1x1x64xf32> to vector<1x64xf32>
    %cst_106 = arith.constant dense<0.000000e+00> : vector<16xf32>
    %252 = vector.multi_reduction <add>, %247, %cst_106 [1] : vector<16x64xf32> to vector<16xf32>
    %253 = vector.shape_cast %252 : vector<16xf32> to vector<16x1xf32>
    %cst_107 = arith.constant 6.400000e+01 : f32
    %254 = vector.broadcast %cst_107 : f32 to vector<16x1xf32>
    %255 = arith.divf %253, %254 : vector<16x1xf32>
    %256 = vector.broadcast %255 : vector<16x1xf32> to vector<16x64xf32>
    %257 = arith.subf %247, %256 : vector<16x64xf32>
    %258 = arith.mulf %257, %257 : vector<16x64xf32>
    %cst_108 = arith.constant dense<0.000000e+00> : vector<16xf32>
    %259 = vector.multi_reduction <add>, %258, %cst_108 [1] : vector<16x64xf32> to vector<16xf32>
    %260 = vector.shape_cast %259 : vector<16xf32> to vector<16x1xf32>
    %cst_109 = arith.constant 6.400000e+01 : f32
    %261 = vector.broadcast %cst_109 : f32 to vector<16x1xf32>
    %262 = arith.divf %260, %261 : vector<16x1xf32>
    %cst_110 = arith.constant 9.99999974E-6 : f32
    %263 = vector.broadcast %cst_110 : f32 to vector<16x1xf32>
    %264 = arith.addf %262, %263 : vector<16x1xf32>
    %265 = math.rsqrt %264 : vector<16x1xf32>
    %266 = vector.broadcast %265 : vector<16x1xf32> to vector<16x64xf32>
    %267 = arith.mulf %257, %266 : vector<16x64xf32>
    %268 = vector.broadcast %249 : vector<1x64xf32> to vector<16x64xf32>
    %269 = arith.mulf %267, %268 : vector<16x64xf32>
    %270 = vector.broadcast %251 : vector<1x64xf32> to vector<16x64xf32>
    %271 = arith.addf %269, %270 : vector<16x64xf32>
    %272 = arith.truncf %271 : vector<16x64xf32> to vector<16x64xbf16>
    %c1_111 = arith.constant 1 : index
    %c0_112 = arith.constant 0 : index
    %c0_113 = arith.constant 0 : index
    %273 = vector.load %arg10[%c1_111, %c0_112, %c0_113] : memref<3x64x128xbf16, #tpu.memory_space<vmem>>, vector<1x64x128xbf16>
    %274 = vector.shape_cast %273 : vector<1x64x128xbf16> to vector<64x128xbf16>
    %cst_114 = arith.constant dense<0.000000e+00> : vector<16x128xf32>
    %275 = tpu.matmul %272, %274, %cst_114 {dimension_numbers = #tpu.dot_dimension_numbers<[1], [0], [0], [1], [0, 0, 1, 1], [], []>} : vector<16x64xbf16>, vector<64x128xbf16>, vector<16x128xf32> -> vector<16x128xf32>
    %c1_115 = arith.constant 1 : index
    %c0_116 = arith.constant 0 : index
    %c0_117 = arith.constant 0 : index
    %276 = vector.load %arg11[%c1_115, %c0_116, %c0_117] : memref<3x1x128xf32, #tpu.memory_space<vmem>>, vector<1x1x128xf32>
    %277 = vector.shape_cast %276 : vector<1x1x128xf32> to vector<1x128xf32>
    %278 = vector.broadcast %277 : vector<1x128xf32> to vector<16x128xf32>
    %279 = arith.addf %275, %278 : vector<16x128xf32>
    %cst_118 = arith.constant 5.000000e-01 : f32
    %280 = vector.broadcast %cst_118 : f32 to vector<16x128xf32>
    %281 = arith.mulf %279, %280 : vector<16x128xf32>
    %cst_119 = arith.constant 1.41421354 : f32
    %282 = vector.broadcast %cst_119 : f32 to vector<16x128xf32>
    %283 = arith.divf %279, %282 : vector<16x128xf32>
    %284 = math.erf %283 : vector<16x128xf32>
    %cst_120 = arith.constant 1.000000e+00 : f32
    %285 = vector.broadcast %cst_120 : f32 to vector<16x128xf32>
    %286 = arith.addf %285, %284 : vector<16x128xf32>
    %287 = arith.mulf %281, %286 : vector<16x128xf32>
    %288 = arith.truncf %287 : vector<16x128xf32> to vector<16x128xbf16>
    %c1_121 = arith.constant 1 : index
    %c0_122 = arith.constant 0 : index
    %c0_123 = arith.constant 0 : index
    %289 = vector.load %arg12[%c1_121, %c0_122, %c0_123] : memref<3x128x64xbf16, #tpu.memory_space<vmem>>, vector<1x128x64xbf16>
    %290 = vector.shape_cast %289 : vector<1x128x64xbf16> to vector<128x64xbf16>
    %cst_124 = arith.constant dense<0.000000e+00> : vector<16x64xf32>
    %291 = tpu.matmul %288, %290, %cst_124 {dimension_numbers = #tpu.dot_dimension_numbers<[1], [0], [0], [1], [0, 0, 1, 1], [], []>} : vector<16x128xbf16>, vector<128x64xbf16>, vector<16x64xf32> -> vector<16x64xf32>
    %c1_125 = arith.constant 1 : index
    %c0_126 = arith.constant 0 : index
    %c0_127 = arith.constant 0 : index
    %292 = vector.load %arg13[%c1_125, %c0_126, %c0_127] : memref<3x1x64xf32, #tpu.memory_space<vmem>>, vector<1x1x64xf32>
    %293 = vector.shape_cast %292 : vector<1x1x64xf32> to vector<1x64xf32>
    %294 = vector.broadcast %293 : vector<1x64xf32> to vector<16x64xf32>
    %295 = arith.addf %291, %294 : vector<16x64xf32>
    %296 = arith.addf %223, %295 : vector<16x64xf32>
    %c2 = arith.constant 2 : index
    %c0_128 = arith.constant 0 : index
    %c0_129 = arith.constant 0 : index
    %297 = vector.load %arg2[%c2, %c0_128, %c0_129] : memref<3x1x64xf32, #tpu.memory_space<vmem>>, vector<1x1x64xf32>
    %298 = vector.shape_cast %297 : vector<1x1x64xf32> to vector<1x64xf32>
    %c2_130 = arith.constant 2 : index
    %c0_131 = arith.constant 0 : index
    %c0_132 = arith.constant 0 : index
    %299 = vector.load %arg3[%c2_130, %c0_131, %c0_132] : memref<3x1x64xf32, #tpu.memory_space<vmem>>, vector<1x1x64xf32>
    %300 = vector.shape_cast %299 : vector<1x1x64xf32> to vector<1x64xf32>
    %cst_133 = arith.constant dense<0.000000e+00> : vector<16xf32>
    %301 = vector.multi_reduction <add>, %296, %cst_133 [1] : vector<16x64xf32> to vector<16xf32>
    %302 = vector.shape_cast %301 : vector<16xf32> to vector<16x1xf32>
    %cst_134 = arith.constant 6.400000e+01 : f32
    %303 = vector.broadcast %cst_134 : f32 to vector<16x1xf32>
    %304 = arith.divf %302, %303 : vector<16x1xf32>
    %305 = vector.broadcast %304 : vector<16x1xf32> to vector<16x64xf32>
    %306 = arith.subf %296, %305 : vector<16x64xf32>
    %307 = arith.mulf %306, %306 : vector<16x64xf32>
    %cst_135 = arith.constant dense<0.000000e+00> : vector<16xf32>
    %308 = vector.multi_reduction <add>, %307, %cst_135 [1] : vector<16x64xf32> to vector<16xf32>
    %309 = vector.shape_cast %308 : vector<16xf32> to vector<16x1xf32>
    %cst_136 = arith.constant 6.400000e+01 : f32
    %310 = vector.broadcast %cst_136 : f32 to vector<16x1xf32>
    %311 = arith.divf %309, %310 : vector<16x1xf32>
    %cst_137 = arith.constant 9.99999974E-6 : f32
    %312 = vector.broadcast %cst_137 : f32 to vector<16x1xf32>
    %313 = arith.addf %311, %312 : vector<16x1xf32>
    %314 = math.rsqrt %313 : vector<16x1xf32>
    %315 = vector.broadcast %314 : vector<16x1xf32> to vector<16x64xf32>
    %316 = arith.mulf %306, %315 : vector<16x64xf32>
    %317 = vector.broadcast %298 : vector<1x64xf32> to vector<16x64xf32>
    %318 = arith.mulf %316, %317 : vector<16x64xf32>
    %319 = vector.broadcast %300 : vector<1x64xf32> to vector<16x64xf32>
    %320 = arith.addf %318, %319 : vector<16x64xf32>
    %321 = arith.truncf %320 : vector<16x64xf32> to vector<16x64xbf16>
    %c2_138 = arith.constant 2 : index
    %c0_139 = arith.constant 0 : index
    %c0_140 = arith.constant 0 : index
    %322 = vector.load %arg4[%c2_138, %c0_139, %c0_140] : memref<3x64x192xbf16, #tpu.memory_space<vmem>>, vector<1x64x192xbf16>
    %323 = vector.shape_cast %322 : vector<1x64x192xbf16> to vector<64x192xbf16>
    %cst_141 = arith.constant dense<0.000000e+00> : vector<16x192xf32>
    %324 = tpu.matmul %321, %323, %cst_141 {dimension_numbers = #tpu.dot_dimension_numbers<[1], [0], [0], [1], [0, 0, 1, 1], [], []>} : vector<16x64xbf16>, vector<64x192xbf16>, vector<16x192xf32> -> vector<16x192xf32>
    %325 = vector.extract_strided_slice %324 {offsets = [0, 0], sizes = [16, 8], strides = [1, 1]} : vector<16x192xf32> to vector<16x8xf32>
    %326 = vector.extract_strided_slice %324 {offsets = [0, 8], sizes = [16, 8], strides = [1, 1]} : vector<16x192xf32> to vector<16x8xf32>
    %327 = vector.extract_strided_slice %324 {offsets = [0, 16], sizes = [16, 8], strides = [1, 1]} : vector<16x192xf32> to vector<16x8xf32>
    %328 = vector.extract_strided_slice %324 {offsets = [0, 24], sizes = [16, 8], strides = [1, 1]} : vector<16x192xf32> to vector<16x8xf32>
    %329 = vector.extract_strided_slice %324 {offsets = [0, 32], sizes = [16, 8], strides = [1, 1]} : vector<16x192xf32> to vector<16x8xf32>
    %330 = vector.extract_strided_slice %324 {offsets = [0, 40], sizes = [16, 8], strides = [1, 1]} : vector<16x192xf32> to vector<16x8xf32>
    %331 = vector.extract_strided_slice %324 {offsets = [0, 48], sizes = [16, 8], strides = [1, 1]} : vector<16x192xf32> to vector<16x8xf32>
    %332 = vector.extract_strided_slice %324 {offsets = [0, 56], sizes = [16, 8], strides = [1, 1]} : vector<16x192xf32> to vector<16x8xf32>
    %333 = vector.shape_cast %325 : vector<16x8xf32> to vector<1x16x8xf32>
    %334 = vector.shape_cast %326 : vector<16x8xf32> to vector<1x16x8xf32>
    %335 = vector.shape_cast %327 : vector<16x8xf32> to vector<1x16x8xf32>
    %336 = vector.shape_cast %328 : vector<16x8xf32> to vector<1x16x8xf32>
    %337 = vector.shape_cast %329 : vector<16x8xf32> to vector<1x16x8xf32>
    %338 = vector.shape_cast %330 : vector<16x8xf32> to vector<1x16x8xf32>
    %339 = vector.shape_cast %331 : vector<16x8xf32> to vector<1x16x8xf32>
    %340 = vector.shape_cast %332 : vector<16x8xf32> to vector<1x16x8xf32>
    %341 = tpu.concatenate %333, %334, %335, %336, %337, %338, %339, %340 in 0 : vector<1x16x8xf32>, vector<1x16x8xf32>, vector<1x16x8xf32>, vector<1x16x8xf32>, vector<1x16x8xf32>, vector<1x16x8xf32>, vector<1x16x8xf32>, vector<1x16x8xf32> -> vector<8x16x8xf32>
    %342 = vector.extract_strided_slice %324 {offsets = [0, 64], sizes = [16, 128], strides = [1, 1]} : vector<16x192xf32> to vector<16x128xf32>
    %343 = tpu.transpose %342, [1, 0] : vector<16x128xf32> -> vector<128x16xf32>
    %344 = vector.shape_cast %343 : vector<128x16xf32> to vector<16x8x16xf32>
    %345 = vector.extract_strided_slice %344 {offsets = [0, 0, 0], sizes = [8, 8, 16], strides = [1, 1, 1]} : vector<16x8x16xf32> to vector<8x8x16xf32>
    %346 = vector.extract_strided_slice %344 {offsets = [8, 0, 0], sizes = [8, 8, 16], strides = [1, 1, 1]} : vector<16x8x16xf32> to vector<8x8x16xf32>
    "tpu.trace_start"() <{level = 10 : i32, message = "hid,hdj->hij"}> : () -> ()
    %cst_142 = arith.constant dense<0.000000e+00> : vector<8x16x16xf32>
    %347 = tpu.matmul %341, %345, %cst_142 {dimension_numbers = #tpu.dot_dimension_numbers<[2], [1], [1], [2], [0, 0, 0, 1, 1, 2], [0], [0]>} : vector<8x16x8xf32>, vector<8x8x16xf32>, vector<8x16x16xf32> -> vector<8x16x16xf32>
    "tpu.trace_stop"() : () -> ()
    %cst_143 = arith.constant 0.353553385 : f32
    %348 = vector.broadcast %cst_143 : f32 to vector<8x16x16xf32>
    %349 = arith.mulf %347, %348 : vector<8x16x16xf32>
    %350 = arith.select %6, %4, %349 : vector<8x16x16xi1>, vector<8x16x16xf32>
    %cst_144 = arith.constant dense<0xFF800000> : vector<8x16xf32>
    %351 = vector.multi_reduction <maximumf>, %350, %cst_144 [2] : vector<8x16x16xf32> to vector<8x16xf32>
    %352 = vector.shape_cast %351 : vector<8x16xf32> to vector<8x16x1xf32>
    %353 = vector.broadcast %352 : vector<8x16x1xf32> to vector<8x16x16xf32>
    %354 = arith.subf %350, %353 : vector<8x16x16xf32>
    %355 = math.exp %354 : vector<8x16x16xf32>
    %cst_145 = arith.constant dense<0.000000e+00> : vector<8x16xf32>
    %356 = vector.multi_reduction <add>, %355, %cst_145 [2] : vector<8x16x16xf32> to vector<8x16xf32>
    %357 = vector.shape_cast %356 : vector<8x16xf32> to vector<8x16x1xf32>
    %358 = tpu.reciprocal %357 {approx = true} : vector<8x16x1xf32> -> vector<8x16x1xf32>
    %359 = vector.broadcast %358 : vector<8x16x1xf32> to vector<8x16x16xf32>
    %360 = arith.mulf %355, %359 : vector<8x16x16xf32>
    "tpu.trace_start"() <{level = 10 : i32, message = "hdj,hij->hdi"}> : () -> ()
    %cst_146 = arith.constant dense<0.000000e+00> : vector<8x8x16xf32>
    %361 = tpu.matmul %346, %360, %cst_146 {dimension_numbers = #tpu.dot_dimension_numbers<[2], [2], [1], [1], [0, 0, 0, 1, 1, 1], [0], [0]>} : vector<8x8x16xf32>, vector<8x16x16xf32>, vector<8x8x16xf32> -> vector<8x8x16xf32>
    "tpu.trace_stop"() : () -> ()
    %362 = vector.shape_cast %361 : vector<8x8x16xf32> to vector<64x16xf32>
    %363 = tpu.transpose %362, [1, 0] : vector<64x16xf32> -> vector<16x64xf32>
    %364 = arith.truncf %363 : vector<16x64xf32> to vector<16x64xbf16>
    %c2_147 = arith.constant 2 : index
    %c0_148 = arith.constant 0 : index
    %c0_149 = arith.constant 0 : index
    %365 = vector.load %arg5[%c2_147, %c0_148, %c0_149] : memref<3x64x64xbf16, #tpu.memory_space<vmem>>, vector<1x64x64xbf16>
    %366 = vector.shape_cast %365 : vector<1x64x64xbf16> to vector<64x64xbf16>
    %cst_150 = arith.constant dense<0.000000e+00> : vector<16x64xf32>
    %367 = tpu.matmul %364, %366, %cst_150 {dimension_numbers = #tpu.dot_dimension_numbers<[1], [0], [0], [1], [0, 0, 1, 1], [], []>} : vector<16x64xbf16>, vector<64x64xbf16>, vector<16x64xf32> -> vector<16x64xf32>
    %368 = arith.addf %296, %367 : vector<16x64xf32>
    %c2_151 = arith.constant 2 : index
    %c0_152 = arith.constant 0 : index
    %c0_153 = arith.constant 0 : index
    %369 = vector.load %arg6[%c2_151, %c0_152, %c0_153] : memref<3x1x64xf32, #tpu.memory_space<vmem>>, vector<1x1x64xf32>
    %370 = vector.shape_cast %369 : vector<1x1x64xf32> to vector<1x64xf32>
    %c2_154 = arith.constant 2 : index
    %c0_155 = arith.constant 0 : index
    %c0_156 = arith.constant 0 : index
    %371 = vector.load %arg7[%c2_154, %c0_155, %c0_156] : memref<3x1x64xf32, #tpu.memory_space<vmem>>, vector<1x1x64xf32>
    %372 = vector.shape_cast %371 : vector<1x1x64xf32> to vector<1x64xf32>
    %cst_157 = arith.constant dense<0.000000e+00> : vector<16xf32>
    %373 = vector.multi_reduction <add>, %368, %cst_157 [1] : vector<16x64xf32> to vector<16xf32>
    %374 = vector.shape_cast %373 : vector<16xf32> to vector<16x1xf32>
    %cst_158 = arith.constant 6.400000e+01 : f32
    %375 = vector.broadcast %cst_158 : f32 to vector<16x1xf32>
    %376 = arith.divf %374, %375 : vector<16x1xf32>
    %377 = vector.broadcast %376 : vector<16x1xf32> to vector<16x64xf32>
    %378 = arith.subf %368, %377 : vector<16x64xf32>
    %379 = arith.mulf %378, %378 : vector<16x64xf32>
    %cst_159 = arith.constant dense<0.000000e+00> : vector<16xf32>
    %380 = vector.multi_reduction <add>, %379, %cst_159 [1] : vector<16x64xf32> to vector<16xf32>
    %381 = vector.shape_cast %380 : vector<16xf32> to vector<16x1xf32>
    %cst_160 = arith.constant 6.400000e+01 : f32
    %382 = vector.broadcast %cst_160 : f32 to vector<16x1xf32>
    %383 = arith.divf %381, %382 : vector<16x1xf32>
    %cst_161 = arith.constant 9.99999974E-6 : f32
    %384 = vector.broadcast %cst_161 : f32 to vector<16x1xf32>
    %385 = arith.addf %383, %384 : vector<16x1xf32>
    %386 = math.rsqrt %385 : vector<16x1xf32>
    %387 = vector.broadcast %386 : vector<16x1xf32> to vector<16x64xf32>
    %388 = arith.mulf %378, %387 : vector<16x64xf32>
    %389 = vector.broadcast %370 : vector<1x64xf32> to vector<16x64xf32>
    %390 = arith.mulf %388, %389 : vector<16x64xf32>
    %391 = vector.broadcast %372 : vector<1x64xf32> to vector<16x64xf32>
    %392 = arith.addf %390, %391 : vector<16x64xf32>
    %c2_162 = arith.constant 2 : index
    %c0_163 = arith.constant 0 : index
    %c0_164 = arith.constant 0 : index
    %393 = vector.load %arg8[%c2_162, %c0_163, %c0_164] : memref<3x1x64xf32, #tpu.memory_space<vmem>>, vector<1x1x64xf32>
    %394 = vector.shape_cast %393 : vector<1x1x64xf32> to vector<1x64xf32>
    %c2_165 = arith.constant 2 : index
    %c0_166 = arith.constant 0 : index
    %c0_167 = arith.constant 0 : index
    %395 = vector.load %arg9[%c2_165, %c0_166, %c0_167] : memref<3x1x64xf32, #tpu.memory_space<vmem>>, vector<1x1x64xf32>
    %396 = vector.shape_cast %395 : vector<1x1x64xf32> to vector<1x64xf32>
    %cst_168 = arith.constant dense<0.000000e+00> : vector<16xf32>
    %397 = vector.multi_reduction <add>, %392, %cst_168 [1] : vector<16x64xf32> to vector<16xf32>
    %398 = vector.shape_cast %397 : vector<16xf32> to vector<16x1xf32>
    %cst_169 = arith.constant 6.400000e+01 : f32
    %399 = vector.broadcast %cst_169 : f32 to vector<16x1xf32>
    %400 = arith.divf %398, %399 : vector<16x1xf32>
    %401 = vector.broadcast %400 : vector<16x1xf32> to vector<16x64xf32>
    %402 = arith.subf %392, %401 : vector<16x64xf32>
    %403 = arith.mulf %402, %402 : vector<16x64xf32>
    %cst_170 = arith.constant dense<0.000000e+00> : vector<16xf32>
    %404 = vector.multi_reduction <add>, %403, %cst_170 [1] : vector<16x64xf32> to vector<16xf32>
    %405 = vector.shape_cast %404 : vector<16xf32> to vector<16x1xf32>
    %cst_171 = arith.constant 6.400000e+01 : f32
    %406 = vector.broadcast %cst_171 : f32 to vector<16x1xf32>
    %407 = arith.divf %405, %406 : vector<16x1xf32>
    %cst_172 = arith.constant 9.99999974E-6 : f32
    %408 = vector.broadcast %cst_172 : f32 to vector<16x1xf32>
    %409 = arith.addf %407, %408 : vector<16x1xf32>
    %410 = math.rsqrt %409 : vector<16x1xf32>
    %411 = vector.broadcast %410 : vector<16x1xf32> to vector<16x64xf32>
    %412 = arith.mulf %402, %411 : vector<16x64xf32>
    %413 = vector.broadcast %394 : vector<1x64xf32> to vector<16x64xf32>
    %414 = arith.mulf %412, %413 : vector<16x64xf32>
    %415 = vector.broadcast %396 : vector<1x64xf32> to vector<16x64xf32>
    %416 = arith.addf %414, %415 : vector<16x64xf32>
    %417 = arith.truncf %416 : vector<16x64xf32> to vector<16x64xbf16>
    %c2_173 = arith.constant 2 : index
    %c0_174 = arith.constant 0 : index
    %c0_175 = arith.constant 0 : index
    %418 = vector.load %arg10[%c2_173, %c0_174, %c0_175] : memref<3x64x128xbf16, #tpu.memory_space<vmem>>, vector<1x64x128xbf16>
    %419 = vector.shape_cast %418 : vector<1x64x128xbf16> to vector<64x128xbf16>
    %cst_176 = arith.constant dense<0.000000e+00> : vector<16x128xf32>
    %420 = tpu.matmul %417, %419, %cst_176 {dimension_numbers = #tpu.dot_dimension_numbers<[1], [0], [0], [1], [0, 0, 1, 1], [], []>} : vector<16x64xbf16>, vector<64x128xbf16>, vector<16x128xf32> -> vector<16x128xf32>
    %c2_177 = arith.constant 2 : index
    %c0_178 = arith.constant 0 : index
    %c0_179 = arith.constant 0 : index
    %421 = vector.load %arg11[%c2_177, %c0_178, %c0_179] : memref<3x1x128xf32, #tpu.memory_space<vmem>>, vector<1x1x128xf32>
    %422 = vector.shape_cast %421 : vector<1x1x128xf32> to vector<1x128xf32>
    %423 = vector.broadcast %422 : vector<1x128xf32> to vector<16x128xf32>
    %424 = arith.addf %420, %423 : vector<16x128xf32>
    %cst_180 = arith.constant 5.000000e-01 : f32
    %425 = vector.broadcast %cst_180 : f32 to vector<16x128xf32>
    %426 = arith.mulf %424, %425 : vector<16x128xf32>
    %cst_181 = arith.constant 1.41421354 : f32
    %427 = vector.broadcast %cst_181 : f32 to vector<16x128xf32>
    %428 = arith.divf %424, %427 : vector<16x128xf32>
    %429 = math.erf %428 : vector<16x128xf32>
    %cst_182 = arith.constant 1.000000e+00 : f32
    %430 = vector.broadcast %cst_182 : f32 to vector<16x128xf32>
    %431 = arith.addf %430, %429 : vector<16x128xf32>
    %432 = arith.mulf %426, %431 : vector<16x128xf32>
    %433 = arith.truncf %432 : vector<16x128xf32> to vector<16x128xbf16>
    %c2_183 = arith.constant 2 : index
    %c0_184 = arith.constant 0 : index
    %c0_185 = arith.constant 0 : index
    %434 = vector.load %arg12[%c2_183, %c0_184, %c0_185] : memref<3x128x64xbf16, #tpu.memory_space<vmem>>, vector<1x128x64xbf16>
    %435 = vector.shape_cast %434 : vector<1x128x64xbf16> to vector<128x64xbf16>
    %cst_186 = arith.constant dense<0.000000e+00> : vector<16x64xf32>
    %436 = tpu.matmul %433, %435, %cst_186 {dimension_numbers = #tpu.dot_dimension_numbers<[1], [0], [0], [1], [0, 0, 1, 1], [], []>} : vector<16x128xbf16>, vector<128x64xbf16>, vector<16x64xf32> -> vector<16x64xf32>
    %c2_187 = arith.constant 2 : index
    %c0_188 = arith.constant 0 : index
    %c0_189 = arith.constant 0 : index
    %437 = vector.load %arg13[%c2_187, %c0_188, %c0_189] : memref<3x1x64xf32, #tpu.memory_space<vmem>>, vector<1x1x64xf32>
    %438 = vector.shape_cast %437 : vector<1x1x64xf32> to vector<1x64xf32>
    %439 = vector.broadcast %438 : vector<1x64xf32> to vector<16x64xf32>
    %440 = arith.addf %436, %439 : vector<16x64xf32>
    %441 = arith.addf %368, %440 : vector<16x64xf32>
    %c0_190 = arith.constant 0 : index
    %c0_191 = arith.constant 0 : index
    %442 = vector.load %arg14[%c0_190, %c0_191] : memref<16x64xf32, #tpu.memory_space<vmem>>, vector<16x64xf32>
    tpu.vector_store %arg14[%c0_190, %c0_191], %441 {strides = array<i32>} : memref<16x64xf32, #tpu.memory_space<vmem>>, vector<16x64xf32>,
    return
  }
}

</mosaic_0001>

<llo_original>
// kernel: stacked_encoder.1
$region0: #{stacked_encoder.1}
  #allocation0 [shape = 'u32[]', space=smem, size = 0x4, offset = 0x4, fixed_abs, tag = 'smem constant byte address 0x4 - core index']
  #allocation1 [shape = 'u32[144,128]{1,0:T(1,128)}', space=vmem, size = 0x12000, scoped, tag = 'internal scratch']
  %s0 = inlined_call_operand.vmem [shape: f32[16,64], index: 0, kind: input, shape index: {}]
  %s1 = inlined_call_operand.vmem [shape: f32[16,16], index: 1, kind: input, shape index: {}]
  %s2 = inlined_call_operand.vmem [shape: f32[3,1,64], index: 2, kind: input, shape index: {}]
  %s3 = inlined_call_operand.vmem [shape: f32[3,1,64], index: 3, kind: input, shape index: {}]
  %s4 = inlined_call_operand.vmem [shape: bf16[3,64,192], index: 4, kind: input, shape index: {}]
  %s5 = inlined_call_operand.vmem [shape: bf16[3,64,64], index: 5, kind: input, shape index: {}]
  %s6 = inlined_call_operand.vmem [shape: f32[3,1,64], index: 6, kind: input, shape index: {}]
  %s7 = inlined_call_operand.vmem [shape: f32[3,1,64], index: 7, kind: input, shape index: {}]
  %s8 = inlined_call_operand.vmem [shape: f32[3,1,64], index: 8, kind: input, shape index: {}]
  %s9 = inlined_call_operand.vmem [shape: f32[3,1,64], index: 9, kind: input, shape index: {}]
  %s10 = inlined_call_operand.hbm [shape: bf16[3,64,128], index: 10, kind: input, shape index: {}]
  %s11 = inlined_call_operand.vmem [shape: f32[3,1,128], index: 11, kind: input, shape index: {}]
  %s12 = inlined_call_operand.vmem [shape: bf16[3,128,64], index: 12, kind: input, shape index: {}]
  %s13 = inlined_call_operand.vmem [shape: f32[3,1,64], index: 13, kind: input, shape index: {}]
  %s14 = inlined_call_operand.hbm [shape: f32[16,64], index: 14, kind: output, shape index: {}]
  %s15 = sld [smem:[#allocation0]]
  $region70: #{stacked_encoder.1} parent=0
    _
  %s17 = ssub.s32 1, %s15
  %s18 = scalar_select 0, %s17, %s15
  $region1: #{stacked_encoder.1} parent=0
    #allocation2 [shape = 'u8[49152]{0}', space=vmem, size = 0xc000, scoped, tag = 'input window, operand 10, single buffered']
    #allocation3 [shape = 's32[1]{0}', space=sflag, size = 0x4, scoped, tag = 'scoped memory for stacked_encoder.1']
    #allocation4 [shape = 's32[1]{0}', space=sflag, size = 0x4, scoped, tag = 'scoped memory for stacked_encoder.1']
    #allocation5 [shape = 'u8[8192]{0}', space=vmem, size = 0x2000, scoped, tag = 'output window, operand 0, single buffered']
    %19 = vsyncpa [#allocation3], 0
    %20 = vsyncpa [#allocation4], 0
    // Predicated region
    $region2: #{stacked_encoder.1} parent=1 // pred_check
      _
    $region3: #{stacked_encoder.1} parent=1 // pred_check_branch
      %22 = sbr.rel (0) target = $region5
    $region4: #{stacked_encoder.1} parent=1 // pred_region
      _
    $region5: #{stacked_encoder.1} parent=1 // pred_fallthru
      _
    // Predicated region
    $region6: #{stacked_encoder.1} parent=1 // pred_check
      _
    $region7: #{stacked_encoder.1} parent=1 // pred_check_branch
      %24 = sbr.rel (0) target = $region9
    $region8: #{stacked_encoder.1} parent=1 // pred_region
      _
    $region9: #{stacked_encoder.1} parent=1 // pred_fallthru
      _
    // Predicated region
    $region10: #{stacked_encoder.1} parent=1 // pred_check
      _
    $region11: #{stacked_encoder.1} parent=1 // pred_check_branch
      %26 = sbr.rel (0) target = $region13
    $region12: #{stacked_encoder.1} parent=1 // pred_region
      _
    $region13: #{stacked_encoder.1} parent=1 // pred_fallthru
      _
    // Predicated region
    $region14: #{stacked_encoder.1} parent=1 // pred_check
      _
    $region15: #{stacked_encoder.1} parent=1 // pred_check_branch
      %28 = sbr.rel (0) target = $region17
    $region16: #{stacked_encoder.1} parent=1 // pred_region
      _
    $region17: #{stacked_encoder.1} parent=1 // pred_fallthru
      _
    // Predicated region
    $region18: #{stacked_encoder.1} parent=1 // pred_check
      _
    $region19: #{stacked_encoder.1} parent=1 // pred_check_branch
      %30 = sbr.rel (0) target = $region21
    $region20: #{stacked_encoder.1} parent=1 // pred_region
      _
    $region21: #{stacked_encoder.1} parent=1 // pred_fallthru
      _
    // Predicated region
    $region22: #{stacked_encoder.1} parent=1 // pred_check
      _
    $region23: #{stacked_encoder.1} parent=1 // pred_check_branch
      %32 = sbr.rel (0) target = $region25
    $region24: #{stacked_encoder.1} parent=1 // pred_region
      _
    $region25: #{stacked_encoder.1} parent=1 // pred_fallthru
      _
    // Predicated region
    $region26: #{stacked_encoder.1} parent=1 // pred_check
      _
    $region27: #{stacked_encoder.1} parent=1 // pred_check_branch
      %34 = sbr.rel (0) target = $region29
    $region28: #{stacked_encoder.1} parent=1 // pred_region
      _
    $region29: #{stacked_encoder.1} parent=1 // pred_fallthru
      _
    // Predicated region
    $region30: #{stacked_encoder.1} parent=1 // pred_check
      _
    $region31: #{stacked_encoder.1} parent=1 // pred_check_branch
      %36 = sbr.rel (0) target = $region33
    $region32: #{stacked_encoder.1} parent=1 // pred_region
      _
    $region33: #{stacked_encoder.1} parent=1 // pred_fallthru
      _
    // Predicated region
    $region34: #{stacked_encoder.1} parent=1 // pred_check
      _
    $region35: #{stacked_encoder.1} parent=1 // pred_check_branch
      %38 = sbr.rel (0) target = $region37
    $region36: #{stacked_encoder.1} parent=1 // pred_region
      _
    $region37: #{stacked_encoder.1} parent=1 // pred_fallthru
      _
    // Predicated region
    $region38: #{stacked_encoder.1} parent=1 // pred_check
      _
    $region39: #{stacked_encoder.1} parent=1 // pred_check_branch
      %40 = sbr.rel (0) target = $region41
    $region40: #{stacked_encoder.1} parent=1 // pred_region
      _
    $region41: #{stacked_encoder.1} parent=1 // pred_fallthru
      _
    // Predicated region
    $region42: #{stacked_encoder.1} parent=1 // pred_check
      _
    $region43: #{stacked_encoder.1} parent=1 // pred_check_branch
      %42 = sbr.rel (0) target = $region45
    $region44: #{stacked_encoder.1} parent=1 // pred_region
      %s44 = ssub.s32 1536, 1536
      %45 = vsyncadd [#allocation3], %s44
      %s46 = sshll.u32 [#allocation2], 4
      %s47 = int_to_ptr.vmem [resolvable:$true] %s46
      %52 = dma.hbm_to_vmem [thread:$0]  %s10, 1536, %s47, [#allocation3], 64, 64, 4
    $region45: #{stacked_encoder.1} parent=1 // pred_fallthru
      _
    // Predicated region
    $region46: #{stacked_encoder.1} parent=1 // pred_check
      _
    $region47: #{stacked_encoder.1} parent=1 // pred_check_branch
      %54 = sbr.rel (0) target = $region49
    $region48: #{stacked_encoder.1} parent=1 // pred_region
      _
    $region49: #{stacked_encoder.1} parent=1 // pred_fallthru
      _
    // Predicated region
    $region50: #{stacked_encoder.1} parent=1 // pred_check
      _
    $region51: #{stacked_encoder.1} parent=1 // pred_check_branch
      %56 = sbr.rel (0) target = $region53
    $region52: #{stacked_encoder.1} parent=1 // pred_region
      _
    $region53: #{stacked_encoder.1} parent=1 // pred_fallthru
      _
    // Predicated region
    $region54: #{stacked_encoder.1} parent=1 // pred_check
      _
    $region55: #{stacked_encoder.1} parent=1 // pred_check_branch
      %58 = sbr.rel (0) target = $region57
    $region56: #{stacked_encoder.1} parent=1 // pred_region
      _
    $region57: #{stacked_encoder.1} parent=1 // pred_fallthru
      _
    // Predicated region
    $region58: #{stacked_encoder.1} parent=1 // pred_check
      _
    $region59: #{stacked_encoder.1} parent=1 // pred_check_branch
      %60 = sbr.rel (0) target = $region61
    $region60: #{stacked_encoder.1} parent=1 // pred_region
      %61 = dma.done [#allocation3], 1536
    $region61: #{stacked_encoder.1} parent=1 // pred_fallthru
      _
    %v63 = vld [vmem:[%s0] sm:$0xff]
    %v64 = vld [vmem:[%s0 + $0x8] sm:$0xff]
    %v65 = vld [vmem:[%s1] sm:$0xff]
    %v66 = vld [vmem:[%s1 + $0x8] sm:$0xff]
    %vm67 = vcmp.lt.f32.partialorder %v65, -0.5
    %vm68 = vcmp.lt.f32.partialorder %v66, -0.5
    %v69 = vld [vmem:[%s2] sm:$0x1]
    %v70 = vld [vmem:[%s3] sm:$0x1]
    %vm71 = vcmask 523264
    %v72 = vsel %vm71, %v63, 0.0
    %73 = vadd.xlane.f32.xlu0 %v72
    %v74 = vpop.xlane.xlu0 %73
    %v75 = vsel %vm71, %v64, 0.0
    %76 = vadd.xlane.f32.xlu0 %v75
    %v77 = vpop.xlane.xlu0 %76
    %v78 = vrcp.pop 64.0
    %v79 = vmul.f32 %v74, %v78
    %v80 = vmul.f32 %v77, %v78
    %v81 = vsub.f32 %v63, %v79
    %v82 = vsub.f32 %v64, %v80
    %v83 = vmul.f32 %v81, %v81
    %v84 = vmul.f32 %v82, %v82
    %v85 = vsel %vm71, %v83, 0.0
    %86 = vadd.xlane.f32.xlu0 %v85
    %v87 = vpop.xlane.xlu0 %86
    %v88 = vsel %vm71, %v84, 0.0
    %89 = vadd.xlane.f32.xlu0 %v88
    %v90 = vpop.xlane.xlu0 %89
    %v91 = vmul.f32 %v87, %v78
    %v92 = vmul.f32 %v90, %v78
    %v93 = vadd.f32 %v91, 1e-05
    %v94 = vadd.f32 %v92, 1e-05
    %v95 = vrsqrt.pop %v93
    %v96 = vrsqrt.pop %v94
    %v97 = vmul.f32 %v81, %v95
    %v98 = vmul.f32 %v82, %v96
    %v100 = vlaneseq
    %v101 = vshrl.u32 %v100, 7
    %v102 = vsub.s32 0, %v101
    %v103 = vrot.slane %v69, %v102
    %v105 = vmul.f32 %v97, %v103
    %v106 = vmul.f32 %v98, %v103
    %v108 = vlaneseq
    %v109 = vshrl.u32 %v108, 7
    %v110 = vsub.s32 0, %v109
    %v111 = vrot.slane %v70, %v110
    %v113 = vadd.f32 %v105, %v111
    %v114 = vadd.f32 %v106, %v111
    %v115 = vpack.c.bf16 %v114, %v113
    %v116 = vld [vmem:[%s4] sm:$0xff]
    %v117 = vld [vmem:[%s4 + $0x8] sm:$0xff]
    %v118 = vld [vmem:[%s4 + $0x10] sm:$0xff]
    %v119 = vld [vmem:[%s4 + $0x18] sm:$0xff]
    %v120 = vld [vmem:[%s4 + $0x20] sm:$0xff]
    %v121 = vld [vmem:[%s4 + $0x28] sm:$0xff]
    %v122 = vld [vmem:[%s4 + $0x30] sm:$0xff]
    %v123 = vld [vmem:[%s4 + $0x38] sm:$0xff]
    %v132 = vunpack.c.l.b16 %v116
    %v133 = vunpack.c.h.b16 %v116
    %v134 = vunpack.c.l.b16 %v117
    %v135 = vunpack.c.h.b16 %v117
    %v136 = vunpack.c.l.b16 %v118
    %v137 = vunpack.c.h.b16 %v118
    %v138 = vunpack.c.l.b16 %v119
    %v139 = vunpack.c.h.b16 %v119
    %v140 = vunpack.c.l.b16 %v120
    %v141 = vunpack.c.h.b16 %v120
    %v142 = vunpack.c.l.b16 %v121
    %v143 = vunpack.c.h.b16 %v121
    %v144 = vunpack.c.l.b16 %v122
    %v145 = vunpack.c.h.b16 %v122
    %v146 = vunpack.c.l.b16 %v123
    %v147 = vunpack.c.h.b16 %v123
    %v148 = vpack.c.b16 %v134, %v132
    %v149 = vpack.c.b16 %v135, %v133
    %v150 = vpack.c.b16 %v138, %v136
    %v151 = vpack.c.b16 %v139, %v137
    %v152 = vpack.c.b16 %v142, %v140
    %v153 = vpack.c.b16 %v143, %v141
    %v154 = vpack.c.b16 %v146, %v144
    %v155 = vpack.c.b16 %v147, %v145
    %v165 = vsel %vm71, %v115, 0
    %167 = vmatprep.subr.bf16.mxu0 0
    %168 = vmatpush1.bf16.msra.mxu0 0
    %169 = vmatprep.subr.bf16.mxu0 0
    %170 = vmatpush1.bf16.msra.mxu0 0
    %171 = vmatprep.subr.bf16.mxu0 0
    %172 = vmatpush1.bf16.msra.mxu0 0
    %173 = vmatprep.subr.bf16.mxu0 0
    %174 = vmatpush1.bf16.msra.mxu0 0
    %175 = vmatprep.subr.bf16.mxu0 %v155
    %176 = vmatpush1.bf16.msra.mxu0 %v154
    %177 = vmatprep.subr.bf16.mxu0 %v153
    %178 = vmatpush1.bf16.msra.mxu0 %v152
    %179 = vmatprep.subr.bf16.mxu0 %v151
    %180 = vmatpush1.bf16.msra.mxu0 %v150
    %181 = vmatprep.subr.bf16.mxu0 %v149
    %182 = vmatpush1.bf16.msra.mxu0 %v148
    %183 = vmatprep.subr.bf16.mxu0 0
    %184 = vmatpush2.bf16.msra.mxu0 0
    %185 = vmatprep.subr.bf16.mxu0 0
    %186 = vmatpush2.bf16.msra.mxu0 0
    %187 = vmatprep.subr.bf16.mxu0 0
    %188 = vmatpush2.bf16.msra.mxu0 0
    %189 = vmatprep.subr.bf16.mxu0 0
    %190 = vmatpush2.bf16.msra.mxu0 0
    %191 = vmatprep.subr.bf16.mxu0 0
    %192 = vmatpush2.bf16.msra.mxu0 0
    %193 = vmatprep.subr.bf16.mxu0 0
    %194 = vmatpush2.bf16.msra.mxu0 0
    %195 = vmatprep.subr.bf16.mxu0 0
    %196 = vmatpush2.bf16.msra.mxu0 0
    %197 = vmatprep.subr.bf16.mxu0 0
    %198 = vmatpush2.bf16.msra.mxu0 0
    %199 = vmatprep.mubr.bf16.mxu0 0
    %200 = vmatmul.mubr.bf16.gmra.mxu0 %v165
    %v201 = vpop.f32.mrf.mxu0
    %v202 = vadd.f32 0.0, %v201
    %v203 = vpop.f32.mrf.mxu0
    %v204 = vadd.f32 0.0, %v203
    %v205 = vpop.f32.mrf.mxu0
    %v206 = vadd.f32 0.0, %v205
    %v207 = vpop.f32.mrf.mxu0
    %v208 = vadd.f32 0.0, %v207
    %209 = vdwg.mxu0
    %212 = vrot.lane.b32.xlu0 %v202, 120
    %v213 = vpop.permute.xlu0 %212
    %214 = vrot.lane.b32.xlu0 %v206, 120
    %v215 = vpop.permute.xlu0 %214
    %216 = vrot.lane.b32.xlu0 %v202, 112
    %v217 = vpop.permute.xlu0 %216
    %218 = vrot.lane.b32.xlu0 %v206, 112
    %v219 = vpop.permute.xlu0 %218
    %220 = vrot.lane.b32.xlu0 %v202, 104
    %v221 = vpop.permute.xlu0 %220
    %222 = vrot.lane.b32.xlu0 %v206, 104
    %v223 = vpop.permute.xlu0 %222
    %224 = vrot.lane.b32.xlu0 %v202, 96
    %v225 = vpop.permute.xlu0 %224
    %226 = vrot.lane.b32.xlu0 %v206, 96
    %v227 = vpop.permute.xlu0 %226
    %228 = vrot.lane.b32.xlu0 %v202, 88
    %v229 = vpop.permute.xlu0 %228
    %230 = vrot.lane.b32.xlu0 %v206, 88
    %v231 = vpop.permute.xlu0 %230
    %232 = vrot.lane.b32.xlu0 %v202, 80
    %v233 = vpop.permute.xlu0 %232
    %234 = vrot.lane.b32.xlu0 %v206, 80
    %v235 = vpop.permute.xlu0 %234
    %236 = vrot.lane.b32.xlu0 %v202, 72
    %v237 = vpop.permute.xlu0 %236
    %238 = vrot.lane.b32.xlu0 %v206, 72
    %v239 = vpop.permute.xlu0 %238
    %242 = vrot.lane.b32.xlu0 %v202, 64
    %v243 = vpop.permute.xlu0 %242
    %244 = vrot.lane.b32.xlu0 %v204, 64
    %v245 = vpop.permute.xlu0 %244
    %246 = vrot.lane.b32.xlu0 %v206, 64
    %v247 = vpop.permute.xlu0 %246
    %248 = vrot.lane.b32.xlu0 %v208, 64
    %v249 = vpop.permute.xlu0 %248
    %v250 = vsel %vm71, %v243, %v245
    %v251 = vsel %vm71, %v247, %v249
    %254 = vxpose.xlu0.b32.start [1/16] %v250, 128
    %255 = vxpose.xlu0.b32.cont [2/16] %v251, 128
    %256 = vxpose.xlu0.b32.cont [3/16] 0.0, 128
    %257 = vxpose.xlu0.b32.cont [4/16] 0.0, 128
    %258 = vxpose.xlu0.b32.cont [5/16] 0.0, 128
    %259 = vxpose.xlu0.b32.cont [6/16] 0.0, 128
    %260 = vxpose.xlu0.b32.cont [7/16] 0.0, 128
    %261 = vxpose.xlu0.b32.cont [8/16] 0.0, 128
    %262 = vxpose.xlu0.b32.cont [9/16] 0.0, 128
    %263 = vxpose.xlu0.b32.cont [10/16] 0.0, 128
    %264 = vxpose.xlu0.b32.cont [11/16] 0.0, 128
    %265 = vxpose.xlu0.b32.cont [12/16] 0.0, 128
    %266 = vxpose.xlu0.b32.cont [13/16] 0.0, 128
    %267 = vxpose.xlu0.b32.cont [14/16] 0.0, 128
    %268 = vxpose.xlu0.b32.cont [15/16] 0.0, 128
    %269 = vxpose.xlu0.b32.end [16/16] 0.0, 128
    %v270 = vpop.trf.xlu0
    %v271 = vpop.trf.xlu0
    %v272 = vpop.trf.xlu0
    %v273 = vpop.trf.xlu0
    %v274 = vpop.trf.xlu0
    %v275 = vpop.trf.xlu0
    %v276 = vpop.trf.xlu0
    %v277 = vpop.trf.xlu0
    %v278 = vpop.trf.xlu0
    %v279 = vpop.trf.xlu0
    %v280 = vpop.trf.xlu0
    %v281 = vpop.trf.xlu0
    %v282 = vpop.trf.xlu0
    %v283 = vpop.trf.xlu0
    %v284 = vpop.trf.xlu0
    %v285 = vpop.trf.xlu0
    %vm286 = vcmask 64512
    %v287 = vsel %vm286, %v202, 0
    %v289 = vsel %vm286, %v206, 0
    %291 = vmatprep.subr.mxu0 0.0
    %292 = vmatpush1.msra.mxu0 0.0
    %293 = vmatprep.subr.mxu0 0.0
    %294 = vmatpush1.msra.mxu0 0.0
    %295 = vmatprep.subr.mxu0 0.0
    %296 = vmatpush1.msra.mxu0 0.0
    %297 = vmatprep.subr.mxu0 0.0
    %298 = vmatpush1.msra.mxu0 0.0
    %299 = vmatprep.subr.mxu0 0.0
    %300 = vmatpush1.msra.mxu0 0.0
    %301 = vmatprep.subr.mxu0 0.0
    %302 = vmatpush1.msra.mxu0 0.0
    %303 = vmatprep.subr.mxu0 0.0
    %304 = vmatpush1.msra.mxu0 0.0
    %305 = vmatprep.subr.mxu0 0.0
    %306 = vmatpush1.msra.mxu0 0.0
    %307 = vmatprep.subr.mxu0 0.0
    %308 = vmatpush1.msra.mxu0 0.0
    %309 = vmatprep.subr.mxu0 0.0
    %310 = vmatpush1.msra.mxu0 0.0
    %311 = vmatprep.subr.mxu0 0.0
    %312 = vmatpush1.msra.mxu0 0.0
    %313 = vmatprep.subr.mxu0 0.0
    %314 = vmatpush1.msra.mxu0 0.0
    %315 = vmatprep.subr.mxu0 0.0
    %316 = vmatpush1.msra.mxu0 0.0
    %317 = vmatprep.subr.mxu0 0.0
    %318 = vmatpush1.msra.mxu0 0.0
    %319 = vmatprep.subr.mxu0 0.0
    %320 = vmatpush1.msra.mxu0 0.0
    %321 = vmatprep.subr.mxu0 0.0
    %322 = vmatpush1.msra.mxu0 %v270
    %323 = vmatprep.subr.mxu0 0.0
    %324 = vmatpush2.msra.mxu0 0.0
    %325 = vmatprep.subr.mxu0 0.0
    %326 = vmatpush2.msra.mxu0 0.0
    %327 = vmatprep.subr.mxu0 0.0
    %328 = vmatpush2.msra.mxu0 0.0
    %329 = vmatprep.subr.mxu0 0.0
    %330 = vmatpush2.msra.mxu0 0.0
    %331 = vmatprep.subr.mxu0 0.0
    %332 = vmatpush2.msra.mxu0 0.0
    %333 = vmatprep.subr.mxu0 0.0
    %334 = vmatpush2.msra.mxu0 0.0
    %335 = vmatprep.subr.mxu0 0.0
    %336 = vmatpush2.msra.mxu0 0.0
    %337 = vmatprep.subr.mxu0 0.0
    %338 = vmatpush2.msra.mxu0 0.0
    %339 = vmatprep.subr.mxu0 0.0
    %340 = vmatpush2.msra.mxu0 0.0
    %341 = vmatprep.subr.mxu0 0.0
    %342 = vmatpush2.msra.mxu0 0.0
    %343 = vmatprep.subr.mxu0 0.0
    %344 = vmatpush2.msra.mxu0 0.0
    %345 = vmatprep.subr.mxu0 0.0
    %346 = vmatpush2.msra.mxu0 0.0
    %347 = vmatprep.subr.mxu0 0.0
    %348 = vmatpush2.msra.mxu0 0.0
    %349 = vmatprep.subr.mxu0 0.0
    %350 = vmatpush2.msra.mxu0 0.0
    %351 = vmatprep.subr.mxu0 0.0
    %352 = vmatpush2.msra.mxu0 0.0
    %353 = vmatprep.subr.mxu0 0.0
    %354 = vmatpush2.msra.mxu0 0.0
    %355 = vmatprep.mubr.f32.mxu0 0.0
    %356 = vmatmul.mubr.f32.gmra.mxu0 %v287
    %v357 = vpop.f32.mrf.mxu0
    %v358 = vadd.f32 0.0, %v357
    %v359 = vpop.f32.mrf.mxu0
    %360 = vmatprep.mubr.f32.mxu0 0.0
    %361 = vmatmul.mubr.f32.gmra.mxu0 %v289
    %v362 = vpop.f32.mrf.mxu0
    %v363 = vadd.f32 0.0, %v362
    %v364 = vpop.f32.mrf.mxu0
    %365 = vdwg.mxu0
    %v366 = vsel %vm286, %v213, 0
    %v368 = vsel %vm286, %v215, 0
    %370 = vmatprep.subr.mxu0 0.0
    %371 = vmatpush1.msra.mxu0 0.0
    %372 = vmatprep.subr.mxu0 0.0
    %373 = vmatpush1.msra.mxu0 0.0
    %374 = vmatprep.subr.mxu0 0.0
    %375 = vmatpush1.msra.mxu0 0.0
    %376 = vmatprep.subr.mxu0 0.0
    %377 = vmatpush1.msra.mxu0 0.0
    %378 = vmatprep.subr.mxu0 0.0
    %379 = vmatpush1.msra.mxu0 0.0
    %380 = vmatprep.subr.mxu0 0.0
    %381 = vmatpush1.msra.mxu0 0.0
    %382 = vmatprep.subr.mxu0 0.0
    %383 = vmatpush1.msra.mxu0 0.0
    %384 = vmatprep.subr.mxu0 0.0
    %385 = vmatpush1.msra.mxu0 0.0
    %386 = vmatprep.subr.mxu0 0.0
    %387 = vmatpush1.msra.mxu0 0.0
    %388 = vmatprep.subr.mxu0 0.0
    %389 = vmatpush1.msra.mxu0 0.0
    %390 = vmatprep.subr.mxu0 0.0
    %391 = vmatpush1.msra.mxu0 0.0
    %392 = vmatprep.subr.mxu0 0.0
    %393 = vmatpush1.msra.mxu0 0.0
    %394 = vmatprep.subr.mxu0 0.0
    %395 = vmatpush1.msra.mxu0 0.0
    %396 = vmatprep.subr.mxu0 0.0
    %397 = vmatpush1.msra.mxu0 0.0
    %398 = vmatprep.subr.mxu0 0.0
    %399 = vmatpush1.msra.mxu0 0.0
    %400 = vmatprep.subr.mxu0 0.0
    %401 = vmatpush1.msra.mxu0 %v271
    %402 = vmatprep.subr.mxu0 0.0
    %403 = vmatpush2.msra.mxu0 0.0
    %404 = vmatprep.subr.mxu0 0.0
    %405 = vmatpush2.msra.mxu0 0.0
    %406 = vmatprep.subr.mxu0 0.0
    %407 = vmatpush2.msra.mxu0 0.0
    %408 = vmatprep.subr.mxu0 0.0
    %409 = vmatpush2.msra.mxu0 0.0
    %410 = vmatprep.subr.mxu0 0.0
    %411 = vmatpush2.msra.mxu0 0.0
    %412 = vmatprep.subr.mxu0 0.0
    %413 = vmatpush2.msra.mxu0 0.0
    %414 = vmatprep.subr.mxu0 0.0
    %415 = vmatpush2.msra.mxu0 0.0
    %416 = vmatprep.subr.mxu0 0.0
    %417 = vmatpush2.msra.mxu0 0.0
    %418 = vmatprep.subr.mxu0 0.0
    %419 = vmatpush2.msra.mxu0 0.0
    %420 = vmatprep.subr.mxu0 0.0
    %421 = vmatpush2.msra.mxu0 0.0
    %422 = vmatprep.subr.mxu0 0.0
    %423 = vmatpush2.msra.mxu0 0.0
    %424 = vmatprep.subr.mxu0 0.0
    %425 = vmatpush2.msra.mxu0 0.0
    %426 = vmatprep.subr.mxu0 0.0
    %427 = vmatpush2.msra.mxu0 0.0
    %428 = vmatprep.subr.mxu0 0.0
    %429 = vmatpush2.msra.mxu0 0.0
    %430 = vmatprep.subr.mxu0 0.0
    %431 = vmatpush2.msra.mxu0 0.0
    %432 = vmatprep.subr.mxu0 0.0
    %433 = vmatpush2.msra.mxu0 0.0
    %434 = vmatprep.mubr.f32.mxu0 0.0
    %435 = vmatmul.mubr.f32.gmra.mxu0 %v366
    %v436 = vpop.f32.mrf.mxu0
    %v437 = vadd.f32 0.0, %v436
    %v438 = vpop.f32.mrf.mxu0
    %439 = vmatprep.mubr.f32.mxu0 0.0
    %440 = vmatmul.mubr.f32.gmra.mxu0 %v368
    %v441 = vpop.f32.mrf.mxu0
    %v442 = vadd.f32 0.0, %v441
    %v443 = vpop.f32.mrf.mxu0
    %444 = vdwg.mxu0
    %v445 = vsel %vm286, %v217, 0
    %v447 = vsel %vm286, %v219, 0
    %449 = vmatprep.subr.mxu0 0.0
    %450 = vmatpush1.msra.mxu0 0.0
    %451 = vmatprep.subr.mxu0 0.0
    %452 = vmatpush1.msra.mxu0 0.0
    %453 = vmatprep.subr.mxu0 0.0
    %454 = vmatpush1.msra.mxu0 0.0
    %455 = vmatprep.subr.mxu0 0.0
    %456 = vmatpush1.msra.mxu0 0.0
    %457 = vmatprep.subr.mxu0 0.0
    %458 = vmatpush1.msra.mxu0 0.0
    %459 = vmatprep.subr.mxu0 0.0
    %460 = vmatpush1.msra.mxu0 0.0
    %461 = vmatprep.subr.mxu0 0.0
    %462 = vmatpush1.msra.mxu0 0.0
    %463 = vmatprep.subr.mxu0 0.0
    %464 = vmatpush1.msra.mxu0 0.0
    %465 = vmatprep.subr.mxu0 0.0
    %466 = vmatpush1.msra.mxu0 0.0
    %467 = vmatprep.subr.mxu0 0.0
    %468 = vmatpush1.msra.mxu0 0.0
    %469 = vmatprep.subr.mxu0 0.0
    %470 = vmatpush1.msra.mxu0 0.0
    %471 = vmatprep.subr.mxu0 0.0
    %472 = vmatpush1.msra.mxu0 0.0
    %473 = vmatprep.subr.mxu0 0.0
    %474 = vmatpush1.msra.mxu0 0.0
    %475 = vmatprep.subr.mxu0 0.0
    %476 = vmatpush1.msra.mxu0 0.0
    %477 = vmatprep.subr.mxu0 0.0
    %478 = vmatpush1.msra.mxu0 0.0
    %479 = vmatprep.subr.mxu0 0.0
    %480 = vmatpush1.msra.mxu0 %v272
    %481 = vmatprep.subr.mxu0 0.0
    %482 = vmatpush2.msra.mxu0 0.0
    %483 = vmatprep.subr.mxu0 0.0
    %484 = vmatpush2.msra.mxu0 0.0
    %485 = vmatprep.subr.mxu0 0.0
    %486 = vmatpush2.msra.mxu0 0.0
    %487 = vmatprep.subr.mxu0 0.0
    %488 = vmatpush2.msra.mxu0 0.0
    %489 = vmatprep.subr.mxu0 0.0
    %490 = vmatpush2.msra.mxu0 0.0
    %491 = vmatprep.subr.mxu0 0.0
    %492 = vmatpush2.msra.mxu0 0.0
    %493 = vmatprep.subr.mxu0 0.0
    %494 = vmatpush2.msra.mxu0 0.0
    %495 = vmatprep.subr.mxu0 0.0
    %496 = vmatpush2.msra.mxu0 0.0
    %497 = vmatprep.subr.mxu0 0.0
    %498 = vmatpush2.msra.mxu0 0.0
    %499 = vmatprep.subr.mxu0 0.0
    %500 = vmatpush2.msra.mxu0 0.0
    %501 = vmatprep.subr.mxu0 0.0
    %502 = vmatpush2.msra.mxu0 0.0
    %503 = vmatprep.subr.mxu0 0.0
    %504 = vmatpush2.msra.mxu0 0.0
    %505 = vmatprep.subr.mxu0 0.0
    %506 = vmatpush2.msra.mxu0 0.0
    %507 = vmatprep.subr.mxu0 0.0
    %508 = vmatpush2.msra.mxu0 0.0
    %509 = vmatprep.subr.mxu0 0.0
    %510 = vmatpush2.msra.mxu0 0.0
    %511 = vmatprep.subr.mxu0 0.0
    %512 = vmatpush2.msra.mxu0 0.0
    %513 = vmatprep.mubr.f32.mxu0 0.0
    %514 = vmatmul.mubr.f32.gmra.mxu0 %v445
    %v515 = vpop.f32.mrf.mxu0
    %v516 = vadd.f32 0.0, %v515
    %v517 = vpop.f32.mrf.mxu0
    %518 = vmatprep.mubr.f32.mxu0 0.0
    %519 = vmatmul.mubr.f32.gmra.mxu0 %v447
    %v520 = vpop.f32.mrf.mxu0
    %v521 = vadd.f32 0.0, %v520
    %v522 = vpop.f32.mrf.mxu0
    %523 = vdwg.mxu0
    %v524 = vsel %vm286, %v221, 0
    %v526 = vsel %vm286, %v223, 0
    %528 = vmatprep.subr.mxu0 0.0
    %529 = vmatpush1.msra.mxu0 0.0
    %530 = vmatprep.subr.mxu0 0.0
    %531 = vmatpush1.msra.mxu0 0.0
    %532 = vmatprep.subr.mxu0 0.0
    %533 = vmatpush1.msra.mxu0 0.0
    %534 = vmatprep.subr.mxu0 0.0
    %535 = vmatpush1.msra.mxu0 0.0
    %536 = vmatprep.subr.mxu0 0.0
    %537 = vmatpush1.msra.mxu0 0.0
    %538 = vmatprep.subr.mxu0 0.0
    %539 = vmatpush1.msra.mxu0 0.0
    %540 = vmatprep.subr.mxu0 0.0
    %541 = vmatpush1.msra.mxu0 0.0
    %542 = vmatprep.subr.mxu0 0.0
    %543 = vmatpush1.msra.mxu0 0.0
    %544 = vmatprep.subr.mxu0 0.0
    %545 = vmatpush1.msra.mxu0 0.0
    %546 = vmatprep.subr.mxu0 0.0
    %547 = vmatpush1.msra.mxu0 0.0
    %548 = vmatprep.subr.mxu0 0.0
    %549 = vmatpush1.msra.mxu0 0.0
    %550 = vmatprep.subr.mxu0 0.0
    %551 = vmatpush1.msra.mxu0 0.0
    %552 = vmatprep.subr.mxu0 0.0
    %553 = vmatpush1.msra.mxu0 0.0
    %554 = vmatprep.subr.mxu0 0.0
    %555 = vmatpush1.msra.mxu0 0.0
    %556 = vmatprep.subr.mxu0 0.0
    %557 = vmatpush1.msra.mxu0 0.0
    %558 = vmatprep.subr.mxu0 0.0
    %559 = vmatpush1.msra.mxu0 %v273
    %560 = vmatprep.subr.mxu0 0.0
    %561 = vmatpush2.msra.mxu0 0.0
    %562 = vmatprep.subr.mxu0 0.0
    %563 = vmatpush2.msra.mxu0 0.0
    %564 = vmatprep.subr.mxu0 0.0
    %565 = vmatpush2.msra.mxu0 0.0
    %566 = vmatprep.subr.mxu0 0.0
    %567 = vmatpush2.msra.mxu0 0.0
    %568 = vmatprep.subr.mxu0 0.0
    %569 = vmatpush2.msra.mxu0 0.0
    %570 = vmatprep.subr.mxu0 0.0
    %571 = vmatpush2.msra.mxu0 0.0
    %572 = vmatprep.subr.mxu0 0.0
    %573 = vmatpush2.msra.mxu0 0.0
    %574 = vmatprep.subr.mxu0 0.0
    %575 = vmatpush2.msra.mxu0 0.0
    %576 = vmatprep.subr.mxu0 0.0
    %577 = vmatpush2.msra.mxu0 0.0
    %578 = vmatprep.subr.mxu0 0.0
    %579 = vmatpush2.msra.mxu0 0.0
    %580 = vmatprep.subr.mxu0 0.0
    %581 = vmatpush2.msra.mxu0 0.0
    %582 = vmatprep.subr.mxu0 0.0
    %583 = vmatpush2.msra.mxu0 0.0
    %584 = vmatprep.subr.mxu0 0.0
    %585 = vmatpush2.msra.mxu0 0.0
    %586 = vmatprep.subr.mxu0 0.0
    %587 = vmatpush2.msra.mxu0 0.0
    %588 = vmatprep.subr.mxu0 0.0
    %589 = vmatpush2.msra.mxu0 0.0
    %590 = vmatprep.subr.mxu0 0.0
    %591 = vmatpush2.msra.mxu0 0.0
    %592 = vmatprep.mubr.f32.mxu0 0.0
    %593 = vmatmul.mubr.f32.gmra.mxu0 %v524
    %v594 = vpop.f32.mrf.mxu0
    %v595 = vadd.f32 0.0, %v594
    %v596 = vpop.f32.mrf.mxu0
    %597 = vmatprep.mubr.f32.mxu0 0.0
    %598 = vmatmul.mubr.f32.gmra.mxu0 %v526
    %v599 = vpop.f32.mrf.mxu0
    %v600 = vadd.f32 0.0, %v599
    %v601 = vpop.f32.mrf.mxu0
    %602 = vdwg.mxu0
    %v603 = vsel %vm286, %v225, 0
    %v605 = vsel %vm286, %v227, 0
    %607 = vmatprep.subr.mxu0 0.0
    %608 = vmatpush1.msra.mxu0 0.0
    %609 = vmatprep.subr.mxu0 0.0
    %610 = vmatpush1.msra.mxu0 0.0
    %611 = vmatprep.subr.mxu0 0.0
    %612 = vmatpush1.msra.mxu0 0.0
    %613 = vmatprep.subr.mxu0 0.0
    %614 = vmatpush1.msra.mxu0 0.0
    %615 = vmatprep.subr.mxu0 0.0
    %616 = vmatpush1.msra.mxu0 0.0
    %617 = vmatprep.subr.mxu0 0.0
    %618 = vmatpush1.msra.mxu0 0.0
    %619 = vmatprep.subr.mxu0 0.0
    %620 = vmatpush1.msra.mxu0 0.0
    %621 = vmatprep.subr.mxu0 0.0
    %622 = vmatpush1.msra.mxu0 0.0
    %623 = vmatprep.subr.mxu0 0.0
    %624 = vmatpush1.msra.mxu0 0.0
    %625 = vmatprep.subr.mxu0 0.0
    %626 = vmatpush1.msra.mxu0 0.0
    %627 = vmatprep.subr.mxu0 0.0
    %628 = vmatpush1.msra.mxu0 0.0
    %629 = vmatprep.subr.mxu0 0.0
    %630 = vmatpush1.msra.mxu0 0.0
    %631 = vmatprep.subr.mxu0 0.0
    %632 = vmatpush1.msra.mxu0 0.0
    %633 = vmatprep.subr.mxu0 0.0
    %634 = vmatpush1.msra.mxu0 0.0
    %635 = vmatprep.subr.mxu0 0.0
    %636 = vmatpush1.msra.mxu0 0.0
    %637 = vmatprep.subr.mxu0 0.0
    %638 = vmatpush1.msra.mxu0 %v274
    %639 = vmatprep.subr.mxu0 0.0
    %640 = vmatpush2.msra.mxu0 0.0
    %641 = vmatprep.subr.mxu0 0.0
    %642 = vmatpush2.msra.mxu0 0.0
    %643 = vmatprep.subr.mxu0 0.0
    %644 = vmatpush2.msra.mxu0 0.0
    %645 = vmatprep.subr.mxu0 0.0
    %646 = vmatpush2.msra.mxu0 0.0
    %647 = vmatprep.subr.mxu0 0.0
    %648 = vmatpush2.msra.mxu0 0.0
    %649 = vmatprep.subr.mxu0 0.0
    %650 = vmatpush2.msra.mxu0 0.0
    %651 = vmatprep.subr.mxu0 0.0
    %652 = vmatpush2.msra.mxu0 0.0
    %653 = vmatprep.subr.mxu0 0.0
    %654 = vmatpush2.msra.mxu0 0.0
    %655 = vmatprep.subr.mxu0 0.0
    %656 = vmatpush2.msra.mxu0 0.0
    %657 = vmatprep.subr.mxu0 0.0
    %658 = vmatpush2.msra.mxu0 0.0
    %659 = vmatprep.subr.mxu0 0.0
    %660 = vmatpush2.msra.mxu0 0.0
    %661 = vmatprep.subr.mxu0 0.0
    %662 = vmatpush2.msra.mxu0 0.0
    %663 = vmatprep.subr.mxu0 0.0
    %664 = vmatpush2.msra.mxu0 0.0
    %665 = vmatprep.subr.mxu0 0.0
    %666 = vmatpush2.msra.mxu0 0.0
    %667 = vmatprep.subr.mxu0 0.0
    %668 = vmatpush2.msra.mxu0 0.0
    %669 = vmatprep.subr.mxu0 0.0
    %670 = vmatpush2.msra.mxu0 0.0
    %671 = vmatprep.mubr.f32.mxu0 0.0
    %672 = vmatmul.mubr.f32.gmra.mxu0 %v603
    %v673 = vpop.f32.mrf.mxu0
    %v674 = vadd.f32 0.0, %v673
    %v675 = vpop.f32.mrf.mxu0
    %676 = vmatprep.mubr.f32.mxu0 0.0
    %677 = vmatmul.mubr.f32.gmra.mxu0 %v605
    %v678 = vpop.f32.mrf.mxu0
    %v679 = vadd.f32 0.0, %v678
    %v680 = vpop.f32.mrf.mxu0
    %681 = vdwg.mxu0
    %v682 = vsel %vm286, %v229, 0
    %v684 = vsel %vm286, %v231, 0
    %686 = vmatprep.subr.mxu0 0.0
    %687 = vmatpush1.msra.mxu0 0.0
    %688 = vmatprep.subr.mxu0 0.0
    %689 = vmatpush1.msra.mxu0 0.0
    %690 = vmatprep.subr.mxu0 0.0
    %691 = vmatpush1.msra.mxu0 0.0
    %692 = vmatprep.subr.mxu0 0.0
    %693 = vmatpush1.msra.mxu0 0.0
    %694 = vmatprep.subr.mxu0 0.0
    %695 = vmatpush1.msra.mxu0 0.0
    %696 = vmatprep.subr.mxu0 0.0
    %697 = vmatpush1.msra.mxu0 0.0
    %698 = vmatprep.subr.mxu0 0.0
    %699 = vmatpush1.msra.mxu0 0.0
    %700 = vmatprep.subr.mxu0 0.0
    %701 = vmatpush1.msra.mxu0 0.0
    %702 = vmatprep.subr.mxu0 0.0
    %703 = vmatpush1.msra.mxu0 0.0
    %704 = vmatprep.subr.mxu0 0.0
    %705 = vmatpush1.msra.mxu0 0.0
    %706 = vmatprep.subr.mxu0 0.0
    %707 = vmatpush1.msra.mxu0 0.0
    %708 = vmatprep.subr.mxu0 0.0
    %709 = vmatpush1.msra.mxu0 0.0
    %710 = vmatprep.subr.mxu0 0.0
    %711 = vmatpush1.msra.mxu0 0.0
    %712 = vmatprep.subr.mxu0 0.0
    %713 = vmatpush1.msra.mxu0 0.0
    %714 = vmatprep.subr.mxu0 0.0
    %715 = vmatpush1.msra.mxu0 0.0
    %716 = vmatprep.subr.mxu0 0.0
    %717 = vmatpush1.msra.mxu0 %v275
    %718 = vmatprep.subr.mxu0 0.0
    %719 = vmatpush2.msra.mxu0 0.0
    %720 = vmatprep.subr.mxu0 0.0
    %721 = vmatpush2.msra.mxu0 0.0
    %722 = vmatprep.subr.mxu0 0.0
    %723 = vmatpush2.msra.mxu0 0.0
    %724 = vmatprep.subr.mxu0 0.0
    %725 = vmatpush2.msra.mxu0 0.0
    %726 = vmatprep.subr.mxu0 0.0
    %727 = vmatpush2.msra.mxu0 0.0
    %728 = vmatprep.subr.mxu0 0.0
    %729 = vmatpush2.msra.mxu0 0.0
    %730 = vmatprep.subr.mxu0 0.0
    %731 = vmatpush2.msra.mxu0 0.0
    %732 = vmatprep.subr.mxu0 0.0
    %733 = vmatpush2.msra.mxu0 0.0
    %734 = vmatprep.subr.mxu0 0.0
    %735 = vmatpush2.msra.mxu0 0.0
    %736 = vmatprep.subr.mxu0 0.0
    %737 = vmatpush2.msra.mxu0 0.0
    %738 = vmatprep.subr.mxu0 0.0
    %739 = vmatpush2.msra.mxu0 0.0
    %740 = vmatprep.subr.mxu0 0.0
    %741 = vmatpush2.msra.mxu0 0.0
    %742 = vmatprep.subr.mxu0 0.0
    %743 = vmatpush2.msra.mxu0 0.0
    %744 = vmatprep.subr.mxu0 0.0
    %745 = vmatpush2.msra.mxu0 0.0
    %746 = vmatprep.subr.mxu0 0.0
    %747 = vmatpush2.msra.mxu0 0.0
    %748 = vmatprep.subr.mxu0 0.0
    %749 = vmatpush2.msra.mxu0 0.0
    %750 = vmatprep.mubr.f32.mxu0 0.0
    %751 = vmatmul.mubr.f32.gmra.mxu0 %v682
    %v752 = vpop.f32.mrf.mxu0
    %v753 = vadd.f32 0.0, %v752
    %v754 = vpop.f32.mrf.mxu0
    %755 = vmatprep.mubr.f32.mxu0 0.0
    %756 = vmatmul.mubr.f32.gmra.mxu0 %v684
    %v757 = vpop.f32.mrf.mxu0
    %v758 = vadd.f32 0.0, %v757
    %v759 = vpop.f32.mrf.mxu0
    %760 = vdwg.mxu0
    %v761 = vsel %vm286, %v233, 0
    %v763 = vsel %vm286, %v235, 0
    %765 = vmatprep.subr.mxu0 0.0
    %766 = vmatpush1.msra.mxu0 0.0
    %767 = vmatprep.subr.mxu0 0.0
    %768 = vmatpush1.msra.mxu0 0.0
    %769 = vmatprep.subr.mxu0 0.0
    %770 = vmatpush1.msra.mxu0 0.0
    %771 = vmatprep.subr.mxu0 0.0
    %772 = vmatpush1.msra.mxu0 0.0
    %773 = vmatprep.subr.mxu0 0.0
    %774 = vmatpush1.msra.mxu0 0.0
    %775 = vmatprep.subr.mxu0 0.0
    %776 = vmatpush1.msra.mxu0 0.0
    %777 = vmatprep.subr.mxu0 0.0
    %778 = vmatpush1.msra.mxu0 0.0
    %779 = vmatprep.subr.mxu0 0.0
    %780 = vmatpush1.msra.mxu0 0.0
    %781 = vmatprep.subr.mxu0 0.0
    %782 = vmatpush1.msra.mxu0 0.0
    %783 = vmatprep.subr.mxu0 0.0
    %784 = vmatpush1.msra.mxu0 0.0
    %785 = vmatprep.subr.mxu0 0.0
    %786 = vmatpush1.msra.mxu0 0.0
    %787 = vmatprep.subr.mxu0 0.0
    %788 = vmatpush1.msra.mxu0 0.0
    %789 = vmatprep.subr.mxu0 0.0
    %790 = vmatpush1.msra.mxu0 0.0
    %791 = vmatprep.subr.mxu0 0.0
    %792 = vmatpush1.msra.mxu0 0.0
    %793 = vmatprep.subr.mxu0 0.0
    %794 = vmatpush1.msra.mxu0 0.0
    %795 = vmatprep.subr.mxu0 0.0
    %796 = vmatpush1.msra.mxu0 %v276
    %797 = vmatprep.subr.mxu0 0.0
    %798 = vmatpush2.msra.mxu0 0.0
    %799 = vmatprep.subr.mxu0 0.0
    %800 = vmatpush2.msra.mxu0 0.0
    %801 = vmatprep.subr.mxu0 0.0
    %802 = vmatpush2.msra.mxu0 0.0
    %803 = vmatprep.subr.mxu0 0.0
    %804 = vmatpush2.msra.mxu0 0.0
    %805 = vmatprep.subr.mxu0 0.0
    %806 = vmatpush2.msra.mxu0 0.0
    %807 = vmatprep.subr.mxu0 0.0
    %808 = vmatpush2.msra.mxu0 0.0
    %809 = vmatprep.subr.mxu0 0.0
    %810 = vmatpush2.msra.mxu0 0.0
    %811 = vmatprep.subr.mxu0 0.0
    %812 = vmatpush2.msra.mxu0 0.0
    %813 = vmatprep.subr.mxu0 0.0
    %814 = vmatpush2.msra.mxu0 0.0
    %815 = vmatprep.subr.mxu0 0.0
    %816 = vmatpush2.msra.mxu0 0.0
    %817 = vmatprep.subr.mxu0 0.0
    %818 = vmatpush2.msra.mxu0 0.0
    %819 = vmatprep.subr.mxu0 0.0
    %820 = vmatpush2.msra.mxu0 0.0
    %821 = vmatprep.subr.mxu0 0.0
    %822 = vmatpush2.msra.mxu0 0.0
    %823 = vmatprep.subr.mxu0 0.0
    %824 = vmatpush2.msra.mxu0 0.0
    %825 = vmatprep.subr.mxu0 0.0
    %826 = vmatpush2.msra.mxu0 0.0
    %827 = vmatprep.subr.mxu0 0.0
    %828 = vmatpush2.msra.mxu0 0.0
    %829 = vmatprep.mubr.f32.mxu0 0.0
    %830 = vmatmul.mubr.f32.gmra.mxu0 %v761
    %v831 = vpop.f32.mrf.mxu0
    %v832 = vadd.f32 0.0, %v831
    %v833 = vpop.f32.mrf.mxu0
    %834 = vmatprep.mubr.f32.mxu0 0.0
    %835 = vmatmul.mubr.f32.gmra.mxu0 %v763
    %v836 = vpop.f32.mrf.mxu0
    %v837 = vadd.f32 0.0, %v836
    %v838 = vpop.f32.mrf.mxu0
    %839 = vdwg.mxu0
    %v840 = vsel %vm286, %v237, 0
    %v842 = vsel %vm286, %v239, 0
    %844 = vmatprep.subr.mxu0 0.0
    %845 = vmatpush1.msra.mxu0 0.0
    %846 = vmatprep.subr.mxu0 0.0
    %847 = vmatpush1.msra.mxu0 0.0
    %848 = vmatprep.subr.mxu0 0.0
    %849 = vmatpush1.msra.mxu0 0.0
    %850 = vmatprep.subr.mxu0 0.0
    %851 = vmatpush1.msra.mxu0 0.0
    %852 = vmatprep.subr.mxu0 0.0
    %853 = vmatpush1.msra.mxu0 0.0
    %854 = vmatprep.subr.mxu0 0.0
    %855 = vmatpush1.msra.mxu0 0.0
    %856 = vmatprep.subr.mxu0 0.0
    %857 = vmatpush1.msra.mxu0 0.0
    %858 = vmatprep.subr.mxu0 0.0
    %859 = vmatpush1.msra.mxu0 0.0
    %860 = vmatprep.subr.mxu0 0.0
    %861 = vmatpush1.msra.mxu0 0.0
    %862 = vmatprep.subr.mxu0 0.0
    %863 = vmatpush1.msra.mxu0 0.0
    %864 = vmatprep.subr.mxu0 0.0
    %865 = vmatpush1.msra.mxu0 0.0
    %866 = vmatprep.subr.mxu0 0.0
    %867 = vmatpush1.msra.mxu0 0.0
    %868 = vmatprep.subr.mxu0 0.0
    %869 = vmatpush1.msra.mxu0 0.0
    %870 = vmatprep.subr.mxu0 0.0
    %871 = vmatpush1.msra.mxu0 0.0
    %872 = vmatprep.subr.mxu0 0.0
    %873 = vmatpush1.msra.mxu0 0.0
    %874 = vmatprep.subr.mxu0 0.0
    %875 = vmatpush1.msra.mxu0 %v277
    %876 = vmatprep.subr.mxu0 0.0
    %877 = vmatpush2.msra.mxu0 0.0
    %878 = vmatprep.subr.mxu0 0.0
    %879 = vmatpush2.msra.mxu0 0.0
    %880 = vmatprep.subr.mxu0 0.0
    %881 = vmatpush2.msra.mxu0 0.0
    %882 = vmatprep.subr.mxu0 0.0
    %883 = vmatpush2.msra.mxu0 0.0
    %884 = vmatprep.subr.mxu0 0.0
    %885 = vmatpush2.msra.mxu0 0.0
    %886 = vmatprep.subr.mxu0 0.0
    %887 = vmatpush2.msra.mxu0 0.0
    %888 = vmatprep.subr.mxu0 0.0
    %889 = vmatpush2.msra.mxu0 0.0
    %890 = vmatprep.subr.mxu0 0.0
    %891 = vmatpush2.msra.mxu0 0.0
    %892 = vmatprep.subr.mxu0 0.0
    %893 = vmatpush2.msra.mxu0 0.0
    %894 = vmatprep.subr.mxu0 0.0
    %895 = vmatpush2.msra.mxu0 0.0
    %896 = vmatprep.subr.mxu0 0.0
    %897 = vmatpush2.msra.mxu0 0.0
    %898 = vmatprep.subr.mxu0 0.0
    %899 = vmatpush2.msra.mxu0 0.0
    %900 = vmatprep.subr.mxu0 0.0
    %901 = vmatpush2.msra.mxu0 0.0
    %902 = vmatprep.subr.mxu0 0.0
    %903 = vmatpush2.msra.mxu0 0.0
    %904 = vmatprep.subr.mxu0 0.0
    %905 = vmatpush2.msra.mxu0 0.0
    %906 = vmatprep.subr.mxu0 0.0
    %907 = vmatpush2.msra.mxu0 0.0
    %908 = vmatprep.mubr.f32.mxu0 0.0
    %909 = vmatmul.mubr.f32.gmra.mxu0 %v840
    %v910 = vpop.f32.mrf.mxu0
    %v911 = vadd.f32 0.0, %v910
    %v912 = vpop.f32.mrf.mxu0
    %913 = vmatprep.mubr.f32.mxu0 0.0
    %914 = vmatmul.mubr.f32.gmra.mxu0 %v842
    %v915 = vpop.f32.mrf.mxu0
    %v916 = vadd.f32 0.0, %v915
    %v917 = vpop.f32.mrf.mxu0
    %918 = vdwg.mxu0
    %v919 = vmul.f32 %v358, 0.35355338
    %v920 = vmul.f32 %v363, 0.35355338
    %v921 = vmul.f32 %v437, 0.35355338
    %v922 = vmul.f32 %v442, 0.35355338
    %v923 = vmul.f32 %v516, 0.35355338
    %v924 = vmul.f32 %v521, 0.35355338
    %v925 = vmul.f32 %v595, 0.35355338
    %v926 = vmul.f32 %v600, 0.35355338
    %v927 = vmul.f32 %v674, 0.35355338
    %v928 = vmul.f32 %v679, 0.35355338
    %v929 = vmul.f32 %v753, 0.35355338
    %v930 = vmul.f32 %v758, 0.35355338
    %v931 = vmul.f32 %v832, 0.35355338
    %v932 = vmul.f32 %v837, 0.35355338
    %v933 = vmul.f32 %v911, 0.35355338
    %v934 = vmul.f32 %v916, 0.35355338
    %v935 = vsel %vm67, %v65, %v919
    %v936 = vsel %vm68, %v66, %v920
    %v937 = vsel %vm67, %v65, %v921
    %v938 = vsel %vm68, %v66, %v922
    %v939 = vsel %vm67, %v65, %v923
    %v940 = vsel %vm68, %v66, %v924
    %v941 = vsel %vm67, %v65, %v925
    %v942 = vsel %vm68, %v66, %v926
    %v943 = vsel %vm67, %v65, %v927
    %v944 = vsel %vm68, %v66, %v928
    %v945 = vsel %vm67, %v65, %v929
    %v946 = vsel %vm68, %v66, %v930
    %v947 = vsel %vm67, %v65, %v931
    %v948 = vsel %vm68, %v66, %v932
    %v949 = vsel %vm67, %v65, %v933
    %v950 = vsel %vm68, %v66, %v934
    %vm951 = vcmask 130048
    %v952 = vsel %vm951, %v935, -inf
    %953 = vmax.xlane.f32.xlu0 %v952
    %v954 = vpop.xlane.xlu0 %953
    %v955 = vsel %vm951, %v936, -inf
    %956 = vmax.xlane.f32.xlu0 %v955
    %v957 = vpop.xlane.xlu0 %956
    %v958 = vsel %vm951, %v937, -inf
    %959 = vmax.xlane.f32.xlu0 %v958
    %v960 = vpop.xlane.xlu0 %959
    %v961 = vsel %vm951, %v938, -inf
    %962 = vmax.xlane.f32.xlu0 %v961
    %v963 = vpop.xlane.xlu0 %962
    %v964 = vsel %vm951, %v939, -inf
    %965 = vmax.xlane.f32.xlu0 %v964
    %v966 = vpop.xlane.xlu0 %965
    %v967 = vsel %vm951, %v940, -inf
    %968 = vmax.xlane.f32.xlu0 %v967
    %v969 = vpop.xlane.xlu0 %968
    %v970 = vsel %vm951, %v941, -inf
    %971 = vmax.xlane.f32.xlu0 %v970
    %v972 = vpop.xlane.xlu0 %971
    %v973 = vsel %vm951, %v942, -inf
    %974 = vmax.xlane.f32.xlu0 %v973
    %v975 = vpop.xlane.xlu0 %974
    %v976 = vsel %vm951, %v943, -inf
    %977 = vmax.xlane.f32.xlu0 %v976
    %v978 = vpop.xlane.xlu0 %977
    %v979 = vsel %vm951, %v944, -inf
    %980 = vmax.xlane.f32.xlu0 %v979
    %v981 = vpop.xlane.xlu0 %980
    %v982 = vsel %vm951, %v945, -inf
    %983 = vmax.xlane.f32.xlu0 %v982
    %v984 = vpop.xlane.xlu0 %983
    %v985 = vsel %vm951, %v946, -inf
    %986 = vmax.xlane.f32.xlu0 %v985
    %v987 = vpop.xlane.xlu0 %986
    %v988 = vsel %vm951, %v947, -inf
    %989 = vmax.xlane.f32.xlu0 %v988
    %v990 = vpop.xlane.xlu0 %989
    %v991 = vsel %vm951, %v948, -inf
    %992 = vmax.xlane.f32.xlu0 %v991
    %v993 = vpop.xlane.xlu0 %992
    %v994 = vsel %vm951, %v949, -inf
    %995 = vmax.xlane.f32.xlu0 %v994
    %v996 = vpop.xlane.xlu0 %995
    %v997 = vsel %vm951, %v950, -inf
    %998 = vmax.xlane.f32.xlu0 %v997
    %v999 = vpop.xlane.xlu0 %998
    %v1000 = vsub.f32 %v935, %v954
    %v1001 = vsub.f32 %v936, %v957
    %v1002 = vsub.f32 %v937, %v960
    %v1003 = vsub.f32 %v938, %v963
    %v1004 = vsub.f32 %v939, %v966
    %v1005 = vsub.f32 %v940, %v969
    %v1006 = vsub.f32 %v941, %v972
    %v1007 = vsub.f32 %v942, %v975
    %v1008 = vsub.f32 %v943, %v978
    %v1009 = vsub.f32 %v944, %v981
    %v1010 = vsub.f32 %v945, %v984
    %v1011 = vsub.f32 %v946, %v987
    %v1012 = vsub.f32 %v947, %v990
    %v1013 = vsub.f32 %v948, %v993
    %v1014 = vsub.f32 %v949, %v996
    %v1015 = vsub.f32 %v950, %v999
    %v1016 = vmul.f32 %v1000, 1.442695
    %v1017 = vpow.pop %v1016
    %v1018 = vmul.f32 %v1001, 1.442695
    %v1019 = vpow.pop %v1018
    %v1020 = vmul.f32 %v1002, 1.442695
    %v1021 = vpow.pop %v1020
    %v1022 = vmul.f32 %v1003, 1.442695
    %v1023 = vpow.pop %v1022
    %v1024 = vmul.f32 %v1004, 1.442695
    %v1025 = vpow.pop %v1024
    %v1026 = vmul.f32 %v1005, 1.442695
    %v1027 = vpow.pop %v1026
    %v1028 = vmul.f32 %v1006, 1.442695
    %v1029 = vpow.pop %v1028
    %v1030 = vmul.f32 %v1007, 1.442695
    %v1031 = vpow.pop %v1030
    %v1032 = vmul.f32 %v1008, 1.442695
    %v1033 = vpow.pop %v1032
    %v1034 = vmul.f32 %v1009, 1.442695
    %v1035 = vpow.pop %v1034
    %v1036 = vmul.f32 %v1010, 1.442695
    %v1037 = vpow.pop %v1036
    %v1038 = vmul.f32 %v1011, 1.442695
    %v1039 = vpow.pop %v1038
    %v1040 = vmul.f32 %v1012, 1.442695
    %v1041 = vpow.pop %v1040
    %v1042 = vmul.f32 %v1013, 1.442695
    %v1043 = vpow.pop %v1042
    %v1044 = vmul.f32 %v1014, 1.442695
    %v1045 = vpow.pop %v1044
    %v1046 = vmul.f32 %v1015, 1.442695
    %v1047 = vpow.pop %v1046
    %v1048 = vsel %vm951, %v1017, 0.0
    %1049 = vadd.xlane.f32.xlu0 %v1048
    %v1050 = vpop.xlane.xlu0 %1049
    %v1051 = vsel %vm951, %v1019, 0.0
    %1052 = vadd.xlane.f32.xlu0 %v1051
    %v1053 = vpop.xlane.xlu0 %1052
    %v1054 = vsel %vm951, %v1021, 0.0
    %1055 = vadd.xlane.f32.xlu0 %v1054
    %v1056 = vpop.xlane.xlu0 %1055
    %v1057 = vsel %vm951, %v1023, 0.0
    %1058 = vadd.xlane.f32.xlu0 %v1057
    %v1059 = vpop.xlane.xlu0 %1058
    %v1060 = vsel %vm951, %v1025, 0.0
    %1061 = vadd.xlane.f32.xlu0 %v1060
    %v1062 = vpop.xlane.xlu0 %1061
    %v1063 = vsel %vm951, %v1027, 0.0
    %1064 = vadd.xlane.f32.xlu0 %v1063
    %v1065 = vpop.xlane.xlu0 %1064
    %v1066 = vsel %vm951, %v1029, 0.0
    %1067 = vadd.xlane.f32.xlu0 %v1066
    %v1068 = vpop.xlane.xlu0 %1067
    %v1069 = vsel %vm951, %v1031, 0.0
    %1070 = vadd.xlane.f32.xlu0 %v1069
    %v1071 = vpop.xlane.xlu0 %1070
    %v1072 = vsel %vm951, %v1033, 0.0
    %1073 = vadd.xlane.f32.xlu0 %v1072
    %v1074 = vpop.xlane.xlu0 %1073
    %v1075 = vsel %vm951, %v1035, 0.0
    %1076 = vadd.xlane.f32.xlu0 %v1075
    %v1077 = vpop.xlane.xlu0 %1076
    %v1078 = vsel %vm951, %v1037, 0.0
    %1079 = vadd.xlane.f32.xlu0 %v1078
    %v1080 = vpop.xlane.xlu0 %1079
    %v1081 = vsel %vm951, %v1039, 0.0
    %1082 = vadd.xlane.f32.xlu0 %v1081
    %v1083 = vpop.xlane.xlu0 %1082
    %v1084 = vsel %vm951, %v1041, 0.0
    %1085 = vadd.xlane.f32.xlu0 %v1084
    %v1086 = vpop.xlane.xlu0 %1085
    %v1087 = vsel %vm951, %v1043, 0.0
    %1088 = vadd.xlane.f32.xlu0 %v1087
    %v1089 = vpop.xlane.xlu0 %1088
    %v1090 = vsel %vm951, %v1045, 0.0
    %1091 = vadd.xlane.f32.xlu0 %v1090
    %v1092 = vpop.xlane.xlu0 %1091
    %v1093 = vsel %vm951, %v1047, 0.0
    %1094 = vadd.xlane.f32.xlu0 %v1093
    %v1095 = vpop.xlane.xlu0 %1094
    %v1096 = vrcp.pop %v1050
    %v1097 = vrcp.pop %v1053
    %v1098 = vrcp.pop %v1056
    %v1099 = vrcp.pop %v1059
    %v1100 = vrcp.pop %v1062
    %v1101 = vrcp.pop %v1065
    %v1102 = vrcp.pop %v1068
    %v1103 = vrcp.pop %v1071
    %v1104 = vrcp.pop %v1074
    %v1105 = vrcp.pop %v1077
    %v1106 = vrcp.pop %v1080
    %v1107 = vrcp.pop %v1083
    %v1108 = vrcp.pop %v1086
    %v1109 = vrcp.pop %v1089
    %v1110 = vrcp.pop %v1092
    %v1111 = vrcp.pop %v1095
    %v1112 = vmul.f32 %v1017, %v1096
    %v1113 = vmul.f32 %v1019, %v1097
    %v1114 = vmul.f32 %v1021, %v1098
    %v1115 = vmul.f32 %v1023, %v1099
    %v1116 = vmul.f32 %v1025, %v1100
    %v1117 = vmul.f32 %v1027, %v1101
    %v1118 = vmul.f32 %v1029, %v1102
    %v1119 = vmul.f32 %v1031, %v1103
    %v1120 = vmul.f32 %v1033, %v1104
    %v1121 = vmul.f32 %v1035, %v1105
    %v1122 = vmul.f32 %v1037, %v1106
    %v1123 = vmul.f32 %v1039, %v1107
    %v1124 = vmul.f32 %v1041, %v1108
    %v1125 = vmul.f32 %v1043, %v1109
    %v1126 = vmul.f32 %v1045, %v1110
    %v1127 = vmul.f32 %v1047, %v1111
    %v1129 = vsel %vm951, %v278, 0
    %v1132 = vsel %vm951, %v1112, 0
    %v1135 = vsel %vm951, %v1113, 0
    %1137 = vmatprep.subr.mxu0 0.0
    %1138 = vmatpush1.xpose.msra.mxu0 0.0
    %1139 = vmatprep.subr.mxu0 0.0
    %1140 = vmatpush1.xpose.msra.mxu0 0.0
    %1141 = vmatprep.subr.mxu0 0.0
    %1142 = vmatpush1.xpose.msra.mxu0 0.0
    %1143 = vmatprep.subr.mxu0 0.0
    %1144 = vmatpush1.xpose.msra.mxu0 0.0
    %1145 = vmatprep.subr.mxu0 0.0
    %1146 = vmatpush1.xpose.msra.mxu0 0.0
    %1147 = vmatprep.subr.mxu0 0.0
    %1148 = vmatpush1.xpose.msra.mxu0 0.0
    %1149 = vmatprep.subr.mxu0 0.0
    %1150 = vmatpush1.xpose.msra.mxu0 0.0
    %1151 = vmatprep.subr.mxu0 0.0
    %1152 = vmatpush1.xpose.msra.mxu0 0.0
    %1153 = vmatprep.subr.mxu0 0.0
    %1154 = vmatpush1.xpose.msra.mxu0 0.0
    %1155 = vmatprep.subr.mxu0 0.0
    %1156 = vmatpush1.xpose.msra.mxu0 0.0
    %1157 = vmatprep.subr.mxu0 0.0
    %1158 = vmatpush1.xpose.msra.mxu0 0.0
    %1159 = vmatprep.subr.mxu0 0.0
    %1160 = vmatpush1.xpose.msra.mxu0 0.0
    %1161 = vmatprep.subr.mxu0 0.0
    %1162 = vmatpush1.xpose.msra.mxu0 0.0
    %1163 = vmatprep.subr.mxu0 0.0
    %1164 = vmatpush1.xpose.msra.mxu0 0.0
    %1165 = vmatprep.subr.mxu0 0.0
    %1166 = vmatpush1.xpose.msra.mxu0 %v1135
    %1167 = vmatprep.subr.mxu0 0.0
    %1168 = vmatpush1.xpose.msra.mxu0 %v1132
    %1169 = vmatprep.subr.mxu0 0.0
    %1170 = vmatpush2.xpose.msra.mxu0 0.0
    %1171 = vmatprep.subr.mxu0 0.0
    %1172 = vmatpush2.xpose.msra.mxu0 0.0
    %1173 = vmatprep.subr.mxu0 0.0
    %1174 = vmatpush2.xpose.msra.mxu0 0.0
    %1175 = vmatprep.subr.mxu0 0.0
    %1176 = vmatpush2.xpose.msra.mxu0 0.0
    %1177 = vmatprep.subr.mxu0 0.0
    %1178 = vmatpush2.xpose.msra.mxu0 0.0
    %1179 = vmatprep.subr.mxu0 0.0
    %1180 = vmatpush2.xpose.msra.mxu0 0.0
    %1181 = vmatprep.subr.mxu0 0.0
    %1182 = vmatpush2.xpose.msra.mxu0 0.0
    %1183 = vmatprep.subr.mxu0 0.0
    %1184 = vmatpush2.xpose.msra.mxu0 0.0
    %1185 = vmatprep.subr.mxu0 0.0
    %1186 = vmatpush2.xpose.msra.mxu0 0.0
    %1187 = vmatprep.subr.mxu0 0.0
    %1188 = vmatpush2.xpose.msra.mxu0 0.0
    %1189 = vmatprep.subr.mxu0 0.0
    %1190 = vmatpush2.xpose.msra.mxu0 0.0
    %1191 = vmatprep.subr.mxu0 0.0
    %1192 = vmatpush2.xpose.msra.mxu0 0.0
    %1193 = vmatprep.subr.mxu0 0.0
    %1194 = vmatpush2.xpose.msra.mxu0 0.0
    %1195 = vmatprep.subr.mxu0 0.0
    %1196 = vmatpush2.xpose.msra.mxu0 0.0
    %1197 = vmatprep.subr.mxu0 0.0
    %1198 = vmatpush2.xpose.msra.mxu0 0.0
    %1199 = vmatprep.subr.mxu0 0.0
    %1200 = vmatpush2.xpose.msra.mxu0 0.0
    %1201 = vmatprep.mubr.f32.mxu0 0.0
    %1202 = vmatmul.mubr.f32.gmra.mxu0 %v1129
    %v1203 = vpop.f32.mrf.mxu0
    %v1204 = vadd.f32 0.0, %v1203
    %v1205 = vpop.f32.mrf.mxu0
    %1206 = vdwg.mxu0
    %v1208 = vsel %vm951, %v279, 0
    %v1211 = vsel %vm951, %v1114, 0
    %v1214 = vsel %vm951, %v1115, 0
    %1216 = vmatprep.subr.mxu0 0.0
    %1217 = vmatpush1.xpose.msra.mxu0 0.0
    %1218 = vmatprep.subr.mxu0 0.0
    %1219 = vmatpush1.xpose.msra.mxu0 0.0
    %1220 = vmatprep.subr.mxu0 0.0
    %1221 = vmatpush1.xpose.msra.mxu0 0.0
    %1222 = vmatprep.subr.mxu0 0.0
    %1223 = vmatpush1.xpose.msra.mxu0 0.0
    %1224 = vmatprep.subr.mxu0 0.0
    %1225 = vmatpush1.xpose.msra.mxu0 0.0
    %1226 = vmatprep.subr.mxu0 0.0
    %1227 = vmatpush1.xpose.msra.mxu0 0.0
    %1228 = vmatprep.subr.mxu0 0.0
    %1229 = vmatpush1.xpose.msra.mxu0 0.0
    %1230 = vmatprep.subr.mxu0 0.0
    %1231 = vmatpush1.xpose.msra.mxu0 0.0
    %1232 = vmatprep.subr.mxu0 0.0
    %1233 = vmatpush1.xpose.msra.mxu0 0.0
    %1234 = vmatprep.subr.mxu0 0.0
    %1235 = vmatpush1.xpose.msra.mxu0 0.0
    %1236 = vmatprep.subr.mxu0 0.0
    %1237 = vmatpush1.xpose.msra.mxu0 0.0
    %1238 = vmatprep.subr.mxu0 0.0
    %1239 = vmatpush1.xpose.msra.mxu0 0.0
    %1240 = vmatprep.subr.mxu0 0.0
    %1241 = vmatpush1.xpose.msra.mxu0 0.0
    %1242 = vmatprep.subr.mxu0 0.0
    %1243 = vmatpush1.xpose.msra.mxu0 0.0
    %1244 = vmatprep.subr.mxu0 0.0
    %1245 = vmatpush1.xpose.msra.mxu0 %v1214
    %1246 = vmatprep.subr.mxu0 0.0
    %1247 = vmatpush1.xpose.msra.mxu0 %v1211
    %1248 = vmatprep.subr.mxu0 0.0
    %1249 = vmatpush2.xpose.msra.mxu0 0.0
    %1250 = vmatprep.subr.mxu0 0.0
    %1251 = vmatpush2.xpose.msra.mxu0 0.0
    %1252 = vmatprep.subr.mxu0 0.0
    %1253 = vmatpush2.xpose.msra.mxu0 0.0
    %1254 = vmatprep.subr.mxu0 0.0
    %1255 = vmatpush2.xpose.msra.mxu0 0.0
    %1256 = vmatprep.subr.mxu0 0.0
    %1257 = vmatpush2.xpose.msra.mxu0 0.0
    %1258 = vmatprep.subr.mxu0 0.0
    %1259 = vmatpush2.xpose.msra.mxu0 0.0
    %1260 = vmatprep.subr.mxu0 0.0
    %1261 = vmatpush2.xpose.msra.mxu0 0.0
    %1262 = vmatprep.subr.mxu0 0.0
    %1263 = vmatpush2.xpose.msra.mxu0 0.0
    %1264 = vmatprep.subr.mxu0 0.0
    %1265 = vmatpush2.xpose.msra.mxu0 0.0
    %1266 = vmatprep.subr.mxu0 0.0
    %1267 = vmatpush2.xpose.msra.mxu0 0.0
    %1268 = vmatprep.subr.mxu0 0.0
    %1269 = vmatpush2.xpose.msra.mxu0 0.0
    %1270 = vmatprep.subr.mxu0 0.0
    %1271 = vmatpush2.xpose.msra.mxu0 0.0
    %1272 = vmatprep.subr.mxu0 0.0
    %1273 = vmatpush2.xpose.msra.mxu0 0.0
    %1274 = vmatprep.subr.mxu0 0.0
    %1275 = vmatpush2.xpose.msra.mxu0 0.0
    %1276 = vmatprep.subr.mxu0 0.0
    %1277 = vmatpush2.xpose.msra.mxu0 0.0
    %1278 = vmatprep.subr.mxu0 0.0
    %1279 = vmatpush2.xpose.msra.mxu0 0.0
    %1280 = vmatprep.mubr.f32.mxu0 0.0
    %1281 = vmatmul.mubr.f32.gmra.mxu0 %v1208
    %v1282 = vpop.f32.mrf.mxu0
    %v1283 = vadd.f32 0.0, %v1282
    %v1284 = vpop.f32.mrf.mxu0
    %1285 = vdwg.mxu0
    %v1287 = vsel %vm951, %v280, 0
    %v1290 = vsel %vm951, %v1116, 0
    %v1293 = vsel %vm951, %v1117, 0
    %1295 = vmatprep.subr.mxu0 0.0
    %1296 = vmatpush1.xpose.msra.mxu0 0.0
    %1297 = vmatprep.subr.mxu0 0.0
    %1298 = vmatpush1.xpose.msra.mxu0 0.0
    %1299 = vmatprep.subr.mxu0 0.0
    %1300 = vmatpush1.xpose.msra.mxu0 0.0
    %1301 = vmatprep.subr.mxu0 0.0
    %1302 = vmatpush1.xpose.msra.mxu0 0.0
    %1303 = vmatprep.subr.mxu0 0.0
    %1304 = vmatpush1.xpose.msra.mxu0 0.0
    %1305 = vmatprep.subr.mxu0 0.0
    %1306 = vmatpush1.xpose.msra.mxu0 0.0
    %1307 = vmatprep.subr.mxu0 0.0
    %1308 = vmatpush1.xpose.msra.mxu0 0.0
    %1309 = vmatprep.subr.mxu0 0.0
    %1310 = vmatpush1.xpose.msra.mxu0 0.0
    %1311 = vmatprep.subr.mxu0 0.0
    %1312 = vmatpush1.xpose.msra.mxu0 0.0
    %1313 = vmatprep.subr.mxu0 0.0
    %1314 = vmatpush1.xpose.msra.mxu0 0.0
    %1315 = vmatprep.subr.mxu0 0.0
    %1316 = vmatpush1.xpose.msra.mxu0 0.0
    %1317 = vmatprep.subr.mxu0 0.0
    %1318 = vmatpush1.xpose.msra.mxu0 0.0
    %1319 = vmatprep.subr.mxu0 0.0
    %1320 = vmatpush1.xpose.msra.mxu0 0.0
    %1321 = vmatprep.subr.mxu0 0.0
    %1322 = vmatpush1.xpose.msra.mxu0 0.0
    %1323 = vmatprep.subr.mxu0 0.0
    %1324 = vmatpush1.xpose.msra.mxu0 %v1293
    %1325 = vmatprep.subr.mxu0 0.0
    %1326 = vmatpush1.xpose.msra.mxu0 %v1290
    %1327 = vmatprep.subr.mxu0 0.0
    %1328 = vmatpush2.xpose.msra.mxu0 0.0
    %1329 = vmatprep.subr.mxu0 0.0
    %1330 = vmatpush2.xpose.msra.mxu0 0.0
    %1331 = vmatprep.subr.mxu0 0.0
    %1332 = vmatpush2.xpose.msra.mxu0 0.0
    %1333 = vmatprep.subr.mxu0 0.0
    %1334 = vmatpush2.xpose.msra.mxu0 0.0
    %1335 = vmatprep.subr.mxu0 0.0
    %1336 = vmatpush2.xpose.msra.mxu0 0.0
    %1337 = vmatprep.subr.mxu0 0.0
    %1338 = vmatpush2.xpose.msra.mxu0 0.0
    %1339 = vmatprep.subr.mxu0 0.0
    %1340 = vmatpush2.xpose.msra.mxu0 0.0
    %1341 = vmatprep.subr.mxu0 0.0
    %1342 = vmatpush2.xpose.msra.mxu0 0.0
    %1343 = vmatprep.subr.mxu0 0.0
    %1344 = vmatpush2.xpose.msra.mxu0 0.0
    %1345 = vmatprep.subr.mxu0 0.0
    %1346 = vmatpush2.xpose.msra.mxu0 0.0
    %1347 = vmatprep.subr.mxu0 0.0
    %1348 = vmatpush2.xpose.msra.mxu0 0.0
    %1349 = vmatprep.subr.mxu0 0.0
    %1350 = vmatpush2.xpose.msra.mxu0 0.0
    %1351 = vmatprep.subr.mxu0 0.0
    %1352 = vmatpush2.xpose.msra.mxu0 0.0
    %1353 = vmatprep.subr.mxu0 0.0
    %1354 = vmatpush2.xpose.msra.mxu0 0.0
    %1355 = vmatprep.subr.mxu0 0.0
    %1356 = vmatpush2.xpose.msra.mxu0 0.0
    %1357 = vmatprep.subr.mxu0 0.0
    %1358 = vmatpush2.xpose.msra.mxu0 0.0
    %1359 = vmatprep.mubr.f32.mxu0 0.0
    %1360 = vmatmul.mubr.f32.gmra.mxu0 %v1287
    %v1361 = vpop.f32.mrf.mxu0
    %v1362 = vadd.f32 0.0, %v1361
    %v1363 = vpop.f32.mrf.mxu0
    %1364 = vdwg.mxu0
    %v1366 = vsel %vm951, %v281, 0
    %v1369 = vsel %vm951, %v1118, 0
    %v1372 = vsel %vm951, %v1119, 0
    %1374 = vmatprep.subr.mxu0 0.0
    %1375 = vmatpush1.xpose.msra.mxu0 0.0
    %1376 = vmatprep.subr.mxu0 0.0
    %1377 = vmatpush1.xpose.msra.mxu0 0.0
    %1378 = vmatprep.subr.mxu0 0.0
    %1379 = vmatpush1.xpose.msra.mxu0 0.0
    %1380 = vmatprep.subr.mxu0 0.0
    %1381 = vmatpush1.xpose.msra.mxu0 0.0
    %1382 = vmatprep.subr.mxu0 0.0
    %1383 = vmatpush1.xpose.msra.mxu0 0.0
    %1384 = vmatprep.subr.mxu0 0.0
    %1385 = vmatpush1.xpose.msra.mxu0 0.0
    %1386 = vmatprep.subr.mxu0 0.0
    %1387 = vmatpush1.xpose.msra.mxu0 0.0
    %1388 = vmatprep.subr.mxu0 0.0
    %1389 = vmatpush1.xpose.msra.mxu0 0.0
    %1390 = vmatprep.subr.mxu0 0.0
    %1391 = vmatpush1.xpose.msra.mxu0 0.0
    %1392 = vmatprep.subr.mxu0 0.0
    %1393 = vmatpush1.xpose.msra.mxu0 0.0
    %1394 = vmatprep.subr.mxu0 0.0
    %1395 = vmatpush1.xpose.msra.mxu0 0.0
    %1396 = vmatprep.subr.mxu0 0.0
    %1397 = vmatpush1.xpose.msra.mxu0 0.0
    %1398 = vmatprep.subr.mxu0 0.0
    %1399 = vmatpush1.xpose.msra.mxu0 0.0
    %1400 = vmatprep.subr.mxu0 0.0
    %1401 = vmatpush1.xpose.msra.mxu0 0.0
    %1402 = vmatprep.subr.mxu0 0.0
    %1403 = vmatpush1.xpose.msra.mxu0 %v1372
    %1404 = vmatprep.subr.mxu0 0.0
    %1405 = vmatpush1.xpose.msra.mxu0 %v1369
    %1406 = vmatprep.subr.mxu0 0.0
    %1407 = vmatpush2.xpose.msra.mxu0 0.0
    %1408 = vmatprep.subr.mxu0 0.0
    %1409 = vmatpush2.xpose.msra.mxu0 0.0
    %1410 = vmatprep.subr.mxu0 0.0
    %1411 = vmatpush2.xpose.msra.mxu0 0.0
    %1412 = vmatprep.subr.mxu0 0.0
    %1413 = vmatpush2.xpose.msra.mxu0 0.0
    %1414 = vmatprep.subr.mxu0 0.0
    %1415 = vmatpush2.xpose.msra.mxu0 0.0
    %1416 = vmatprep.subr.mxu0 0.0
    %1417 = vmatpush2.xpose.msra.mxu0 0.0
    %1418 = vmatprep.subr.mxu0 0.0
    %1419 = vmatpush2.xpose.msra.mxu0 0.0
    %1420 = vmatprep.subr.mxu0 0.0
    %1421 = vmatpush2.xpose.msra.mxu0 0.0
    %1422 = vmatprep.subr.mxu0 0.0
    %1423 = vmatpush2.xpose.msra.mxu0 0.0
    %1424 = vmatprep.subr.mxu0 0.0
    %1425 = vmatpush2.xpose.msra.mxu0 0.0
    %1426 = vmatprep.subr.mxu0 0.0
    %1427 = vmatpush2.xpose.msra.mxu0 0.0
    %1428 = vmatprep.subr.mxu0 0.0
    %1429 = vmatpush2.xpose.msra.mxu0 0.0
    %1430 = vmatprep.subr.mxu0 0.0
    %1431 = vmatpush2.xpose.msra.mxu0 0.0
    %1432 = vmatprep.subr.mxu0 0.0
    %1433 = vmatpush2.xpose.msra.mxu0 0.0
    %1434 = vmatprep.subr.mxu0 0.0
    %1435 = vmatpush2.xpose.msra.mxu0 0.0
    %1436 = vmatprep.subr.mxu0 0.0
    %1437 = vmatpush2.xpose.msra.mxu0 0.0
    %1438 = vmatprep.mubr.f32.mxu0 0.0
    %1439 = vmatmul.mubr.f32.gmra.mxu0 %v1366
    %v1440 = vpop.f32.mrf.mxu0
    %v1441 = vadd.f32 0.0, %v1440
    %v1442 = vpop.f32.mrf.mxu0
    %1443 = vdwg.mxu0
    %v1445 = vsel %vm951, %v282, 0
    %v1448 = vsel %vm951, %v1120, 0
    %v1451 = vsel %vm951, %v1121, 0
    %1453 = vmatprep.subr.mxu0 0.0
    %1454 = vmatpush1.xpose.msra.mxu0 0.0
    %1455 = vmatprep.subr.mxu0 0.0
    %1456 = vmatpush1.xpose.msra.mxu0 0.0
    %1457 = vmatprep.subr.mxu0 0.0
    %1458 = vmatpush1.xpose.msra.mxu0 0.0
    %1459 = vmatprep.subr.mxu0 0.0
    %1460 = vmatpush1.xpose.msra.mxu0 0.0
    %1461 = vmatprep.subr.mxu0 0.0
    %1462 = vmatpush1.xpose.msra.mxu0 0.0
    %1463 = vmatprep.subr.mxu0 0.0
    %1464 = vmatpush1.xpose.msra.mxu0 0.0
    %1465 = vmatprep.subr.mxu0 0.0
    %1466 = vmatpush1.xpose.msra.mxu0 0.0
    %1467 = vmatprep.subr.mxu0 0.0
    %1468 = vmatpush1.xpose.msra.mxu0 0.0
    %1469 = vmatprep.subr.mxu0 0.0
    %1470 = vmatpush1.xpose.msra.mxu0 0.0
    %1471 = vmatprep.subr.mxu0 0.0
    %1472 = vmatpush1.xpose.msra.mxu0 0.0
    %1473 = vmatprep.subr.mxu0 0.0
    %1474 = vmatpush1.xpose.msra.mxu0 0.0
    %1475 = vmatprep.subr.mxu0 0.0
    %1476 = vmatpush1.xpose.msra.mxu0 0.0
    %1477 = vmatprep.subr.mxu0 0.0
    %1478 = vmatpush1.xpose.msra.mxu0 0.0
    %1479 = vmatprep.subr.mxu0 0.0
    %1480 = vmatpush1.xpose.msra.mxu0 0.0
    %1481 = vmatprep.subr.mxu0 0.0
    %1482 = vmatpush1.xpose.msra.mxu0 %v1451
    %1483 = vmatprep.subr.mxu0 0.0
    %1484 = vmatpush1.xpose.msra.mxu0 %v1448
    %1485 = vmatprep.subr.mxu0 0.0
    %1486 = vmatpush2.xpose.msra.mxu0 0.0
    %1487 = vmatprep.subr.mxu0 0.0
    %1488 = vmatpush2.xpose.msra.mxu0 0.0
    %1489 = vmatprep.subr.mxu0 0.0
    %1490 = vmatpush2.xpose.msra.mxu0 0.0
    %1491 = vmatprep.subr.mxu0 0.0
    %1492 = vmatpush2.xpose.msra.mxu0 0.0
    %1493 = vmatprep.subr.mxu0 0.0
    %1494 = vmatpush2.xpose.msra.mxu0 0.0
    %1495 = vmatprep.subr.mxu0 0.0
    %1496 = vmatpush2.xpose.msra.mxu0 0.0
    %1497 = vmatprep.subr.mxu0 0.0
    %1498 = vmatpush2.xpose.msra.mxu0 0.0
    %1499 = vmatprep.subr.mxu0 0.0
    %1500 = vmatpush2.xpose.msra.mxu0 0.0
    %1501 = vmatprep.subr.mxu0 0.0
    %1502 = vmatpush2.xpose.msra.mxu0 0.0
    %1503 = vmatprep.subr.mxu0 0.0
    %1504 = vmatpush2.xpose.msra.mxu0 0.0
    %1505 = vmatprep.subr.mxu0 0.0
    %1506 = vmatpush2.xpose.msra.mxu0 0.0
    %1507 = vmatprep.subr.mxu0 0.0
    %1508 = vmatpush2.xpose.msra.mxu0 0.0
    %1509 = vmatprep.subr.mxu0 0.0
    %1510 = vmatpush2.xpose.msra.mxu0 0.0
    %1511 = vmatprep.subr.mxu0 0.0
    %1512 = vmatpush2.xpose.msra.mxu0 0.0
    %1513 = vmatprep.subr.mxu0 0.0
    %1514 = vmatpush2.xpose.msra.mxu0 0.0
    %1515 = vmatprep.subr.mxu0 0.0
    %1516 = vmatpush2.xpose.msra.mxu0 0.0
    %1517 = vmatprep.mubr.f32.mxu0 0.0
    %1518 = vmatmul.mubr.f32.gmra.mxu0 %v1445
    %v1519 = vpop.f32.mrf.mxu0
    %v1520 = vadd.f32 0.0, %v1519
    %v1521 = vpop.f32.mrf.mxu0
    %1522 = vdwg.mxu0
    %v1524 = vsel %vm951, %v283, 0
    %v1527 = vsel %vm951, %v1122, 0
    %v1530 = vsel %vm951, %v1123, 0
    %1532 = vmatprep.subr.mxu0 0.0
    %1533 = vmatpush1.xpose.msra.mxu0 0.0
    %1534 = vmatprep.subr.mxu0 0.0
    %1535 = vmatpush1.xpose.msra.mxu0 0.0
    %1536 = vmatprep.subr.mxu0 0.0
    %1537 = vmatpush1.xpose.msra.mxu0 0.0
    %1538 = vmatprep.subr.mxu0 0.0
    %1539 = vmatpush1.xpose.msra.mxu0 0.0
    %1540 = vmatprep.subr.mxu0 0.0
    %1541 = vmatpush1.xpose.msra.mxu0 0.0
    %1542 = vmatprep.subr.mxu0 0.0
    %1543 = vmatpush1.xpose.msra.mxu0 0.0
    %1544 = vmatprep.subr.mxu0 0.0
    %1545 = vmatpush1.xpose.msra.mxu0 0.0
    %1546 = vmatprep.subr.mxu0 0.0
    %1547 = vmatpush1.xpose.msra.mxu0 0.0
    %1548 = vmatprep.subr.mxu0 0.0
    %1549 = vmatpush1.xpose.msra.mxu0 0.0
    %1550 = vmatprep.subr.mxu0 0.0
    %1551 = vmatpush1.xpose.msra.mxu0 0.0
    %1552 = vmatprep.subr.mxu0 0.0
    %1553 = vmatpush1.xpose.msra.mxu0 0.0
    %1554 = vmatprep.subr.mxu0 0.0
    %1555 = vmatpush1.xpose.msra.mxu0 0.0
    %1556 = vmatprep.subr.mxu0 0.0
    %1557 = vmatpush1.xpose.msra.mxu0 0.0
    %1558 = vmatprep.subr.mxu0 0.0
    %1559 = vmatpush1.xpose.msra.mxu0 0.0
    %1560 = vmatprep.subr.mxu0 0.0
    %1561 = vmatpush1.xpose.msra.mxu0 %v1530
    %1562 = vmatprep.subr.mxu0 0.0
    %1563 = vmatpush1.xpose.msra.mxu0 %v1527
    %1564 = vmatprep.subr.mxu0 0.0
    %1565 = vmatpush2.xpose.msra.mxu0 0.0
    %1566 = vmatprep.subr.mxu0 0.0
    %1567 = vmatpush2.xpose.msra.mxu0 0.0
    %1568 = vmatprep.subr.mxu0 0.0
    %1569 = vmatpush2.xpose.msra.mxu0 0.0
    %1570 = vmatprep.subr.mxu0 0.0
    %1571 = vmatpush2.xpose.msra.mxu0 0.0
    %1572 = vmatprep.subr.mxu0 0.0
    %1573 = vmatpush2.xpose.msra.mxu0 0.0
    %1574 = vmatprep.subr.mxu0 0.0
    %1575 = vmatpush2.xpose.msra.mxu0 0.0
    %1576 = vmatprep.subr.mxu0 0.0
    %1577 = vmatpush2.xpose.msra.mxu0 0.0
    %1578 = vmatprep.subr.mxu0 0.0
    %1579 = vmatpush2.xpose.msra.mxu0 0.0
    %1580 = vmatprep.subr.mxu0 0.0
    %1581 = vmatpush2.xpose.msra.mxu0 0.0
    %1582 = vmatprep.subr.mxu0 0.0
    %1583 = vmatpush2.xpose.msra.mxu0 0.0
    %1584 = vmatprep.subr.mxu0 0.0
    %1585 = vmatpush2.xpose.msra.mxu0 0.0
    %1586 = vmatprep.subr.mxu0 0.0
    %1587 = vmatpush2.xpose.msra.mxu0 0.0
    %1588 = vmatprep.subr.mxu0 0.0
    %1589 = vmatpush2.xpose.msra.mxu0 0.0
    %1590 = vmatprep.subr.mxu0 0.0
    %1591 = vmatpush2.xpose.msra.mxu0 0.0
    %1592 = vmatprep.subr.mxu0 0.0
    %1593 = vmatpush2.xpose.msra.mxu0 0.0
    %1594 = vmatprep.subr.mxu0 0.0
    %1595 = vmatpush2.xpose.msra.mxu0 0.0
    %1596 = vmatprep.mubr.f32.mxu0 0.0
    %1597 = vmatmul.mubr.f32.gmra.mxu0 %v1524
    %v1598 = vpop.f32.mrf.mxu0
    %v1599 = vadd.f32 0.0, %v1598
    %v1600 = vpop.f32.mrf.mxu0
    %1601 = vdwg.mxu0
    %v1603 = vsel %vm951, %v284, 0
    %v1606 = vsel %vm951, %v1124, 0
    %v1609 = vsel %vm951, %v1125, 0
    %1611 = vmatprep.subr.mxu0 0.0
    %1612 = vmatpush1.xpose.msra.mxu0 0.0
    %1613 = vmatprep.subr.mxu0 0.0
    %1614 = vmatpush1.xpose.msra.mxu0 0.0
    %1615 = vmatprep.subr.mxu0 0.0
    %1616 = vmatpush1.xpose.msra.mxu0 0.0
    %1617 = vmatprep.subr.mxu0 0.0
    %1618 = vmatpush1.xpose.msra.mxu0 0.0
    %1619 = vmatprep.subr.mxu0 0.0
    %1620 = vmatpush1.xpose.msra.mxu0 0.0
    %1621 = vmatprep.subr.mxu0 0.0
    %1622 = vmatpush1.xpose.msra.mxu0 0.0
    %1623 = vmatprep.subr.mxu0 0.0
    %1624 = vmatpush1.xpose.msra.mxu0 0.0
    %1625 = vmatprep.subr.mxu0 0.0
    %1626 = vmatpush1.xpose.msra.mxu0 0.0
    %1627 = vmatprep.subr.mxu0 0.0
    %1628 = vmatpush1.xpose.msra.mxu0 0.0
    %1629 = vmatprep.subr.mxu0 0.0
    %1630 = vmatpush1.xpose.msra.mxu0 0.0
    %1631 = vmatprep.subr.mxu0 0.0
    %1632 = vmatpush1.xpose.msra.mxu0 0.0
    %1633 = vmatprep.subr.mxu0 0.0
    %1634 = vmatpush1.xpose.msra.mxu0 0.0
    %1635 = vmatprep.subr.mxu0 0.0
    %1636 = vmatpush1.xpose.msra.mxu0 0.0
    %1637 = vmatprep.subr.mxu0 0.0
    %1638 = vmatpush1.xpose.msra.mxu0 0.0
    %1639 = vmatprep.subr.mxu0 0.0
    %1640 = vmatpush1.xpose.msra.mxu0 %v1609
    %1641 = vmatprep.subr.mxu0 0.0
    %1642 = vmatpush1.xpose.msra.mxu0 %v1606
    %1643 = vmatprep.subr.mxu0 0.0
    %1644 = vmatpush2.xpose.msra.mxu0 0.0
    %1645 = vmatprep.subr.mxu0 0.0
    %1646 = vmatpush2.xpose.msra.mxu0 0.0
    %1647 = vmatprep.subr.mxu0 0.0
    %1648 = vmatpush2.xpose.msra.mxu0 0.0
    %1649 = vmatprep.subr.mxu0 0.0
    %1650 = vmatpush2.xpose.msra.mxu0 0.0
    %1651 = vmatprep.subr.mxu0 0.0
    %1652 = vmatpush2.xpose.msra.mxu0 0.0
    %1653 = vmatprep.subr.mxu0 0.0
    %1654 = vmatpush2.xpose.msra.mxu0 0.0
    %1655 = vmatprep.subr.mxu0 0.0
    %1656 = vmatpush2.xpose.msra.mxu0 0.0
    %1657 = vmatprep.subr.mxu0 0.0
    %1658 = vmatpush2.xpose.msra.mxu0 0.0
    %1659 = vmatprep.subr.mxu0 0.0
    %1660 = vmatpush2.xpose.msra.mxu0 0.0
    %1661 = vmatprep.subr.mxu0 0.0
    %1662 = vmatpush2.xpose.msra.mxu0 0.0
    %1663 = vmatprep.subr.mxu0 0.0
    %1664 = vmatpush2.xpose.msra.mxu0 0.0
    %1665 = vmatprep.subr.mxu0 0.0
    %1666 = vmatpush2.xpose.msra.mxu0 0.0
    %1667 = vmatprep.subr.mxu0 0.0
    %1668 = vmatpush2.xpose.msra.mxu0 0.0
    %1669 = vmatprep.subr.mxu0 0.0
    %1670 = vmatpush2.xpose.msra.mxu0 0.0
    %1671 = vmatprep.subr.mxu0 0.0
    %1672 = vmatpush2.xpose.msra.mxu0 0.0
    %1673 = vmatprep.subr.mxu0 0.0
    %1674 = vmatpush2.xpose.msra.mxu0 0.0
    %1675 = vmatprep.mubr.f32.mxu0 0.0
    %1676 = vmatmul.mubr.f32.gmra.mxu0 %v1603
    %v1677 = vpop.f32.mrf.mxu0
    %v1678 = vadd.f32 0.0, %v1677
    %v1679 = vpop.f32.mrf.mxu0
    %1680 = vdwg.mxu0
    %v1682 = vsel %vm951, %v285, 0
    %v1685 = vsel %vm951, %v1126, 0
    %v1688 = vsel %vm951, %v1127, 0
    %1690 = vmatprep.subr.mxu0 0.0
    %1691 = vmatpush1.xpose.msra.mxu0 0.0
    %1692 = vmatprep.subr.mxu0 0.0
    %1693 = vmatpush1.xpose.msra.mxu0 0.0
    %1694 = vmatprep.subr.mxu0 0.0
    %1695 = vmatpush1.xpose.msra.mxu0 0.0
    %1696 = vmatprep.subr.mxu0 0.0
    %1697 = vmatpush1.xpose.msra.mxu0 0.0
    %1698 = vmatprep.subr.mxu0 0.0
    %1699 = vmatpush1.xpose.msra.mxu0 0.0
    %1700 = vmatprep.subr.mxu0 0.0
    %1701 = vmatpush1.xpose.msra.mxu0 0.0
    %1702 = vmatprep.subr.mxu0 0.0
    %1703 = vmatpush1.xpose.msra.mxu0 0.0
    %1704 = vmatprep.subr.mxu0 0.0
    %1705 = vmatpush1.xpose.msra.mxu0 0.0
    %1706 = vmatprep.subr.mxu0 0.0
    %1707 = vmatpush1.xpose.msra.mxu0 0.0
    %1708 = vmatprep.subr.mxu0 0.0
    %1709 = vmatpush1.xpose.msra.mxu0 0.0
    %1710 = vmatprep.subr.mxu0 0.0
    %1711 = vmatpush1.xpose.msra.mxu0 0.0
    %1712 = vmatprep.subr.mxu0 0.0
    %1713 = vmatpush1.xpose.msra.mxu0 0.0
    %1714 = vmatprep.subr.mxu0 0.0
    %1715 = vmatpush1.xpose.msra.mxu0 0.0
    %1716 = vmatprep.subr.mxu0 0.0
    %1717 = vmatpush1.xpose.msra.mxu0 0.0
    %1718 = vmatprep.subr.mxu0 0.0
    %1719 = vmatpush1.xpose.msra.mxu0 %v1688
    %1720 = vmatprep.subr.mxu0 0.0
    %1721 = vmatpush1.xpose.msra.mxu0 %v1685
    %1722 = vmatprep.subr.mxu0 0.0
    %1723 = vmatpush2.xpose.msra.mxu0 0.0
    %1724 = vmatprep.subr.mxu0 0.0
    %1725 = vmatpush2.xpose.msra.mxu0 0.0
    %1726 = vmatprep.subr.mxu0 0.0
    %1727 = vmatpush2.xpose.msra.mxu0 0.0
    %1728 = vmatprep.subr.mxu0 0.0
    %1729 = vmatpush2.xpose.msra.mxu0 0.0
    %1730 = vmatprep.subr.mxu0 0.0
    %1731 = vmatpush2.xpose.msra.mxu0 0.0
    %1732 = vmatprep.subr.mxu0 0.0
    %1733 = vmatpush2.xpose.msra.mxu0 0.0
    %1734 = vmatprep.subr.mxu0 0.0
    %1735 = vmatpush2.xpose.msra.mxu0 0.0
    %1736 = vmatprep.subr.mxu0 0.0
    %1737 = vmatpush2.xpose.msra.mxu0 0.0
    %1738 = vmatprep.subr.mxu0 0.0
    %1739 = vmatpush2.xpose.msra.mxu0 0.0
    %1740 = vmatprep.subr.mxu0 0.0
    %1741 = vmatpush2.xpose.msra.mxu0 0.0
    %1742 = vmatprep.subr.mxu0 0.0
    %1743 = vmatpush2.xpose.msra.mxu0 0.0
    %1744 = vmatprep.subr.mxu0 0.0
    %1745 = vmatpush2.xpose.msra.mxu0 0.0
    %1746 = vmatprep.subr.mxu0 0.0
    %1747 = vmatpush2.xpose.msra.mxu0 0.0
    %1748 = vmatprep.subr.mxu0 0.0
    %1749 = vmatpush2.xpose.msra.mxu0 0.0
    %1750 = vmatprep.subr.mxu0 0.0
    %1751 = vmatpush2.xpose.msra.mxu0 0.0
    %1752 = vmatprep.subr.mxu0 0.0
    %1753 = vmatpush2.xpose.msra.mxu0 0.0
    %1754 = vmatprep.mubr.f32.mxu0 0.0
    %1755 = vmatmul.mubr.f32.gmra.mxu0 %v1682
    %v1756 = vpop.f32.mrf.mxu0
    %v1757 = vadd.f32 0.0, %v1756
    %v1758 = vpop.f32.mrf.mxu0
    %1759 = vdwg.mxu0
    %1760 = vxpose.xlu0.b32.start [1/16] %v1204, 128
    %1761 = vxpose.xlu0.b32.cont [2/16] %v1283, 128
    %1762 = vxpose.xlu0.b32.cont [3/16] %v1362, 128
    %1763 = vxpose.xlu0.b32.cont [4/16] %v1441, 128
    %1764 = vxpose.xlu0.b32.cont [5/16] %v1520, 128
    %1765 = vxpose.xlu0.b32.cont [6/16] %v1599, 128
    %1766 = vxpose.xlu0.b32.cont [7/16] %v1678, 128
    %1767 = vxpose.xlu0.b32.cont [8/16] %v1757, 128
    %1768 = vxpose.xlu0.b32.cont [9/16] 0.0, 128
    %1769 = vxpose.xlu0.b32.cont [10/16] 0.0, 128
    %1770 = vxpose.xlu0.b32.cont [11/16] 0.0, 128
    %1771 = vxpose.xlu0.b32.cont [12/16] 0.0, 128
    %1772 = vxpose.xlu0.b32.cont [13/16] 0.0, 128
    %1773 = vxpose.xlu0.b32.cont [14/16] 0.0, 128
    %1774 = vxpose.xlu0.b32.cont [15/16] 0.0, 128
    %1775 = vxpose.xlu0.b32.end [16/16] 0.0, 128
    %v1776 = vpop.trf.xlu0
    %v1777 = vpop.trf.xlu0
    %v1778 = vpop.trf.xlu0
    %v1779 = vpop.trf.xlu0
    %v1780 = vpop.trf.xlu0
    %v1781 = vpop.trf.xlu0
    %v1782 = vpop.trf.xlu0
    %v1783 = vpop.trf.xlu0
    %v1784 = vpop.trf.xlu0
    %v1785 = vpop.trf.xlu0
    %v1786 = vpop.trf.xlu0
    %v1787 = vpop.trf.xlu0
    %v1788 = vpop.trf.xlu0
    %v1789 = vpop.trf.xlu0
    %v1790 = vpop.trf.xlu0
    %v1791 = vpop.trf.xlu0
    %v1792 = vpack.c.bf16 %v1777, %v1776
    %v1793 = vld [vmem:[%s5] sm:$0xf]
    %v1794 = vld [vmem:[%s5 + $0x4] sm:$0xf]
    %v1795 = vld [vmem:[%s5 + $0x8] sm:$0xf]
    %v1796 = vld [vmem:[%s5 + $0xc] sm:$0xf]
    %v1797 = vld [vmem:[%s5 + $0x10] sm:$0xf]
    %v1798 = vld [vmem:[%s5 + $0x14] sm:$0xf]
    %v1799 = vld [vmem:[%s5 + $0x18] sm:$0xf]
    %v1800 = vld [vmem:[%s5 + $0x1c] sm:$0xf]
    %v1809 = vunpack.c.l.b16 %v1793
    %v1810 = vunpack.c.l.b16 %v1794
    %v1811 = vunpack.c.l.b16 %v1795
    %v1812 = vunpack.c.l.b16 %v1796
    %v1813 = vunpack.c.l.b16 %v1797
    %v1814 = vunpack.c.l.b16 %v1798
    %v1815 = vunpack.c.l.b16 %v1799
    %v1816 = vunpack.c.l.b16 %v1800
    %v1817 = vpack.c.b16 %v1810, %v1809
    %v1818 = vpack.c.b16 %v1812, %v1811
    %v1819 = vpack.c.b16 %v1814, %v1813
    %v1820 = vpack.c.b16 %v1816, %v1815
    %v1826 = vsel %vm71, %v1792, 0
    %1828 = vmatprep.subr.bf16.mxu0 0
    %1829 = vmatpush1.bf16.msra.mxu0 0
    %1830 = vmatprep.subr.bf16.mxu0 0
    %1831 = vmatpush1.bf16.msra.mxu0 0
    %1832 = vmatprep.subr.bf16.mxu0 0
    %1833 = vmatpush1.bf16.msra.mxu0 0
    %1834 = vmatprep.subr.bf16.mxu0 0
    %1835 = vmatpush1.bf16.msra.mxu0 0
    %1836 = vmatprep.subr.bf16.mxu0 0
    %1837 = vmatpush1.bf16.msra.mxu0 %v1820
    %1838 = vmatprep.subr.bf16.mxu0 0
    %1839 = vmatpush1.bf16.msra.mxu0 %v1819
    %1840 = vmatprep.subr.bf16.mxu0 0
    %1841 = vmatpush1.bf16.msra.mxu0 %v1818
    %1842 = vmatprep.subr.bf16.mxu0 0
    %1843 = vmatpush1.bf16.msra.mxu0 %v1817
    %1844 = vmatprep.subr.bf16.mxu0 0
    %1845 = vmatpush2.bf16.msra.mxu0 0
    %1846 = vmatprep.subr.bf16.mxu0 0
    %1847 = vmatpush2.bf16.msra.mxu0 0
    %1848 = vmatprep.subr.bf16.mxu0 0
    %1849 = vmatpush2.bf16.msra.mxu0 0
    %1850 = vmatprep.subr.bf16.mxu0 0
    %1851 = vmatpush2.bf16.msra.mxu0 0
    %1852 = vmatprep.subr.bf16.mxu0 0
    %1853 = vmatpush2.bf16.msra.mxu0 0
    %1854 = vmatprep.subr.bf16.mxu0 0
    %1855 = vmatpush2.bf16.msra.mxu0 0
    %1856 = vmatprep.subr.bf16.mxu0 0
    %1857 = vmatpush2.bf16.msra.mxu0 0
    %1858 = vmatprep.subr.bf16.mxu0 0
    %1859 = vmatpush2.bf16.msra.mxu0 0
    %1860 = vmatprep.mubr.bf16.mxu0 0
    %1861 = vmatmul.mubr.bf16.gmra.mxu0 %v1826
    %v1862 = vpop.f32.mrf.mxu0
    %v1863 = vadd.f32 0.0, %v1862
    %v1864 = vpop.f32.mrf.mxu0
    %v1865 = vpop.f32.mrf.mxu0
    %v1866 = vadd.f32 0.0, %v1865
    %v1867 = vpop.f32.mrf.mxu0
    %1868 = vdwg.mxu0
    %v1869 = vadd.f32 %v63, %v1863
    %v1870 = vadd.f32 %v64, %v1866
    %v1871 = vld [vmem:[%s6] sm:$0x1]
    %v1872 = vld [vmem:[%s7] sm:$0x1]
    %v1873 = vsel %vm71, %v1869, 0.0
    %1874 = vadd.xlane.f32.xlu0 %v1873
    %v1875 = vpop.xlane.xlu0 %1874
    %v1876 = vsel %vm71, %v1870, 0.0
    %1877 = vadd.xlane.f32.xlu0 %v1876
    %v1878 = vpop.xlane.xlu0 %1877
    %v1879 = vmul.f32 %v1875, %v78
    %v1880 = vmul.f32 %v1878, %v78
    %v1881 = vsub.f32 %v1869, %v1879
    %v1882 = vsub.f32 %v1870, %v1880
    %v1883 = vmul.f32 %v1881, %v1881
    %v1884 = vmul.f32 %v1882, %v1882
    %v1885 = vsel %vm71, %v1883, 0.0
    %1886 = vadd.xlane.f32.xlu0 %v1885
    %v1887 = vpop.xlane.xlu0 %1886
    %v1888 = vsel %vm71, %v1884, 0.0
    %1889 = vadd.xlane.f32.xlu0 %v1888
    %v1890 = vpop.xlane.xlu0 %1889
    %v1891 = vmul.f32 %v1887, %v78
    %v1892 = vmul.f32 %v1890, %v78
    %v1893 = vadd.f32 %v1891, 1e-05
    %v1894 = vadd.f32 %v1892, 1e-05
    %v1895 = vrsqrt.pop %v1893
    %v1896 = vrsqrt.pop %v1894
    %v1897 = vmul.f32 %v1881, %v1895
    %v1898 = vmul.f32 %v1882, %v1896
    %v1900 = vlaneseq
    %v1901 = vshrl.u32 %v1900, 7
    %v1902 = vsub.s32 0, %v1901
    %v1903 = vrot.slane %v1871, %v1902
    %v1905 = vmul.f32 %v1897, %v1903
    %v1906 = vmul.f32 %v1898, %v1903
    %v1908 = vlaneseq
    %v1909 = vshrl.u32 %v1908, 7
    %v1910 = vsub.s32 0, %v1909
    %v1911 = vrot.slane %v1872, %v1910
    %v1913 = vadd.f32 %v1905, %v1911
    %v1914 = vadd.f32 %v1906, %v1911
    %v1915 = vld [vmem:[%s8] sm:$0x1]
    %v1916 = vld [vmem:[%s9] sm:$0x1]
    %v1917 = vsel %vm71, %v1913, 0.0
    %1918 = vadd.xlane.f32.xlu0 %v1917
    %v1919 = vpop.xlane.xlu0 %1918
    %v1920 = vsel %vm71, %v1914, 0.0
    %1921 = vadd.xlane.f32.xlu0 %v1920
    %v1922 = vpop.xlane.xlu0 %1921
    %v1923 = vmul.f32 %v1919, %v78
    %v1924 = vmul.f32 %v1922, %v78
    %v1925 = vsub.f32 %v1913, %v1923
    %v1926 = vsub.f32 %v1914, %v1924
    %v1927 = vmul.f32 %v1925, %v1925
    %v1928 = vmul.f32 %v1926, %v1926
    %v1929 = vsel %vm71, %v1927, 0.0
    %1930 = vadd.xlane.f32.xlu0 %v1929
    %v1931 = vpop.xlane.xlu0 %1930
    %v1932 = vsel %vm71, %v1928, 0.0
    %1933 = vadd.xlane.f32.xlu0 %v1932
    %v1934 = vpop.xlane.xlu0 %1933
    %v1935 = vmul.f32 %v1931, %v78
    %v1936 = vmul.f32 %v1934, %v78
    %v1937 = vadd.f32 %v1935, 1e-05
    %v1938 = vadd.f32 %v1936, 1e-05
    %v1939 = vrsqrt.pop %v1937
    %v1940 = vrsqrt.pop %v1938
    %v1941 = vmul.f32 %v1925, %v1939
    %v1942 = vmul.f32 %v1926, %v1940
    %v1944 = vlaneseq
    %v1945 = vshrl.u32 %v1944, 7
    %v1946 = vsub.s32 0, %v1945
    %v1947 = vrot.slane %v1915, %v1946
    %v1949 = vmul.f32 %v1941, %v1947
    %v1950 = vmul.f32 %v1942, %v1947
    %v1952 = vlaneseq
    %v1953 = vshrl.u32 %v1952, 7
    %v1954 = vsub.s32 0, %v1953
    %v1955 = vrot.slane %v1916, %v1954
    %v1957 = vadd.f32 %v1949, %v1955
    %v1958 = vadd.f32 %v1950, %v1955
    %v1959 = vpack.c.bf16 %v1958, %v1957
    %v1960 = vld [vmem:[#allocation2] sm:$0xf]
    %v1961 = vld [vmem:[#allocation2 + $0x4] sm:$0xf]
    %v1962 = vld [vmem:[#allocation2 + $0x8] sm:$0xf]
    %v1963 = vld [vmem:[#allocation2 + $0xc] sm:$0xf]
    %v1964 = vld [vmem:[#allocation2 + $0x10] sm:$0xf]
    %v1965 = vld [vmem:[#allocation2 + $0x14] sm:$0xf]
    %v1966 = vld [vmem:[#allocation2 + $0x18] sm:$0xf]
    %v1967 = vld [vmem:[#allocation2 + $0x1c] sm:$0xf]
    %v1968 = vld [vmem:[%s11] sm:$0x1]
    %v1970 = vlaneseq
    %v1971 = vshrl.u32 %v1970, 7
    %v1972 = vsub.s32 0, %v1971
    %v1973 = vrot.slane %v1968, %v1972
    %v1983 = vunpack.c.l.b16 %v1960
    %v1984 = vunpack.c.l.b16 %v1961
    %v1985 = vunpack.c.l.b16 %v1962
    %v1986 = vunpack.c.l.b16 %v1963
    %v1987 = vunpack.c.l.b16 %v1964
    %v1988 = vunpack.c.l.b16 %v1965
    %v1989 = vunpack.c.l.b16 %v1966
    %v1990 = vunpack.c.l.b16 %v1967
    %v1991 = vpack.c.b16 %v1984, %v1983
    %v1992 = vpack.c.b16 %v1986, %v1985
    %v1993 = vpack.c.b16 %v1988, %v1987
    %v1994 = vpack.c.b16 %v1990, %v1989
    %v2000 = vsel %vm71, %v1959, 0
    %2002 = vmatprep.subr.bf16.mxu0 0
    %2003 = vmatpush1.bf16.msra.mxu0 0
    %2004 = vmatprep.subr.bf16.mxu0 0
    %2005 = vmatpush1.bf16.msra.mxu0 0
    %2006 = vmatprep.subr.bf16.mxu0 0
    %2007 = vmatpush1.bf16.msra.mxu0 0
    %2008 = vmatprep.subr.bf16.mxu0 0
    %2009 = vmatpush1.bf16.msra.mxu0 0
    %2010 = vmatprep.subr.bf16.mxu0 0
    %2011 = vmatpush1.bf16.msra.mxu0 %v1994
    %2012 = vmatprep.subr.bf16.mxu0 0
    %2013 = vmatpush1.bf16.msra.mxu0 %v1993
    %2014 = vmatprep.subr.bf16.mxu0 0
    %2015 = vmatpush1.bf16.msra.mxu0 %v1992
    %2016 = vmatprep.subr.bf16.mxu0 0
    %2017 = vmatpush1.bf16.msra.mxu0 %v1991
    %2018 = vmatprep.subr.bf16.mxu0 0
    %2019 = vmatpush2.bf16.msra.mxu0 0
    %2020 = vmatprep.subr.bf16.mxu0 0
    %2021 = vmatpush2.bf16.msra.mxu0 0
    %2022 = vmatprep.subr.bf16.mxu0 0
    %2023 = vmatpush2.bf16.msra.mxu0 0
    %2024 = vmatprep.subr.bf16.mxu0 0
    %2025 = vmatpush2.bf16.msra.mxu0 0
    %2026 = vmatprep.subr.bf16.mxu0 0
    %2027 = vmatpush2.bf16.msra.mxu0 0
    %2028 = vmatprep.subr.bf16.mxu0 0
    %2029 = vmatpush2.bf16.msra.mxu0 0
    %2030 = vmatprep.subr.bf16.mxu0 0
    %2031 = vmatpush2.bf16.msra.mxu0 0
    %2032 = vmatprep.subr.bf16.mxu0 0
    %2033 = vmatpush2.bf16.msra.mxu0 0
    %2034 = vmatprep.mubr.bf16.mxu0 0
    %2035 = vmatmul.mubr.bf16.gmra.mxu0 %v2000
    %v2036 = vpop.f32.mrf.mxu0
    %v2037 = vadd.f32 %v1973, %v2036
    %v2038 = vpop.f32.mrf.mxu0
    %v2039 = vpop.f32.mrf.mxu0
    %v2040 = vadd.f32 %v1973, %v2039
    %v2041 = vpop.f32.mrf.mxu0
    %2042 = vdwg.mxu0
    %v2043 = vmul.f32 %v2037, 0.5
    %v2044 = vmul.f32 %v2040, 0.5
    %v2045 = vrcp.pop 1.4142135
    %v2046 = vmul.f32 %v2037, %v2045
    %v2047 = vmul.f32 %v2040, %v2045
    %v2048 = verf.f32.pop %v2046
    %v2049 = verf.f32.pop %v2047
    %v2050 = vadd.f32 %v2048, 1.0
    %v2051 = vadd.f32 %v2049, 1.0
    %v2052 = vmul.f32 %v2043, %v2050
    %v2053 = vmul.f32 %v2044, %v2051
    %v2054 = vpack.c.bf16 %v2053, %v2052
    %v2055 = vld [vmem:[%s12] sm:$0xf]
    %v2056 = vld [vmem:[%s12 + $0x4] sm:$0xf]
    %v2057 = vld [vmem:[%s12 + $0x8] sm:$0xf]
    %v2058 = vld [vmem:[%s12 + $0xc] sm:$0xf]
    %v2059 = vld [vmem:[%s12 + $0x10] sm:$0xf]
    %v2060 = vld [vmem:[%s12 + $0x14] sm:$0xf]
    %v2061 = vld [vmem:[%s12 + $0x18] sm:$0xf]
    %v2062 = vld [vmem:[%s12 + $0x1c] sm:$0xf]
    %v2063 = vld [vmem:[%s12 + $0x20] sm:$0xf]
    %v2064 = vld [vmem:[%s12 + $0x24] sm:$0xf]
    %v2065 = vld [vmem:[%s12 + $0x28] sm:$0xf]
    %v2066 = vld [vmem:[%s12 + $0x2c] sm:$0xf]
    %v2067 = vld [vmem:[%s12 + $0x30] sm:$0xf]
    %v2068 = vld [vmem:[%s12 + $0x34] sm:$0xf]
    %v2069 = vld [vmem:[%s12 + $0x38] sm:$0xf]
    %v2070 = vld [vmem:[%s12 + $0x3c] sm:$0xf]
    %v2071 = vld [vmem:[%s13] sm:$0x1]
    %v2073 = vlaneseq
    %v2074 = vshrl.u32 %v2073, 7
    %v2075 = vsub.s32 0, %v2074
    %v2076 = vrot.slane %v2071, %v2075
    %v2094 = vunpack.c.l.b16 %v2055
    %v2095 = vunpack.c.l.b16 %v2056
    %v2096 = vunpack.c.l.b16 %v2057
    %v2097 = vunpack.c.l.b16 %v2058
    %v2098 = vunpack.c.l.b16 %v2059
    %v2099 = vunpack.c.l.b16 %v2060
    %v2100 = vunpack.c.l.b16 %v2061
    %v2101 = vunpack.c.l.b16 %v2062
    %v2102 = vunpack.c.l.b16 %v2063
    %v2103 = vunpack.c.l.b16 %v2064
    %v2104 = vunpack.c.l.b16 %v2065
    %v2105 = vunpack.c.l.b16 %v2066
    %v2106 = vunpack.c.l.b16 %v2067
    %v2107 = vunpack.c.l.b16 %v2068
    %v2108 = vunpack.c.l.b16 %v2069
    %v2109 = vunpack.c.l.b16 %v2070
    %v2110 = vpack.c.b16 %v2095, %v2094
    %v2111 = vpack.c.b16 %v2097, %v2096
    %v2112 = vpack.c.b16 %v2099, %v2098
    %v2113 = vpack.c.b16 %v2101, %v2100
    %v2114 = vpack.c.b16 %v2103, %v2102
    %v2115 = vpack.c.b16 %v2105, %v2104
    %v2116 = vpack.c.b16 %v2107, %v2106
    %v2117 = vpack.c.b16 %v2109, %v2108
    %2126 = vmatprep.subr.bf16.mxu0 0
    %2127 = vmatpush1.bf16.msra.mxu0 %v2117
    %2128 = vmatprep.subr.bf16.mxu0 0
    %2129 = vmatpush1.bf16.msra.mxu0 %v2116
    %2130 = vmatprep.subr.bf16.mxu0 0
    %2131 = vmatpush1.bf16.msra.mxu0 %v2115
    %2132 = vmatprep.subr.bf16.mxu0 0
    %2133 = vmatpush1.bf16.msra.mxu0 %v2114
    %2134 = vmatprep.subr.bf16.mxu0 0
    %2135 = vmatpush1.bf16.msra.mxu0 %v2113
    %2136 = vmatprep.subr.bf16.mxu0 0
    %2137 = vmatpush1.bf16.msra.mxu0 %v2112
    %2138 = vmatprep.subr.bf16.mxu0 0
    %2139 = vmatpush1.bf16.msra.mxu0 %v2111
    %2140 = vmatprep.subr.bf16.mxu0 0
    %2141 = vmatpush1.bf16.msra.mxu0 %v2110
    %2142 = vmatprep.subr.bf16.mxu0 0
    %2143 = vmatpush2.bf16.msra.mxu0 0
    %2144 = vmatprep.subr.bf16.mxu0 0
    %2145 = vmatpush2.bf16.msra.mxu0 0
    %2146 = vmatprep.subr.bf16.mxu0 0
    %2147 = vmatpush2.bf16.msra.mxu0 0
    %2148 = vmatprep.subr.bf16.mxu0 0
    %2149 = vmatpush2.bf16.msra.mxu0 0
    %2150 = vmatprep.subr.bf16.mxu0 0
    %2151 = vmatpush2.bf16.msra.mxu0 0
    %2152 = vmatprep.subr.bf16.mxu0 0
    %2153 = vmatpush2.bf16.msra.mxu0 0
    %2154 = vmatprep.subr.bf16.mxu0 0
    %2155 = vmatpush2.bf16.msra.mxu0 0
    %2156 = vmatprep.subr.bf16.mxu0 0
    %2157 = vmatpush2.bf16.msra.mxu0 0
    %2158 = vmatprep.mubr.bf16.mxu0 0
    %2159 = vmatmul.mubr.bf16.gmra.mxu0 %v2054
    %v2160 = vpop.f32.mrf.mxu0
    %v2161 = vadd.f32 %v2076, %v2160
    %v2162 = vpop.f32.mrf.mxu0
    %v2163 = vpop.f32.mrf.mxu0
    %v2164 = vadd.f32 %v2076, %v2163
    %v2165 = vpop.f32.mrf.mxu0
    %2166 = vdwg.mxu0
    %v2167 = vadd.f32 %v1869, %v2161
    %v2168 = vadd.f32 %v1870, %v2164
    %s2169 = scalar_lea.vmem %s2, 1
    %v2170 = vld [vmem:[%s2169] sm:$0x1]
    %s2171 = scalar_lea.vmem %s3, 1
    %v2172 = vld [vmem:[%s2171] sm:$0x1]
    %v2173 = vsel %vm71, %v2167, 0.0
    %2174 = vadd.xlane.f32.xlu0 %v2173
    %v2175 = vpop.xlane.xlu0 %2174
    %v2176 = vsel %vm71, %v2168, 0.0
    %2177 = vadd.xlane.f32.xlu0 %v2176
    %v2178 = vpop.xlane.xlu0 %2177
    %v2179 = vmul.f32 %v2175, %v78
    %v2180 = vmul.f32 %v2178, %v78
    %v2181 = vsub.f32 %v2167, %v2179
    %v2182 = vsub.f32 %v2168, %v2180
    %v2183 = vmul.f32 %v2181, %v2181
    %v2184 = vmul.f32 %v2182, %v2182
    %v2185 = vsel %vm71, %v2183, 0.0
    %2186 = vadd.xlane.f32.xlu0 %v2185
    %v2187 = vpop.xlane.xlu0 %2186
    %v2188 = vsel %vm71, %v2184, 0.0
    %2189 = vadd.xlane.f32.xlu0 %v2188
    %v2190 = vpop.xlane.xlu0 %2189
    %v2191 = vmul.f32 %v2187, %v78
    %v2192 = vmul.f32 %v2190, %v78
    %v2193 = vadd.f32 %v2191, 1e-05
    %v2194 = vadd.f32 %v2192, 1e-05
    %v2195 = vrsqrt.pop %v2193
    %v2196 = vrsqrt.pop %v2194
    %v2197 = vmul.f32 %v2181, %v2195
    %v2198 = vmul.f32 %v2182, %v2196
    %v2200 = vlaneseq
    %v2201 = vshrl.u32 %v2200, 7
    %v2202 = vsub.s32 0, %v2201
    %v2203 = vrot.slane %v2170, %v2202
    %v2205 = vmul.f32 %v2197, %v2203
    %v2206 = vmul.f32 %v2198, %v2203
    %v2208 = vlaneseq
    %v2209 = vshrl.u32 %v2208, 7
    %v2210 = vsub.s32 0, %v2209
    %v2211 = vrot.slane %v2172, %v2210
    %v2213 = vadd.f32 %v2205, %v2211
    %v2214 = vadd.f32 %v2206, %v2211
    %v2215 = vpack.c.bf16 %v2214, %v2213
    %s2216 = scalar_lea.vmem %s4, 64
    %v2217 = vld [vmem:[%s2216] sm:$0xff]
    %v2218 = vld [vmem:[%s2216 + $0x8] sm:$0xff]
    %v2219 = vld [vmem:[%s2216 + $0x10] sm:$0xff]
    %v2220 = vld [vmem:[%s2216 + $0x18] sm:$0xff]
    %v2221 = vld [vmem:[%s2216 + $0x20] sm:$0xff]
    %v2222 = vld [vmem:[%s2216 + $0x28] sm:$0xff]
    %v2223 = vld [vmem:[%s2216 + $0x30] sm:$0xff]
    %v2224 = vld [vmem:[%s2216 + $0x38] sm:$0xff]
    %v2233 = vunpack.c.l.b16 %v2217
    %v2234 = vunpack.c.h.b16 %v2217
    %v2235 = vunpack.c.l.b16 %v2218
    %v2236 = vunpack.c.h.b16 %v2218
    %v2237 = vunpack.c.l.b16 %v2219
    %v2238 = vunpack.c.h.b16 %v2219
    %v2239 = vunpack.c.l.b16 %v2220
    %v2240 = vunpack.c.h.b16 %v2220
    %v2241 = vunpack.c.l.b16 %v2221
    %v2242 = vunpack.c.h.b16 %v2221
    %v2243 = vunpack.c.l.b16 %v2222
    %v2244 = vunpack.c.h.b16 %v2222
    %v2245 = vunpack.c.l.b16 %v2223
    %v2246 = vunpack.c.h.b16 %v2223
    %v2247 = vunpack.c.l.b16 %v2224
    %v2248 = vunpack.c.h.b16 %v2224
    %v2249 = vpack.c.b16 %v2235, %v2233
    %v2250 = vpack.c.b16 %v2236, %v2234
    %v2251 = vpack.c.b16 %v2239, %v2237
    %v2252 = vpack.c.b16 %v2240, %v2238
    %v2253 = vpack.c.b16 %v2243, %v2241
    %v2254 = vpack.c.b16 %v2244, %v2242
    %v2255 = vpack.c.b16 %v2247, %v2245
    %v2256 = vpack.c.b16 %v2248, %v2246
    %v2266 = vsel %vm71, %v2215, 0
    %2268 = vmatprep.subr.bf16.mxu0 0
    %2269 = vmatpush1.bf16.msra.mxu0 0
    %2270 = vmatprep.subr.bf16.mxu0 0
    %2271 = vmatpush1.bf16.msra.mxu0 0
    %2272 = vmatprep.subr.bf16.mxu0 0
    %2273 = vmatpush1.bf16.msra.mxu0 0
    %2274 = vmatprep.subr.bf16.mxu0 0
    %2275 = vmatpush1.bf16.msra.mxu0 0
    %2276 = vmatprep.subr.bf16.mxu0 %v2256
    %2277 = vmatpush1.bf16.msra.mxu0 %v2255
    %2278 = vmatprep.subr.bf16.mxu0 %v2254
    %2279 = vmatpush1.bf16.msra.mxu0 %v2253
    %2280 = vmatprep.subr.bf16.mxu0 %v2252
    %2281 = vmatpush1.bf16.msra.mxu0 %v2251
    %2282 = vmatprep.subr.bf16.mxu0 %v2250
    %2283 = vmatpush1.bf16.msra.mxu0 %v2249
    %2284 = vmatprep.subr.bf16.mxu0 0
    %2285 = vmatpush2.bf16.msra.mxu0 0
    %2286 = vmatprep.subr.bf16.mxu0 0
    %2287 = vmatpush2.bf16.msra.mxu0 0
    %2288 = vmatprep.subr.bf16.mxu0 0
    %2289 = vmatpush2.bf16.msra.mxu0 0
    %2290 = vmatprep.subr.bf16.mxu0 0
    %2291 = vmatpush2.bf16.msra.mxu0 0
    %2292 = vmatprep.subr.bf16.mxu0 0
    %2293 = vmatpush2.bf16.msra.mxu0 0
    %2294 = vmatprep.subr.bf16.mxu0 0
    %2295 = vmatpush2.bf16.msra.mxu0 0
    %2296 = vmatprep.subr.bf16.mxu0 0
    %2297 = vmatpush2.bf16.msra.mxu0 0
    %2298 = vmatprep.subr.bf16.mxu0 0
    %2299 = vmatpush2.bf16.msra.mxu0 0
    %2300 = vmatprep.mubr.bf16.mxu0 0
    %2301 = vmatmul.mubr.bf16.gmra.mxu0 %v2266
    %v2302 = vpop.f32.mrf.mxu0
    %v2303 = vadd.f32 0.0, %v2302
    %v2304 = vpop.f32.mrf.mxu0
    %v2305 = vadd.f32 0.0, %v2304
    %v2306 = vpop.f32.mrf.mxu0
    %v2307 = vadd.f32 0.0, %v2306
    %v2308 = vpop.f32.mrf.mxu0
    %v2309 = vadd.f32 0.0, %v2308
    %2310 = vdwg.mxu0
    %2313 = vrot.lane.b32.xlu0 %v2303, 120
    %v2314 = vpop.permute.xlu0 %2313
    %2315 = vrot.lane.b32.xlu0 %v2307, 120
    %v2316 = vpop.permute.xlu0 %2315
    %2317 = vrot.lane.b32.xlu0 %v2303, 112
    %v2318 = vpop.permute.xlu0 %2317
    %2319 = vrot.lane.b32.xlu0 %v2307, 112
    %v2320 = vpop.permute.xlu0 %2319
    %2321 = vrot.lane.b32.xlu0 %v2303, 104
    %v2322 = vpop.permute.xlu0 %2321
    %2323 = vrot.lane.b32.xlu0 %v2307, 104
    %v2324 = vpop.permute.xlu0 %2323
    %2325 = vrot.lane.b32.xlu0 %v2303, 96
    %v2326 = vpop.permute.xlu0 %2325
    %2327 = vrot.lane.b32.xlu0 %v2307, 96
    %v2328 = vpop.permute.xlu0 %2327
    %2329 = vrot.lane.b32.xlu0 %v2303, 88
    %v2330 = vpop.permute.xlu0 %2329
    %2331 = vrot.lane.b32.xlu0 %v2307, 88
    %v2332 = vpop.permute.xlu0 %2331
    %2333 = vrot.lane.b32.xlu0 %v2303, 80
    %v2334 = vpop.permute.xlu0 %2333
    %2335 = vrot.lane.b32.xlu0 %v2307, 80
    %v2336 = vpop.permute.xlu0 %2335
    %2337 = vrot.lane.b32.xlu0 %v2303, 72
    %v2338 = vpop.permute.xlu0 %2337
    %2339 = vrot.lane.b32.xlu0 %v2307, 72
    %v2340 = vpop.permute.xlu0 %2339
    %2343 = vrot.lane.b32.xlu0 %v2303, 64
    %v2344 = vpop.permute.xlu0 %2343
    %2345 = vrot.lane.b32.xlu0 %v2305, 64
    %v2346 = vpop.permute.xlu0 %2345
    %2347 = vrot.lane.b32.xlu0 %v2307, 64
    %v2348 = vpop.permute.xlu0 %2347
    %2349 = vrot.lane.b32.xlu0 %v2309, 64
    %v2350 = vpop.permute.xlu0 %2349
    %v2351 = vsel %vm71, %v2344, %v2346
    %v2352 = vsel %vm71, %v2348, %v2350
    %2355 = vxpose.xlu0.b32.start [1/16] %v2351, 128
    %2356 = vxpose.xlu0.b32.cont [2/16] %v2352, 128
    %2357 = vxpose.xlu0.b32.cont [3/16] 0.0, 128
    %2358 = vxpose.xlu0.b32.cont [4/16] 0.0, 128
    %2359 = vxpose.xlu0.b32.cont [5/16] 0.0, 128
    %2360 = vxpose.xlu0.b32.cont [6/16] 0.0, 128
    %2361 = vxpose.xlu0.b32.cont [7/16] 0.0, 128
    %2362 = vxpose.xlu0.b32.cont [8/16] 0.0, 128
    %2363 = vxpose.xlu0.b32.cont [9/16] 0.0, 128
    %2364 = vxpose.xlu0.b32.cont [10/16] 0.0, 128
    %2365 = vxpose.xlu0.b32.cont [11/16] 0.0, 128
    %2366 = vxpose.xlu0.b32.cont [12/16] 0.0, 128
    %2367 = vxpose.xlu0.b32.cont [13/16] 0.0, 128
    %2368 = vxpose.xlu0.b32.cont [14/16] 0.0, 128
    %2369 = vxpose.xlu0.b32.cont [15/16] 0.0, 128
    %2370 = vxpose.xlu0.b32.end [16/16] 0.0, 128
    %v2371 = vpop.trf.xlu0
    %v2372 = vpop.trf.xlu0
    %v2373 = vpop.trf.xlu0
    %v2374 = vpop.trf.xlu0
    %v2375 = vpop.trf.xlu0
    %v2376 = vpop.trf.xlu0
    %v2377 = vpop.trf.xlu0
    %v2378 = vpop.trf.xlu0
    %v2379 = vpop.trf.xlu0
    %v2380 = vpop.trf.xlu0
    %v2381 = vpop.trf.xlu0
    %v2382 = vpop.trf.xlu0
    %v2383 = vpop.trf.xlu0
    %v2384 = vpop.trf.xlu0
    %v2385 = vpop.trf.xlu0
    %v2386 = vpop.trf.xlu0
    %v2387 = vsel %vm286, %v2303, 0
    %v2389 = vsel %vm286, %v2307, 0
    %2391 = vmatprep.subr.mxu0 0.0
    %2392 = vmatpush1.msra.mxu0 0.0
    %2393 = vmatprep.subr.mxu0 0.0
    %2394 = vmatpush1.msra.mxu0 0.0
    %2395 = vmatprep.subr.mxu0 0.0
    %2396 = vmatpush1.msra.mxu0 0.0
    %2397 = vmatprep.subr.mxu0 0.0
    %2398 = vmatpush1.msra.mxu0 0.0
    %2399 = vmatprep.subr.mxu0 0.0
    %2400 = vmatpush1.msra.mxu0 0.0
    %2401 = vmatprep.subr.mxu0 0.0
    %2402 = vmatpush1.msra.mxu0 0.0
    %2403 = vmatprep.subr.mxu0 0.0
    %2404 = vmatpush1.msra.mxu0 0.0
    %2405 = vmatprep.subr.mxu0 0.0
    %2406 = vmatpush1.msra.mxu0 0.0
    %2407 = vmatprep.subr.mxu0 0.0
    %2408 = vmatpush1.msra.mxu0 0.0
    %2409 = vmatprep.subr.mxu0 0.0
    %2410 = vmatpush1.msra.mxu0 0.0
    %2411 = vmatprep.subr.mxu0 0.0
    %2412 = vmatpush1.msra.mxu0 0.0
    %2413 = vmatprep.subr.mxu0 0.0
    %2414 = vmatpush1.msra.mxu0 0.0
    %2415 = vmatprep.subr.mxu0 0.0
    %2416 = vmatpush1.msra.mxu0 0.0
    %2417 = vmatprep.subr.mxu0 0.0
    %2418 = vmatpush1.msra.mxu0 0.0
    %2419 = vmatprep.subr.mxu0 0.0
    %2420 = vmatpush1.msra.mxu0 0.0
    %2421 = vmatprep.subr.mxu0 0.0
    %2422 = vmatpush1.msra.mxu0 %v2371
    %2423 = vmatprep.subr.mxu0 0.0
    %2424 = vmatpush2.msra.mxu0 0.0
    %2425 = vmatprep.subr.mxu0 0.0
    %2426 = vmatpush2.msra.mxu0 0.0
    %2427 = vmatprep.subr.mxu0 0.0
    %2428 = vmatpush2.msra.mxu0 0.0
    %2429 = vmatprep.subr.mxu0 0.0
    %2430 = vmatpush2.msra.mxu0 0.0
    %2431 = vmatprep.subr.mxu0 0.0
    %2432 = vmatpush2.msra.mxu0 0.0
    %2433 = vmatprep.subr.mxu0 0.0
    %2434 = vmatpush2.msra.mxu0 0.0
    %2435 = vmatprep.subr.mxu0 0.0
    %2436 = vmatpush2.msra.mxu0 0.0
    %2437 = vmatprep.subr.mxu0 0.0
    %2438 = vmatpush2.msra.mxu0 0.0
    %2439 = vmatprep.subr.mxu0 0.0
    %2440 = vmatpush2.msra.mxu0 0.0
    %2441 = vmatprep.subr.mxu0 0.0
    %2442 = vmatpush2.msra.mxu0 0.0
    %2443 = vmatprep.subr.mxu0 0.0
    %2444 = vmatpush2.msra.mxu0 0.0
    %2445 = vmatprep.subr.mxu0 0.0
    %2446 = vmatpush2.msra.mxu0 0.0
    %2447 = vmatprep.subr.mxu0 0.0
    %2448 = vmatpush2.msra.mxu0 0.0
    %2449 = vmatprep.subr.mxu0 0.0
    %2450 = vmatpush2.msra.mxu0 0.0
    %2451 = vmatprep.subr.mxu0 0.0
    %2452 = vmatpush2.msra.mxu0 0.0
    %2453 = vmatprep.subr.mxu0 0.0
    %2454 = vmatpush2.msra.mxu0 0.0
    %2455 = vmatprep.mubr.f32.mxu0 0.0
    %2456 = vmatmul.mubr.f32.gmra.mxu0 %v2387
    %v2457 = vpop.f32.mrf.mxu0
    %v2458 = vadd.f32 0.0, %v2457
    %v2459 = vpop.f32.mrf.mxu0
    %2460 = vmatprep.mubr.f32.mxu0 0.0
    %2461 = vmatmul.mubr.f32.gmra.mxu0 %v2389
    %v2462 = vpop.f32.mrf.mxu0
    %v2463 = vadd.f32 0.0, %v2462
    %v2464 = vpop.f32.mrf.mxu0
    %2465 = vdwg.mxu0
    %v2466 = vsel %vm286, %v2314, 0
    %v2468 = vsel %vm286, %v2316, 0
    %2470 = vmatprep.subr.mxu0 0.0
    %2471 = vmatpush1.msra.mxu0 0.0
    %2472 = vmatprep.subr.mxu0 0.0
    %2473 = vmatpush1.msra.mxu0 0.0
    %2474 = vmatprep.subr.mxu0 0.0
    %2475 = vmatpush1.msra.mxu0 0.0
    %2476 = vmatprep.subr.mxu0 0.0
    %2477 = vmatpush1.msra.mxu0 0.0
    %2478 = vmatprep.subr.mxu0 0.0
    %2479 = vmatpush1.msra.mxu0 0.0
    %2480 = vmatprep.subr.mxu0 0.0
    %2481 = vmatpush1.msra.mxu0 0.0
    %2482 = vmatprep.subr.mxu0 0.0
    %2483 = vmatpush1.msra.mxu0 0.0
    %2484 = vmatprep.subr.mxu0 0.0
    %2485 = vmatpush1.msra.mxu0 0.0
    %2486 = vmatprep.subr.mxu0 0.0
    %2487 = vmatpush1.msra.mxu0 0.0
    %2488 = vmatprep.subr.mxu0 0.0
    %2489 = vmatpush1.msra.mxu0 0.0
    %2490 = vmatprep.subr.mxu0 0.0
    %2491 = vmatpush1.msra.mxu0 0.0
    %2492 = vmatprep.subr.mxu0 0.0
    %2493 = vmatpush1.msra.mxu0 0.0
    %2494 = vmatprep.subr.mxu0 0.0
    %2495 = vmatpush1.msra.mxu0 0.0
    %2496 = vmatprep.subr.mxu0 0.0
    %2497 = vmatpush1.msra.mxu0 0.0
    %2498 = vmatprep.subr.mxu0 0.0
    %2499 = vmatpush1.msra.mxu0 0.0
    %2500 = vmatprep.subr.mxu0 0.0
    %2501 = vmatpush1.msra.mxu0 %v2372
    %2502 = vmatprep.subr.mxu0 0.0
    %2503 = vmatpush2.msra.mxu0 0.0
    %2504 = vmatprep.subr.mxu0 0.0
    %2505 = vmatpush2.msra.mxu0 0.0
    %2506 = vmatprep.subr.mxu0 0.0
    %2507 = vmatpush2.msra.mxu0 0.0
    %2508 = vmatprep.subr.mxu0 0.0
    %2509 = vmatpush2.msra.mxu0 0.0
    %2510 = vmatprep.subr.mxu0 0.0
    %2511 = vmatpush2.msra.mxu0 0.0
    %2512 = vmatprep.subr.mxu0 0.0
    %2513 = vmatpush2.msra.mxu0 0.0
    %2514 = vmatprep.subr.mxu0 0.0
    %2515 = vmatpush2.msra.mxu0 0.0
    %2516 = vmatprep.subr.mxu0 0.0
    %2517 = vmatpush2.msra.mxu0 0.0
    %2518 = vmatprep.subr.mxu0 0.0
    %2519 = vmatpush2.msra.mxu0 0.0
    %2520 = vmatprep.subr.mxu0 0.0
    %2521 = vmatpush2.msra.mxu0 0.0
    %2522 = vmatprep.subr.mxu0 0.0
    %2523 = vmatpush2.msra.mxu0 0.0
    %2524 = vmatprep.subr.mxu0 0.0
    %2525 = vmatpush2.msra.mxu0 0.0
    %2526 = vmatprep.subr.mxu0 0.0
    %2527 = vmatpush2.msra.mxu0 0.0
    %2528 = vmatprep.subr.mxu0 0.0
    %2529 = vmatpush2.msra.mxu0 0.0
    %2530 = vmatprep.subr.mxu0 0.0
    %2531 = vmatpush2.msra.mxu0 0.0
    %2532 = vmatprep.subr.mxu0 0.0
    %2533 = vmatpush2.msra.mxu0 0.0
    %2534 = vmatprep.mubr.f32.mxu0 0.0
    %2535 = vmatmul.mubr.f32.gmra.mxu0 %v2466
    %v2536 = vpop.f32.mrf.mxu0
    %v2537 = vadd.f32 0.0, %v2536
    %v2538 = vpop.f32.mrf.mxu0
    %2539 = vmatprep.mubr.f32.mxu0 0.0
    %2540 = vmatmul.mubr.f32.gmra.mxu0 %v2468
    %v2541 = vpop.f32.mrf.mxu0
    %v2542 = vadd.f32 0.0, %v2541
    %v2543 = vpop.f32.mrf.mxu0
    %2544 = vdwg.mxu0
    %v2545 = vsel %vm286, %v2318, 0
    %v2547 = vsel %vm286, %v2320, 0
    %2549 = vmatprep.subr.mxu0 0.0
    %2550 = vmatpush1.msra.mxu0 0.0
    %2551 = vmatprep.subr.mxu0 0.0
    %2552 = vmatpush1.msra.mxu0 0.0
    %2553 = vmatprep.subr.mxu0 0.0
    %2554 = vmatpush1.msra.mxu0 0.0
    %2555 = vmatprep.subr.mxu0 0.0
    %2556 = vmatpush1.msra.mxu0 0.0
    %2557 = vmatprep.subr.mxu0 0.0
    %2558 = vmatpush1.msra.mxu0 0.0
    %2559 = vmatprep.subr.mxu0 0.0
    %2560 = vmatpush1.msra.mxu0 0.0
    %2561 = vmatprep.subr.mxu0 0.0
    %2562 = vmatpush1.msra.mxu0 0.0
    %2563 = vmatprep.subr.mxu0 0.0
    %2564 = vmatpush1.msra.mxu0 0.0
    %2565 = vmatprep.subr.mxu0 0.0
    %2566 = vmatpush1.msra.mxu0 0.0
    %2567 = vmatprep.subr.mxu0 0.0
    %2568 = vmatpush1.msra.mxu0 0.0
    %2569 = vmatprep.subr.mxu0 0.0
    %2570 = vmatpush1.msra.mxu0 0.0
    %2571 = vmatprep.subr.mxu0 0.0
    %2572 = vmatpush1.msra.mxu0 0.0
    %2573 = vmatprep.subr.mxu0 0.0
    %2574 = vmatpush1.msra.mxu0 0.0
    %2575 = vmatprep.subr.mxu0 0.0
    %2576 = vmatpush1.msra.mxu0 0.0
    %2577 = vmatprep.subr.mxu0 0.0
    %2578 = vmatpush1.msra.mxu0 0.0
    %2579 = vmatprep.subr.mxu0 0.0
    %2580 = vmatpush1.msra.mxu0 %v2373
    %2581 = vmatprep.subr.mxu0 0.0
    %2582 = vmatpush2.msra.mxu0 0.0
    %2583 = vmatprep.subr.mxu0 0.0
    %2584 = vmatpush2.msra.mxu0 0.0
    %2585 = vmatprep.subr.mxu0 0.0
    %2586 = vmatpush2.msra.mxu0 0.0
    %2587 = vmatprep.subr.mxu0 0.0
    %2588 = vmatpush2.msra.mxu0 0.0
    %2589 = vmatprep.subr.mxu0 0.0
    %2590 = vmatpush2.msra.mxu0 0.0
    %2591 = vmatprep.subr.mxu0 0.0
    %2592 = vmatpush2.msra.mxu0 0.0
    %2593 = vmatprep.subr.mxu0 0.0
    %2594 = vmatpush2.msra.mxu0 0.0
    %2595 = vmatprep.subr.mxu0 0.0
    %2596 = vmatpush2.msra.mxu0 0.0
    %2597 = vmatprep.subr.mxu0 0.0
    %2598 = vmatpush2.msra.mxu0 0.0
    %2599 = vmatprep.subr.mxu0 0.0
    %2600 = vmatpush2.msra.mxu0 0.0
    %2601 = vmatprep.subr.mxu0 0.0
    %2602 = vmatpush2.msra.mxu0 0.0
    %2603 = vmatprep.subr.mxu0 0.0
    %2604 = vmatpush2.msra.mxu0 0.0
    %2605 = vmatprep.subr.mxu0 0.0
    %2606 = vmatpush2.msra.mxu0 0.0
    %2607 = vmatprep.subr.mxu0 0.0
    %2608 = vmatpush2.msra.mxu0 0.0
    %2609 = vmatprep.subr.mxu0 0.0
    %2610 = vmatpush2.msra.mxu0 0.0
    %2611 = vmatprep.subr.mxu0 0.0
    %2612 = vmatpush2.msra.mxu0 0.0
    %2613 = vmatprep.mubr.f32.mxu0 0.0
    %2614 = vmatmul.mubr.f32.gmra.mxu0 %v2545
    %v2615 = vpop.f32.mrf.mxu0
    %v2616 = vadd.f32 0.0, %v2615
    %v2617 = vpop.f32.mrf.mxu0
    %2618 = vmatprep.mubr.f32.mxu0 0.0
    %2619 = vmatmul.mubr.f32.gmra.mxu0 %v2547
    %v2620 = vpop.f32.mrf.mxu0
    %v2621 = vadd.f32 0.0, %v2620
    %v2622 = vpop.f32.mrf.mxu0
    %2623 = vdwg.mxu0
    %v2624 = vsel %vm286, %v2322, 0
    %v2626 = vsel %vm286, %v2324, 0
    %2628 = vmatprep.subr.mxu0 0.0
    %2629 = vmatpush1.msra.mxu0 0.0
    %2630 = vmatprep.subr.mxu0 0.0
    %2631 = vmatpush1.msra.mxu0 0.0
    %2632 = vmatprep.subr.mxu0 0.0
    %2633 = vmatpush1.msra.mxu0 0.0
    %2634 = vmatprep.subr.mxu0 0.0
    %2635 = vmatpush1.msra.mxu0 0.0
    %2636 = vmatprep.subr.mxu0 0.0
    %2637 = vmatpush1.msra.mxu0 0.0
    %2638 = vmatprep.subr.mxu0 0.0
    %2639 = vmatpush1.msra.mxu0 0.0
    %2640 = vmatprep.subr.mxu0 0.0
    %2641 = vmatpush1.msra.mxu0 0.0
    %2642 = vmatprep.subr.mxu0 0.0
    %2643 = vmatpush1.msra.mxu0 0.0
    %2644 = vmatprep.subr.mxu0 0.0
    %2645 = vmatpush1.msra.mxu0 0.0
    %2646 = vmatprep.subr.mxu0 0.0
    %2647 = vmatpush1.msra.mxu0 0.0
    %2648 = vmatprep.subr.mxu0 0.0
    %2649 = vmatpush1.msra.mxu0 0.0
    %2650 = vmatprep.subr.mxu0 0.0
    %2651 = vmatpush1.msra.mxu0 0.0
    %2652 = vmatprep.subr.mxu0 0.0
    %2653 = vmatpush1.msra.mxu0 0.0
    %2654 = vmatprep.subr.mxu0 0.0
    %2655 = vmatpush1.msra.mxu0 0.0
    %2656 = vmatprep.subr.mxu0 0.0
    %2657 = vmatpush1.msra.mxu0 0.0
    %2658 = vmatprep.subr.mxu0 0.0
    %2659 = vmatpush1.msra.mxu0 %v2374
    %2660 = vmatprep.subr.mxu0 0.0
    %2661 = vmatpush2.msra.mxu0 0.0
    %2662 = vmatprep.subr.mxu0 0.0
    %2663 = vmatpush2.msra.mxu0 0.0
    %2664 = vmatprep.subr.mxu0 0.0
    %2665 = vmatpush2.msra.mxu0 0.0
    %2666 = vmatprep.subr.mxu0 0.0
    %2667 = vmatpush2.msra.mxu0 0.0
    %2668 = vmatprep.subr.mxu0 0.0
    %2669 = vmatpush2.msra.mxu0 0.0
    %2670 = vmatprep.subr.mxu0 0.0
    %2671 = vmatpush2.msra.mxu0 0.0
    %2672 = vmatprep.subr.mxu0 0.0
    %2673 = vmatpush2.msra.mxu0 0.0
    %2674 = vmatprep.subr.mxu0 0.0
    %2675 = vmatpush2.msra.mxu0 0.0
    %2676 = vmatprep.subr.mxu0 0.0
    %2677 = vmatpush2.msra.mxu0 0.0
    %2678 = vmatprep.subr.mxu0 0.0
    %2679 = vmatpush2.msra.mxu0 0.0
    %2680 = vmatprep.subr.mxu0 0.0
    %2681 = vmatpush2.msra.mxu0 0.0
    %2682 = vmatprep.subr.mxu0 0.0
    %2683 = vmatpush2.msra.mxu0 0.0
    %2684 = vmatprep.subr.mxu0 0.0
    %2685 = vmatpush2.msra.mxu0 0.0
    %2686 = vmatprep.subr.mxu0 0.0
    %2687 = vmatpush2.msra.mxu0 0.0
    %2688 = vmatprep.subr.mxu0 0.0
    %2689 = vmatpush2.msra.mxu0 0.0
    %2690 = vmatprep.subr.mxu0 0.0
    %2691 = vmatpush2.msra.mxu0 0.0
    %2692 = vmatprep.mubr.f32.mxu0 0.0
    %2693 = vmatmul.mubr.f32.gmra.mxu0 %v2624
    %v2694 = vpop.f32.mrf.mxu0
    %v2695 = vadd.f32 0.0, %v2694
    %v2696 = vpop.f32.mrf.mxu0
    %2697 = vmatprep.mubr.f32.mxu0 0.0
    %2698 = vmatmul.mubr.f32.gmra.mxu0 %v2626
    %v2699 = vpop.f32.mrf.mxu0
    %v2700 = vadd.f32 0.0, %v2699
    %v2701 = vpop.f32.mrf.mxu0
    %2702 = vdwg.mxu0
    %v2703 = vsel %vm286, %v2326, 0
    %v2705 = vsel %vm286, %v2328, 0
    %2707 = vmatprep.subr.mxu0 0.0
    %2708 = vmatpush1.msra.mxu0 0.0
    %2709 = vmatprep.subr.mxu0 0.0
    %2710 = vmatpush1.msra.mxu0 0.0
    %2711 = vmatprep.subr.mxu0 0.0
    %2712 = vmatpush1.msra.mxu0 0.0
    %2713 = vmatprep.subr.mxu0 0.0
    %2714 = vmatpush1.msra.mxu0 0.0
    %2715 = vmatprep.subr.mxu0 0.0
    %2716 = vmatpush1.msra.mxu0 0.0
    %2717 = vmatprep.subr.mxu0 0.0
    %2718 = vmatpush1.msra.mxu0 0.0
    %2719 = vmatprep.subr.mxu0 0.0
    %2720 = vmatpush1.msra.mxu0 0.0
    %2721 = vmatprep.subr.mxu0 0.0
    %2722 = vmatpush1.msra.mxu0 0.0
    %2723 = vmatprep.subr.mxu0 0.0
    %2724 = vmatpush1.msra.mxu0 0.0
    %2725 = vmatprep.subr.mxu0 0.0
    %2726 = vmatpush1.msra.mxu0 0.0
    %2727 = vmatprep.subr.mxu0 0.0
    %2728 = vmatpush1.msra.mxu0 0.0
    %2729 = vmatprep.subr.mxu0 0.0
    %2730 = vmatpush1.msra.mxu0 0.0
    %2731 = vmatprep.subr.mxu0 0.0
    %2732 = vmatpush1.msra.mxu0 0.0
    %2733 = vmatprep.subr.mxu0 0.0
    %2734 = vmatpush1.msra.mxu0 0.0
    %2735 = vmatprep.subr.mxu0 0.0
    %2736 = vmatpush1.msra.mxu0 0.0
    %2737 = vmatprep.subr.mxu0 0.0
    %2738 = vmatpush1.msra.mxu0 %v2375
    %2739 = vmatprep.subr.mxu0 0.0
    %2740 = vmatpush2.msra.mxu0 0.0
    %2741 = vmatprep.subr.mxu0 0.0
    %2742 = vmatpush2.msra.mxu0 0.0
    %2743 = vmatprep.subr.mxu0 0.0
    %2744 = vmatpush2.msra.mxu0 0.0
    %2745 = vmatprep.subr.mxu0 0.0
    %2746 = vmatpush2.msra.mxu0 0.0
    %2747 = vmatprep.subr.mxu0 0.0
    %2748 = vmatpush2.msra.mxu0 0.0
    %2749 = vmatprep.subr.mxu0 0.0
    %2750 = vmatpush2.msra.mxu0 0.0
    %2751 = vmatprep.subr.mxu0 0.0
    %2752 = vmatpush2.msra.mxu0 0.0
    %2753 = vmatprep.subr.mxu0 0.0
    %2754 = vmatpush2.msra.mxu0 0.0
    %2755 = vmatprep.subr.mxu0 0.0
    %2756 = vmatpush2.msra.mxu0 0.0
    %2757 = vmatprep.subr.mxu0 0.0
    %2758 = vmatpush2.msra.mxu0 0.0
    %2759 = vmatprep.subr.mxu0 0.0
    %2760 = vmatpush2.msra.mxu0 0.0
    %2761 = vmatprep.subr.mxu0 0.0
    %2762 = vmatpush2.msra.mxu0 0.0
    %2763 = vmatprep.subr.mxu0 0.0
    %2764 = vmatpush2.msra.mxu0 0.0
    %2765 = vmatprep.subr.mxu0 0.0
    %2766 = vmatpush2.msra.mxu0 0.0
    %2767 = vmatprep.subr.mxu0 0.0
    %2768 = vmatpush2.msra.mxu0 0.0
    %2769 = vmatprep.subr.mxu0 0.0
    %2770 = vmatpush2.msra.mxu0 0.0
    %2771 = vmatprep.mubr.f32.mxu0 0.0
    %2772 = vmatmul.mubr.f32.gmra.mxu0 %v2703
    %v2773 = vpop.f32.mrf.mxu0
    %v2774 = vadd.f32 0.0, %v2773
    %v2775 = vpop.f32.mrf.mxu0
    %2776 = vmatprep.mubr.f32.mxu0 0.0
    %2777 = vmatmul.mubr.f32.gmra.mxu0 %v2705
    %v2778 = vpop.f32.mrf.mxu0
    %v2779 = vadd.f32 0.0, %v2778
    %v2780 = vpop.f32.mrf.mxu0
    %2781 = vdwg.mxu0
    %v2782 = vsel %vm286, %v2330, 0
    %v2784 = vsel %vm286, %v2332, 0
    %2786 = vmatprep.subr.mxu0 0.0
    %2787 = vmatpush1.msra.mxu0 0.0
    %2788 = vmatprep.subr.mxu0 0.0
    %2789 = vmatpush1.msra.mxu0 0.0
    %2790 = vmatprep.subr.mxu0 0.0
    %2791 = vmatpush1.msra.mxu0 0.0
    %2792 = vmatprep.subr.mxu0 0.0
    %2793 = vmatpush1.msra.mxu0 0.0
    %2794 = vmatprep.subr.mxu0 0.0
    %2795 = vmatpush1.msra.mxu0 0.0
    %2796 = vmatprep.subr.mxu0 0.0
    %2797 = vmatpush1.msra.mxu0 0.0
    %2798 = vmatprep.subr.mxu0 0.0
    %2799 = vmatpush1.msra.mxu0 0.0
    %2800 = vmatprep.subr.mxu0 0.0
    %2801 = vmatpush1.msra.mxu0 0.0
    %2802 = vmatprep.subr.mxu0 0.0
    %2803 = vmatpush1.msra.mxu0 0.0
    %2804 = vmatprep.subr.mxu0 0.0
    %2805 = vmatpush1.msra.mxu0 0.0
    %2806 = vmatprep.subr.mxu0 0.0
    %2807 = vmatpush1.msra.mxu0 0.0
    %2808 = vmatprep.subr.mxu0 0.0
    %2809 = vmatpush1.msra.mxu0 0.0
    %2810 = vmatprep.subr.mxu0 0.0
    %2811 = vmatpush1.msra.mxu0 0.0
    %2812 = vmatprep.subr.mxu0 0.0
    %2813 = vmatpush1.msra.mxu0 0.0
    %2814 = vmatprep.subr.mxu0 0.0
    %2815 = vmatpush1.msra.mxu0 0.0
    %2816 = vmatprep.subr.mxu0 0.0
    %2817 = vmatpush1.msra.mxu0 %v2376
    %2818 = vmatprep.subr.mxu0 0.0
    %2819 = vmatpush2.msra.mxu0 0.0
    %2820 = vmatprep.subr.mxu0 0.0
    %2821 = vmatpush2.msra.mxu0 0.0
    %2822 = vmatprep.subr.mxu0 0.0
    %2823 = vmatpush2.msra.mxu0 0.0
    %2824 = vmatprep.subr.mxu0 0.0
    %2825 = vmatpush2.msra.mxu0 0.0
    %2826 = vmatprep.subr.mxu0 0.0
    %2827 = vmatpush2.msra.mxu0 0.0
    %2828 = vmatprep.subr.mxu0 0.0
    %2829 = vmatpush2.msra.mxu0 0.0
    %2830 = vmatprep.subr.mxu0 0.0
    %2831 = vmatpush2.msra.mxu0 0.0
    %2832 = vmatprep.subr.mxu0 0.0
    %2833 = vmatpush2.msra.mxu0 0.0
    %2834 = vmatprep.subr.mxu0 0.0
    %2835 = vmatpush2.msra.mxu0 0.0
    %2836 = vmatprep.subr.mxu0 0.0
    %2837 = vmatpush2.msra.mxu0 0.0
    %2838 = vmatprep.subr.mxu0 0.0
    %2839 = vmatpush2.msra.mxu0 0.0
    %2840 = vmatprep.subr.mxu0 0.0
    %2841 = vmatpush2.msra.mxu0 0.0
    %2842 = vmatprep.subr.mxu0 0.0
    %2843 = vmatpush2.msra.mxu0 0.0
    %2844 = vmatprep.subr.mxu0 0.0
    %2845 = vmatpush2.msra.mxu0 0.0
    %2846 = vmatprep.subr.mxu0 0.0
    %2847 = vmatpush2.msra.mxu0 0.0
    %2848 = vmatprep.subr.mxu0 0.0
    %2849 = vmatpush2.msra.mxu0 0.0
    %2850 = vmatprep.mubr.f32.mxu0 0.0
    %2851 = vmatmul.mubr.f32.gmra.mxu0 %v2782
    %v2852 = vpop.f32.mrf.mxu0
    %v2853 = vadd.f32 0.0, %v2852
    %v2854 = vpop.f32.mrf.mxu0
    %2855 = vmatprep.mubr.f32.mxu0 0.0
    %2856 = vmatmul.mubr.f32.gmra.mxu0 %v2784
    %v2857 = vpop.f32.mrf.mxu0
    %v2858 = vadd.f32 0.0, %v2857
    %v2859 = vpop.f32.mrf.mxu0
    %2860 = vdwg.mxu0
    %v2861 = vsel %vm286, %v2334, 0
    %v2863 = vsel %vm286, %v2336, 0
    %2865 = vmatprep.subr.mxu0 0.0
    %2866 = vmatpush1.msra.mxu0 0.0
    %2867 = vmatprep.subr.mxu0 0.0
    %2868 = vmatpush1.msra.mxu0 0.0
    %2869 = vmatprep.subr.mxu0 0.0
    %2870 = vmatpush1.msra.mxu0 0.0
    %2871 = vmatprep.subr.mxu0 0.0
    %2872 = vmatpush1.msra.mxu0 0.0
    %2873 = vmatprep.subr.mxu0 0.0
    %2874 = vmatpush1.msra.mxu0 0.0
    %2875 = vmatprep.subr.mxu0 0.0
    %2876 = vmatpush1.msra.mxu0 0.0
    %2877 = vmatprep.subr.mxu0 0.0
    %2878 = vmatpush1.msra.mxu0 0.0
    %2879 = vmatprep.subr.mxu0 0.0
    %2880 = vmatpush1.msra.mxu0 0.0
    %2881 = vmatprep.subr.mxu0 0.0
    %2882 = vmatpush1.msra.mxu0 0.0
    %2883 = vmatprep.subr.mxu0 0.0
    %2884 = vmatpush1.msra.mxu0 0.0
    %2885 = vmatprep.subr.mxu0 0.0
    %2886 = vmatpush1.msra.mxu0 0.0
    %2887 = vmatprep.subr.mxu0 0.0
    %2888 = vmatpush1.msra.mxu0 0.0
    %2889 = vmatprep.subr.mxu0 0.0
    %2890 = vmatpush1.msra.mxu0 0.0
    %2891 = vmatprep.subr.mxu0 0.0
    %2892 = vmatpush1.msra.mxu0 0.0
    %2893 = vmatprep.subr.mxu0 0.0
    %2894 = vmatpush1.msra.mxu0 0.0
    %2895 = vmatprep.subr.mxu0 0.0
    %2896 = vmatpush1.msra.mxu0 %v2377
    %2897 = vmatprep.subr.mxu0 0.0
    %2898 = vmatpush2.msra.mxu0 0.0
    %2899 = vmatprep.subr.mxu0 0.0
    %2900 = vmatpush2.msra.mxu0 0.0
    %2901 = vmatprep.subr.mxu0 0.0
    %2902 = vmatpush2.msra.mxu0 0.0
    %2903 = vmatprep.subr.mxu0 0.0
    %2904 = vmatpush2.msra.mxu0 0.0
    %2905 = vmatprep.subr.mxu0 0.0
    %2906 = vmatpush2.msra.mxu0 0.0
    %2907 = vmatprep.subr.mxu0 0.0
    %2908 = vmatpush2.msra.mxu0 0.0
    %2909 = vmatprep.subr.mxu0 0.0
    %2910 = vmatpush2.msra.mxu0 0.0
    %2911 = vmatprep.subr.mxu0 0.0
    %2912 = vmatpush2.msra.mxu0 0.0
    %2913 = vmatprep.subr.mxu0 0.0
    %2914 = vmatpush2.msra.mxu0 0.0
    %2915 = vmatprep.subr.mxu0 0.0
    %2916 = vmatpush2.msra.mxu0 0.0
    %2917 = vmatprep.subr.mxu0 0.0
    %2918 = vmatpush2.msra.mxu0 0.0
    %2919 = vmatprep.subr.mxu0 0.0
    %2920 = vmatpush2.msra.mxu0 0.0
    %2921 = vmatprep.subr.mxu0 0.0
    %2922 = vmatpush2.msra.mxu0 0.0
    %2923 = vmatprep.subr.mxu0 0.0
    %2924 = vmatpush2.msra.mxu0 0.0
    %2925 = vmatprep.subr.mxu0 0.0
    %2926 = vmatpush2.msra.mxu0 0.0
    %2927 = vmatprep.subr.mxu0 0.0
    %2928 = vmatpush2.msra.mxu0 0.0
    %2929 = vmatprep.mubr.f32.mxu0 0.0
    %2930 = vmatmul.mubr.f32.gmra.mxu0 %v2861
    %v2931 = vpop.f32.mrf.mxu0
    %v2932 = vadd.f32 0.0, %v2931
    %v2933 = vpop.f32.mrf.mxu0
    %2934 = vmatprep.mubr.f32.mxu0 0.0
    %2935 = vmatmul.mubr.f32.gmra.mxu0 %v2863
    %v2936 = vpop.f32.mrf.mxu0
    %v2937 = vadd.f32 0.0, %v2936
    %v2938 = vpop.f32.mrf.mxu0
    %2939 = vdwg.mxu0
    %v2940 = vsel %vm286, %v2338, 0
    %v2942 = vsel %vm286, %v2340, 0
    %2944 = vmatprep.subr.mxu0 0.0
    %2945 = vmatpush1.msra.mxu0 0.0
    %2946 = vmatprep.subr.mxu0 0.0
    %2947 = vmatpush1.msra.mxu0 0.0
    %2948 = vmatprep.subr.mxu0 0.0
    %2949 = vmatpush1.msra.mxu0 0.0
    %2950 = vmatprep.subr.mxu0 0.0
    %2951 = vmatpush1.msra.mxu0 0.0
    %2952 = vmatprep.subr.mxu0 0.0
    %2953 = vmatpush1.msra.mxu0 0.0
    %2954 = vmatprep.subr.mxu0 0.0
    %2955 = vmatpush1.msra.mxu0 0.0
    %2956 = vmatprep.subr.mxu0 0.0
    %2957 = vmatpush1.msra.mxu0 0.0
    %2958 = vmatprep.subr.mxu0 0.0
    %2959 = vmatpush1.msra.mxu0 0.0
    %2960 = vmatprep.subr.mxu0 0.0
    %2961 = vmatpush1.msra.mxu0 0.0
    %2962 = vmatprep.subr.mxu0 0.0
    %2963 = vmatpush1.msra.mxu0 0.0
    %2964 = vmatprep.subr.mxu0 0.0
    %2965 = vmatpush1.msra.mxu0 0.0
    %2966 = vmatprep.subr.mxu0 0.0
    %2967 = vmatpush1.msra.mxu0 0.0
    %2968 = vmatprep.subr.mxu0 0.0
    %2969 = vmatpush1.msra.mxu0 0.0
    %2970 = vmatprep.subr.mxu0 0.0
    %2971 = vmatpush1.msra.mxu0 0.0
    %2972 = vmatprep.subr.mxu0 0.0
    %2973 = vmatpush1.msra.mxu0 0.0
    %2974 = vmatprep.subr.mxu0 0.0
    %2975 = vmatpush1.msra.mxu0 %v2378
    %2976 = vmatprep.subr.mxu0 0.0
    %2977 = vmatpush2.msra.mxu0 0.0
    %2978 = vmatprep.subr.mxu0 0.0
    %2979 = vmatpush2.msra.mxu0 0.0
    %2980 = vmatprep.subr.mxu0 0.0
    %2981 = vmatpush2.msra.mxu0 0.0
    %2982 = vmatprep.subr.mxu0 0.0
    %2983 = vmatpush2.msra.mxu0 0.0
    %2984 = vmatprep.subr.mxu0 0.0
    %2985 = vmatpush2.msra.mxu0 0.0
    %2986 = vmatprep.subr.mxu0 0.0
    %2987 = vmatpush2.msra.mxu0 0.0
    %2988 = vmatprep.subr.mxu0 0.0
    %2989 = vmatpush2.msra.mxu0 0.0
    %2990 = vmatprep.subr.mxu0 0.0
    %2991 = vmatpush2.msra.mxu0 0.0
    %2992 = vmatprep.subr.mxu0 0.0
    %2993 = vmatpush2.msra.mxu0 0.0
    %2994 = vmatprep.subr.mxu0 0.0
    %2995 = vmatpush2.msra.mxu0 0.0
    %2996 = vmatprep.subr.mxu0 0.0
    %2997 = vmatpush2.msra.mxu0 0.0
    %2998 = vmatprep.subr.mxu0 0.0
    %2999 = vmatpush2.msra.mxu0 0.0
    %3000 = vmatprep.subr.mxu0 0.0
    %3001 = vmatpush2.msra.mxu0 0.0
    %3002 = vmatprep.subr.mxu0 0.0
    %3003 = vmatpush2.msra.mxu0 0.0
    %3004 = vmatprep.subr.mxu0 0.0
    %3005 = vmatpush2.msra.mxu0 0.0
    %3006 = vmatprep.subr.mxu0 0.0
    %3007 = vmatpush2.msra.mxu0 0.0
    %3008 = vmatprep.mubr.f32.mxu0 0.0
    %3009 = vmatmul.mubr.f32.gmra.mxu0 %v2940
    %v3010 = vpop.f32.mrf.mxu0
    %v3011 = vadd.f32 0.0, %v3010
    %v3012 = vpop.f32.mrf.mxu0
    %3013 = vmatprep.mubr.f32.mxu0 0.0
    %3014 = vmatmul.mubr.f32.gmra.mxu0 %v2942
    %v3015 = vpop.f32.mrf.mxu0
    %v3016 = vadd.f32 0.0, %v3015
    %v3017 = vpop.f32.mrf.mxu0
    %3018 = vdwg.mxu0
    %v3019 = vmul.f32 %v2458, 0.35355338
    %v3020 = vmul.f32 %v2463, 0.35355338
    %v3021 = vmul.f32 %v2537, 0.35355338
    %v3022 = vmul.f32 %v2542, 0.35355338
    %v3023 = vmul.f32 %v2616, 0.35355338
    %v3024 = vmul.f32 %v2621, 0.35355338
    %v3025 = vmul.f32 %v2695, 0.35355338
    %v3026 = vmul.f32 %v2700, 0.35355338
    %v3027 = vmul.f32 %v2774, 0.35355338
    %v3028 = vmul.f32 %v2779, 0.35355338
    %v3029 = vmul.f32 %v2853, 0.35355338
    %v3030 = vmul.f32 %v2858, 0.35355338
    %v3031 = vmul.f32 %v2932, 0.35355338
    %v3032 = vmul.f32 %v2937, 0.35355338
    %v3033 = vmul.f32 %v3011, 0.35355338
    %v3034 = vmul.f32 %v3016, 0.35355338
    %v3035 = vsel %vm67, %v65, %v3019
    %v3036 = vsel %vm68, %v66, %v3020
    %v3037 = vsel %vm67, %v65, %v3021
    %v3038 = vsel %vm68, %v66, %v3022
    %v3039 = vsel %vm67, %v65, %v3023
    %v3040 = vsel %vm68, %v66, %v3024
    %v3041 = vsel %vm67, %v65, %v3025
    %v3042 = vsel %vm68, %v66, %v3026
    %v3043 = vsel %vm67, %v65, %v3027
    %v3044 = vsel %vm68, %v66, %v3028
    %v3045 = vsel %vm67, %v65, %v3029
    %v3046 = vsel %vm68, %v66, %v3030
    %v3047 = vsel %vm67, %v65, %v3031
    %v3048 = vsel %vm68, %v66, %v3032
    %v3049 = vsel %vm67, %v65, %v3033
    %v3050 = vsel %vm68, %v66, %v3034
    %v3051 = vsel %vm951, %v3035, -inf
    %3052 = vmax.xlane.f32.xlu0 %v3051
    %v3053 = vpop.xlane.xlu0 %3052
    %v3054 = vsel %vm951, %v3036, -inf
    %3055 = vmax.xlane.f32.xlu0 %v3054
    %v3056 = vpop.xlane.xlu0 %3055
    %v3057 = vsel %vm951, %v3037, -inf
    %3058 = vmax.xlane.f32.xlu0 %v3057
    %v3059 = vpop.xlane.xlu0 %3058
    %v3060 = vsel %vm951, %v3038, -inf
    %3061 = vmax.xlane.f32.xlu0 %v3060
    %v3062 = vpop.xlane.xlu0 %3061
    %v3063 = vsel %vm951, %v3039, -inf
    %3064 = vmax.xlane.f32.xlu0 %v3063
    %v3065 = vpop.xlane.xlu0 %3064
    %v3066 = vsel %vm951, %v3040, -inf
    %3067 = vmax.xlane.f32.xlu0 %v3066
    %v3068 = vpop.xlane.xlu0 %3067
    %v3069 = vsel %vm951, %v3041, -inf
    %3070 = vmax.xlane.f32.xlu0 %v3069
    %v3071 = vpop.xlane.xlu0 %3070
    %v3072 = vsel %vm951, %v3042, -inf
    %3073 = vmax.xlane.f32.xlu0 %v3072
    %v3074 = vpop.xlane.xlu0 %3073
    %v3075 = vsel %vm951, %v3043, -inf
    %3076 = vmax.xlane.f32.xlu0 %v3075
    %v3077 = vpop.xlane.xlu0 %3076
    %v3078 = vsel %vm951, %v3044, -inf
    %3079 = vmax.xlane.f32.xlu0 %v3078
    %v3080 = vpop.xlane.xlu0 %3079
    %v3081 = vsel %vm951, %v3045, -inf
    %3082 = vmax.xlane.f32.xlu0 %v3081
    %v3083 = vpop.xlane.xlu0 %3082
    %v3084 = vsel %vm951, %v3046, -inf
    %3085 = vmax.xlane.f32.xlu0 %v3084
    %v3086 = vpop.xlane.xlu0 %3085
    %v3087 = vsel %vm951, %v3047, -inf
    %3088 = vmax.xlane.f32.xlu0 %v3087
    %v3089 = vpop.xlane.xlu0 %3088
    %v3090 = vsel %vm951, %v3048, -inf
    %3091 = vmax.xlane.f32.xlu0 %v3090
    %v3092 = vpop.xlane.xlu0 %3091
    %v3093 = vsel %vm951, %v3049, -inf
    %3094 = vmax.xlane.f32.xlu0 %v3093
    %v3095 = vpop.xlane.xlu0 %3094
    %v3096 = vsel %vm951, %v3050, -inf
    %3097 = vmax.xlane.f32.xlu0 %v3096
    %v3098 = vpop.xlane.xlu0 %3097
    %v3099 = vsub.f32 %v3035, %v3053
    %v3100 = vsub.f32 %v3036, %v3056
    %v3101 = vsub.f32 %v3037, %v3059
    %v3102 = vsub.f32 %v3038, %v3062
    %v3103 = vsub.f32 %v3039, %v3065
    %v3104 = vsub.f32 %v3040, %v3068
    %v3105 = vsub.f32 %v3041, %v3071
    %v3106 = vsub.f32 %v3042, %v3074
    %v3107 = vsub.f32 %v3043, %v3077
    %v3108 = vsub.f32 %v3044, %v3080
    %v3109 = vsub.f32 %v3045, %v3083
    %v3110 = vsub.f32 %v3046, %v3086
    %v3111 = vsub.f32 %v3047, %v3089
    %v3112 = vsub.f32 %v3048, %v3092
    %v3113 = vsub.f32 %v3049, %v3095
    %v3114 = vsub.f32 %v3050, %v3098
    %v3115 = vmul.f32 %v3099, 1.442695
    %v3116 = vpow.pop %v3115
    %v3117 = vmul.f32 %v3100, 1.442695
    %v3118 = vpow.pop %v3117
    %v3119 = vmul.f32 %v3101, 1.442695
    %v3120 = vpow.pop %v3119
    %v3121 = vmul.f32 %v3102, 1.442695
    %v3122 = vpow.pop %v3121
    %v3123 = vmul.f32 %v3103, 1.442695
    %v3124 = vpow.pop %v3123
    %v3125 = vmul.f32 %v3104, 1.442695
    %v3126 = vpow.pop %v3125
    %v3127 = vmul.f32 %v3105, 1.442695
    %v3128 = vpow.pop %v3127
    %v3129 = vmul.f32 %v3106, 1.442695
    %v3130 = vpow.pop %v3129
    %v3131 = vmul.f32 %v3107, 1.442695
    %v3132 = vpow.pop %v3131
    %v3133 = vmul.f32 %v3108, 1.442695
    %v3134 = vpow.pop %v3133
    %v3135 = vmul.f32 %v3109, 1.442695
    %v3136 = vpow.pop %v3135
    %v3137 = vmul.f32 %v3110, 1.442695
    %v3138 = vpow.pop %v3137
    %v3139 = vmul.f32 %v3111, 1.442695
    %v3140 = vpow.pop %v3139
    %v3141 = vmul.f32 %v3112, 1.442695
    %v3142 = vpow.pop %v3141
    %v3143 = vmul.f32 %v3113, 1.442695
    %v3144 = vpow.pop %v3143
    %v3145 = vmul.f32 %v3114, 1.442695
    %v3146 = vpow.pop %v3145
    %v3147 = vsel %vm951, %v3116, 0.0
    %3148 = vadd.xlane.f32.xlu0 %v3147
    %v3149 = vpop.xlane.xlu0 %3148
    %v3150 = vsel %vm951, %v3118, 0.0
    %3151 = vadd.xlane.f32.xlu0 %v3150
    %v3152 = vpop.xlane.xlu0 %3151
    %v3153 = vsel %vm951, %v3120, 0.0
    %3154 = vadd.xlane.f32.xlu0 %v3153
    %v3155 = vpop.xlane.xlu0 %3154
    %v3156 = vsel %vm951, %v3122, 0.0
    %3157 = vadd.xlane.f32.xlu0 %v3156
    %v3158 = vpop.xlane.xlu0 %3157
    %v3159 = vsel %vm951, %v3124, 0.0
    %3160 = vadd.xlane.f32.xlu0 %v3159
    %v3161 = vpop.xlane.xlu0 %3160
    %v3162 = vsel %vm951, %v3126, 0.0
    %3163 = vadd.xlane.f32.xlu0 %v3162
    %v3164 = vpop.xlane.xlu0 %3163
    %v3165 = vsel %vm951, %v3128, 0.0
    %3166 = vadd.xlane.f32.xlu0 %v3165
    %v3167 = vpop.xlane.xlu0 %3166
    %v3168 = vsel %vm951, %v3130, 0.0
    %3169 = vadd.xlane.f32.xlu0 %v3168
    %v3170 = vpop.xlane.xlu0 %3169
    %v3171 = vsel %vm951, %v3132, 0.0
    %3172 = vadd.xlane.f32.xlu0 %v3171
    %v3173 = vpop.xlane.xlu0 %3172
    %v3174 = vsel %vm951, %v3134, 0.0
    %3175 = vadd.xlane.f32.xlu0 %v3174
    %v3176 = vpop.xlane.xlu0 %3175
    %v3177 = vsel %vm951, %v3136, 0.0
    %3178 = vadd.xlane.f32.xlu0 %v3177
    %v3179 = vpop.xlane.xlu0 %3178
    %v3180 = vsel %vm951, %v3138, 0.0
    %3181 = vadd.xlane.f32.xlu0 %v3180
    %v3182 = vpop.xlane.xlu0 %3181
    %v3183 = vsel %vm951, %v3140, 0.0
    %3184 = vadd.xlane.f32.xlu0 %v3183
    %v3185 = vpop.xlane.xlu0 %3184
    %v3186 = vsel %vm951, %v3142, 0.0
    %3187 = vadd.xlane.f32.xlu0 %v3186
    %v3188 = vpop.xlane.xlu0 %3187
    %v3189 = vsel %vm951, %v3144, 0.0
    %3190 = vadd.xlane.f32.xlu0 %v3189
    %v3191 = vpop.xlane.xlu0 %3190
    %v3192 = vsel %vm951, %v3146, 0.0
    %3193 = vadd.xlane.f32.xlu0 %v3192
    %v3194 = vpop.xlane.xlu0 %3193
    %v3195 = vrcp.pop %v3149
    %v3196 = vrcp.pop %v3152
    %v3197 = vrcp.pop %v3155
    %v3198 = vrcp.pop %v3158
    %v3199 = vrcp.pop %v3161
    %v3200 = vrcp.pop %v3164
    %v3201 = vrcp.pop %v3167
    %v3202 = vrcp.pop %v3170
    %v3203 = vrcp.pop %v3173
    %v3204 = vrcp.pop %v3176
    %v3205 = vrcp.pop %v3179
    %v3206 = vrcp.pop %v3182
    %v3207 = vrcp.pop %v3185
    %v3208 = vrcp.pop %v3188
    %v3209 = vrcp.pop %v3191
    %v3210 = vrcp.pop %v3194
    %v3211 = vmul.f32 %v3116, %v3195
    %v3212 = vmul.f32 %v3118, %v3196
    %v3213 = vmul.f32 %v3120, %v3197
    %v3214 = vmul.f32 %v3122, %v3198
    %v3215 = vmul.f32 %v3124, %v3199
    %v3216 = vmul.f32 %v3126, %v3200
    %v3217 = vmul.f32 %v3128, %v3201
    %v3218 = vmul.f32 %v3130, %v3202
    %v3219 = vmul.f32 %v3132, %v3203
    %v3220 = vmul.f32 %v3134, %v3204
    %v3221 = vmul.f32 %v3136, %v3205
    %v3222 = vmul.f32 %v3138, %v3206
    %v3223 = vmul.f32 %v3140, %v3207
    %v3224 = vmul.f32 %v3142, %v3208
    %v3225 = vmul.f32 %v3144, %v3209
    %v3226 = vmul.f32 %v3146, %v3210
    %v3228 = vsel %vm951, %v2379, 0
    %v3231 = vsel %vm951, %v3211, 0
    %v3234 = vsel %vm951, %v3212, 0
    %3236 = vmatprep.subr.mxu0 0.0
    %3237 = vmatpush1.xpose.msra.mxu0 0.0
    %3238 = vmatprep.subr.mxu0 0.0
    %3239 = vmatpush1.xpose.msra.mxu0 0.0
    %3240 = vmatprep.subr.mxu0 0.0
    %3241 = vmatpush1.xpose.msra.mxu0 0.0
    %3242 = vmatprep.subr.mxu0 0.0
    %3243 = vmatpush1.xpose.msra.mxu0 0.0
    %3244 = vmatprep.subr.mxu0 0.0
    %3245 = vmatpush1.xpose.msra.mxu0 0.0
    %3246 = vmatprep.subr.mxu0 0.0
    %3247 = vmatpush1.xpose.msra.mxu0 0.0
    %3248 = vmatprep.subr.mxu0 0.0
    %3249 = vmatpush1.xpose.msra.mxu0 0.0
    %3250 = vmatprep.subr.mxu0 0.0
    %3251 = vmatpush1.xpose.msra.mxu0 0.0
    %3252 = vmatprep.subr.mxu0 0.0
    %3253 = vmatpush1.xpose.msra.mxu0 0.0
    %3254 = vmatprep.subr.mxu0 0.0
    %3255 = vmatpush1.xpose.msra.mxu0 0.0
    %3256 = vmatprep.subr.mxu0 0.0
    %3257 = vmatpush1.xpose.msra.mxu0 0.0
    %3258 = vmatprep.subr.mxu0 0.0
    %3259 = vmatpush1.xpose.msra.mxu0 0.0
    %3260 = vmatprep.subr.mxu0 0.0
    %3261 = vmatpush1.xpose.msra.mxu0 0.0
    %3262 = vmatprep.subr.mxu0 0.0
    %3263 = vmatpush1.xpose.msra.mxu0 0.0
    %3264 = vmatprep.subr.mxu0 0.0
    %3265 = vmatpush1.xpose.msra.mxu0 %v3234
    %3266 = vmatprep.subr.mxu0 0.0
    %3267 = vmatpush1.xpose.msra.mxu0 %v3231
    %3268 = vmatprep.subr.mxu0 0.0
    %3269 = vmatpush2.xpose.msra.mxu0 0.0
    %3270 = vmatprep.subr.mxu0 0.0
    %3271 = vmatpush2.xpose.msra.mxu0 0.0
    %3272 = vmatprep.subr.mxu0 0.0
    %3273 = vmatpush2.xpose.msra.mxu0 0.0
    %3274 = vmatprep.subr.mxu0 0.0
    %3275 = vmatpush2.xpose.msra.mxu0 0.0
    %3276 = vmatprep.subr.mxu0 0.0
    %3277 = vmatpush2.xpose.msra.mxu0 0.0
    %3278 = vmatprep.subr.mxu0 0.0
    %3279 = vmatpush2.xpose.msra.mxu0 0.0
    %3280 = vmatprep.subr.mxu0 0.0
    %3281 = vmatpush2.xpose.msra.mxu0 0.0
    %3282 = vmatprep.subr.mxu0 0.0
    %3283 = vmatpush2.xpose.msra.mxu0 0.0
    %3284 = vmatprep.subr.mxu0 0.0
    %3285 = vmatpush2.xpose.msra.mxu0 0.0
    %3286 = vmatprep.subr.mxu0 0.0
    %3287 = vmatpush2.xpose.msra.mxu0 0.0
    %3288 = vmatprep.subr.mxu0 0.0
    %3289 = vmatpush2.xpose.msra.mxu0 0.0
    %3290 = vmatprep.subr.mxu0 0.0
    %3291 = vmatpush2.xpose.msra.mxu0 0.0
    %3292 = vmatprep.subr.mxu0 0.0
    %3293 = vmatpush2.xpose.msra.mxu0 0.0
    %3294 = vmatprep.subr.mxu0 0.0
    %3295 = vmatpush2.xpose.msra.mxu0 0.0
    %3296 = vmatprep.subr.mxu0 0.0
    %3297 = vmatpush2.xpose.msra.mxu0 0.0
    %3298 = vmatprep.subr.mxu0 0.0
    %3299 = vmatpush2.xpose.msra.mxu0 0.0
    %3300 = vmatprep.mubr.f32.mxu0 0.0
    %3301 = vmatmul.mubr.f32.gmra.mxu0 %v3228
    %v3302 = vpop.f32.mrf.mxu0
    %v3303 = vadd.f32 0.0, %v3302
    %v3304 = vpop.f32.mrf.mxu0
    %3305 = vdwg.mxu0
    %v3307 = vsel %vm951, %v2380, 0
    %v3310 = vsel %vm951, %v3213, 0
    %v3313 = vsel %vm951, %v3214, 0
    %3315 = vmatprep.subr.mxu0 0.0
    %3316 = vmatpush1.xpose.msra.mxu0 0.0
    %3317 = vmatprep.subr.mxu0 0.0
    %3318 = vmatpush1.xpose.msra.mxu0 0.0
    %3319 = vmatprep.subr.mxu0 0.0
    %3320 = vmatpush1.xpose.msra.mxu0 0.0
    %3321 = vmatprep.subr.mxu0 0.0
    %3322 = vmatpush1.xpose.msra.mxu0 0.0
    %3323 = vmatprep.subr.mxu0 0.0
    %3324 = vmatpush1.xpose.msra.mxu0 0.0
    %3325 = vmatprep.subr.mxu0 0.0
    %3326 = vmatpush1.xpose.msra.mxu0 0.0
    %3327 = vmatprep.subr.mxu0 0.0
    %3328 = vmatpush1.xpose.msra.mxu0 0.0
    %3329 = vmatprep.subr.mxu0 0.0
    %3330 = vmatpush1.xpose.msra.mxu0 0.0
    %3331 = vmatprep.subr.mxu0 0.0
    %3332 = vmatpush1.xpose.msra.mxu0 0.0
    %3333 = vmatprep.subr.mxu0 0.0
    %3334 = vmatpush1.xpose.msra.mxu0 0.0
    %3335 = vmatprep.subr.mxu0 0.0
    %3336 = vmatpush1.xpose.msra.mxu0 0.0
    %3337 = vmatprep.subr.mxu0 0.0
    %3338 = vmatpush1.xpose.msra.mxu0 0.0
    %3339 = vmatprep.subr.mxu0 0.0
    %3340 = vmatpush1.xpose.msra.mxu0 0.0
    %3341 = vmatprep.subr.mxu0 0.0
    %3342 = vmatpush1.xpose.msra.mxu0 0.0
    %3343 = vmatprep.subr.mxu0 0.0
    %3344 = vmatpush1.xpose.msra.mxu0 %v3313
    %3345 = vmatprep.subr.mxu0 0.0
    %3346 = vmatpush1.xpose.msra.mxu0 %v3310
    %3347 = vmatprep.subr.mxu0 0.0
    %3348 = vmatpush2.xpose.msra.mxu0 0.0
    %3349 = vmatprep.subr.mxu0 0.0
    %3350 = vmatpush2.xpose.msra.mxu0 0.0
    %3351 = vmatprep.subr.mxu0 0.0
    %3352 = vmatpush2.xpose.msra.mxu0 0.0
    %3353 = vmatprep.subr.mxu0 0.0
    %3354 = vmatpush2.xpose.msra.mxu0 0.0
    %3355 = vmatprep.subr.mxu0 0.0
    %3356 = vmatpush2.xpose.msra.mxu0 0.0
    %3357 = vmatprep.subr.mxu0 0.0
    %3358 = vmatpush2.xpose.msra.mxu0 0.0
    %3359 = vmatprep.subr.mxu0 0.0
    %3360 = vmatpush2.xpose.msra.mxu0 0.0
    %3361 = vmatprep.subr.mxu0 0.0
    %3362 = vmatpush2.xpose.msra.mxu0 0.0
    %3363 = vmatprep.subr.mxu0 0.0
    %3364 = vmatpush2.xpose.msra.mxu0 0.0
    %3365 = vmatprep.subr.mxu0 0.0
    %3366 = vmatpush2.xpose.msra.mxu0 0.0
    %3367 = vmatprep.subr.mxu0 0.0
    %3368 = vmatpush2.xpose.msra.mxu0 0.0
    %3369 = vmatprep.subr.mxu0 0.0
    %3370 = vmatpush2.xpose.msra.mxu0 0.0
    %3371 = vmatprep.subr.mxu0 0.0
    %3372 = vmatpush2.xpose.msra.mxu0 0.0
    %3373 = vmatprep.subr.mxu0 0.0
    %3374 = vmatpush2.xpose.msra.mxu0 0.0
    %3375 = vmatprep.subr.mxu0 0.0
    %3376 = vmatpush2.xpose.msra.mxu0 0.0
    %3377 = vmatprep.subr.mxu0 0.0
    %3378 = vmatpush2.xpose.msra.mxu0 0.0
    %3379 = vmatprep.mubr.f32.mxu0 0.0
    %3380 = vmatmul.mubr.f32.gmra.mxu0 %v3307
    %v3381 = vpop.f32.mrf.mxu0
    %v3382 = vadd.f32 0.0, %v3381
    %v3383 = vpop.f32.mrf.mxu0
    %3384 = vdwg.mxu0
    %v3386 = vsel %vm951, %v2381, 0
    %v3389 = vsel %vm951, %v3215, 0
    %v3392 = vsel %vm951, %v3216, 0
    %3394 = vmatprep.subr.mxu0 0.0
    %3395 = vmatpush1.xpose.msra.mxu0 0.0
    %3396 = vmatprep.subr.mxu0 0.0
    %3397 = vmatpush1.xpose.msra.mxu0 0.0
    %3398 = vmatprep.subr.mxu0 0.0
    %3399 = vmatpush1.xpose.msra.mxu0 0.0
    %3400 = vmatprep.subr.mxu0 0.0
    %3401 = vmatpush1.xpose.msra.mxu0 0.0
    %3402 = vmatprep.subr.mxu0 0.0
    %3403 = vmatpush1.xpose.msra.mxu0 0.0
    %3404 = vmatprep.subr.mxu0 0.0
    %3405 = vmatpush1.xpose.msra.mxu0 0.0
    %3406 = vmatprep.subr.mxu0 0.0
    %3407 = vmatpush1.xpose.msra.mxu0 0.0
    %3408 = vmatprep.subr.mxu0 0.0
    %3409 = vmatpush1.xpose.msra.mxu0 0.0
    %3410 = vmatprep.subr.mxu0 0.0
    %3411 = vmatpush1.xpose.msra.mxu0 0.0
    %3412 = vmatprep.subr.mxu0 0.0
    %3413 = vmatpush1.xpose.msra.mxu0 0.0
    %3414 = vmatprep.subr.mxu0 0.0
    %3415 = vmatpush1.xpose.msra.mxu0 0.0
    %3416 = vmatprep.subr.mxu0 0.0
    %3417 = vmatpush1.xpose.msra.mxu0 0.0
    %3418 = vmatprep.subr.mxu0 0.0
    %3419 = vmatpush1.xpose.msra.mxu0 0.0
    %3420 = vmatprep.subr.mxu0 0.0
    %3421 = vmatpush1.xpose.msra.mxu0 0.0
    %3422 = vmatprep.subr.mxu0 0.0
    %3423 = vmatpush1.xpose.msra.mxu0 %v3392
    %3424 = vmatprep.subr.mxu0 0.0
    %3425 = vmatpush1.xpose.msra.mxu0 %v3389
    %3426 = vmatprep.subr.mxu0 0.0
    %3427 = vmatpush2.xpose.msra.mxu0 0.0
    %3428 = vmatprep.subr.mxu0 0.0
    %3429 = vmatpush2.xpose.msra.mxu0 0.0
    %3430 = vmatprep.subr.mxu0 0.0
    %3431 = vmatpush2.xpose.msra.mxu0 0.0
    %3432 = vmatprep.subr.mxu0 0.0
    %3433 = vmatpush2.xpose.msra.mxu0 0.0
    %3434 = vmatprep.subr.mxu0 0.0
    %3435 = vmatpush2.xpose.msra.mxu0 0.0
    %3436 = vmatprep.subr.mxu0 0.0
    %3437 = vmatpush2.xpose.msra.mxu0 0.0
    %3438 = vmatprep.subr.mxu0 0.0
    %3439 = vmatpush2.xpose.msra.mxu0 0.0
    %3440 = vmatprep.subr.mxu0 0.0
    %3441 = vmatpush2.xpose.msra.mxu0 0.0
    %3442 = vmatprep.subr.mxu0 0.0
    %3443 = vmatpush2.xpose.msra.mxu0 0.0
    %3444 = vmatprep.subr.mxu0 0.0
    %3445 = vmatpush2.xpose.msra.mxu0 0.0
    %3446 = vmatprep.subr.mxu0 0.0
    %3447 = vmatpush2.xpose.msra.mxu0 0.0
    %3448 = vmatprep.subr.mxu0 0.0
    %3449 = vmatpush2.xpose.msra.mxu0 0.0
    %3450 = vmatprep.subr.mxu0 0.0
    %3451 = vmatpush2.xpose.msra.mxu0 0.0
    %3452 = vmatprep.subr.mxu0 0.0
    %3453 = vmatpush2.xpose.msra.mxu0 0.0
    %3454 = vmatprep.subr.mxu0 0.0
    %3455 = vmatpush2.xpose.msra.mxu0 0.0
    %3456 = vmatprep.subr.mxu0 0.0
    %3457 = vmatpush2.xpose.msra.mxu0 0.0
    %3458 = vmatprep.mubr.f32.mxu0 0.0
    %3459 = vmatmul.mubr.f32.gmra.mxu0 %v3386
    %v3460 = vpop.f32.mrf.mxu0
    %v3461 = vadd.f32 0.0, %v3460
    %v3462 = vpop.f32.mrf.mxu0
    %3463 = vdwg.mxu0
    %v3465 = vsel %vm951, %v2382, 0
    %v3468 = vsel %vm951, %v3217, 0
    %v3471 = vsel %vm951, %v3218, 0
    %3473 = vmatprep.subr.mxu0 0.0
    %3474 = vmatpush1.xpose.msra.mxu0 0.0
    %3475 = vmatprep.subr.mxu0 0.0
    %3476 = vmatpush1.xpose.msra.mxu0 0.0
    %3477 = vmatprep.subr.mxu0 0.0
    %3478 = vmatpush1.xpose.msra.mxu0 0.0
    %3479 = vmatprep.subr.mxu0 0.0
    %3480 = vmatpush1.xpose.msra.mxu0 0.0
    %3481 = vmatprep.subr.mxu0 0.0
    %3482 = vmatpush1.xpose.msra.mxu0 0.0
    %3483 = vmatprep.subr.mxu0 0.0
    %3484 = vmatpush1.xpose.msra.mxu0 0.0
    %3485 = vmatprep.subr.mxu0 0.0
    %3486 = vmatpush1.xpose.msra.mxu0 0.0
    %3487 = vmatprep.subr.mxu0 0.0
    %3488 = vmatpush1.xpose.msra.mxu0 0.0
    %3489 = vmatprep.subr.mxu0 0.0
    %3490 = vmatpush1.xpose.msra.mxu0 0.0
    %3491 = vmatprep.subr.mxu0 0.0
    %3492 = vmatpush1.xpose.msra.mxu0 0.0
    %3493 = vmatprep.subr.mxu0 0.0
    %3494 = vmatpush1.xpose.msra.mxu0 0.0
    %3495 = vmatprep.subr.mxu0 0.0
    %3496 = vmatpush1.xpose.msra.mxu0 0.0
    %3497 = vmatprep.subr.mxu0 0.0
    %3498 = vmatpush1.xpose.msra.mxu0 0.0
    %3499 = vmatprep.subr.mxu0 0.0
    %3500 = vmatpush1.xpose.msra.mxu0 0.0
    %3501 = vmatprep.subr.mxu0 0.0
    %3502 = vmatpush1.xpose.msra.mxu0 %v3471
    %3503 = vmatprep.subr.mxu0 0.0
    %3504 = vmatpush1.xpose.msra.mxu0 %v3468
    %3505 = vmatprep.subr.mxu0 0.0
    %3506 = vmatpush2.xpose.msra.mxu0 0.0
    %3507 = vmatprep.subr.mxu0 0.0
    %3508 = vmatpush2.xpose.msra.mxu0 0.0
    %3509 = vmatprep.subr.mxu0 0.0
    %3510 = vmatpush2.xpose.msra.mxu0 0.0
    %3511 = vmatprep.subr.mxu0 0.0
    %3512 = vmatpush2.xpose.msra.mxu0 0.0
    %3513 = vmatprep.subr.mxu0 0.0
    %3514 = vmatpush2.xpose.msra.mxu0 0.0
    %3515 = vmatprep.subr.mxu0 0.0
    %3516 = vmatpush2.xpose.msra.mxu0 0.0
    %3517 = vmatprep.subr.mxu0 0.0
    %3518 = vmatpush2.xpose.msra.mxu0 0.0
    %3519 = vmatprep.subr.mxu0 0.0
    %3520 = vmatpush2.xpose.msra.mxu0 0.0
    %3521 = vmatprep.subr.mxu0 0.0
    %3522 = vmatpush2.xpose.msra.mxu0 0.0
    %3523 = vmatprep.subr.mxu0 0.0
    %3524 = vmatpush2.xpose.msra.mxu0 0.0
    %3525 = vmatprep.subr.mxu0 0.0
    %3526 = vmatpush2.xpose.msra.mxu0 0.0
    %3527 = vmatprep.subr.mxu0 0.0
    %3528 = vmatpush2.xpose.msra.mxu0 0.0
    %3529 = vmatprep.subr.mxu0 0.0
    %3530 = vmatpush2.xpose.msra.mxu0 0.0
    %3531 = vmatprep.subr.mxu0 0.0
    %3532 = vmatpush2.xpose.msra.mxu0 0.0
    %3533 = vmatprep.subr.mxu0 0.0
    %3534 = vmatpush2.xpose.msra.mxu0 0.0
    %3535 = vmatprep.subr.mxu0 0.0
    %3536 = vmatpush2.xpose.msra.mxu0 0.0
    %3537 = vmatprep.mubr.f32.mxu0 0.0
    %3538 = vmatmul.mubr.f32.gmra.mxu0 %v3465
    %v3539 = vpop.f32.mrf.mxu0
    %v3540 = vadd.f32 0.0, %v3539
    %v3541 = vpop.f32.mrf.mxu0
    %3542 = vdwg.mxu0
    %v3544 = vsel %vm951, %v2383, 0
    %v3547 = vsel %vm951, %v3219, 0
    %v3550 = vsel %vm951, %v3220, 0
    %3552 = vmatprep.subr.mxu0 0.0
    %3553 = vmatpush1.xpose.msra.mxu0 0.0
    %3554 = vmatprep.subr.mxu0 0.0
    %3555 = vmatpush1.xpose.msra.mxu0 0.0
    %3556 = vmatprep.subr.mxu0 0.0
    %3557 = vmatpush1.xpose.msra.mxu0 0.0
    %3558 = vmatprep.subr.mxu0 0.0
    %3559 = vmatpush1.xpose.msra.mxu0 0.0
    %3560 = vmatprep.subr.mxu0 0.0
    %3561 = vmatpush1.xpose.msra.mxu0 0.0
    %3562 = vmatprep.subr.mxu0 0.0
    %3563 = vmatpush1.xpose.msra.mxu0 0.0
    %3564 = vmatprep.subr.mxu0 0.0
    %3565 = vmatpush1.xpose.msra.mxu0 0.0
    %3566 = vmatprep.subr.mxu0 0.0
    %3567 = vmatpush1.xpose.msra.mxu0 0.0
    %3568 = vmatprep.subr.mxu0 0.0
    %3569 = vmatpush1.xpose.msra.mxu0 0.0
    %3570 = vmatprep.subr.mxu0 0.0
    %3571 = vmatpush1.xpose.msra.mxu0 0.0
    %3572 = vmatprep.subr.mxu0 0.0
    %3573 = vmatpush1.xpose.msra.mxu0 0.0
    %3574 = vmatprep.subr.mxu0 0.0
    %3575 = vmatpush1.xpose.msra.mxu0 0.0
    %3576 = vmatprep.subr.mxu0 0.0
    %3577 = vmatpush1.xpose.msra.mxu0 0.0
    %3578 = vmatprep.subr.mxu0 0.0
    %3579 = vmatpush1.xpose.msra.mxu0 0.0
    %3580 = vmatprep.subr.mxu0 0.0
    %3581 = vmatpush1.xpose.msra.mxu0 %v3550
    %3582 = vmatprep.subr.mxu0 0.0
    %3583 = vmatpush1.xpose.msra.mxu0 %v3547
    %3584 = vmatprep.subr.mxu0 0.0
    %3585 = vmatpush2.xpose.msra.mxu0 0.0
    %3586 = vmatprep.subr.mxu0 0.0
    %3587 = vmatpush2.xpose.msra.mxu0 0.0
    %3588 = vmatprep.subr.mxu0 0.0
    %3589 = vmatpush2.xpose.msra.mxu0 0.0
    %3590 = vmatprep.subr.mxu0 0.0
    %3591 = vmatpush2.xpose.msra.mxu0 0.0
    %3592 = vmatprep.subr.mxu0 0.0
    %3593 = vmatpush2.xpose.msra.mxu0 0.0
    %3594 = vmatprep.subr.mxu0 0.0
    %3595 = vmatpush2.xpose.msra.mxu0 0.0
    %3596 = vmatprep.subr.mxu0 0.0
    %3597 = vmatpush2.xpose.msra.mxu0 0.0
    %3598 = vmatprep.subr.mxu0 0.0
    %3599 = vmatpush2.xpose.msra.mxu0 0.0
    %3600 = vmatprep.subr.mxu0 0.0
    %3601 = vmatpush2.xpose.msra.mxu0 0.0
    %3602 = vmatprep.subr.mxu0 0.0
    %3603 = vmatpush2.xpose.msra.mxu0 0.0
    %3604 = vmatprep.subr.mxu0 0.0
    %3605 = vmatpush2.xpose.msra.mxu0 0.0
    %3606 = vmatprep.subr.mxu0 0.0
    %3607 = vmatpush2.xpose.msra.mxu0 0.0
    %3608 = vmatprep.subr.mxu0 0.0
    %3609 = vmatpush2.xpose.msra.mxu0 0.0
    %3610 = vmatprep.subr.mxu0 0.0
    %3611 = vmatpush2.xpose.msra.mxu0 0.0
    %3612 = vmatprep.subr.mxu0 0.0
    %3613 = vmatpush2.xpose.msra.mxu0 0.0
    %3614 = vmatprep.subr.mxu0 0.0
    %3615 = vmatpush2.xpose.msra.mxu0 0.0
    %3616 = vmatprep.mubr.f32.mxu0 0.0
    %3617 = vmatmul.mubr.f32.gmra.mxu0 %v3544
    %v3618 = vpop.f32.mrf.mxu0
    %v3619 = vadd.f32 0.0, %v3618
    %v3620 = vpop.f32.mrf.mxu0
    %3621 = vdwg.mxu0
    %v3623 = vsel %vm951, %v2384, 0
    %v3626 = vsel %vm951, %v3221, 0
    %v3629 = vsel %vm951, %v3222, 0
    %3631 = vmatprep.subr.mxu0 0.0
    %3632 = vmatpush1.xpose.msra.mxu0 0.0
    %3633 = vmatprep.subr.mxu0 0.0
    %3634 = vmatpush1.xpose.msra.mxu0 0.0
    %3635 = vmatprep.subr.mxu0 0.0
    %3636 = vmatpush1.xpose.msra.mxu0 0.0
    %3637 = vmatprep.subr.mxu0 0.0
    %3638 = vmatpush1.xpose.msra.mxu0 0.0
    %3639 = vmatprep.subr.mxu0 0.0
    %3640 = vmatpush1.xpose.msra.mxu0 0.0
    %3641 = vmatprep.subr.mxu0 0.0
    %3642 = vmatpush1.xpose.msra.mxu0 0.0
    %3643 = vmatprep.subr.mxu0 0.0
    %3644 = vmatpush1.xpose.msra.mxu0 0.0
    %3645 = vmatprep.subr.mxu0 0.0
    %3646 = vmatpush1.xpose.msra.mxu0 0.0
    %3647 = vmatprep.subr.mxu0 0.0
    %3648 = vmatpush1.xpose.msra.mxu0 0.0
    %3649 = vmatprep.subr.mxu0 0.0
    %3650 = vmatpush1.xpose.msra.mxu0 0.0
    %3651 = vmatprep.subr.mxu0 0.0
    %3652 = vmatpush1.xpose.msra.mxu0 0.0
    %3653 = vmatprep.subr.mxu0 0.0
    %3654 = vmatpush1.xpose.msra.mxu0 0.0
    %3655 = vmatprep.subr.mxu0 0.0
    %3656 = vmatpush1.xpose.msra.mxu0 0.0
    %3657 = vmatprep.subr.mxu0 0.0
    %3658 = vmatpush1.xpose.msra.mxu0 0.0
    %3659 = vmatprep.subr.mxu0 0.0
    %3660 = vmatpush1.xpose.msra.mxu0 %v3629
    %3661 = vmatprep.subr.mxu0 0.0
    %3662 = vmatpush1.xpose.msra.mxu0 %v3626
    %3663 = vmatprep.subr.mxu0 0.0
    %3664 = vmatpush2.xpose.msra.mxu0 0.0
    %3665 = vmatprep.subr.mxu0 0.0
    %3666 = vmatpush2.xpose.msra.mxu0 0.0
    %3667 = vmatprep.subr.mxu0 0.0
    %3668 = vmatpush2.xpose.msra.mxu0 0.0
    %3669 = vmatprep.subr.mxu0 0.0
    %3670 = vmatpush2.xpose.msra.mxu0 0.0
    %3671 = vmatprep.subr.mxu0 0.0
    %3672 = vmatpush2.xpose.msra.mxu0 0.0
    %3673 = vmatprep.subr.mxu0 0.0
    %3674 = vmatpush2.xpose.msra.mxu0 0.0
    %3675 = vmatprep.subr.mxu0 0.0
    %3676 = vmatpush2.xpose.msra.mxu0 0.0
    %3677 = vmatprep.subr.mxu0 0.0
    %3678 = vmatpush2.xpose.msra.mxu0 0.0
    %3679 = vmatprep.subr.mxu0 0.0
    %3680 = vmatpush2.xpose.msra.mxu0 0.0
    %3681 = vmatprep.subr.mxu0 0.0
    %3682 = vmatpush2.xpose.msra.mxu0 0.0
    %3683 = vmatprep.subr.mxu0 0.0
    %3684 = vmatpush2.xpose.msra.mxu0 0.0
    %3685 = vmatprep.subr.mxu0 0.0
    %3686 = vmatpush2.xpose.msra.mxu0 0.0
    %3687 = vmatprep.subr.mxu0 0.0
    %3688 = vmatpush2.xpose.msra.mxu0 0.0
    %3689 = vmatprep.subr.mxu0 0.0
    %3690 = vmatpush2.xpose.msra.mxu0 0.0
    %3691 = vmatprep.subr.mxu0 0.0
    %3692 = vmatpush2.xpose.msra.mxu0 0.0
    %3693 = vmatprep.subr.mxu0 0.0
    %3694 = vmatpush2.xpose.msra.mxu0 0.0
    %3695 = vmatprep.mubr.f32.mxu0 0.0
    %3696 = vmatmul.mubr.f32.gmra.mxu0 %v3623
    %v3697 = vpop.f32.mrf.mxu0
    %v3698 = vadd.f32 0.0, %v3697
    %v3699 = vpop.f32.mrf.mxu0
    %3700 = vdwg.mxu0
    %v3702 = vsel %vm951, %v2385, 0
    %v3705 = vsel %vm951, %v3223, 0
    %v3708 = vsel %vm951, %v3224, 0
    %3710 = vmatprep.subr.mxu0 0.0
    %3711 = vmatpush1.xpose.msra.mxu0 0.0
    %3712 = vmatprep.subr.mxu0 0.0
    %3713 = vmatpush1.xpose.msra.mxu0 0.0
    %3714 = vmatprep.subr.mxu0 0.0
    %3715 = vmatpush1.xpose.msra.mxu0 0.0
    %3716 = vmatprep.subr.mxu0 0.0
    %3717 = vmatpush1.xpose.msra.mxu0 0.0
    %3718 = vmatprep.subr.mxu0 0.0
    %3719 = vmatpush1.xpose.msra.mxu0 0.0
    %3720 = vmatprep.subr.mxu0 0.0
    %3721 = vmatpush1.xpose.msra.mxu0 0.0
    %3722 = vmatprep.subr.mxu0 0.0
    %3723 = vmatpush1.xpose.msra.mxu0 0.0
    %3724 = vmatprep.subr.mxu0 0.0
    %3725 = vmatpush1.xpose.msra.mxu0 0.0
    %3726 = vmatprep.subr.mxu0 0.0
    %3727 = vmatpush1.xpose.msra.mxu0 0.0
    %3728 = vmatprep.subr.mxu0 0.0
    %3729 = vmatpush1.xpose.msra.mxu0 0.0
    %3730 = vmatprep.subr.mxu0 0.0
    %3731 = vmatpush1.xpose.msra.mxu0 0.0
    %3732 = vmatprep.subr.mxu0 0.0
    %3733 = vmatpush1.xpose.msra.mxu0 0.0
    %3734 = vmatprep.subr.mxu0 0.0
    %3735 = vmatpush1.xpose.msra.mxu0 0.0
    %3736 = vmatprep.subr.mxu0 0.0
    %3737 = vmatpush1.xpose.msra.mxu0 0.0
    %3738 = vmatprep.subr.mxu0 0.0
    %3739 = vmatpush1.xpose.msra.mxu0 %v3708
    %3740 = vmatprep.subr.mxu0 0.0
    %3741 = vmatpush1.xpose.msra.mxu0 %v3705
    %3742 = vmatprep.subr.mxu0 0.0
    %3743 = vmatpush2.xpose.msra.mxu0 0.0
    %3744 = vmatprep.subr.mxu0 0.0
    %3745 = vmatpush2.xpose.msra.mxu0 0.0
    %3746 = vmatprep.subr.mxu0 0.0
    %3747 = vmatpush2.xpose.msra.mxu0 0.0
    %3748 = vmatprep.subr.mxu0 0.0
    %3749 = vmatpush2.xpose.msra.mxu0 0.0
    %3750 = vmatprep.subr.mxu0 0.0
    %3751 = vmatpush2.xpose.msra.mxu0 0.0
    %3752 = vmatprep.subr.mxu0 0.0
    %3753 = vmatpush2.xpose.msra.mxu0 0.0
    %3754 = vmatprep.subr.mxu0 0.0
    %3755 = vmatpush2.xpose.msra.mxu0 0.0
    %3756 = vmatprep.subr.mxu0 0.0
    %3757 = vmatpush2.xpose.msra.mxu0 0.0
    %3758 = vmatprep.subr.mxu0 0.0
    %3759 = vmatpush2.xpose.msra.mxu0 0.0
    %3760 = vmatprep.subr.mxu0 0.0
    %3761 = vmatpush2.xpose.msra.mxu0 0.0
    %3762 = vmatprep.subr.mxu0 0.0
    %3763 = vmatpush2.xpose.msra.mxu0 0.0
    %3764 = vmatprep.subr.mxu0 0.0
    %3765 = vmatpush2.xpose.msra.mxu0 0.0
    %3766 = vmatprep.subr.mxu0 0.0
    %3767 = vmatpush2.xpose.msra.mxu0 0.0
    %3768 = vmatprep.subr.mxu0 0.0
    %3769 = vmatpush2.xpose.msra.mxu0 0.0
    %3770 = vmatprep.subr.mxu0 0.0
    %3771 = vmatpush2.xpose.msra.mxu0 0.0
    %3772 = vmatprep.subr.mxu0 0.0
    %3773 = vmatpush2.xpose.msra.mxu0 0.0
    %3774 = vmatprep.mubr.f32.mxu0 0.0
    %3775 = vmatmul.mubr.f32.gmra.mxu0 %v3702
    %v3776 = vpop.f32.mrf.mxu0
    %v3777 = vadd.f32 0.0, %v3776
    %v3778 = vpop.f32.mrf.mxu0
    %3779 = vdwg.mxu0
    %v3781 = vsel %vm951, %v2386, 0
    %v3784 = vsel %vm951, %v3225, 0
    %v3787 = vsel %vm951, %v3226, 0
    %3789 = vmatprep.subr.mxu0 0.0
    %3790 = vmatpush1.xpose.msra.mxu0 0.0
    %3791 = vmatprep.subr.mxu0 0.0
    %3792 = vmatpush1.xpose.msra.mxu0 0.0
    %3793 = vmatprep.subr.mxu0 0.0
    %3794 = vmatpush1.xpose.msra.mxu0 0.0
    %3795 = vmatprep.subr.mxu0 0.0
    %3796 = vmatpush1.xpose.msra.mxu0 0.0
    %3797 = vmatprep.subr.mxu0 0.0
    %3798 = vmatpush1.xpose.msra.mxu0 0.0
    %3799 = vmatprep.subr.mxu0 0.0
    %3800 = vmatpush1.xpose.msra.mxu0 0.0
    %3801 = vmatprep.subr.mxu0 0.0
    %3802 = vmatpush1.xpose.msra.mxu0 0.0
    %3803 = vmatprep.subr.mxu0 0.0
    %3804 = vmatpush1.xpose.msra.mxu0 0.0
    %3805 = vmatprep.subr.mxu0 0.0
    %3806 = vmatpush1.xpose.msra.mxu0 0.0
    %3807 = vmatprep.subr.mxu0 0.0
    %3808 = vmatpush1.xpose.msra.mxu0 0.0
    %3809 = vmatprep.subr.mxu0 0.0
    %3810 = vmatpush1.xpose.msra.mxu0 0.0
    %3811 = vmatprep.subr.mxu0 0.0
    %3812 = vmatpush1.xpose.msra.mxu0 0.0
    %3813 = vmatprep.subr.mxu0 0.0
    %3814 = vmatpush1.xpose.msra.mxu0 0.0
    %3815 = vmatprep.subr.mxu0 0.0
    %3816 = vmatpush1.xpose.msra.mxu0 0.0
    %3817 = vmatprep.subr.mxu0 0.0
    %3818 = vmatpush1.xpose.msra.mxu0 %v3787
    %3819 = vmatprep.subr.mxu0 0.0
    %3820 = vmatpush1.xpose.msra.mxu0 %v3784
    %3821 = vmatprep.subr.mxu0 0.0
    %3822 = vmatpush2.xpose.msra.mxu0 0.0
    %3823 = vmatprep.subr.mxu0 0.0
    %3824 = vmatpush2.xpose.msra.mxu0 0.0
    %3825 = vmatprep.subr.mxu0 0.0
    %3826 = vmatpush2.xpose.msra.mxu0 0.0
    %3827 = vmatprep.subr.mxu0 0.0
    %3828 = vmatpush2.xpose.msra.mxu0 0.0
    %3829 = vmatprep.subr.mxu0 0.0
    %3830 = vmatpush2.xpose.msra.mxu0 0.0
    %3831 = vmatprep.subr.mxu0 0.0
    %3832 = vmatpush2.xpose.msra.mxu0 0.0
    %3833 = vmatprep.subr.mxu0 0.0
    %3834 = vmatpush2.xpose.msra.mxu0 0.0
    %3835 = vmatprep.subr.mxu0 0.0
    %3836 = vmatpush2.xpose.msra.mxu0 0.0
    %3837 = vmatprep.subr.mxu0 0.0
    %3838 = vmatpush2.xpose.msra.mxu0 0.0
    %3839 = vmatprep.subr.mxu0 0.0
    %3840 = vmatpush2.xpose.msra.mxu0 0.0
    %3841 = vmatprep.subr.mxu0 0.0
    %3842 = vmatpush2.xpose.msra.mxu0 0.0
    %3843 = vmatprep.subr.mxu0 0.0
    %3844 = vmatpush2.xpose.msra.mxu0 0.0
    %3845 = vmatprep.subr.mxu0 0.0
    %3846 = vmatpush2.xpose.msra.mxu0 0.0
    %3847 = vmatprep.subr.mxu0 0.0
    %3848 = vmatpush2.xpose.msra.mxu0 0.0
    %3849 = vmatprep.subr.mxu0 0.0
    %3850 = vmatpush2.xpose.msra.mxu0 0.0
    %3851 = vmatprep.subr.mxu0 0.0
    %3852 = vmatpush2.xpose.msra.mxu0 0.0
    %3853 = vmatprep.mubr.f32.mxu0 0.0
    %3854 = vmatmul.mubr.f32.gmra.mxu0 %v3781
    %v3855 = vpop.f32.mrf.mxu0
    %v3856 = vadd.f32 0.0, %v3855
    %v3857 = vpop.f32.mrf.mxu0
    %3858 = vdwg.mxu0
    %3859 = vxpose.xlu0.b32.start [1/16] %v3303, 128
    %3860 = vxpose.xlu0.b32.cont [2/16] %v3382, 128
    %3861 = vxpose.xlu0.b32.cont [3/16] %v3461, 128
    %3862 = vxpose.xlu0.b32.cont [4/16] %v3540, 128
    %3863 = vxpose.xlu0.b32.cont [5/16] %v3619, 128
    %3864 = vxpose.xlu0.b32.cont [6/16] %v3698, 128
    %3865 = vxpose.xlu0.b32.cont [7/16] %v3777, 128
    %3866 = vxpose.xlu0.b32.cont [8/16] %v3856, 128
    %3867 = vxpose.xlu0.b32.cont [9/16] 0.0, 128
    %3868 = vxpose.xlu0.b32.cont [10/16] 0.0, 128
    %3869 = vxpose.xlu0.b32.cont [11/16] 0.0, 128
    %3870 = vxpose.xlu0.b32.cont [12/16] 0.0, 128
    %3871 = vxpose.xlu0.b32.cont [13/16] 0.0, 128
    %3872 = vxpose.xlu0.b32.cont [14/16] 0.0, 128
    %3873 = vxpose.xlu0.b32.cont [15/16] 0.0, 128
    %3874 = vxpose.xlu0.b32.end [16/16] 0.0, 128
    %v3875 = vpop.trf.xlu0
    %v3876 = vpop.trf.xlu0
    %v3877 = vpop.trf.xlu0
    %v3878 = vpop.trf.xlu0
    %v3879 = vpop.trf.xlu0
    %v3880 = vpop.trf.xlu0
    %v3881 = vpop.trf.xlu0
    %v3882 = vpop.trf.xlu0
    %v3883 = vpop.trf.xlu0
    %v3884 = vpop.trf.xlu0
    %v3885 = vpop.trf.xlu0
    %v3886 = vpop.trf.xlu0
    %v3887 = vpop.trf.xlu0
    %v3888 = vpop.trf.xlu0
    %v3889 = vpop.trf.xlu0
    %v3890 = vpop.trf.xlu0
    %v3891 = vpack.c.bf16 %v3876, %v3875
    %s3892 = scalar_lea.vmem %s5, 32
    %v3893 = vld [vmem:[%s3892] sm:$0xf]
    %v3894 = vld [vmem:[%s3892 + $0x4] sm:$0xf]
    %v3895 = vld [vmem:[%s3892 + $0x8] sm:$0xf]
    %v3896 = vld [vmem:[%s3892 + $0xc] sm:$0xf]
    %v3897 = vld [vmem:[%s3892 + $0x10] sm:$0xf]
    %v3898 = vld [vmem:[%s3892 + $0x14] sm:$0xf]
    %v3899 = vld [vmem:[%s3892 + $0x18] sm:$0xf]
    %v3900 = vld [vmem:[%s3892 + $0x1c] sm:$0xf]
    %v3909 = vunpack.c.l.b16 %v3893
    %v3910 = vunpack.c.l.b16 %v3894
    %v3911 = vunpack.c.l.b16 %v3895
    %v3912 = vunpack.c.l.b16 %v3896
    %v3913 = vunpack.c.l.b16 %v3897
    %v3914 = vunpack.c.l.b16 %v3898
    %v3915 = vunpack.c.l.b16 %v3899
    %v3916 = vunpack.c.l.b16 %v3900
    %v3917 = vpack.c.b16 %v3910, %v3909
    %v3918 = vpack.c.b16 %v3912, %v3911
    %v3919 = vpack.c.b16 %v3914, %v3913
    %v3920 = vpack.c.b16 %v3916, %v3915
    %v3926 = vsel %vm71, %v3891, 0
    %3928 = vmatprep.subr.bf16.mxu0 0
    %3929 = vmatpush1.bf16.msra.mxu0 0
    %3930 = vmatprep.subr.bf16.mxu0 0
    %3931 = vmatpush1.bf16.msra.mxu0 0
    %3932 = vmatprep.subr.bf16.mxu0 0
    %3933 = vmatpush1.bf16.msra.mxu0 0
    %3934 = vmatprep.subr.bf16.mxu0 0
    %3935 = vmatpush1.bf16.msra.mxu0 0
    %3936 = vmatprep.subr.bf16.mxu0 0
    %3937 = vmatpush1.bf16.msra.mxu0 %v3920
    %3938 = vmatprep.subr.bf16.mxu0 0
    %3939 = vmatpush1.bf16.msra.mxu0 %v3919
    %3940 = vmatprep.subr.bf16.mxu0 0
    %3941 = vmatpush1.bf16.msra.mxu0 %v3918
    %3942 = vmatprep.subr.bf16.mxu0 0
    %3943 = vmatpush1.bf16.msra.mxu0 %v3917
    %3944 = vmatprep.subr.bf16.mxu0 0
    %3945 = vmatpush2.bf16.msra.mxu0 0
    %3946 = vmatprep.subr.bf16.mxu0 0
    %3947 = vmatpush2.bf16.msra.mxu0 0
    %3948 = vmatprep.subr.bf16.mxu0 0
    %3949 = vmatpush2.bf16.msra.mxu0 0
    %3950 = vmatprep.subr.bf16.mxu0 0
    %3951 = vmatpush2.bf16.msra.mxu0 0
    %3952 = vmatprep.subr.bf16.mxu0 0
    %3953 = vmatpush2.bf16.msra.mxu0 0
    %3954 = vmatprep.subr.bf16.mxu0 0
    %3955 = vmatpush2.bf16.msra.mxu0 0
    %3956 = vmatprep.subr.bf16.mxu0 0
    %3957 = vmatpush2.bf16.msra.mxu0 0
    %3958 = vmatprep.subr.bf16.mxu0 0
    %3959 = vmatpush2.bf16.msra.mxu0 0
    %3960 = vmatprep.mubr.bf16.mxu0 0
    %3961 = vmatmul.mubr.bf16.gmra.mxu0 %v3926
    %v3962 = vpop.f32.mrf.mxu0
    %v3963 = vadd.f32 0.0, %v3962
    %v3964 = vpop.f32.mrf.mxu0
    %v3965 = vpop.f32.mrf.mxu0
    %v3966 = vadd.f32 0.0, %v3965
    %v3967 = vpop.f32.mrf.mxu0
    %3968 = vdwg.mxu0
    %v3969 = vadd.f32 %v2167, %v3963
    %v3970 = vadd.f32 %v2168, %v3966
    %s3971 = scalar_lea.vmem %s6, 1
    %v3972 = vld [vmem:[%s3971] sm:$0x1]
    %s3973 = scalar_lea.vmem %s7, 1
    %v3974 = vld [vmem:[%s3973] sm:$0x1]
    %v3975 = vsel %vm71, %v3969, 0.0
    %3976 = vadd.xlane.f32.xlu0 %v3975
    %v3977 = vpop.xlane.xlu0 %3976
    %v3978 = vsel %vm71, %v3970, 0.0
    %3979 = vadd.xlane.f32.xlu0 %v3978
    %v3980 = vpop.xlane.xlu0 %3979
    %v3981 = vmul.f32 %v3977, %v78
    %v3982 = vmul.f32 %v3980, %v78
    %v3983 = vsub.f32 %v3969, %v3981
    %v3984 = vsub.f32 %v3970, %v3982
    %v3985 = vmul.f32 %v3983, %v3983
    %v3986 = vmul.f32 %v3984, %v3984
    %v3987 = vsel %vm71, %v3985, 0.0
    %3988 = vadd.xlane.f32.xlu0 %v3987
    %v3989 = vpop.xlane.xlu0 %3988
    %v3990 = vsel %vm71, %v3986, 0.0
    %3991 = vadd.xlane.f32.xlu0 %v3990
    %v3992 = vpop.xlane.xlu0 %3991
    %v3993 = vmul.f32 %v3989, %v78
    %v3994 = vmul.f32 %v3992, %v78
    %v3995 = vadd.f32 %v3993, 1e-05
    %v3996 = vadd.f32 %v3994, 1e-05
    %v3997 = vrsqrt.pop %v3995
    %v3998 = vrsqrt.pop %v3996
    %v3999 = vmul.f32 %v3983, %v3997
    %v4000 = vmul.f32 %v3984, %v3998
    %v4002 = vlaneseq
    %v4003 = vshrl.u32 %v4002, 7
    %v4004 = vsub.s32 0, %v4003
    %v4005 = vrot.slane %v3972, %v4004
    %v4007 = vmul.f32 %v3999, %v4005
    %v4008 = vmul.f32 %v4000, %v4005
    %v4010 = vlaneseq
    %v4011 = vshrl.u32 %v4010, 7
    %v4012 = vsub.s32 0, %v4011
    %v4013 = vrot.slane %v3974, %v4012
    %v4015 = vadd.f32 %v4007, %v4013
    %v4016 = vadd.f32 %v4008, %v4013
    %s4017 = scalar_lea.vmem %s8, 1
    %v4018 = vld [vmem:[%s4017] sm:$0x1]
    %s4019 = scalar_lea.vmem %s9, 1
    %v4020 = vld [vmem:[%s4019] sm:$0x1]
    %v4021 = vsel %vm71, %v4015, 0.0
    %4022 = vadd.xlane.f32.xlu0 %v4021
    %v4023 = vpop.xlane.xlu0 %4022
    %v4024 = vsel %vm71, %v4016, 0.0
    %4025 = vadd.xlane.f32.xlu0 %v4024
    %v4026 = vpop.xlane.xlu0 %4025
    %v4027 = vmul.f32 %v4023, %v78
    %v4028 = vmul.f32 %v4026, %v78
    %v4029 = vsub.f32 %v4015, %v4027
    %v4030 = vsub.f32 %v4016, %v4028
    %v4031 = vmul.f32 %v4029, %v4029
    %v4032 = vmul.f32 %v4030, %v4030
    %v4033 = vsel %vm71, %v4031, 0.0
    %4034 = vadd.xlane.f32.xlu0 %v4033
    %v4035 = vpop.xlane.xlu0 %4034
    %v4036 = vsel %vm71, %v4032, 0.0
    %4037 = vadd.xlane.f32.xlu0 %v4036
    %v4038 = vpop.xlane.xlu0 %4037
    %v4039 = vmul.f32 %v4035, %v78
    %v4040 = vmul.f32 %v4038, %v78
    %v4041 = vadd.f32 %v4039, 1e-05
    %v4042 = vadd.f32 %v4040, 1e-05
    %v4043 = vrsqrt.pop %v4041
    %v4044 = vrsqrt.pop %v4042
    %v4045 = vmul.f32 %v4029, %v4043
    %v4046 = vmul.f32 %v4030, %v4044
    %v4048 = vlaneseq
    %v4049 = vshrl.u32 %v4048, 7
    %v4050 = vsub.s32 0, %v4049
    %v4051 = vrot.slane %v4018, %v4050
    %v4053 = vmul.f32 %v4045, %v4051
    %v4054 = vmul.f32 %v4046, %v4051
    %v4056 = vlaneseq
    %v4057 = vshrl.u32 %v4056, 7
    %v4058 = vsub.s32 0, %v4057
    %v4059 = vrot.slane %v4020, %v4058
    %v4061 = vadd.f32 %v4053, %v4059
    %v4062 = vadd.f32 %v4054, %v4059
    %v4063 = vpack.c.bf16 %v4062, %v4061
    %s4064 = scalar_lea.vmem [#allocation2], 32
    %v4065 = vld [vmem:[%s4064] sm:$0xf]
    %v4066 = vld [vmem:[%s4064 + $0x4] sm:$0xf]
    %v4067 = vld [vmem:[%s4064 + $0x8] sm:$0xf]
    %v4068 = vld [vmem:[%s4064 + $0xc] sm:$0xf]
    %v4069 = vld [vmem:[%s4064 + $0x10] sm:$0xf]
    %v4070 = vld [vmem:[%s4064 + $0x14] sm:$0xf]
    %v4071 = vld [vmem:[%s4064 + $0x18] sm:$0xf]
    %v4072 = vld [vmem:[%s4064 + $0x1c] sm:$0xf]
    %s4073 = scalar_lea.vmem %s11, 1
    %v4074 = vld [vmem:[%s4073] sm:$0x1]
    %v4076 = vlaneseq
    %v4077 = vshrl.u32 %v4076, 7
    %v4078 = vsub.s32 0, %v4077
    %v4079 = vrot.slane %v4074, %v4078
    %v4089 = vunpack.c.l.b16 %v4065
    %v4090 = vunpack.c.l.b16 %v4066
    %v4091 = vunpack.c.l.b16 %v4067
    %v4092 = vunpack.c.l.b16 %v4068
    %v4093 = vunpack.c.l.b16 %v4069
    %v4094 = vunpack.c.l.b16 %v4070
    %v4095 = vunpack.c.l.b16 %v4071
    %v4096 = vunpack.c.l.b16 %v4072
    %v4097 = vpack.c.b16 %v4090, %v4089
    %v4098 = vpack.c.b16 %v4092, %v4091
    %v4099 = vpack.c.b16 %v4094, %v4093
    %v4100 = vpack.c.b16 %v4096, %v4095
    %v4106 = vsel %vm71, %v4063, 0
    %4108 = vmatprep.subr.bf16.mxu0 0
    %4109 = vmatpush1.bf16.msra.mxu0 0
    %4110 = vmatprep.subr.bf16.mxu0 0
    %4111 = vmatpush1.bf16.msra.mxu0 0
    %4112 = vmatprep.subr.bf16.mxu0 0
    %4113 = vmatpush1.bf16.msra.mxu0 0
    %4114 = vmatprep.subr.bf16.mxu0 0
    %4115 = vmatpush1.bf16.msra.mxu0 0
    %4116 = vmatprep.subr.bf16.mxu0 0
    %4117 = vmatpush1.bf16.msra.mxu0 %v4100
    %4118 = vmatprep.subr.bf16.mxu0 0
    %4119 = vmatpush1.bf16.msra.mxu0 %v4099
    %4120 = vmatprep.subr.bf16.mxu0 0
    %4121 = vmatpush1.bf16.msra.mxu0 %v4098
    %4122 = vmatprep.subr.bf16.mxu0 0
    %4123 = vmatpush1.bf16.msra.mxu0 %v4097
    %4124 = vmatprep.subr.bf16.mxu0 0
    %4125 = vmatpush2.bf16.msra.mxu0 0
    %4126 = vmatprep.subr.bf16.mxu0 0
    %4127 = vmatpush2.bf16.msra.mxu0 0
    %4128 = vmatprep.subr.bf16.mxu0 0
    %4129 = vmatpush2.bf16.msra.mxu0 0
    %4130 = vmatprep.subr.bf16.mxu0 0
    %4131 = vmatpush2.bf16.msra.mxu0 0
    %4132 = vmatprep.subr.bf16.mxu0 0
    %4133 = vmatpush2.bf16.msra.mxu0 0
    %4134 = vmatprep.subr.bf16.mxu0 0
    %4135 = vmatpush2.bf16.msra.mxu0 0
    %4136 = vmatprep.subr.bf16.mxu0 0
    %4137 = vmatpush2.bf16.msra.mxu0 0
    %4138 = vmatprep.subr.bf16.mxu0 0
    %4139 = vmatpush2.bf16.msra.mxu0 0
    %4140 = vmatprep.mubr.bf16.mxu0 0
    %4141 = vmatmul.mubr.bf16.gmra.mxu0 %v4106
    %v4142 = vpop.f32.mrf.mxu0
    %v4143 = vadd.f32 %v4079, %v4142
    %v4144 = vpop.f32.mrf.mxu0
    %v4145 = vpop.f32.mrf.mxu0
    %v4146 = vadd.f32 %v4079, %v4145
    %v4147 = vpop.f32.mrf.mxu0
    %4148 = vdwg.mxu0
    %v4149 = vmul.f32 %v4143, 0.5
    %v4150 = vmul.f32 %v4146, 0.5
    %v4151 = vmul.f32 %v4143, %v2045
    %v4152 = vmul.f32 %v4146, %v2045
    %v4153 = verf.f32.pop %v4151
    %v4154 = verf.f32.pop %v4152
    %v4155 = vadd.f32 %v4153, 1.0
    %v4156 = vadd.f32 %v4154, 1.0
    %v4157 = vmul.f32 %v4149, %v4155
    %v4158 = vmul.f32 %v4150, %v4156
    %v4159 = vpack.c.bf16 %v4158, %v4157
    %s4160 = scalar_lea.vmem %s12, 64
    %v4161 = vld [vmem:[%s4160] sm:$0xf]
    %v4162 = vld [vmem:[%s4160 + $0x4] sm:$0xf]
    %v4163 = vld [vmem:[%s4160 + $0x8] sm:$0xf]
    %v4164 = vld [vmem:[%s4160 + $0xc] sm:$0xf]
    %v4165 = vld [vmem:[%s4160 + $0x10] sm:$0xf]
    %v4166 = vld [vmem:[%s4160 + $0x14] sm:$0xf]
    %v4167 = vld [vmem:[%s4160 + $0x18] sm:$0xf]
    %v4168 = vld [vmem:[%s4160 + $0x1c] sm:$0xf]
    %v4169 = vld [vmem:[%s4160 + $0x20] sm:$0xf]
    %v4170 = vld [vmem:[%s4160 + $0x24] sm:$0xf]
    %v4171 = vld [vmem:[%s4160 + $0x28] sm:$0xf]
    %v4172 = vld [vmem:[%s4160 + $0x2c] sm:$0xf]
    %v4173 = vld [vmem:[%s4160 + $0x30] sm:$0xf]
    %v4174 = vld [vmem:[%s4160 + $0x34] sm:$0xf]
    %v4175 = vld [vmem:[%s4160 + $0x38] sm:$0xf]
    %v4176 = vld [vmem:[%s4160 + $0x3c] sm:$0xf]
    %s4177 = scalar_lea.vmem %s13, 1
    %v4178 = vld [vmem:[%s4177] sm:$0x1]
    %v4180 = vlaneseq
    %v4181 = vshrl.u32 %v4180, 7
    %v4182 = vsub.s32 0, %v4181
    %v4183 = vrot.slane %v4178, %v4182
    %v4201 = vunpack.c.l.b16 %v4161
    %v4202 = vunpack.c.l.b16 %v4162
    %v4203 = vunpack.c.l.b16 %v4163
    %v4204 = vunpack.c.l.b16 %v4164
    %v4205 = vunpack.c.l.b16 %v4165
    %v4206 = vunpack.c.l.b16 %v4166
    %v4207 = vunpack.c.l.b16 %v4167
    %v4208 = vunpack.c.l.b16 %v4168
    %v4209 = vunpack.c.l.b16 %v4169
    %v4210 = vunpack.c.l.b16 %v4170
    %v4211 = vunpack.c.l.b16 %v4171
    %v4212 = vunpack.c.l.b16 %v4172
    %v4213 = vunpack.c.l.b16 %v4173
    %v4214 = vunpack.c.l.b16 %v4174
    %v4215 = vunpack.c.l.b16 %v4175
    %v4216 = vunpack.c.l.b16 %v4176
    %v4217 = vpack.c.b16 %v4202, %v4201
    %v4218 = vpack.c.b16 %v4204, %v4203
    %v4219 = vpack.c.b16 %v4206, %v4205
    %v4220 = vpack.c.b16 %v4208, %v4207
    %v4221 = vpack.c.b16 %v4210, %v4209
    %v4222 = vpack.c.b16 %v4212, %v4211
    %v4223 = vpack.c.b16 %v4214, %v4213
    %v4224 = vpack.c.b16 %v4216, %v4215
    %4233 = vmatprep.subr.bf16.mxu0 0
    %4234 = vmatpush1.bf16.msra.mxu0 %v4224
    %4235 = vmatprep.subr.bf16.mxu0 0
    %4236 = vmatpush1.bf16.msra.mxu0 %v4223
    %4237 = vmatprep.subr.bf16.mxu0 0
    %4238 = vmatpush1.bf16.msra.mxu0 %v4222
    %4239 = vmatprep.subr.bf16.mxu0 0
    %4240 = vmatpush1.bf16.msra.mxu0 %v4221
    %4241 = vmatprep.subr.bf16.mxu0 0
    %4242 = vmatpush1.bf16.msra.mxu0 %v4220
    %4243 = vmatprep.subr.bf16.mxu0 0
    %4244 = vmatpush1.bf16.msra.mxu0 %v4219
    %4245 = vmatprep.subr.bf16.mxu0 0
    %4246 = vmatpush1.bf16.msra.mxu0 %v4218
    %4247 = vmatprep.subr.bf16.mxu0 0
    %4248 = vmatpush1.bf16.msra.mxu0 %v4217
    %4249 = vmatprep.subr.bf16.mxu0 0
    %4250 = vmatpush2.bf16.msra.mxu0 0
    %4251 = vmatprep.subr.bf16.mxu0 0
    %4252 = vmatpush2.bf16.msra.mxu0 0
    %4253 = vmatprep.subr.bf16.mxu0 0
    %4254 = vmatpush2.bf16.msra.mxu0 0
    %4255 = vmatprep.subr.bf16.mxu0 0
    %4256 = vmatpush2.bf16.msra.mxu0 0
    %4257 = vmatprep.subr.bf16.mxu0 0
    %4258 = vmatpush2.bf16.msra.mxu0 0
    %4259 = vmatprep.subr.bf16.mxu0 0
    %4260 = vmatpush2.bf16.msra.mxu0 0
    %4261 = vmatprep.subr.bf16.mxu0 0
    %4262 = vmatpush2.bf16.msra.mxu0 0
    %4263 = vmatprep.subr.bf16.mxu0 0
    %4264 = vmatpush2.bf16.msra.mxu0 0
    %4265 = vmatprep.mubr.bf16.mxu0 0
    %4266 = vmatmul.mubr.bf16.gmra.mxu0 %v4159
    %v4267 = vpop.f32.mrf.mxu0
    %v4268 = vadd.f32 %v4183, %v4267
    %v4269 = vpop.f32.mrf.mxu0
    %v4270 = vpop.f32.mrf.mxu0
    %v4271 = vadd.f32 %v4183, %v4270
    %v4272 = vpop.f32.mrf.mxu0
    %4273 = vdwg.mxu0
    %v4274 = vadd.f32 %v3969, %v4268
    %v4275 = vadd.f32 %v3970, %v4271
    %s4276 = scalar_lea.vmem %s2, 2
    %v4277 = vld [vmem:[%s4276] sm:$0x1]
    %s4278 = scalar_lea.vmem %s3, 2
    %v4279 = vld [vmem:[%s4278] sm:$0x1]
    %v4280 = vsel %vm71, %v4274, 0.0
    %4281 = vadd.xlane.f32.xlu0 %v4280
    %v4282 = vpop.xlane.xlu0 %4281
    %v4283 = vsel %vm71, %v4275, 0.0
    %4284 = vadd.xlane.f32.xlu0 %v4283
    %v4285 = vpop.xlane.xlu0 %4284
    %v4286 = vmul.f32 %v4282, %v78
    %v4287 = vmul.f32 %v4285, %v78
    %v4288 = vsub.f32 %v4274, %v4286
    %v4289 = vsub.f32 %v4275, %v4287
    %v4290 = vmul.f32 %v4288, %v4288
    %v4291 = vmul.f32 %v4289, %v4289
    %v4292 = vsel %vm71, %v4290, 0.0
    %4293 = vadd.xlane.f32.xlu0 %v4292
    %v4294 = vpop.xlane.xlu0 %4293
    %v4295 = vsel %vm71, %v4291, 0.0
    %4296 = vadd.xlane.f32.xlu0 %v4295
    %v4297 = vpop.xlane.xlu0 %4296
    %v4298 = vmul.f32 %v4294, %v78
    %v4299 = vmul.f32 %v4297, %v78
    %v4300 = vadd.f32 %v4298, 1e-05
    %v4301 = vadd.f32 %v4299, 1e-05
    %v4302 = vrsqrt.pop %v4300
    %v4303 = vrsqrt.pop %v4301
    %v4304 = vmul.f32 %v4288, %v4302
    %v4305 = vmul.f32 %v4289, %v4303
    %v4307 = vlaneseq
    %v4308 = vshrl.u32 %v4307, 7
    %v4309 = vsub.s32 0, %v4308
    %v4310 = vrot.slane %v4277, %v4309
    %v4312 = vmul.f32 %v4304, %v4310
    %v4313 = vmul.f32 %v4305, %v4310
    %v4315 = vlaneseq
    %v4316 = vshrl.u32 %v4315, 7
    %v4317 = vsub.s32 0, %v4316
    %v4318 = vrot.slane %v4279, %v4317
    %v4320 = vadd.f32 %v4312, %v4318
    %v4321 = vadd.f32 %v4313, %v4318
    %v4322 = vpack.c.bf16 %v4321, %v4320
    %s4323 = scalar_lea.vmem %s4, 128
    %v4324 = vld [vmem:[%s4323] sm:$0xff]
    %v4325 = vld [vmem:[%s4323 + $0x8] sm:$0xff]
    %v4326 = vld [vmem:[%s4323 + $0x10] sm:$0xff]
    %v4327 = vld [vmem:[%s4323 + $0x18] sm:$0xff]
    %v4328 = vld [vmem:[%s4323 + $0x20] sm:$0xff]
    %v4329 = vld [vmem:[%s4323 + $0x28] sm:$0xff]
    %v4330 = vld [vmem:[%s4323 + $0x30] sm:$0xff]
    %v4331 = vld [vmem:[%s4323 + $0x38] sm:$0xff]
    %v4340 = vunpack.c.l.b16 %v4324
    %v4341 = vunpack.c.h.b16 %v4324
    %v4342 = vunpack.c.l.b16 %v4325
    %v4343 = vunpack.c.h.b16 %v4325
    %v4344 = vunpack.c.l.b16 %v4326
    %v4345 = vunpack.c.h.b16 %v4326
    %v4346 = vunpack.c.l.b16 %v4327
    %v4347 = vunpack.c.h.b16 %v4327
    %v4348 = vunpack.c.l.b16 %v4328
    %v4349 = vunpack.c.h.b16 %v4328
    %v4350 = vunpack.c.l.b16 %v4329
    %v4351 = vunpack.c.h.b16 %v4329
    %v4352 = vunpack.c.l.b16 %v4330
    %v4353 = vunpack.c.h.b16 %v4330
    %v4354 = vunpack.c.l.b16 %v4331
    %v4355 = vunpack.c.h.b16 %v4331
    %v4356 = vpack.c.b16 %v4342, %v4340
    %v4357 = vpack.c.b16 %v4343, %v4341
    %v4358 = vpack.c.b16 %v4346, %v4344
    %v4359 = vpack.c.b16 %v4347, %v4345
    %v4360 = vpack.c.b16 %v4350, %v4348
    %v4361 = vpack.c.b16 %v4351, %v4349
    %v4362 = vpack.c.b16 %v4354, %v4352
    %v4363 = vpack.c.b16 %v4355, %v4353
    %v4373 = vsel %vm71, %v4322, 0
    %4375 = vmatprep.subr.bf16.mxu0 0
    %4376 = vmatpush1.bf16.msra.mxu0 0
    %4377 = vmatprep.subr.bf16.mxu0 0
    %4378 = vmatpush1.bf16.msra.mxu0 0
    %4379 = vmatprep.subr.bf16.mxu0 0
    %4380 = vmatpush1.bf16.msra.mxu0 0
    %4381 = vmatprep.subr.bf16.mxu0 0
    %4382 = vmatpush1.bf16.msra.mxu0 0
    %4383 = vmatprep.subr.bf16.mxu0 %v4363
    %4384 = vmatpush1.bf16.msra.mxu0 %v4362
    %4385 = vmatprep.subr.bf16.mxu0 %v4361
    %4386 = vmatpush1.bf16.msra.mxu0 %v4360
    %4387 = vmatprep.subr.bf16.mxu0 %v4359
    %4388 = vmatpush1.bf16.msra.mxu0 %v4358
    %4389 = vmatprep.subr.bf16.mxu0 %v4357
    %4390 = vmatpush1.bf16.msra.mxu0 %v4356
    %4391 = vmatprep.subr.bf16.mxu0 0
    %4392 = vmatpush2.bf16.msra.mxu0 0
    %4393 = vmatprep.subr.bf16.mxu0 0
    %4394 = vmatpush2.bf16.msra.mxu0 0
    %4395 = vmatprep.subr.bf16.mxu0 0
    %4396 = vmatpush2.bf16.msra.mxu0 0
    %4397 = vmatprep.subr.bf16.mxu0 0
    %4398 = vmatpush2.bf16.msra.mxu0 0
    %4399 = vmatprep.subr.bf16.mxu0 0
    %4400 = vmatpush2.bf16.msra.mxu0 0
    %4401 = vmatprep.subr.bf16.mxu0 0
    %4402 = vmatpush2.bf16.msra.mxu0 0
    %4403 = vmatprep.subr.bf16.mxu0 0
    %4404 = vmatpush2.bf16.msra.mxu0 0
    %4405 = vmatprep.subr.bf16.mxu0 0
    %4406 = vmatpush2.bf16.msra.mxu0 0
    %4407 = vmatprep.mubr.bf16.mxu0 0
    %4408 = vmatmul.mubr.bf16.gmra.mxu0 %v4373
    %v4409 = vpop.f32.mrf.mxu0
    %v4410 = vadd.f32 0.0, %v4409
    %v4411 = vpop.f32.mrf.mxu0
    %v4412 = vadd.f32 0.0, %v4411
    %v4413 = vpop.f32.mrf.mxu0
    %v4414 = vadd.f32 0.0, %v4413
    %v4415 = vpop.f32.mrf.mxu0
    %v4416 = vadd.f32 0.0, %v4415
    %4417 = vdwg.mxu0
    %4420 = vrot.lane.b32.xlu0 %v4410, 120
    %v4421 = vpop.permute.xlu0 %4420
    %4422 = vrot.lane.b32.xlu0 %v4414, 120
    %v4423 = vpop.permute.xlu0 %4422
    %4424 = vrot.lane.b32.xlu0 %v4410, 112
    %v4425 = vpop.permute.xlu0 %4424
    %4426 = vrot.lane.b32.xlu0 %v4414, 112
    %v4427 = vpop.permute.xlu0 %4426
    %4428 = vrot.lane.b32.xlu0 %v4410, 104
    %v4429 = vpop.permute.xlu0 %4428
    %4430 = vrot.lane.b32.xlu0 %v4414, 104
    %v4431 = vpop.permute.xlu0 %4430
    %4432 = vrot.lane.b32.xlu0 %v4410, 96
    %v4433 = vpop.permute.xlu0 %4432
    %4434 = vrot.lane.b32.xlu0 %v4414, 96
    %v4435 = vpop.permute.xlu0 %4434
    %4436 = vrot.lane.b32.xlu0 %v4410, 88
    %v4437 = vpop.permute.xlu0 %4436
    %4438 = vrot.lane.b32.xlu0 %v4414, 88
    %v4439 = vpop.permute.xlu0 %4438
    %4440 = vrot.lane.b32.xlu0 %v4410, 80
    %v4441 = vpop.permute.xlu0 %4440
    %4442 = vrot.lane.b32.xlu0 %v4414, 80
    %v4443 = vpop.permute.xlu0 %4442
    %4444 = vrot.lane.b32.xlu0 %v4410, 72
    %v4445 = vpop.permute.xlu0 %4444
    %4446 = vrot.lane.b32.xlu0 %v4414, 72
    %v4447 = vpop.permute.xlu0 %4446
    %4450 = vrot.lane.b32.xlu0 %v4410, 64
    %v4451 = vpop.permute.xlu0 %4450
    %4452 = vrot.lane.b32.xlu0 %v4412, 64
    %v4453 = vpop.permute.xlu0 %4452
    %4454 = vrot.lane.b32.xlu0 %v4414, 64
    %v4455 = vpop.permute.xlu0 %4454
    %4456 = vrot.lane.b32.xlu0 %v4416, 64
    %v4457 = vpop.permute.xlu0 %4456
    %v4458 = vsel %vm71, %v4451, %v4453
    %v4459 = vsel %vm71, %v4455, %v4457
    %4462 = vxpose.xlu0.b32.start [1/16] %v4458, 128
    %4463 = vxpose.xlu0.b32.cont [2/16] %v4459, 128
    %4464 = vxpose.xlu0.b32.cont [3/16] 0.0, 128
    %4465 = vxpose.xlu0.b32.cont [4/16] 0.0, 128
    %4466 = vxpose.xlu0.b32.cont [5/16] 0.0, 128
    %4467 = vxpose.xlu0.b32.cont [6/16] 0.0, 128
    %4468 = vxpose.xlu0.b32.cont [7/16] 0.0, 128
    %4469 = vxpose.xlu0.b32.cont [8/16] 0.0, 128
    %4470 = vxpose.xlu0.b32.cont [9/16] 0.0, 128
    %4471 = vxpose.xlu0.b32.cont [10/16] 0.0, 128
    %4472 = vxpose.xlu0.b32.cont [11/16] 0.0, 128
    %4473 = vxpose.xlu0.b32.cont [12/16] 0.0, 128
    %4474 = vxpose.xlu0.b32.cont [13/16] 0.0, 128
    %4475 = vxpose.xlu0.b32.cont [14/16] 0.0, 128
    %4476 = vxpose.xlu0.b32.cont [15/16] 0.0, 128
    %4477 = vxpose.xlu0.b32.end [16/16] 0.0, 128
    %v4478 = vpop.trf.xlu0
    %v4479 = vpop.trf.xlu0
    %v4480 = vpop.trf.xlu0
    %v4481 = vpop.trf.xlu0
    %v4482 = vpop.trf.xlu0
    %v4483 = vpop.trf.xlu0
    %v4484 = vpop.trf.xlu0
    %v4485 = vpop.trf.xlu0
    %v4486 = vpop.trf.xlu0
    %v4487 = vpop.trf.xlu0
    %v4488 = vpop.trf.xlu0
    %v4489 = vpop.trf.xlu0
    %v4490 = vpop.trf.xlu0
    %v4491 = vpop.trf.xlu0
    %v4492 = vpop.trf.xlu0
    %v4493 = vpop.trf.xlu0
    %v4494 = vsel %vm286, %v4410, 0
    %v4496 = vsel %vm286, %v4414, 0
    %4498 = vmatprep.subr.mxu0 0.0
    %4499 = vmatpush1.msra.mxu0 0.0
    %4500 = vmatprep.subr.mxu0 0.0
    %4501 = vmatpush1.msra.mxu0 0.0
    %4502 = vmatprep.subr.mxu0 0.0
    %4503 = vmatpush1.msra.mxu0 0.0
    %4504 = vmatprep.subr.mxu0 0.0
    %4505 = vmatpush1.msra.mxu0 0.0
    %4506 = vmatprep.subr.mxu0 0.0
    %4507 = vmatpush1.msra.mxu0 0.0
    %4508 = vmatprep.subr.mxu0 0.0
    %4509 = vmatpush1.msra.mxu0 0.0
    %4510 = vmatprep.subr.mxu0 0.0
    %4511 = vmatpush1.msra.mxu0 0.0
    %4512 = vmatprep.subr.mxu0 0.0
    %4513 = vmatpush1.msra.mxu0 0.0
    %4514 = vmatprep.subr.mxu0 0.0
    %4515 = vmatpush1.msra.mxu0 0.0
    %4516 = vmatprep.subr.mxu0 0.0
    %4517 = vmatpush1.msra.mxu0 0.0
    %4518 = vmatprep.subr.mxu0 0.0
    %4519 = vmatpush1.msra.mxu0 0.0
    %4520 = vmatprep.subr.mxu0 0.0
    %4521 = vmatpush1.msra.mxu0 0.0
    %4522 = vmatprep.subr.mxu0 0.0
    %4523 = vmatpush1.msra.mxu0 0.0
    %4524 = vmatprep.subr.mxu0 0.0
    %4525 = vmatpush1.msra.mxu0 0.0
    %4526 = vmatprep.subr.mxu0 0.0
    %4527 = vmatpush1.msra.mxu0 0.0
    %4528 = vmatprep.subr.mxu0 0.0
    %4529 = vmatpush1.msra.mxu0 %v4478
    %4530 = vmatprep.subr.mxu0 0.0
    %4531 = vmatpush2.msra.mxu0 0.0
    %4532 = vmatprep.subr.mxu0 0.0
    %4533 = vmatpush2.msra.mxu0 0.0
    %4534 = vmatprep.subr.mxu0 0.0
    %4535 = vmatpush2.msra.mxu0 0.0
    %4536 = vmatprep.subr.mxu0 0.0
    %4537 = vmatpush2.msra.mxu0 0.0
    %4538 = vmatprep.subr.mxu0 0.0
    %4539 = vmatpush2.msra.mxu0 0.0
    %4540 = vmatprep.subr.mxu0 0.0
    %4541 = vmatpush2.msra.mxu0 0.0
    %4542 = vmatprep.subr.mxu0 0.0
    %4543 = vmatpush2.msra.mxu0 0.0
    %4544 = vmatprep.subr.mxu0 0.0
    %4545 = vmatpush2.msra.mxu0 0.0
    %4546 = vmatprep.subr.mxu0 0.0
    %4547 = vmatpush2.msra.mxu0 0.0
    %4548 = vmatprep.subr.mxu0 0.0
    %4549 = vmatpush2.msra.mxu0 0.0
    %4550 = vmatprep.subr.mxu0 0.0
    %4551 = vmatpush2.msra.mxu0 0.0
    %4552 = vmatprep.subr.mxu0 0.0
    %4553 = vmatpush2.msra.mxu0 0.0
    %4554 = vmatprep.subr.mxu0 0.0
    %4555 = vmatpush2.msra.mxu0 0.0
    %4556 = vmatprep.subr.mxu0 0.0
    %4557 = vmatpush2.msra.mxu0 0.0
    %4558 = vmatprep.subr.mxu0 0.0
    %4559 = vmatpush2.msra.mxu0 0.0
    %4560 = vmatprep.subr.mxu0 0.0
    %4561 = vmatpush2.msra.mxu0 0.0
    %4562 = vmatprep.mubr.f32.mxu0 0.0
    %4563 = vmatmul.mubr.f32.gmra.mxu0 %v4494
    %v4564 = vpop.f32.mrf.mxu0
    %v4565 = vadd.f32 0.0, %v4564
    %v4566 = vpop.f32.mrf.mxu0
    %4567 = vmatprep.mubr.f32.mxu0 0.0
    %4568 = vmatmul.mubr.f32.gmra.mxu0 %v4496
    %v4569 = vpop.f32.mrf.mxu0
    %v4570 = vadd.f32 0.0, %v4569
    %v4571 = vpop.f32.mrf.mxu0
    %4572 = vdwg.mxu0
    %v4573 = vsel %vm286, %v4421, 0
    %v4575 = vsel %vm286, %v4423, 0
    %4577 = vmatprep.subr.mxu0 0.0
    %4578 = vmatpush1.msra.mxu0 0.0
    %4579 = vmatprep.subr.mxu0 0.0
    %4580 = vmatpush1.msra.mxu0 0.0
    %4581 = vmatprep.subr.mxu0 0.0
    %4582 = vmatpush1.msra.mxu0 0.0
    %4583 = vmatprep.subr.mxu0 0.0
    %4584 = vmatpush1.msra.mxu0 0.0
    %4585 = vmatprep.subr.mxu0 0.0
    %4586 = vmatpush1.msra.mxu0 0.0
    %4587 = vmatprep.subr.mxu0 0.0
    %4588 = vmatpush1.msra.mxu0 0.0
    %4589 = vmatprep.subr.mxu0 0.0
    %4590 = vmatpush1.msra.mxu0 0.0
    %4591 = vmatprep.subr.mxu0 0.0
    %4592 = vmatpush1.msra.mxu0 0.0
    %4593 = vmatprep.subr.mxu0 0.0
    %4594 = vmatpush1.msra.mxu0 0.0
    %4595 = vmatprep.subr.mxu0 0.0
    %4596 = vmatpush1.msra.mxu0 0.0
    %4597 = vmatprep.subr.mxu0 0.0
    %4598 = vmatpush1.msra.mxu0 0.0
    %4599 = vmatprep.subr.mxu0 0.0
    %4600 = vmatpush1.msra.mxu0 0.0
    %4601 = vmatprep.subr.mxu0 0.0
    %4602 = vmatpush1.msra.mxu0 0.0
    %4603 = vmatprep.subr.mxu0 0.0
    %4604 = vmatpush1.msra.mxu0 0.0
    %4605 = vmatprep.subr.mxu0 0.0
    %4606 = vmatpush1.msra.mxu0 0.0
    %4607 = vmatprep.subr.mxu0 0.0
    %4608 = vmatpush1.msra.mxu0 %v4479
    %4609 = vmatprep.subr.mxu0 0.0
    %4610 = vmatpush2.msra.mxu0 0.0
    %4611 = vmatprep.subr.mxu0 0.0
    %4612 = vmatpush2.msra.mxu0 0.0
    %4613 = vmatprep.subr.mxu0 0.0
    %4614 = vmatpush2.msra.mxu0 0.0
    %4615 = vmatprep.subr.mxu0 0.0
    %4616 = vmatpush2.msra.mxu0 0.0
    %4617 = vmatprep.subr.mxu0 0.0
    %4618 = vmatpush2.msra.mxu0 0.0
    %4619 = vmatprep.subr.mxu0 0.0
    %4620 = vmatpush2.msra.mxu0 0.0
    %4621 = vmatprep.subr.mxu0 0.0
    %4622 = vmatpush2.msra.mxu0 0.0
    %4623 = vmatprep.subr.mxu0 0.0
    %4624 = vmatpush2.msra.mxu0 0.0
    %4625 = vmatprep.subr.mxu0 0.0
    %4626 = vmatpush2.msra.mxu0 0.0
    %4627 = vmatprep.subr.mxu0 0.0
    %4628 = vmatpush2.msra.mxu0 0.0
    %4629 = vmatprep.subr.mxu0 0.0
    %4630 = vmatpush2.msra.mxu0 0.0
    %4631 = vmatprep.subr.mxu0 0.0
    %4632 = vmatpush2.msra.mxu0 0.0
    %4633 = vmatprep.subr.mxu0 0.0
    %4634 = vmatpush2.msra.mxu0 0.0
    %4635 = vmatprep.subr.mxu0 0.0
    %4636 = vmatpush2.msra.mxu0 0.0
    %4637 = vmatprep.subr.mxu0 0.0
    %4638 = vmatpush2.msra.mxu0 0.0
    %4639 = vmatprep.subr.mxu0 0.0
    %4640 = vmatpush2.msra.mxu0 0.0
    %4641 = vmatprep.mubr.f32.mxu0 0.0
    %4642 = vmatmul.mubr.f32.gmra.mxu0 %v4573
    %v4643 = vpop.f32.mrf.mxu0
    %v4644 = vadd.f32 0.0, %v4643
    %v4645 = vpop.f32.mrf.mxu0
    %4646 = vmatprep.mubr.f32.mxu0 0.0
    %4647 = vmatmul.mubr.f32.gmra.mxu0 %v4575
    %v4648 = vpop.f32.mrf.mxu0
    %v4649 = vadd.f32 0.0, %v4648
    %v4650 = vpop.f32.mrf.mxu0
    %4651 = vdwg.mxu0
    %v4652 = vsel %vm286, %v4425, 0
    %v4654 = vsel %vm286, %v4427, 0
    %4656 = vmatprep.subr.mxu0 0.0
    %4657 = vmatpush1.msra.mxu0 0.0
    %4658 = vmatprep.subr.mxu0 0.0
    %4659 = vmatpush1.msra.mxu0 0.0
    %4660 = vmatprep.subr.mxu0 0.0
    %4661 = vmatpush1.msra.mxu0 0.0
    %4662 = vmatprep.subr.mxu0 0.0
    %4663 = vmatpush1.msra.mxu0 0.0
    %4664 = vmatprep.subr.mxu0 0.0
    %4665 = vmatpush1.msra.mxu0 0.0
    %4666 = vmatprep.subr.mxu0 0.0
    %4667 = vmatpush1.msra.mxu0 0.0
    %4668 = vmatprep.subr.mxu0 0.0
    %4669 = vmatpush1.msra.mxu0 0.0
    %4670 = vmatprep.subr.mxu0 0.0
    %4671 = vmatpush1.msra.mxu0 0.0
    %4672 = vmatprep.subr.mxu0 0.0
    %4673 = vmatpush1.msra.mxu0 0.0
    %4674 = vmatprep.subr.mxu0 0.0
    %4675 = vmatpush1.msra.mxu0 0.0
    %4676 = vmatprep.subr.mxu0 0.0
    %4677 = vmatpush1.msra.mxu0 0.0
    %4678 = vmatprep.subr.mxu0 0.0
    %4679 = vmatpush1.msra.mxu0 0.0
    %4680 = vmatprep.subr.mxu0 0.0
    %4681 = vmatpush1.msra.mxu0 0.0
    %4682 = vmatprep.subr.mxu0 0.0
    %4683 = vmatpush1.msra.mxu0 0.0
    %4684 = vmatprep.subr.mxu0 0.0
    %4685 = vmatpush1.msra.mxu0 0.0
    %4686 = vmatprep.subr.mxu0 0.0
    %4687 = vmatpush1.msra.mxu0 %v4480
    %4688 = vmatprep.subr.mxu0 0.0
    %4689 = vmatpush2.msra.mxu0 0.0
    %4690 = vmatprep.subr.mxu0 0.0
    %4691 = vmatpush2.msra.mxu0 0.0
    %4692 = vmatprep.subr.mxu0 0.0
    %4693 = vmatpush2.msra.mxu0 0.0
    %4694 = vmatprep.subr.mxu0 0.0
    %4695 = vmatpush2.msra.mxu0 0.0
    %4696 = vmatprep.subr.mxu0 0.0
    %4697 = vmatpush2.msra.mxu0 0.0
    %4698 = vmatprep.subr.mxu0 0.0
    %4699 = vmatpush2.msra.mxu0 0.0
    %4700 = vmatprep.subr.mxu0 0.0
    %4701 = vmatpush2.msra.mxu0 0.0
    %4702 = vmatprep.subr.mxu0 0.0
    %4703 = vmatpush2.msra.mxu0 0.0
    %4704 = vmatprep.subr.mxu0 0.0
    %4705 = vmatpush2.msra.mxu0 0.0
    %4706 = vmatprep.subr.mxu0 0.0
    %4707 = vmatpush2.msra.mxu0 0.0
    %4708 = vmatprep.subr.mxu0 0.0
    %4709 = vmatpush2.msra.mxu0 0.0
    %4710 = vmatprep.subr.mxu0 0.0
    %4711 = vmatpush2.msra.mxu0 0.0
    %4712 = vmatprep.subr.mxu0 0.0
    %4713 = vmatpush2.msra.mxu0 0.0
    %4714 = vmatprep.subr.mxu0 0.0
    %4715 = vmatpush2.msra.mxu0 0.0
    %4716 = vmatprep.subr.mxu0 0.0
    %4717 = vmatpush2.msra.mxu0 0.0
    %4718 = vmatprep.subr.mxu0 0.0
    %4719 = vmatpush2.msra.mxu0 0.0
    %4720 = vmatprep.mubr.f32.mxu0 0.0
    %4721 = vmatmul.mubr.f32.gmra.mxu0 %v4652
    %v4722 = vpop.f32.mrf.mxu0
    %v4723 = vadd.f32 0.0, %v4722
    %v4724 = vpop.f32.mrf.mxu0
    %4725 = vmatprep.mubr.f32.mxu0 0.0
    %4726 = vmatmul.mubr.f32.gmra.mxu0 %v4654
    %v4727 = vpop.f32.mrf.mxu0
    %v4728 = vadd.f32 0.0, %v4727
    %v4729 = vpop.f32.mrf.mxu0
    %4730 = vdwg.mxu0
    %v4731 = vsel %vm286, %v4429, 0
    %v4733 = vsel %vm286, %v4431, 0
    %4735 = vmatprep.subr.mxu0 0.0
    %4736 = vmatpush1.msra.mxu0 0.0
    %4737 = vmatprep.subr.mxu0 0.0
    %4738 = vmatpush1.msra.mxu0 0.0
    %4739 = vmatprep.subr.mxu0 0.0
    %4740 = vmatpush1.msra.mxu0 0.0
    %4741 = vmatprep.subr.mxu0 0.0
    %4742 = vmatpush1.msra.mxu0 0.0
    %4743 = vmatprep.subr.mxu0 0.0
    %4744 = vmatpush1.msra.mxu0 0.0
    %4745 = vmatprep.subr.mxu0 0.0
    %4746 = vmatpush1.msra.mxu0 0.0
    %4747 = vmatprep.subr.mxu0 0.0
    %4748 = vmatpush1.msra.mxu0 0.0
    %4749 = vmatprep.subr.mxu0 0.0
    %4750 = vmatpush1.msra.mxu0 0.0
    %4751 = vmatprep.subr.mxu0 0.0
    %4752 = vmatpush1.msra.mxu0 0.0
    %4753 = vmatprep.subr.mxu0 0.0
    %4754 = vmatpush1.msra.mxu0 0.0
    %4755 = vmatprep.subr.mxu0 0.0
    %4756 = vmatpush1.msra.mxu0 0.0
    %4757 = vmatprep.subr.mxu0 0.0
    %4758 = vmatpush1.msra.mxu0 0.0
    %4759 = vmatprep.subr.mxu0 0.0
    %4760 = vmatpush1.msra.mxu0 0.0
    %4761 = vmatprep.subr.mxu0 0.0
    %4762 = vmatpush1.msra.mxu0 0.0
    %4763 = vmatprep.subr.mxu0 0.0
    %4764 = vmatpush1.msra.mxu0 0.0
    %4765 = vmatprep.subr.mxu0 0.0
    %4766 = vmatpush1.msra.mxu0 %v4481
    %4767 = vmatprep.subr.mxu0 0.0
    %4768 = vmatpush2.msra.mxu0 0.0
    %4769 = vmatprep.subr.mxu0 0.0
    %4770 = vmatpush2.msra.mxu0 0.0
    %4771 = vmatprep.subr.mxu0 0.0
    %4772 = vmatpush2.msra.mxu0 0.0
    %4773 = vmatprep.subr.mxu0 0.0
    %4774 = vmatpush2.msra.mxu0 0.0
    %4775 = vmatprep.subr.mxu0 0.0
    %4776 = vmatpush2.msra.mxu0 0.0
    %4777 = vmatprep.subr.mxu0 0.0
    %4778 = vmatpush2.msra.mxu0 0.0
    %4779 = vmatprep.subr.mxu0 0.0
    %4780 = vmatpush2.msra.mxu0 0.0
    %4781 = vmatprep.subr.mxu0 0.0
    %4782 = vmatpush2.msra.mxu0 0.0
    %4783 = vmatprep.subr.mxu0 0.0
    %4784 = vmatpush2.msra.mxu0 0.0
    %4785 = vmatprep.subr.mxu0 0.0
    %4786 = vmatpush2.msra.mxu0 0.0
    %4787 = vmatprep.subr.mxu0 0.0
    %4788 = vmatpush2.msra.mxu0 0.0
    %4789 = vmatprep.subr.mxu0 0.0
    %4790 = vmatpush2.msra.mxu0 0.0
    %4791 = vmatprep.subr.mxu0 0.0
    %4792 = vmatpush2.msra.mxu0 0.0
    %4793 = vmatprep.subr.mxu0 0.0
    %4794 = vmatpush2.msra.mxu0 0.0
    %4795 = vmatprep.subr.mxu0 0.0
    %4796 = vmatpush2.msra.mxu0 0.0
    %4797 = vmatprep.subr.mxu0 0.0
    %4798 = vmatpush2.msra.mxu0 0.0
    %4799 = vmatprep.mubr.f32.mxu0 0.0
    %4800 = vmatmul.mubr.f32.gmra.mxu0 %v4731
    %v4801 = vpop.f32.mrf.mxu0
    %v4802 = vadd.f32 0.0, %v4801
    %v4803 = vpop.f32.mrf.mxu0
    %4804 = vmatprep.mubr.f32.mxu0 0.0
    %4805 = vmatmul.mubr.f32.gmra.mxu0 %v4733
    %v4806 = vpop.f32.mrf.mxu0
    %v4807 = vadd.f32 0.0, %v4806
    %v4808 = vpop.f32.mrf.mxu0
    %4809 = vdwg.mxu0
    %v4810 = vsel %vm286, %v4433, 0
    %v4812 = vsel %vm286, %v4435, 0
    %4814 = vmatprep.subr.mxu0 0.0
    %4815 = vmatpush1.msra.mxu0 0.0
    %4816 = vmatprep.subr.mxu0 0.0
    %4817 = vmatpush1.msra.mxu0 0.0
    %4818 = vmatprep.subr.mxu0 0.0
    %4819 = vmatpush1.msra.mxu0 0.0
    %4820 = vmatprep.subr.mxu0 0.0
    %4821 = vmatpush1.msra.mxu0 0.0
    %4822 = vmatprep.subr.mxu0 0.0
    %4823 = vmatpush1.msra.mxu0 0.0
    %4824 = vmatprep.subr.mxu0 0.0
    %4825 = vmatpush1.msra.mxu0 0.0
    %4826 = vmatprep.subr.mxu0 0.0
    %4827 = vmatpush1.msra.mxu0 0.0
    %4828 = vmatprep.subr.mxu0 0.0
    %4829 = vmatpush1.msra.mxu0 0.0
    %4830 = vmatprep.subr.mxu0 0.0
    %4831 = vmatpush1.msra.mxu0 0.0
    %4832 = vmatprep.subr.mxu0 0.0
    %4833 = vmatpush1.msra.mxu0 0.0
    %4834 = vmatprep.subr.mxu0 0.0
    %4835 = vmatpush1.msra.mxu0 0.0
    %4836 = vmatprep.subr.mxu0 0.0
    %4837 = vmatpush1.msra.mxu0 0.0
    %4838 = vmatprep.subr.mxu0 0.0
    %4839 = vmatpush1.msra.mxu0 0.0
    %4840 = vmatprep.subr.mxu0 0.0
    %4841 = vmatpush1.msra.mxu0 0.0
    %4842 = vmatprep.subr.mxu0 0.0
    %4843 = vmatpush1.msra.mxu0 0.0
    %4844 = vmatprep.subr.mxu0 0.0
    %4845 = vmatpush1.msra.mxu0 %v4482
    %4846 = vmatprep.subr.mxu0 0.0
    %4847 = vmatpush2.msra.mxu0 0.0
    %4848 = vmatprep.subr.mxu0 0.0
    %4849 = vmatpush2.msra.mxu0 0.0
    %4850 = vmatprep.subr.mxu0 0.0
    %4851 = vmatpush2.msra.mxu0 0.0
    %4852 = vmatprep.subr.mxu0 0.0
    %4853 = vmatpush2.msra.mxu0 0.0
    %4854 = vmatprep.subr.mxu0 0.0
    %4855 = vmatpush2.msra.mxu0 0.0
    %4856 = vmatprep.subr.mxu0 0.0
    %4857 = vmatpush2.msra.mxu0 0.0
    %4858 = vmatprep.subr.mxu0 0.0
    %4859 = vmatpush2.msra.mxu0 0.0
    %4860 = vmatprep.subr.mxu0 0.0
    %4861 = vmatpush2.msra.mxu0 0.0
    %4862 = vmatprep.subr.mxu0 0.0
    %4863 = vmatpush2.msra.mxu0 0.0
    %4864 = vmatprep.subr.mxu0 0.0
    %4865 = vmatpush2.msra.mxu0 0.0
    %4866 = vmatprep.subr.mxu0 0.0
    %4867 = vmatpush2.msra.mxu0 0.0
    %4868 = vmatprep.subr.mxu0 0.0
    %4869 = vmatpush2.msra.mxu0 0.0
    %4870 = vmatprep.subr.mxu0 0.0
    %4871 = vmatpush2.msra.mxu0 0.0
    %4872 = vmatprep.subr.mxu0 0.0
    %4873 = vmatpush2.msra.mxu0 0.0
    %4874 = vmatprep.subr.mxu0 0.0
    %4875 = vmatpush2.msra.mxu0 0.0
    %4876 = vmatprep.subr.mxu0 0.0
    %4877 = vmatpush2.msra.mxu0 0.0
    %4878 = vmatprep.mubr.f32.mxu0 0.0
    %4879 = vmatmul.mubr.f32.gmra.mxu0 %v4810
    %v4880 = vpop.f32.mrf.mxu0
    %v4881 = vadd.f32 0.0, %v4880
    %v4882 = vpop.f32.mrf.mxu0
    %4883 = vmatprep.mubr.f32.mxu0 0.0
    %4884 = vmatmul.mubr.f32.gmra.mxu0 %v4812
    %v4885 = vpop.f32.mrf.mxu0
    %v4886 = vadd.f32 0.0, %v4885
    %v4887 = vpop.f32.mrf.mxu0
    %4888 = vdwg.mxu0
    %v4889 = vsel %vm286, %v4437, 0
    %v4891 = vsel %vm286, %v4439, 0
    %4893 = vmatprep.subr.mxu0 0.0
    %4894 = vmatpush1.msra.mxu0 0.0
    %4895 = vmatprep.subr.mxu0 0.0
    %4896 = vmatpush1.msra.mxu0 0.0
    %4897 = vmatprep.subr.mxu0 0.0
    %4898 = vmatpush1.msra.mxu0 0.0
    %4899 = vmatprep.subr.mxu0 0.0
    %4900 = vmatpush1.msra.mxu0 0.0
    %4901 = vmatprep.subr.mxu0 0.0
    %4902 = vmatpush1.msra.mxu0 0.0
    %4903 = vmatprep.subr.mxu0 0.0
    %4904 = vmatpush1.msra.mxu0 0.0
    %4905 = vmatprep.subr.mxu0 0.0
    %4906 = vmatpush1.msra.mxu0 0.0
    %4907 = vmatprep.subr.mxu0 0.0
    %4908 = vmatpush1.msra.mxu0 0.0
    %4909 = vmatprep.subr.mxu0 0.0
    %4910 = vmatpush1.msra.mxu0 0.0
    %4911 = vmatprep.subr.mxu0 0.0
    %4912 = vmatpush1.msra.mxu0 0.0
    %4913 = vmatprep.subr.mxu0 0.0
    %4914 = vmatpush1.msra.mxu0 0.0
    %4915 = vmatprep.subr.mxu0 0.0
    %4916 = vmatpush1.msra.mxu0 0.0
    %4917 = vmatprep.subr.mxu0 0.0
    %4918 = vmatpush1.msra.mxu0 0.0
    %4919 = vmatprep.subr.mxu0 0.0
    %4920 = vmatpush1.msra.mxu0 0.0
    %4921 = vmatprep.subr.mxu0 0.0
    %4922 = vmatpush1.msra.mxu0 0.0
    %4923 = vmatprep.subr.mxu0 0.0
    %4924 = vmatpush1.msra.mxu0 %v4483
    %4925 = vmatprep.subr.mxu0 0.0
    %4926 = vmatpush2.msra.mxu0 0.0
    %4927 = vmatprep.subr.mxu0 0.0
    %4928 = vmatpush2.msra.mxu0 0.0
    %4929 = vmatprep.subr.mxu0 0.0
    %4930 = vmatpush2.msra.mxu0 0.0
    %4931 = vmatprep.subr.mxu0 0.0
    %4932 = vmatpush2.msra.mxu0 0.0
    %4933 = vmatprep.subr.mxu0 0.0
    %4934 = vmatpush2.msra.mxu0 0.0
    %4935 = vmatprep.subr.mxu0 0.0
    %4936 = vmatpush2.msra.mxu0 0.0
    %4937 = vmatprep.subr.mxu0 0.0
    %4938 = vmatpush2.msra.mxu0 0.0
    %4939 = vmatprep.subr.mxu0 0.0
    %4940 = vmatpush2.msra.mxu0 0.0
    %4941 = vmatprep.subr.mxu0 0.0
    %4942 = vmatpush2.msra.mxu0 0.0
    %4943 = vmatprep.subr.mxu0 0.0
    %4944 = vmatpush2.msra.mxu0 0.0
    %4945 = vmatprep.subr.mxu0 0.0
    %4946 = vmatpush2.msra.mxu0 0.0
    %4947 = vmatprep.subr.mxu0 0.0
    %4948 = vmatpush2.msra.mxu0 0.0
    %4949 = vmatprep.subr.mxu0 0.0
    %4950 = vmatpush2.msra.mxu0 0.0
    %4951 = vmatprep.subr.mxu0 0.0
    %4952 = vmatpush2.msra.mxu0 0.0
    %4953 = vmatprep.subr.mxu0 0.0
    %4954 = vmatpush2.msra.mxu0 0.0
    %4955 = vmatprep.subr.mxu0 0.0
    %4956 = vmatpush2.msra.mxu0 0.0
    %4957 = vmatprep.mubr.f32.mxu0 0.0
    %4958 = vmatmul.mubr.f32.gmra.mxu0 %v4889
    %v4959 = vpop.f32.mrf.mxu0
    %v4960 = vadd.f32 0.0, %v4959
    %v4961 = vpop.f32.mrf.mxu0
    %4962 = vmatprep.mubr.f32.mxu0 0.0
    %4963 = vmatmul.mubr.f32.gmra.mxu0 %v4891
    %v4964 = vpop.f32.mrf.mxu0
    %v4965 = vadd.f32 0.0, %v4964
    %v4966 = vpop.f32.mrf.mxu0
    %4967 = vdwg.mxu0
    %v4968 = vsel %vm286, %v4441, 0
    %v4970 = vsel %vm286, %v4443, 0
    %4972 = vmatprep.subr.mxu0 0.0
    %4973 = vmatpush1.msra.mxu0 0.0
    %4974 = vmatprep.subr.mxu0 0.0
    %4975 = vmatpush1.msra.mxu0 0.0
    %4976 = vmatprep.subr.mxu0 0.0
    %4977 = vmatpush1.msra.mxu0 0.0
    %4978 = vmatprep.subr.mxu0 0.0
    %4979 = vmatpush1.msra.mxu0 0.0
    %4980 = vmatprep.subr.mxu0 0.0
    %4981 = vmatpush1.msra.mxu0 0.0
    %4982 = vmatprep.subr.mxu0 0.0
    %4983 = vmatpush1.msra.mxu0 0.0
    %4984 = vmatprep.subr.mxu0 0.0
    %4985 = vmatpush1.msra.mxu0 0.0
    %4986 = vmatprep.subr.mxu0 0.0
    %4987 = vmatpush1.msra.mxu0 0.0
    %4988 = vmatprep.subr.mxu0 0.0
    %4989 = vmatpush1.msra.mxu0 0.0
    %4990 = vmatprep.subr.mxu0 0.0
    %4991 = vmatpush1.msra.mxu0 0.0
    %4992 = vmatprep.subr.mxu0 0.0
    %4993 = vmatpush1.msra.mxu0 0.0
    %4994 = vmatprep.subr.mxu0 0.0
    %4995 = vmatpush1.msra.mxu0 0.0
    %4996 = vmatprep.subr.mxu0 0.0
    %4997 = vmatpush1.msra.mxu0 0.0
    %4998 = vmatprep.subr.mxu0 0.0
    %4999 = vmatpush1.msra.mxu0 0.0
    %5000 = vmatprep.subr.mxu0 0.0
    %5001 = vmatpush1.msra.mxu0 0.0
    %5002 = vmatprep.subr.mxu0 0.0
    %5003 = vmatpush1.msra.mxu0 %v4484
    %5004 = vmatprep.subr.mxu0 0.0
    %5005 = vmatpush2.msra.mxu0 0.0
    %5006 = vmatprep.subr.mxu0 0.0
    %5007 = vmatpush2.msra.mxu0 0.0
    %5008 = vmatprep.subr.mxu0 0.0
    %5009 = vmatpush2.msra.mxu0 0.0
    %5010 = vmatprep.subr.mxu0 0.0
    %5011 = vmatpush2.msra.mxu0 0.0
    %5012 = vmatprep.subr.mxu0 0.0
    %5013 = vmatpush2.msra.mxu0 0.0
    %5014 = vmatprep.subr.mxu0 0.0
    %5015 = vmatpush2.msra.mxu0 0.0
    %5016 = vmatprep.subr.mxu0 0.0
    %5017 = vmatpush2.msra.mxu0 0.0
    %5018 = vmatprep.subr.mxu0 0.0
    %5019 = vmatpush2.msra.mxu0 0.0
    %5020 = vmatprep.subr.mxu0 0.0
    %5021 = vmatpush2.msra.mxu0 0.0
    %5022 = vmatprep.subr.mxu0 0.0
    %5023 = vmatpush2.msra.mxu0 0.0
    %5024 = vmatprep.subr.mxu0 0.0
    %5025 = vmatpush2.msra.mxu0 0.0
    %5026 = vmatprep.subr.mxu0 0.0
    %5027 = vmatpush2.msra.mxu0 0.0
    %5028 = vmatprep.subr.mxu0 0.0
    %5029 = vmatpush2.msra.mxu0 0.0
    %5030 = vmatprep.subr.mxu0 0.0
    %5031 = vmatpush2.msra.mxu0 0.0
    %5032 = vmatprep.subr.mxu0 0.0
    %5033 = vmatpush2.msra.mxu0 0.0
    %5034 = vmatprep.subr.mxu0 0.0
    %5035 = vmatpush2.msra.mxu0 0.0
    %5036 = vmatprep.mubr.f32.mxu0 0.0
    %5037 = vmatmul.mubr.f32.gmra.mxu0 %v4968
    %v5038 = vpop.f32.mrf.mxu0
    %v5039 = vadd.f32 0.0, %v5038
    %v5040 = vpop.f32.mrf.mxu0
    %5041 = vmatprep.mubr.f32.mxu0 0.0
    %5042 = vmatmul.mubr.f32.gmra.mxu0 %v4970
    %v5043 = vpop.f32.mrf.mxu0
    %v5044 = vadd.f32 0.0, %v5043
    %v5045 = vpop.f32.mrf.mxu0
    %5046 = vdwg.mxu0
    %v5047 = vsel %vm286, %v4445, 0
    %v5049 = vsel %vm286, %v4447, 0
    %5051 = vmatprep.subr.mxu0 0.0
    %5052 = vmatpush1.msra.mxu0 0.0
    %5053 = vmatprep.subr.mxu0 0.0
    %5054 = vmatpush1.msra.mxu0 0.0
    %5055 = vmatprep.subr.mxu0 0.0
    %5056 = vmatpush1.msra.mxu0 0.0
    %5057 = vmatprep.subr.mxu0 0.0
    %5058 = vmatpush1.msra.mxu0 0.0
    %5059 = vmatprep.subr.mxu0 0.0
    %5060 = vmatpush1.msra.mxu0 0.0
    %5061 = vmatprep.subr.mxu0 0.0
    %5062 = vmatpush1.msra.mxu0 0.0
    %5063 = vmatprep.subr.mxu0 0.0
    %5064 = vmatpush1.msra.mxu0 0.0
    %5065 = vmatprep.subr.mxu0 0.0
    %5066 = vmatpush1.msra.mxu0 0.0
    %5067 = vmatprep.subr.mxu0 0.0
    %5068 = vmatpush1.msra.mxu0 0.0
    %5069 = vmatprep.subr.mxu0 0.0
    %5070 = vmatpush1.msra.mxu0 0.0
    %5071 = vmatprep.subr.mxu0 0.0
    %5072 = vmatpush1.msra.mxu0 0.0
    %5073 = vmatprep.subr.mxu0 0.0
    %5074 = vmatpush1.msra.mxu0 0.0
    %5075 = vmatprep.subr.mxu0 0.0
    %5076 = vmatpush1.msra.mxu0 0.0
    %5077 = vmatprep.subr.mxu0 0.0
    %5078 = vmatpush1.msra.mxu0 0.0
    %5079 = vmatprep.subr.mxu0 0.0
    %5080 = vmatpush1.msra.mxu0 0.0
    %5081 = vmatprep.subr.mxu0 0.0
    %5082 = vmatpush1.msra.mxu0 %v4485
    %5083 = vmatprep.subr.mxu0 0.0
    %5084 = vmatpush2.msra.mxu0 0.0
    %5085 = vmatprep.subr.mxu0 0.0
    %5086 = vmatpush2.msra.mxu0 0.0
    %5087 = vmatprep.subr.mxu0 0.0
    %5088 = vmatpush2.msra.mxu0 0.0
    %5089 = vmatprep.subr.mxu0 0.0
    %5090 = vmatpush2.msra.mxu0 0.0
    %5091 = vmatprep.subr.mxu0 0.0
    %5092 = vmatpush2.msra.mxu0 0.0
    %5093 = vmatprep.subr.mxu0 0.0
    %5094 = vmatpush2.msra.mxu0 0.0
    %5095 = vmatprep.subr.mxu0 0.0
    %5096 = vmatpush2.msra.mxu0 0.0
    %5097 = vmatprep.subr.mxu0 0.0
    %5098 = vmatpush2.msra.mxu0 0.0
    %5099 = vmatprep.subr.mxu0 0.0
    %5100 = vmatpush2.msra.mxu0 0.0
    %5101 = vmatprep.subr.mxu0 0.0
    %5102 = vmatpush2.msra.mxu0 0.0
    %5103 = vmatprep.subr.mxu0 0.0
    %5104 = vmatpush2.msra.mxu0 0.0
    %5105 = vmatprep.subr.mxu0 0.0
    %5106 = vmatpush2.msra.mxu0 0.0
    %5107 = vmatprep.subr.mxu0 0.0
    %5108 = vmatpush2.msra.mxu0 0.0
    %5109 = vmatprep.subr.mxu0 0.0
    %5110 = vmatpush2.msra.mxu0 0.0
    %5111 = vmatprep.subr.mxu0 0.0
    %5112 = vmatpush2.msra.mxu0 0.0
    %5113 = vmatprep.subr.mxu0 0.0
    %5114 = vmatpush2.msra.mxu0 0.0
    %5115 = vmatprep.mubr.f32.mxu0 0.0
    %5116 = vmatmul.mubr.f32.gmra.mxu0 %v5047
    %v5117 = vpop.f32.mrf.mxu0
    %v5118 = vadd.f32 0.0, %v5117
    %v5119 = vpop.f32.mrf.mxu0
    %5120 = vmatprep.mubr.f32.mxu0 0.0
    %5121 = vmatmul.mubr.f32.gmra.mxu0 %v5049
    %v5122 = vpop.f32.mrf.mxu0
    %v5123 = vadd.f32 0.0, %v5122
    %v5124 = vpop.f32.mrf.mxu0
    %5125 = vdwg.mxu0
    %v5126 = vmul.f32 %v4565, 0.35355338
    %v5127 = vmul.f32 %v4570, 0.35355338
    %v5128 = vmul.f32 %v4644, 0.35355338
    %v5129 = vmul.f32 %v4649, 0.35355338
    %v5130 = vmul.f32 %v4723, 0.35355338
    %v5131 = vmul.f32 %v4728, 0.35355338
    %v5132 = vmul.f32 %v4802, 0.35355338
    %v5133 = vmul.f32 %v4807, 0.35355338
    %v5134 = vmul.f32 %v4881, 0.35355338
    %v5135 = vmul.f32 %v4886, 0.35355338
    %v5136 = vmul.f32 %v4960, 0.35355338
    %v5137 = vmul.f32 %v4965, 0.35355338
    %v5138 = vmul.f32 %v5039, 0.35355338
    %v5139 = vmul.f32 %v5044, 0.35355338
    %v5140 = vmul.f32 %v5118, 0.35355338
    %v5141 = vmul.f32 %v5123, 0.35355338
    %v5142 = vsel %vm67, %v65, %v5126
    %v5143 = vsel %vm68, %v66, %v5127
    %v5144 = vsel %vm67, %v65, %v5128
    %v5145 = vsel %vm68, %v66, %v5129
    %v5146 = vsel %vm67, %v65, %v5130
    %v5147 = vsel %vm68, %v66, %v5131
    %v5148 = vsel %vm67, %v65, %v5132
    %v5149 = vsel %vm68, %v66, %v5133
    %v5150 = vsel %vm67, %v65, %v5134
    %v5151 = vsel %vm68, %v66, %v5135
    %v5152 = vsel %vm67, %v65, %v5136
    %v5153 = vsel %vm68, %v66, %v5137
    %v5154 = vsel %vm67, %v65, %v5138
    %v5155 = vsel %vm68, %v66, %v5139
    %v5156 = vsel %vm67, %v65, %v5140
    %v5157 = vsel %vm68, %v66, %v5141
    %v5158 = vsel %vm951, %v5142, -inf
    %5159 = vmax.xlane.f32.xlu0 %v5158
    %v5160 = vpop.xlane.xlu0 %5159
    %v5161 = vsel %vm951, %v5143, -inf
    %5162 = vmax.xlane.f32.xlu0 %v5161
    %v5163 = vpop.xlane.xlu0 %5162
    %v5164 = vsel %vm951, %v5144, -inf
    %5165 = vmax.xlane.f32.xlu0 %v5164
    %v5166 = vpop.xlane.xlu0 %5165
    %v5167 = vsel %vm951, %v5145, -inf
    %5168 = vmax.xlane.f32.xlu0 %v5167
    %v5169 = vpop.xlane.xlu0 %5168
    %v5170 = vsel %vm951, %v5146, -inf
    %5171 = vmax.xlane.f32.xlu0 %v5170
    %v5172 = vpop.xlane.xlu0 %5171
    %v5173 = vsel %vm951, %v5147, -inf
    %5174 = vmax.xlane.f32.xlu0 %v5173
    %v5175 = vpop.xlane.xlu0 %5174
    %v5176 = vsel %vm951, %v5148, -inf
    %5177 = vmax.xlane.f32.xlu0 %v5176
    %v5178 = vpop.xlane.xlu0 %5177
    %v5179 = vsel %vm951, %v5149, -inf
    %5180 = vmax.xlane.f32.xlu0 %v5179
    %v5181 = vpop.xlane.xlu0 %5180
    %v5182 = vsel %vm951, %v5150, -inf
    %5183 = vmax.xlane.f32.xlu0 %v5182
    %v5184 = vpop.xlane.xlu0 %5183
    %v5185 = vsel %vm951, %v5151, -inf
    %5186 = vmax.xlane.f32.xlu0 %v5185
    %v5187 = vpop.xlane.xlu0 %5186
    %v5188 = vsel %vm951, %v5152, -inf
    %5189 = vmax.xlane.f32.xlu0 %v5188
    %v5190 = vpop.xlane.xlu0 %5189
    %v5191 = vsel %vm951, %v5153, -inf
    %5192 = vmax.xlane.f32.xlu0 %v5191
    %v5193 = vpop.xlane.xlu0 %5192
    %v5194 = vsel %vm951, %v5154, -inf
    %5195 = vmax.xlane.f32.xlu0 %v5194
    %v5196 = vpop.xlane.xlu0 %5195
    %v5197 = vsel %vm951, %v5155, -inf
    %5198 = vmax.xlane.f32.xlu0 %v5197
    %v5199 = vpop.xlane.xlu0 %5198
    %v5200 = vsel %vm951, %v5156, -inf
    %5201 = vmax.xlane.f32.xlu0 %v5200
    %v5202 = vpop.xlane.xlu0 %5201
    %v5203 = vsel %vm951, %v5157, -inf
    %5204 = vmax.xlane.f32.xlu0 %v5203
    %v5205 = vpop.xlane.xlu0 %5204
    %v5206 = vsub.f32 %v5142, %v5160
    %v5207 = vsub.f32 %v5143, %v5163
    %v5208 = vsub.f32 %v5144, %v5166
    %v5209 = vsub.f32 %v5145, %v5169
    %v5210 = vsub.f32 %v5146, %v5172
    %v5211 = vsub.f32 %v5147, %v5175
    %v5212 = vsub.f32 %v5148, %v5178
    %v5213 = vsub.f32 %v5149, %v5181
    %v5214 = vsub.f32 %v5150, %v5184
    %v5215 = vsub.f32 %v5151, %v5187
    %v5216 = vsub.f32 %v5152, %v5190
    %v5217 = vsub.f32 %v5153, %v5193
    %v5218 = vsub.f32 %v5154, %v5196
    %v5219 = vsub.f32 %v5155, %v5199
    %v5220 = vsub.f32 %v5156, %v5202
    %v5221 = vsub.f32 %v5157, %v5205
    %v5222 = vmul.f32 %v5206, 1.442695
    %v5223 = vpow.pop %v5222
    %v5224 = vmul.f32 %v5207, 1.442695
    %v5225 = vpow.pop %v5224
    %v5226 = vmul.f32 %v5208, 1.442695
    %v5227 = vpow.pop %v5226
    %v5228 = vmul.f32 %v5209, 1.442695
    %v5229 = vpow.pop %v5228
    %v5230 = vmul.f32 %v5210, 1.442695
    %v5231 = vpow.pop %v5230
    %v5232 = vmul.f32 %v5211, 1.442695
    %v5233 = vpow.pop %v5232
    %v5234 = vmul.f32 %v5212, 1.442695
    %v5235 = vpow.pop %v5234
    %v5236 = vmul.f32 %v5213, 1.442695
    %v5237 = vpow.pop %v5236
    %v5238 = vmul.f32 %v5214, 1.442695
    %v5239 = vpow.pop %v5238
    %v5240 = vmul.f32 %v5215, 1.442695
    %v5241 = vpow.pop %v5240
    %v5242 = vmul.f32 %v5216, 1.442695
    %v5243 = vpow.pop %v5242
    %v5244 = vmul.f32 %v5217, 1.442695
    %v5245 = vpow.pop %v5244
    %v5246 = vmul.f32 %v5218, 1.442695
    %v5247 = vpow.pop %v5246
    %v5248 = vmul.f32 %v5219, 1.442695
    %v5249 = vpow.pop %v5248
    %v5250 = vmul.f32 %v5220, 1.442695
    %v5251 = vpow.pop %v5250
    %v5252 = vmul.f32 %v5221, 1.442695
    %v5253 = vpow.pop %v5252
    %v5254 = vsel %vm951, %v5223, 0.0
    %5255 = vadd.xlane.f32.xlu0 %v5254
    %v5256 = vpop.xlane.xlu0 %5255
    %v5257 = vsel %vm951, %v5225, 0.0
    %5258 = vadd.xlane.f32.xlu0 %v5257
    %v5259 = vpop.xlane.xlu0 %5258
    %v5260 = vsel %vm951, %v5227, 0.0
    %5261 = vadd.xlane.f32.xlu0 %v5260
    %v5262 = vpop.xlane.xlu0 %5261
    %v5263 = vsel %vm951, %v5229, 0.0
    %5264 = vadd.xlane.f32.xlu0 %v5263
    %v5265 = vpop.xlane.xlu0 %5264
    %v5266 = vsel %vm951, %v5231, 0.0
    %5267 = vadd.xlane.f32.xlu0 %v5266
    %v5268 = vpop.xlane.xlu0 %5267
    %v5269 = vsel %vm951, %v5233, 0.0
    %5270 = vadd.xlane.f32.xlu0 %v5269
    %v5271 = vpop.xlane.xlu0 %5270
    %v5272 = vsel %vm951, %v5235, 0.0
    %5273 = vadd.xlane.f32.xlu0 %v5272
    %v5274 = vpop.xlane.xlu0 %5273
    %v5275 = vsel %vm951, %v5237, 0.0
    %5276 = vadd.xlane.f32.xlu0 %v5275
    %v5277 = vpop.xlane.xlu0 %5276
    %v5278 = vsel %vm951, %v5239, 0.0
    %5279 = vadd.xlane.f32.xlu0 %v5278
    %v5280 = vpop.xlane.xlu0 %5279
    %v5281 = vsel %vm951, %v5241, 0.0
    %5282 = vadd.xlane.f32.xlu0 %v5281
    %v5283 = vpop.xlane.xlu0 %5282
    %v5284 = vsel %vm951, %v5243, 0.0
    %5285 = vadd.xlane.f32.xlu0 %v5284
    %v5286 = vpop.xlane.xlu0 %5285
    %v5287 = vsel %vm951, %v5245, 0.0
    %5288 = vadd.xlane.f32.xlu0 %v5287
    %v5289 = vpop.xlane.xlu0 %5288
    %v5290 = vsel %vm951, %v5247, 0.0
    %5291 = vadd.xlane.f32.xlu0 %v5290
    %v5292 = vpop.xlane.xlu0 %5291
    %v5293 = vsel %vm951, %v5249, 0.0
    %5294 = vadd.xlane.f32.xlu0 %v5293
    %v5295 = vpop.xlane.xlu0 %5294
    %v5296 = vsel %vm951, %v5251, 0.0
    %5297 = vadd.xlane.f32.xlu0 %v5296
    %v5298 = vpop.xlane.xlu0 %5297
    %v5299 = vsel %vm951, %v5253, 0.0
    %5300 = vadd.xlane.f32.xlu0 %v5299
    %v5301 = vpop.xlane.xlu0 %5300
    %v5302 = vrcp.pop %v5256
    %v5303 = vrcp.pop %v5259
    %v5304 = vrcp.pop %v5262
    %v5305 = vrcp.pop %v5265
    %v5306 = vrcp.pop %v5268
    %v5307 = vrcp.pop %v5271
    %v5308 = vrcp.pop %v5274
    %v5309 = vrcp.pop %v5277
    %v5310 = vrcp.pop %v5280
    %v5311 = vrcp.pop %v5283
    %v5312 = vrcp.pop %v5286
    %v5313 = vrcp.pop %v5289
    %v5314 = vrcp.pop %v5292
    %v5315 = vrcp.pop %v5295
    %v5316 = vrcp.pop %v5298
    %v5317 = vrcp.pop %v5301
    %v5318 = vmul.f32 %v5223, %v5302
    %v5319 = vmul.f32 %v5225, %v5303
    %v5320 = vmul.f32 %v5227, %v5304
    %v5321 = vmul.f32 %v5229, %v5305
    %v5322 = vmul.f32 %v5231, %v5306
    %v5323 = vmul.f32 %v5233, %v5307
    %v5324 = vmul.f32 %v5235, %v5308
    %v5325 = vmul.f32 %v5237, %v5309
    %v5326 = vmul.f32 %v5239, %v5310
    %v5327 = vmul.f32 %v5241, %v5311
    %v5328 = vmul.f32 %v5243, %v5312
    %v5329 = vmul.f32 %v5245, %v5313
    %v5330 = vmul.f32 %v5247, %v5314
    %v5331 = vmul.f32 %v5249, %v5315
    %v5332 = vmul.f32 %v5251, %v5316
    %v5333 = vmul.f32 %v5253, %v5317
    %v5335 = vsel %vm951, %v4486, 0
    %v5338 = vsel %vm951, %v5318, 0
    %v5341 = vsel %vm951, %v5319, 0
    %5343 = vmatprep.subr.mxu0 0.0
    %5344 = vmatpush1.xpose.msra.mxu0 0.0
    %5345 = vmatprep.subr.mxu0 0.0
    %5346 = vmatpush1.xpose.msra.mxu0 0.0
    %5347 = vmatprep.subr.mxu0 0.0
    %5348 = vmatpush1.xpose.msra.mxu0 0.0
    %5349 = vmatprep.subr.mxu0 0.0
    %5350 = vmatpush1.xpose.msra.mxu0 0.0
    %5351 = vmatprep.subr.mxu0 0.0
    %5352 = vmatpush1.xpose.msra.mxu0 0.0
    %5353 = vmatprep.subr.mxu0 0.0
    %5354 = vmatpush1.xpose.msra.mxu0 0.0
    %5355 = vmatprep.subr.mxu0 0.0
    %5356 = vmatpush1.xpose.msra.mxu0 0.0
    %5357 = vmatprep.subr.mxu0 0.0
    %5358 = vmatpush1.xpose.msra.mxu0 0.0
    %5359 = vmatprep.subr.mxu0 0.0
    %5360 = vmatpush1.xpose.msra.mxu0 0.0
    %5361 = vmatprep.subr.mxu0 0.0
    %5362 = vmatpush1.xpose.msra.mxu0 0.0
    %5363 = vmatprep.subr.mxu0 0.0
    %5364 = vmatpush1.xpose.msra.mxu0 0.0
    %5365 = vmatprep.subr.mxu0 0.0
    %5366 = vmatpush1.xpose.msra.mxu0 0.0
    %5367 = vmatprep.subr.mxu0 0.0
    %5368 = vmatpush1.xpose.msra.mxu0 0.0
    %5369 = vmatprep.subr.mxu0 0.0
    %5370 = vmatpush1.xpose.msra.mxu0 0.0
    %5371 = vmatprep.subr.mxu0 0.0
    %5372 = vmatpush1.xpose.msra.mxu0 %v5341
    %5373 = vmatprep.subr.mxu0 0.0
    %5374 = vmatpush1.xpose.msra.mxu0 %v5338
    %5375 = vmatprep.subr.mxu0 0.0
    %5376 = vmatpush2.xpose.msra.mxu0 0.0
    %5377 = vmatprep.subr.mxu0 0.0
    %5378 = vmatpush2.xpose.msra.mxu0 0.0
    %5379 = vmatprep.subr.mxu0 0.0
    %5380 = vmatpush2.xpose.msra.mxu0 0.0
    %5381 = vmatprep.subr.mxu0 0.0
    %5382 = vmatpush2.xpose.msra.mxu0 0.0
    %5383 = vmatprep.subr.mxu0 0.0
    %5384 = vmatpush2.xpose.msra.mxu0 0.0
    %5385 = vmatprep.subr.mxu0 0.0
    %5386 = vmatpush2.xpose.msra.mxu0 0.0
    %5387 = vmatprep.subr.mxu0 0.0
    %5388 = vmatpush2.xpose.msra.mxu0 0.0
    %5389 = vmatprep.subr.mxu0 0.0
    %5390 = vmatpush2.xpose.msra.mxu0 0.0
    %5391 = vmatprep.subr.mxu0 0.0
    %5392 = vmatpush2.xpose.msra.mxu0 0.0
    %5393 = vmatprep.subr.mxu0 0.0
    %5394 = vmatpush2.xpose.msra.mxu0 0.0
    %5395 = vmatprep.subr.mxu0 0.0
    %5396 = vmatpush2.xpose.msra.mxu0 0.0
    %5397 = vmatprep.subr.mxu0 0.0
    %5398 = vmatpush2.xpose.msra.mxu0 0.0
    %5399 = vmatprep.subr.mxu0 0.0
    %5400 = vmatpush2.xpose.msra.mxu0 0.0
    %5401 = vmatprep.subr.mxu0 0.0
    %5402 = vmatpush2.xpose.msra.mxu0 0.0
    %5403 = vmatprep.subr.mxu0 0.0
    %5404 = vmatpush2.xpose.msra.mxu0 0.0
    %5405 = vmatprep.subr.mxu0 0.0
    %5406 = vmatpush2.xpose.msra.mxu0 0.0
    %5407 = vmatprep.mubr.f32.mxu0 0.0
    %5408 = vmatmul.mubr.f32.gmra.mxu0 %v5335
    %v5409 = vpop.f32.mrf.mxu0
    %v5410 = vadd.f32 0.0, %v5409
    %v5411 = vpop.f32.mrf.mxu0
    %5412 = vdwg.mxu0
    %v5414 = vsel %vm951, %v4487, 0
    %v5417 = vsel %vm951, %v5320, 0
    %v5420 = vsel %vm951, %v5321, 0
    %5422 = vmatprep.subr.mxu0 0.0
    %5423 = vmatpush1.xpose.msra.mxu0 0.0
    %5424 = vmatprep.subr.mxu0 0.0
    %5425 = vmatpush1.xpose.msra.mxu0 0.0
    %5426 = vmatprep.subr.mxu0 0.0
    %5427 = vmatpush1.xpose.msra.mxu0 0.0
    %5428 = vmatprep.subr.mxu0 0.0
    %5429 = vmatpush1.xpose.msra.mxu0 0.0
    %5430 = vmatprep.subr.mxu0 0.0
    %5431 = vmatpush1.xpose.msra.mxu0 0.0
    %5432 = vmatprep.subr.mxu0 0.0
    %5433 = vmatpush1.xpose.msra.mxu0 0.0
    %5434 = vmatprep.subr.mxu0 0.0
    %5435 = vmatpush1.xpose.msra.mxu0 0.0
    %5436 = vmatprep.subr.mxu0 0.0
    %5437 = vmatpush1.xpose.msra.mxu0 0.0
    %5438 = vmatprep.subr.mxu0 0.0
    %5439 = vmatpush1.xpose.msra.mxu0 0.0
    %5440 = vmatprep.subr.mxu0 0.0
    %5441 = vmatpush1.xpose.msra.mxu0 0.0
    %5442 = vmatprep.subr.mxu0 0.0
    %5443 = vmatpush1.xpose.msra.mxu0 0.0
    %5444 = vmatprep.subr.mxu0 0.0
    %5445 = vmatpush1.xpose.msra.mxu0 0.0
    %5446 = vmatprep.subr.mxu0 0.0
    %5447 = vmatpush1.xpose.msra.mxu0 0.0
    %5448 = vmatprep.subr.mxu0 0.0
    %5449 = vmatpush1.xpose.msra.mxu0 0.0
    %5450 = vmatprep.subr.mxu0 0.0
    %5451 = vmatpush1.xpose.msra.mxu0 %v5420
    %5452 = vmatprep.subr.mxu0 0.0
    %5453 = vmatpush1.xpose.msra.mxu0 %v5417
    %5454 = vmatprep.subr.mxu0 0.0
    %5455 = vmatpush2.xpose.msra.mxu0 0.0
    %5456 = vmatprep.subr.mxu0 0.0
    %5457 = vmatpush2.xpose.msra.mxu0 0.0
    %5458 = vmatprep.subr.mxu0 0.0
    %5459 = vmatpush2.xpose.msra.mxu0 0.0
    %5460 = vmatprep.subr.mxu0 0.0
    %5461 = vmatpush2.xpose.msra.mxu0 0.0
    %5462 = vmatprep.subr.mxu0 0.0
    %5463 = vmatpush2.xpose.msra.mxu0 0.0
    %5464 = vmatprep.subr.mxu0 0.0
    %5465 = vmatpush2.xpose.msra.mxu0 0.0
    %5466 = vmatprep.subr.mxu0 0.0
    %5467 = vmatpush2.xpose.msra.mxu0 0.0
    %5468 = vmatprep.subr.mxu0 0.0
    %5469 = vmatpush2.xpose.msra.mxu0 0.0
    %5470 = vmatprep.subr.mxu0 0.0
    %5471 = vmatpush2.xpose.msra.mxu0 0.0
    %5472 = vmatprep.subr.mxu0 0.0
    %5473 = vmatpush2.xpose.msra.mxu0 0.0
    %5474 = vmatprep.subr.mxu0 0.0
    %5475 = vmatpush2.xpose.msra.mxu0 0.0
    %5476 = vmatprep.subr.mxu0 0.0
    %5477 = vmatpush2.xpose.msra.mxu0 0.0
    %5478 = vmatprep.subr.mxu0 0.0
    %5479 = vmatpush2.xpose.msra.mxu0 0.0
    %5480 = vmatprep.subr.mxu0 0.0
    %5481 = vmatpush2.xpose.msra.mxu0 0.0
    %5482 = vmatprep.subr.mxu0 0.0
    %5483 = vmatpush2.xpose.msra.mxu0 0.0
    %5484 = vmatprep.subr.mxu0 0.0
    %5485 = vmatpush2.xpose.msra.mxu0 0.0
    %5486 = vmatprep.mubr.f32.mxu0 0.0
    %5487 = vmatmul.mubr.f32.gmra.mxu0 %v5414
    %v5488 = vpop.f32.mrf.mxu0
    %v5489 = vadd.f32 0.0, %v5488
    %v5490 = vpop.f32.mrf.mxu0
    %5491 = vdwg.mxu0
    %v5493 = vsel %vm951, %v4488, 0
    %v5496 = vsel %vm951, %v5322, 0
    %v5499 = vsel %vm951, %v5323, 0
    %5501 = vmatprep.subr.mxu0 0.0
    %5502 = vmatpush1.xpose.msra.mxu0 0.0
    %5503 = vmatprep.subr.mxu0 0.0
    %5504 = vmatpush1.xpose.msra.mxu0 0.0
    %5505 = vmatprep.subr.mxu0 0.0
    %5506 = vmatpush1.xpose.msra.mxu0 0.0
    %5507 = vmatprep.subr.mxu0 0.0
    %5508 = vmatpush1.xpose.msra.mxu0 0.0
    %5509 = vmatprep.subr.mxu0 0.0
    %5510 = vmatpush1.xpose.msra.mxu0 0.0
    %5511 = vmatprep.subr.mxu0 0.0
    %5512 = vmatpush1.xpose.msra.mxu0 0.0
    %5513 = vmatprep.subr.mxu0 0.0
    %5514 = vmatpush1.xpose.msra.mxu0 0.0
    %5515 = vmatprep.subr.mxu0 0.0
    %5516 = vmatpush1.xpose.msra.mxu0 0.0
    %5517 = vmatprep.subr.mxu0 0.0
    %5518 = vmatpush1.xpose.msra.mxu0 0.0
    %5519 = vmatprep.subr.mxu0 0.0
    %5520 = vmatpush1.xpose.msra.mxu0 0.0
    %5521 = vmatprep.subr.mxu0 0.0
    %5522 = vmatpush1.xpose.msra.mxu0 0.0
    %5523 = vmatprep.subr.mxu0 0.0
    %5524 = vmatpush1.xpose.msra.mxu0 0.0
    %5525 = vmatprep.subr.mxu0 0.0
    %5526 = vmatpush1.xpose.msra.mxu0 0.0
    %5527 = vmatprep.subr.mxu0 0.0
    %5528 = vmatpush1.xpose.msra.mxu0 0.0
    %5529 = vmatprep.subr.mxu0 0.0
    %5530 = vmatpush1.xpose.msra.mxu0 %v5499
    %5531 = vmatprep.subr.mxu0 0.0
    %5532 = vmatpush1.xpose.msra.mxu0 %v5496
    %5533 = vmatprep.subr.mxu0 0.0
    %5534 = vmatpush2.xpose.msra.mxu0 0.0
    %5535 = vmatprep.subr.mxu0 0.0
    %5536 = vmatpush2.xpose.msra.mxu0 0.0
    %5537 = vmatprep.subr.mxu0 0.0
    %5538 = vmatpush2.xpose.msra.mxu0 0.0
    %5539 = vmatprep.subr.mxu0 0.0
    %5540 = vmatpush2.xpose.msra.mxu0 0.0
    %5541 = vmatprep.subr.mxu0 0.0
    %5542 = vmatpush2.xpose.msra.mxu0 0.0
    %5543 = vmatprep.subr.mxu0 0.0
    %5544 = vmatpush2.xpose.msra.mxu0 0.0
    %5545 = vmatprep.subr.mxu0 0.0
    %5546 = vmatpush2.xpose.msra.mxu0 0.0
    %5547 = vmatprep.subr.mxu0 0.0
    %5548 = vmatpush2.xpose.msra.mxu0 0.0
    %5549 = vmatprep.subr.mxu0 0.0
    %5550 = vmatpush2.xpose.msra.mxu0 0.0
    %5551 = vmatprep.subr.mxu0 0.0
    %5552 = vmatpush2.xpose.msra.mxu0 0.0
    %5553 = vmatprep.subr.mxu0 0.0
    %5554 = vmatpush2.xpose.msra.mxu0 0.0
    %5555 = vmatprep.subr.mxu0 0.0
    %5556 = vmatpush2.xpose.msra.mxu0 0.0
    %5557 = vmatprep.subr.mxu0 0.0
    %5558 = vmatpush2.xpose.msra.mxu0 0.0
    %5559 = vmatprep.subr.mxu0 0.0
    %5560 = vmatpush2.xpose.msra.mxu0 0.0
    %5561 = vmatprep.subr.mxu0 0.0
    %5562 = vmatpush2.xpose.msra.mxu0 0.0
    %5563 = vmatprep.subr.mxu0 0.0
    %5564 = vmatpush2.xpose.msra.mxu0 0.0
    %5565 = vmatprep.mubr.f32.mxu0 0.0
    %5566 = vmatmul.mubr.f32.gmra.mxu0 %v5493
    %v5567 = vpop.f32.mrf.mxu0
    %v5568 = vadd.f32 0.0, %v5567
    %v5569 = vpop.f32.mrf.mxu0
    %5570 = vdwg.mxu0
    %v5572 = vsel %vm951, %v4489, 0
    %v5575 = vsel %vm951, %v5324, 0
    %v5578 = vsel %vm951, %v5325, 0
    %5580 = vmatprep.subr.mxu0 0.0
    %5581 = vmatpush1.xpose.msra.mxu0 0.0
    %5582 = vmatprep.subr.mxu0 0.0
    %5583 = vmatpush1.xpose.msra.mxu0 0.0
    %5584 = vmatprep.subr.mxu0 0.0
    %5585 = vmatpush1.xpose.msra.mxu0 0.0
    %5586 = vmatprep.subr.mxu0 0.0
    %5587 = vmatpush1.xpose.msra.mxu0 0.0
    %5588 = vmatprep.subr.mxu0 0.0
    %5589 = vmatpush1.xpose.msra.mxu0 0.0
    %5590 = vmatprep.subr.mxu0 0.0
    %5591 = vmatpush1.xpose.msra.mxu0 0.0
    %5592 = vmatprep.subr.mxu0 0.0
    %5593 = vmatpush1.xpose.msra.mxu0 0.0
    %5594 = vmatprep.subr.mxu0 0.0
    %5595 = vmatpush1.xpose.msra.mxu0 0.0
    %5596 = vmatprep.subr.mxu0 0.0
    %5597 = vmatpush1.xpose.msra.mxu0 0.0
    %5598 = vmatprep.subr.mxu0 0.0
    %5599 = vmatpush1.xpose.msra.mxu0 0.0
    %5600 = vmatprep.subr.mxu0 0.0
    %5601 = vmatpush1.xpose.msra.mxu0 0.0
    %5602 = vmatprep.subr.mxu0 0.0
    %5603 = vmatpush1.xpose.msra.mxu0 0.0
    %5604 = vmatprep.subr.mxu0 0.0
    %5605 = vmatpush1.xpose.msra.mxu0 0.0
    %5606 = vmatprep.subr.mxu0 0.0
    %5607 = vmatpush1.xpose.msra.mxu0 0.0
    %5608 = vmatprep.subr.mxu0 0.0
    %5609 = vmatpush1.xpose.msra.mxu0 %v5578
    %5610 = vmatprep.subr.mxu0 0.0
    %5611 = vmatpush1.xpose.msra.mxu0 %v5575
    %5612 = vmatprep.subr.mxu0 0.0
    %5613 = vmatpush2.xpose.msra.mxu0 0.0
    %5614 = vmatprep.subr.mxu0 0.0
    %5615 = vmatpush2.xpose.msra.mxu0 0.0
    %5616 = vmatprep.subr.mxu0 0.0
    %5617 = vmatpush2.xpose.msra.mxu0 0.0
    %5618 = vmatprep.subr.mxu0 0.0
    %5619 = vmatpush2.xpose.msra.mxu0 0.0
    %5620 = vmatprep.subr.mxu0 0.0
    %5621 = vmatpush2.xpose.msra.mxu0 0.0
    %5622 = vmatprep.subr.mxu0 0.0
    %5623 = vmatpush2.xpose.msra.mxu0 0.0
    %5624 = vmatprep.subr.mxu0 0.0
    %5625 = vmatpush2.xpose.msra.mxu0 0.0
    %5626 = vmatprep.subr.mxu0 0.0
    %5627 = vmatpush2.xpose.msra.mxu0 0.0
    %5628 = vmatprep.subr.mxu0 0.0
    %5629 = vmatpush2.xpose.msra.mxu0 0.0
    %5630 = vmatprep.subr.mxu0 0.0
    %5631 = vmatpush2.xpose.msra.mxu0 0.0
    %5632 = vmatprep.subr.mxu0 0.0
    %5633 = vmatpush2.xpose.msra.mxu0 0.0
    %5634 = vmatprep.subr.mxu0 0.0
    %5635 = vmatpush2.xpose.msra.mxu0 0.0
    %5636 = vmatprep.subr.mxu0 0.0
    %5637 = vmatpush2.xpose.msra.mxu0 0.0
    %5638 = vmatprep.subr.mxu0 0.0
    %5639 = vmatpush2.xpose.msra.mxu0 0.0
    %5640 = vmatprep.subr.mxu0 0.0
    %5641 = vmatpush2.xpose.msra.mxu0 0.0
    %5642 = vmatprep.subr.mxu0 0.0
    %5643 = vmatpush2.xpose.msra.mxu0 0.0
    %5644 = vmatprep.mubr.f32.mxu0 0.0
    %5645 = vmatmul.mubr.f32.gmra.mxu0 %v5572
    %v5646 = vpop.f32.mrf.mxu0
    %v5647 = vadd.f32 0.0, %v5646
    %v5648 = vpop.f32.mrf.mxu0
    %5649 = vdwg.mxu0
    %v5651 = vsel %vm951, %v4490, 0
    %v5654 = vsel %vm951, %v5326, 0
    %v5657 = vsel %vm951, %v5327, 0
    %5659 = vmatprep.subr.mxu0 0.0
    %5660 = vmatpush1.xpose.msra.mxu0 0.0
    %5661 = vmatprep.subr.mxu0 0.0
    %5662 = vmatpush1.xpose.msra.mxu0 0.0
    %5663 = vmatprep.subr.mxu0 0.0
    %5664 = vmatpush1.xpose.msra.mxu0 0.0
    %5665 = vmatprep.subr.mxu0 0.0
    %5666 = vmatpush1.xpose.msra.mxu0 0.0
    %5667 = vmatprep.subr.mxu0 0.0
    %5668 = vmatpush1.xpose.msra.mxu0 0.0
    %5669 = vmatprep.subr.mxu0 0.0
    %5670 = vmatpush1.xpose.msra.mxu0 0.0
    %5671 = vmatprep.subr.mxu0 0.0
    %5672 = vmatpush1.xpose.msra.mxu0 0.0
    %5673 = vmatprep.subr.mxu0 0.0
    %5674 = vmatpush1.xpose.msra.mxu0 0.0
    %5675 = vmatprep.subr.mxu0 0.0
    %5676 = vmatpush1.xpose.msra.mxu0 0.0
    %5677 = vmatprep.subr.mxu0 0.0
    %5678 = vmatpush1.xpose.msra.mxu0 0.0
    %5679 = vmatprep.subr.mxu0 0.0
    %5680 = vmatpush1.xpose.msra.mxu0 0.0
    %5681 = vmatprep.subr.mxu0 0.0
    %5682 = vmatpush1.xpose.msra.mxu0 0.0
    %5683 = vmatprep.subr.mxu0 0.0
    %5684 = vmatpush1.xpose.msra.mxu0 0.0
    %5685 = vmatprep.subr.mxu0 0.0
    %5686 = vmatpush1.xpose.msra.mxu0 0.0
    %5687 = vmatprep.subr.mxu0 0.0
    %5688 = vmatpush1.xpose.msra.mxu0 %v5657
    %5689 = vmatprep.subr.mxu0 0.0
    %5690 = vmatpush1.xpose.msra.mxu0 %v5654
    %5691 = vmatprep.subr.mxu0 0.0
    %5692 = vmatpush2.xpose.msra.mxu0 0.0
    %5693 = vmatprep.subr.mxu0 0.0
    %5694 = vmatpush2.xpose.msra.mxu0 0.0
    %5695 = vmatprep.subr.mxu0 0.0
    %5696 = vmatpush2.xpose.msra.mxu0 0.0
    %5697 = vmatprep.subr.mxu0 0.0
    %5698 = vmatpush2.xpose.msra.mxu0 0.0
    %5699 = vmatprep.subr.mxu0 0.0
    %5700 = vmatpush2.xpose.msra.mxu0 0.0
    %5701 = vmatprep.subr.mxu0 0.0
    %5702 = vmatpush2.xpose.msra.mxu0 0.0
    %5703 = vmatprep.subr.mxu0 0.0
    %5704 = vmatpush2.xpose.msra.mxu0 0.0
    %5705 = vmatprep.subr.mxu0 0.0
    %5706 = vmatpush2.xpose.msra.mxu0 0.0
    %5707 = vmatprep.subr.mxu0 0.0
    %5708 = vmatpush2.xpose.msra.mxu0 0.0
    %5709 = vmatprep.subr.mxu0 0.0
    %5710 = vmatpush2.xpose.msra.mxu0 0.0
    %5711 = vmatprep.subr.mxu0 0.0
    %5712 = vmatpush2.xpose.msra.mxu0 0.0
    %5713 = vmatprep.subr.mxu0 0.0
    %5714 = vmatpush2.xpose.msra.mxu0 0.0
    %5715 = vmatprep.subr.mxu0 0.0
    %5716 = vmatpush2.xpose.msra.mxu0 0.0
    %5717 = vmatprep.subr.mxu0 0.0
    %5718 = vmatpush2.xpose.msra.mxu0 0.0
    %5719 = vmatprep.subr.mxu0 0.0
    %5720 = vmatpush2.xpose.msra.mxu0 0.0
    %5721 = vmatprep.subr.mxu0 0.0
    %5722 = vmatpush2.xpose.msra.mxu0 0.0
    %5723 = vmatprep.mubr.f32.mxu0 0.0
    %5724 = vmatmul.mubr.f32.gmra.mxu0 %v5651
    %v5725 = vpop.f32.mrf.mxu0
    %v5726 = vadd.f32 0.0, %v5725
    %v5727 = vpop.f32.mrf.mxu0
    %5728 = vdwg.mxu0
    %v5730 = vsel %vm951, %v4491, 0
    %v5733 = vsel %vm951, %v5328, 0
    %v5736 = vsel %vm951, %v5329, 0
    %5738 = vmatprep.subr.mxu0 0.0
    %5739 = vmatpush1.xpose.msra.mxu0 0.0
    %5740 = vmatprep.subr.mxu0 0.0
    %5741 = vmatpush1.xpose.msra.mxu0 0.0
    %5742 = vmatprep.subr.mxu0 0.0
    %5743 = vmatpush1.xpose.msra.mxu0 0.0
    %5744 = vmatprep.subr.mxu0 0.0
    %5745 = vmatpush1.xpose.msra.mxu0 0.0
    %5746 = vmatprep.subr.mxu0 0.0
    %5747 = vmatpush1.xpose.msra.mxu0 0.0
    %5748 = vmatprep.subr.mxu0 0.0
    %5749 = vmatpush1.xpose.msra.mxu0 0.0
    %5750 = vmatprep.subr.mxu0 0.0
    %5751 = vmatpush1.xpose.msra.mxu0 0.0
    %5752 = vmatprep.subr.mxu0 0.0
    %5753 = vmatpush1.xpose.msra.mxu0 0.0
    %5754 = vmatprep.subr.mxu0 0.0
    %5755 = vmatpush1.xpose.msra.mxu0 0.0
    %5756 = vmatprep.subr.mxu0 0.0
    %5757 = vmatpush1.xpose.msra.mxu0 0.0
    %5758 = vmatprep.subr.mxu0 0.0
    %5759 = vmatpush1.xpose.msra.mxu0 0.0
    %5760 = vmatprep.subr.mxu0 0.0
    %5761 = vmatpush1.xpose.msra.mxu0 0.0
    %5762 = vmatprep.subr.mxu0 0.0
    %5763 = vmatpush1.xpose.msra.mxu0 0.0
    %5764 = vmatprep.subr.mxu0 0.0
    %5765 = vmatpush1.xpose.msra.mxu0 0.0
    %5766 = vmatprep.subr.mxu0 0.0
    %5767 = vmatpush1.xpose.msra.mxu0 %v5736
    %5768 = vmatprep.subr.mxu0 0.0
    %5769 = vmatpush1.xpose.msra.mxu0 %v5733
    %5770 = vmatprep.subr.mxu0 0.0
    %5771 = vmatpush2.xpose.msra.mxu0 0.0
    %5772 = vmatprep.subr.mxu0 0.0
    %5773 = vmatpush2.xpose.msra.mxu0 0.0
    %5774 = vmatprep.subr.mxu0 0.0
    %5775 = vmatpush2.xpose.msra.mxu0 0.0
    %5776 = vmatprep.subr.mxu0 0.0
    %5777 = vmatpush2.xpose.msra.mxu0 0.0
    %5778 = vmatprep.subr.mxu0 0.0
    %5779 = vmatpush2.xpose.msra.mxu0 0.0
    %5780 = vmatprep.subr.mxu0 0.0
    %5781 = vmatpush2.xpose.msra.mxu0 0.0
    %5782 = vmatprep.subr.mxu0 0.0
    %5783 = vmatpush2.xpose.msra.mxu0 0.0
    %5784 = vmatprep.subr.mxu0 0.0
    %5785 = vmatpush2.xpose.msra.mxu0 0.0
    %5786 = vmatprep.subr.mxu0 0.0
    %5787 = vmatpush2.xpose.msra.mxu0 0.0
    %5788 = vmatprep.subr.mxu0 0.0
    %5789 = vmatpush2.xpose.msra.mxu0 0.0
    %5790 = vmatprep.subr.mxu0 0.0
    %5791 = vmatpush2.xpose.msra.mxu0 0.0
    %5792 = vmatprep.subr.mxu0 0.0
    %5793 = vmatpush2.xpose.msra.mxu0 0.0
    %5794 = vmatprep.subr.mxu0 0.0
    %5795 = vmatpush2.xpose.msra.mxu0 0.0
    %5796 = vmatprep.subr.mxu0 0.0
    %5797 = vmatpush2.xpose.msra.mxu0 0.0
    %5798 = vmatprep.subr.mxu0 0.0
    %5799 = vmatpush2.xpose.msra.mxu0 0.0
    %5800 = vmatprep.subr.mxu0 0.0
    %5801 = vmatpush2.xpose.msra.mxu0 0.0
    %5802 = vmatprep.mubr.f32.mxu0 0.0
    %5803 = vmatmul.mubr.f32.gmra.mxu0 %v5730
    %v5804 = vpop.f32.mrf.mxu0
    %v5805 = vadd.f32 0.0, %v5804
    %v5806 = vpop.f32.mrf.mxu0
    %5807 = vdwg.mxu0
    %v5809 = vsel %vm951, %v4492, 0
    %v5812 = vsel %vm951, %v5330, 0
    %v5815 = vsel %vm951, %v5331, 0
    %5817 = vmatprep.subr.mxu0 0.0
    %5818 = vmatpush1.xpose.msra.mxu0 0.0
    %5819 = vmatprep.subr.mxu0 0.0
    %5820 = vmatpush1.xpose.msra.mxu0 0.0
    %5821 = vmatprep.subr.mxu0 0.0
    %5822 = vmatpush1.xpose.msra.mxu0 0.0
    %5823 = vmatprep.subr.mxu0 0.0
    %5824 = vmatpush1.xpose.msra.mxu0 0.0
    %5825 = vmatprep.subr.mxu0 0.0
    %5826 = vmatpush1.xpose.msra.mxu0 0.0
    %5827 = vmatprep.subr.mxu0 0.0
    %5828 = vmatpush1.xpose.msra.mxu0 0.0
    %5829 = vmatprep.subr.mxu0 0.0
    %5830 = vmatpush1.xpose.msra.mxu0 0.0
    %5831 = vmatprep.subr.mxu0 0.0
    %5832 = vmatpush1.xpose.msra.mxu0 0.0
    %5833 = vmatprep.subr.mxu0 0.0
    %5834 = vmatpush1.xpose.msra.mxu0 0.0
    %5835 = vmatprep.subr.mxu0 0.0
    %5836 = vmatpush1.xpose.msra.mxu0 0.0
    %5837 = vmatprep.subr.mxu0 0.0
    %5838 = vmatpush1.xpose.msra.mxu0 0.0
    %5839 = vmatprep.subr.mxu0 0.0
    %5840 = vmatpush1.xpose.msra.mxu0 0.0
    %5841 = vmatprep.subr.mxu0 0.0
    %5842 = vmatpush1.xpose.msra.mxu0 0.0
    %5843 = vmatprep.subr.mxu0 0.0
    %5844 = vmatpush1.xpose.msra.mxu0 0.0
    %5845 = vmatprep.subr.mxu0 0.0
    %5846 = vmatpush1.xpose.msra.mxu0 %v5815
    %5847 = vmatprep.subr.mxu0 0.0
    %5848 = vmatpush1.xpose.msra.mxu0 %v5812
    %5849 = vmatprep.subr.mxu0 0.0
    %5850 = vmatpush2.xpose.msra.mxu0 0.0
    %5851 = vmatprep.subr.mxu0 0.0
    %5852 = vmatpush2.xpose.msra.mxu0 0.0
    %5853 = vmatprep.subr.mxu0 0.0
    %5854 = vmatpush2.xpose.msra.mxu0 0.0
    %5855 = vmatprep.subr.mxu0 0.0
    %5856 = vmatpush2.xpose.msra.mxu0 0.0
    %5857 = vmatprep.subr.mxu0 0.0
    %5858 = vmatpush2.xpose.msra.mxu0 0.0
    %5859 = vmatprep.subr.mxu0 0.0
    %5860 = vmatpush2.xpose.msra.mxu0 0.0
    %5861 = vmatprep.subr.mxu0 0.0
    %5862 = vmatpush2.xpose.msra.mxu0 0.0
    %5863 = vmatprep.subr.mxu0 0.0
    %5864 = vmatpush2.xpose.msra.mxu0 0.0
    %5865 = vmatprep.subr.mxu0 0.0
    %5866 = vmatpush2.xpose.msra.mxu0 0.0
    %5867 = vmatprep.subr.mxu0 0.0
    %5868 = vmatpush2.xpose.msra.mxu0 0.0
    %5869 = vmatprep.subr.mxu0 0.0
    %5870 = vmatpush2.xpose.msra.mxu0 0.0
    %5871 = vmatprep.subr.mxu0 0.0
    %5872 = vmatpush2.xpose.msra.mxu0 0.0
    %5873 = vmatprep.subr.mxu0 0.0
    %5874 = vmatpush2.xpose.msra.mxu0 0.0
    %5875 = vmatprep.subr.mxu0 0.0
    %5876 = vmatpush2.xpose.msra.mxu0 0.0
    %5877 = vmatprep.subr.mxu0 0.0
    %5878 = vmatpush2.xpose.msra.mxu0 0.0
    %5879 = vmatprep.subr.mxu0 0.0
    %5880 = vmatpush2.xpose.msra.mxu0 0.0
    %5881 = vmatprep.mubr.f32.mxu0 0.0
    %5882 = vmatmul.mubr.f32.gmra.mxu0 %v5809
    %v5883 = vpop.f32.mrf.mxu0
    %v5884 = vadd.f32 0.0, %v5883
    %v5885 = vpop.f32.mrf.mxu0
    %5886 = vdwg.mxu0
    %v5888 = vsel %vm951, %v4493, 0
    %v5891 = vsel %vm951, %v5332, 0
    %v5894 = vsel %vm951, %v5333, 0
    %5896 = vmatprep.subr.mxu0 0.0
    %5897 = vmatpush1.xpose.msra.mxu0 0.0
    %5898 = vmatprep.subr.mxu0 0.0
    %5899 = vmatpush1.xpose.msra.mxu0 0.0
    %5900 = vmatprep.subr.mxu0 0.0
    %5901 = vmatpush1.xpose.msra.mxu0 0.0
    %5902 = vmatprep.subr.mxu0 0.0
    %5903 = vmatpush1.xpose.msra.mxu0 0.0
    %5904 = vmatprep.subr.mxu0 0.0
    %5905 = vmatpush1.xpose.msra.mxu0 0.0
    %5906 = vmatprep.subr.mxu0 0.0
    %5907 = vmatpush1.xpose.msra.mxu0 0.0
    %5908 = vmatprep.subr.mxu0 0.0
    %5909 = vmatpush1.xpose.msra.mxu0 0.0
    %5910 = vmatprep.subr.mxu0 0.0
    %5911 = vmatpush1.xpose.msra.mxu0 0.0
    %5912 = vmatprep.subr.mxu0 0.0
    %5913 = vmatpush1.xpose.msra.mxu0 0.0
    %5914 = vmatprep.subr.mxu0 0.0
    %5915 = vmatpush1.xpose.msra.mxu0 0.0
    %5916 = vmatprep.subr.mxu0 0.0
    %5917 = vmatpush1.xpose.msra.mxu0 0.0
    %5918 = vmatprep.subr.mxu0 0.0
    %5919 = vmatpush1.xpose.msra.mxu0 0.0
    %5920 = vmatprep.subr.mxu0 0.0
    %5921 = vmatpush1.xpose.msra.mxu0 0.0
    %5922 = vmatprep.subr.mxu0 0.0
    %5923 = vmatpush1.xpose.msra.mxu0 0.0
    %5924 = vmatprep.subr.mxu0 0.0
    %5925 = vmatpush1.xpose.msra.mxu0 %v5894
    %5926 = vmatprep.subr.mxu0 0.0
    %5927 = vmatpush1.xpose.msra.mxu0 %v5891
    %5928 = vmatprep.subr.mxu0 0.0
    %5929 = vmatpush2.xpose.msra.mxu0 0.0
    %5930 = vmatprep.subr.mxu0 0.0
    %5931 = vmatpush2.xpose.msra.mxu0 0.0
    %5932 = vmatprep.subr.mxu0 0.0
    %5933 = vmatpush2.xpose.msra.mxu0 0.0
    %5934 = vmatprep.subr.mxu0 0.0
    %5935 = vmatpush2.xpose.msra.mxu0 0.0
    %5936 = vmatprep.subr.mxu0 0.0
    %5937 = vmatpush2.xpose.msra.mxu0 0.0
    %5938 = vmatprep.subr.mxu0 0.0
    %5939 = vmatpush2.xpose.msra.mxu0 0.0
    %5940 = vmatprep.subr.mxu0 0.0
    %5941 = vmatpush2.xpose.msra.mxu0 0.0
    %5942 = vmatprep.subr.mxu0 0.0
    %5943 = vmatpush2.xpose.msra.mxu0 0.0
    %5944 = vmatprep.subr.mxu0 0.0
    %5945 = vmatpush2.xpose.msra.mxu0 0.0
    %5946 = vmatprep.subr.mxu0 0.0
    %5947 = vmatpush2.xpose.msra.mxu0 0.0
    %5948 = vmatprep.subr.mxu0 0.0
    %5949 = vmatpush2.xpose.msra.mxu0 0.0
    %5950 = vmatprep.subr.mxu0 0.0
    %5951 = vmatpush2.xpose.msra.mxu0 0.0
    %5952 = vmatprep.subr.mxu0 0.0
    %5953 = vmatpush2.xpose.msra.mxu0 0.0
    %5954 = vmatprep.subr.mxu0 0.0
    %5955 = vmatpush2.xpose.msra.mxu0 0.0
    %5956 = vmatprep.subr.mxu0 0.0
    %5957 = vmatpush2.xpose.msra.mxu0 0.0
    %5958 = vmatprep.subr.mxu0 0.0
    %5959 = vmatpush2.xpose.msra.mxu0 0.0
    %5960 = vmatprep.mubr.f32.mxu0 0.0
    %5961 = vmatmul.mubr.f32.gmra.mxu0 %v5888
    %v5962 = vpop.f32.mrf.mxu0
    %v5963 = vadd.f32 0.0, %v5962
    %v5964 = vpop.f32.mrf.mxu0
    %5965 = vdwg.mxu0
    %5966 = vxpose.xlu0.b32.start [1/16] %v5410, 128
    %5967 = vxpose.xlu0.b32.cont [2/16] %v5489, 128
    %5968 = vxpose.xlu0.b32.cont [3/16] %v5568, 128
    %5969 = vxpose.xlu0.b32.cont [4/16] %v5647, 128
    %5970 = vxpose.xlu0.b32.cont [5/16] %v5726, 128
    %5971 = vxpose.xlu0.b32.cont [6/16] %v5805, 128
    %5972 = vxpose.xlu0.b32.cont [7/16] %v5884, 128
    %5973 = vxpose.xlu0.b32.cont [8/16] %v5963, 128
    %5974 = vxpose.xlu0.b32.cont [9/16] 0.0, 128
    %5975 = vxpose.xlu0.b32.cont [10/16] 0.0, 128
    %5976 = vxpose.xlu0.b32.cont [11/16] 0.0, 128
    %5977 = vxpose.xlu0.b32.cont [12/16] 0.0, 128
    %5978 = vxpose.xlu0.b32.cont [13/16] 0.0, 128
    %5979 = vxpose.xlu0.b32.cont [14/16] 0.0, 128
    %5980 = vxpose.xlu0.b32.cont [15/16] 0.0, 128
    %5981 = vxpose.xlu0.b32.end [16/16] 0.0, 128
    %v5982 = vpop.trf.xlu0
    %v5983 = vpop.trf.xlu0
    %v5984 = vpop.trf.xlu0
    %v5985 = vpop.trf.xlu0
    %v5986 = vpop.trf.xlu0
    %v5987 = vpop.trf.xlu0
    %v5988 = vpop.trf.xlu0
    %v5989 = vpop.trf.xlu0
    %v5990 = vpop.trf.xlu0
    %v5991 = vpop.trf.xlu0
    %v5992 = vpop.trf.xlu0
    %v5993 = vpop.trf.xlu0
    %v5994 = vpop.trf.xlu0
    %v5995 = vpop.trf.xlu0
    %v5996 = vpop.trf.xlu0
    %v5997 = vpop.trf.xlu0
    %v5998 = vpack.c.bf16 %v5983, %v5982
    %s5999 = scalar_lea.vmem %s5, 64
    %v6000 = vld [vmem:[%s5999] sm:$0xf]
    %v6001 = vld [vmem:[%s5999 + $0x4] sm:$0xf]
    %v6002 = vld [vmem:[%s5999 + $0x8] sm:$0xf]
    %v6003 = vld [vmem:[%s5999 + $0xc] sm:$0xf]
    %v6004 = vld [vmem:[%s5999 + $0x10] sm:$0xf]
    %v6005 = vld [vmem:[%s5999 + $0x14] sm:$0xf]
    %v6006 = vld [vmem:[%s5999 + $0x18] sm:$0xf]
    %v6007 = vld [vmem:[%s5999 + $0x1c] sm:$0xf]
    %v6016 = vunpack.c.l.b16 %v6000
    %v6017 = vunpack.c.l.b16 %v6001
    %v6018 = vunpack.c.l.b16 %v6002
    %v6019 = vunpack.c.l.b16 %v6003
    %v6020 = vunpack.c.l.b16 %v6004
    %v6021 = vunpack.c.l.b16 %v6005
    %v6022 = vunpack.c.l.b16 %v6006
    %v6023 = vunpack.c.l.b16 %v6007
    %v6024 = vpack.c.b16 %v6017, %v6016
    %v6025 = vpack.c.b16 %v6019, %v6018
    %v6026 = vpack.c.b16 %v6021, %v6020
    %v6027 = vpack.c.b16 %v6023, %v6022
    %v6033 = vsel %vm71, %v5998, 0
    %6035 = vmatprep.subr.bf16.mxu0 0
    %6036 = vmatpush1.bf16.msra.mxu0 0
    %6037 = vmatprep.subr.bf16.mxu0 0
    %6038 = vmatpush1.bf16.msra.mxu0 0
    %6039 = vmatprep.subr.bf16.mxu0 0
    %6040 = vmatpush1.bf16.msra.mxu0 0
    %6041 = vmatprep.subr.bf16.mxu0 0
    %6042 = vmatpush1.bf16.msra.mxu0 0
    %6043 = vmatprep.subr.bf16.mxu0 0
    %6044 = vmatpush1.bf16.msra.mxu0 %v6027
    %6045 = vmatprep.subr.bf16.mxu0 0
    %6046 = vmatpush1.bf16.msra.mxu0 %v6026
    %6047 = vmatprep.subr.bf16.mxu0 0
    %6048 = vmatpush1.bf16.msra.mxu0 %v6025
    %6049 = vmatprep.subr.bf16.mxu0 0
    %6050 = vmatpush1.bf16.msra.mxu0 %v6024
    %6051 = vmatprep.subr.bf16.mxu0 0
    %6052 = vmatpush2.bf16.msra.mxu0 0
    %6053 = vmatprep.subr.bf16.mxu0 0
    %6054 = vmatpush2.bf16.msra.mxu0 0
    %6055 = vmatprep.subr.bf16.mxu0 0
    %6056 = vmatpush2.bf16.msra.mxu0 0
    %6057 = vmatprep.subr.bf16.mxu0 0
    %6058 = vmatpush2.bf16.msra.mxu0 0
    %6059 = vmatprep.subr.bf16.mxu0 0
    %6060 = vmatpush2.bf16.msra.mxu0 0
    %6061 = vmatprep.subr.bf16.mxu0 0
    %6062 = vmatpush2.bf16.msra.mxu0 0
    %6063 = vmatprep.subr.bf16.mxu0 0
    %6064 = vmatpush2.bf16.msra.mxu0 0
    %6065 = vmatprep.subr.bf16.mxu0 0
    %6066 = vmatpush2.bf16.msra.mxu0 0
    %6067 = vmatprep.mubr.bf16.mxu0 0
    %6068 = vmatmul.mubr.bf16.gmra.mxu0 %v6033
    %v6069 = vpop.f32.mrf.mxu0
    %v6070 = vadd.f32 0.0, %v6069
    %v6071 = vpop.f32.mrf.mxu0
    %v6072 = vpop.f32.mrf.mxu0
    %v6073 = vadd.f32 0.0, %v6072
    %v6074 = vpop.f32.mrf.mxu0
    %6075 = vdwg.mxu0
    %v6076 = vadd.f32 %v4274, %v6070
    %v6077 = vadd.f32 %v4275, %v6073
    %s6078 = scalar_lea.vmem %s6, 2
    %v6079 = vld [vmem:[%s6078] sm:$0x1]
    %s6080 = scalar_lea.vmem %s7, 2
    %v6081 = vld [vmem:[%s6080] sm:$0x1]
    %v6082 = vsel %vm71, %v6076, 0.0
    %6083 = vadd.xlane.f32.xlu0 %v6082
    %v6084 = vpop.xlane.xlu0 %6083
    %v6085 = vsel %vm71, %v6077, 0.0
    %6086 = vadd.xlane.f32.xlu0 %v6085
    %v6087 = vpop.xlane.xlu0 %6086
    %v6088 = vmul.f32 %v6084, %v78
    %v6089 = vmul.f32 %v6087, %v78
    %v6090 = vsub.f32 %v6076, %v6088
    %v6091 = vsub.f32 %v6077, %v6089
    %v6092 = vmul.f32 %v6090, %v6090
    %v6093 = vmul.f32 %v6091, %v6091
    %v6094 = vsel %vm71, %v6092, 0.0
    %6095 = vadd.xlane.f32.xlu0 %v6094
    %v6096 = vpop.xlane.xlu0 %6095
    %v6097 = vsel %vm71, %v6093, 0.0
    %6098 = vadd.xlane.f32.xlu0 %v6097
    %v6099 = vpop.xlane.xlu0 %6098
    %v6100 = vmul.f32 %v6096, %v78
    %v6101 = vmul.f32 %v6099, %v78
    %v6102 = vadd.f32 %v6100, 1e-05
    %v6103 = vadd.f32 %v6101, 1e-05
    %v6104 = vrsqrt.pop %v6102
    %v6105 = vrsqrt.pop %v6103
    %v6106 = vmul.f32 %v6090, %v6104
    %v6107 = vmul.f32 %v6091, %v6105
    %v6109 = vlaneseq
    %v6110 = vshrl.u32 %v6109, 7
    %v6111 = vsub.s32 0, %v6110
    %v6112 = vrot.slane %v6079, %v6111
    %v6114 = vmul.f32 %v6106, %v6112
    %v6115 = vmul.f32 %v6107, %v6112
    %v6117 = vlaneseq
    %v6118 = vshrl.u32 %v6117, 7
    %v6119 = vsub.s32 0, %v6118
    %v6120 = vrot.slane %v6081, %v6119
    %v6122 = vadd.f32 %v6114, %v6120
    %v6123 = vadd.f32 %v6115, %v6120
    %s6124 = scalar_lea.vmem %s8, 2
    %v6125 = vld [vmem:[%s6124] sm:$0x1]
    %s6126 = scalar_lea.vmem %s9, 2
    %v6127 = vld [vmem:[%s6126] sm:$0x1]
    %v6128 = vsel %vm71, %v6122, 0.0
    %6129 = vadd.xlane.f32.xlu0 %v6128
    %v6130 = vpop.xlane.xlu0 %6129
    %v6131 = vsel %vm71, %v6123, 0.0
    %6132 = vadd.xlane.f32.xlu0 %v6131
    %v6133 = vpop.xlane.xlu0 %6132
    %v6134 = vmul.f32 %v6130, %v78
    %v6135 = vmul.f32 %v6133, %v78
    %v6136 = vsub.f32 %v6122, %v6134
    %v6137 = vsub.f32 %v6123, %v6135
    %v6138 = vmul.f32 %v6136, %v6136
    %v6139 = vmul.f32 %v6137, %v6137
    %v6140 = vsel %vm71, %v6138, 0.0
    %6141 = vadd.xlane.f32.xlu0 %v6140
    %v6142 = vpop.xlane.xlu0 %6141
    %v6143 = vsel %vm71, %v6139, 0.0
    %6144 = vadd.xlane.f32.xlu0 %v6143
    %v6145 = vpop.xlane.xlu0 %6144
    %v6146 = vmul.f32 %v6142, %v78
    %v6147 = vmul.f32 %v6145, %v78
    %v6148 = vadd.f32 %v6146, 1e-05
    %v6149 = vadd.f32 %v6147, 1e-05
    %v6150 = vrsqrt.pop %v6148
    %v6151 = vrsqrt.pop %v6149
    %v6152 = vmul.f32 %v6136, %v6150
    %v6153 = vmul.f32 %v6137, %v6151
    %v6155 = vlaneseq
    %v6156 = vshrl.u32 %v6155, 7
    %v6157 = vsub.s32 0, %v6156
    %v6158 = vrot.slane %v6125, %v6157
    %v6160 = vmul.f32 %v6152, %v6158
    %v6161 = vmul.f32 %v6153, %v6158
    %v6163 = vlaneseq
    %v6164 = vshrl.u32 %v6163, 7
    %v6165 = vsub.s32 0, %v6164
    %v6166 = vrot.slane %v6127, %v6165
    %v6168 = vadd.f32 %v6160, %v6166
    %v6169 = vadd.f32 %v6161, %v6166
    %v6170 = vpack.c.bf16 %v6169, %v6168
    %s6171 = scalar_lea.vmem [#allocation2], 64
    %v6172 = vld [vmem:[%s6171] sm:$0xf]
    %v6173 = vld [vmem:[%s6171 + $0x4] sm:$0xf]
    %v6174 = vld [vmem:[%s6171 + $0x8] sm:$0xf]
    %v6175 = vld [vmem:[%s6171 + $0xc] sm:$0xf]
    %v6176 = vld [vmem:[%s6171 + $0x10] sm:$0xf]
    %v6177 = vld [vmem:[%s6171 + $0x14] sm:$0xf]
    %v6178 = vld [vmem:[%s6171 + $0x18] sm:$0xf]
    %v6179 = vld [vmem:[%s6171 + $0x1c] sm:$0xf]
    %s6180 = scalar_lea.vmem %s11, 2
    %v6181 = vld [vmem:[%s6180] sm:$0x1]
    %v6183 = vlaneseq
    %v6184 = vshrl.u32 %v6183, 7
    %v6185 = vsub.s32 0, %v6184
    %v6186 = vrot.slane %v6181, %v6185
    %v6196 = vunpack.c.l.b16 %v6172
    %v6197 = vunpack.c.l.b16 %v6173
    %v6198 = vunpack.c.l.b16 %v6174
    %v6199 = vunpack.c.l.b16 %v6175
    %v6200 = vunpack.c.l.b16 %v6176
    %v6201 = vunpack.c.l.b16 %v6177
    %v6202 = vunpack.c.l.b16 %v6178
    %v6203 = vunpack.c.l.b16 %v6179
    %v6204 = vpack.c.b16 %v6197, %v6196
    %v6205 = vpack.c.b16 %v6199, %v6198
    %v6206 = vpack.c.b16 %v6201, %v6200
    %v6207 = vpack.c.b16 %v6203, %v6202
    %v6213 = vsel %vm71, %v6170, 0
    %6215 = vmatprep.subr.bf16.mxu0 0
    %6216 = vmatpush1.bf16.msra.mxu0 0
    %6217 = vmatprep.subr.bf16.mxu0 0
    %6218 = vmatpush1.bf16.msra.mxu0 0
    %6219 = vmatprep.subr.bf16.mxu0 0
    %6220 = vmatpush1.bf16.msra.mxu0 0
    %6221 = vmatprep.subr.bf16.mxu0 0
    %6222 = vmatpush1.bf16.msra.mxu0 0
    %6223 = vmatprep.subr.bf16.mxu0 0
    %6224 = vmatpush1.bf16.msra.mxu0 %v6207
    %6225 = vmatprep.subr.bf16.mxu0 0
    %6226 = vmatpush1.bf16.msra.mxu0 %v6206
    %6227 = vmatprep.subr.bf16.mxu0 0
    %6228 = vmatpush1.bf16.msra.mxu0 %v6205
    %6229 = vmatprep.subr.bf16.mxu0 0
    %6230 = vmatpush1.bf16.msra.mxu0 %v6204
    %6231 = vmatprep.subr.bf16.mxu0 0
    %6232 = vmatpush2.bf16.msra.mxu0 0
    %6233 = vmatprep.subr.bf16.mxu0 0
    %6234 = vmatpush2.bf16.msra.mxu0 0
    %6235 = vmatprep.subr.bf16.mxu0 0
    %6236 = vmatpush2.bf16.msra.mxu0 0
    %6237 = vmatprep.subr.bf16.mxu0 0
    %6238 = vmatpush2.bf16.msra.mxu0 0
    %6239 = vmatprep.subr.bf16.mxu0 0
    %6240 = vmatpush2.bf16.msra.mxu0 0
    %6241 = vmatprep.subr.bf16.mxu0 0
    %6242 = vmatpush2.bf16.msra.mxu0 0
    %6243 = vmatprep.subr.bf16.mxu0 0
    %6244 = vmatpush2.bf16.msra.mxu0 0
    %6245 = vmatprep.subr.bf16.mxu0 0
    %6246 = vmatpush2.bf16.msra.mxu0 0
    %6247 = vmatprep.mubr.bf16.mxu0 0
    %6248 = vmatmul.mubr.bf16.gmra.mxu0 %v6213
    %v6249 = vpop.f32.mrf.mxu0
    %v6250 = vadd.f32 %v6186, %v6249
    %v6251 = vpop.f32.mrf.mxu0
    %v6252 = vpop.f32.mrf.mxu0
    %v6253 = vadd.f32 %v6186, %v6252
    %v6254 = vpop.f32.mrf.mxu0
    %6255 = vdwg.mxu0
    %v6256 = vmul.f32 %v6250, 0.5
    %v6257 = vmul.f32 %v6253, 0.5
    %v6258 = vmul.f32 %v6250, %v2045
    %v6259 = vmul.f32 %v6253, %v2045
    %v6260 = verf.f32.pop %v6258
    %v6261 = verf.f32.pop %v6259
    %v6262 = vadd.f32 %v6260, 1.0
    %v6263 = vadd.f32 %v6261, 1.0
    %v6264 = vmul.f32 %v6256, %v6262
    %v6265 = vmul.f32 %v6257, %v6263
    %v6266 = vpack.c.bf16 %v6265, %v6264
    %s6267 = scalar_lea.vmem %s12, 128
    %v6268 = vld [vmem:[%s6267] sm:$0xf]
    %v6269 = vld [vmem:[%s6267 + $0x4] sm:$0xf]
    %v6270 = vld [vmem:[%s6267 + $0x8] sm:$0xf]
    %v6271 = vld [vmem:[%s6267 + $0xc] sm:$0xf]
    %v6272 = vld [vmem:[%s6267 + $0x10] sm:$0xf]
    %v6273 = vld [vmem:[%s6267 + $0x14] sm:$0xf]
    %v6274 = vld [vmem:[%s6267 + $0x18] sm:$0xf]
    %v6275 = vld [vmem:[%s6267 + $0x1c] sm:$0xf]
    %v6276 = vld [vmem:[%s6267 + $0x20] sm:$0xf]
    %v6277 = vld [vmem:[%s6267 + $0x24] sm:$0xf]
    %v6278 = vld [vmem:[%s6267 + $0x28] sm:$0xf]
    %v6279 = vld [vmem:[%s6267 + $0x2c] sm:$0xf]
    %v6280 = vld [vmem:[%s6267 + $0x30] sm:$0xf]
    %v6281 = vld [vmem:[%s6267 + $0x34] sm:$0xf]
    %v6282 = vld [vmem:[%s6267 + $0x38] sm:$0xf]
    %v6283 = vld [vmem:[%s6267 + $0x3c] sm:$0xf]
    %s6284 = scalar_lea.vmem %s13, 2
    %v6285 = vld [vmem:[%s6284] sm:$0x1]
    %v6287 = vlaneseq
    %v6288 = vshrl.u32 %v6287, 7
    %v6289 = vsub.s32 0, %v6288
    %v6290 = vrot.slane %v6285, %v6289
    %v6308 = vunpack.c.l.b16 %v6268
    %v6309 = vunpack.c.l.b16 %v6269
    %v6310 = vunpack.c.l.b16 %v6270
    %v6311 = vunpack.c.l.b16 %v6271
    %v6312 = vunpack.c.l.b16 %v6272
    %v6313 = vunpack.c.l.b16 %v6273
    %v6314 = vunpack.c.l.b16 %v6274
    %v6315 = vunpack.c.l.b16 %v6275
    %v6316 = vunpack.c.l.b16 %v6276
    %v6317 = vunpack.c.l.b16 %v6277
    %v6318 = vunpack.c.l.b16 %v6278
    %v6319 = vunpack.c.l.b16 %v6279
    %v6320 = vunpack.c.l.b16 %v6280
    %v6321 = vunpack.c.l.b16 %v6281
    %v6322 = vunpack.c.l.b16 %v6282
    %v6323 = vunpack.c.l.b16 %v6283
    %v6324 = vpack.c.b16 %v6309, %v6308
    %v6325 = vpack.c.b16 %v6311, %v6310
    %v6326 = vpack.c.b16 %v6313, %v6312
    %v6327 = vpack.c.b16 %v6315, %v6314
    %v6328 = vpack.c.b16 %v6317, %v6316
    %v6329 = vpack.c.b16 %v6319, %v6318
    %v6330 = vpack.c.b16 %v6321, %v6320
    %v6331 = vpack.c.b16 %v6323, %v6322
    %6340 = vmatprep.subr.bf16.mxu0 0
    %6341 = vmatpush1.bf16.msra.mxu0 %v6331
    %6342 = vmatprep.subr.bf16.mxu0 0
    %6343 = vmatpush1.bf16.msra.mxu0 %v6330
    %6344 = vmatprep.subr.bf16.mxu0 0
    %6345 = vmatpush1.bf16.msra.mxu0 %v6329
    %6346 = vmatprep.subr.bf16.mxu0 0
    %6347 = vmatpush1.bf16.msra.mxu0 %v6328
    %6348 = vmatprep.subr.bf16.mxu0 0
    %6349 = vmatpush1.bf16.msra.mxu0 %v6327
    %6350 = vmatprep.subr.bf16.mxu0 0
    %6351 = vmatpush1.bf16.msra.mxu0 %v6326
    %6352 = vmatprep.subr.bf16.mxu0 0
    %6353 = vmatpush1.bf16.msra.mxu0 %v6325
    %6354 = vmatprep.subr.bf16.mxu0 0
    %6355 = vmatpush1.bf16.msra.mxu0 %v6324
    %6356 = vmatprep.subr.bf16.mxu0 0
    %6357 = vmatpush2.bf16.msra.mxu0 0
    %6358 = vmatprep.subr.bf16.mxu0 0
    %6359 = vmatpush2.bf16.msra.mxu0 0
    %6360 = vmatprep.subr.bf16.mxu0 0
    %6361 = vmatpush2.bf16.msra.mxu0 0
    %6362 = vmatprep.subr.bf16.mxu0 0
    %6363 = vmatpush2.bf16.msra.mxu0 0
    %6364 = vmatprep.subr.bf16.mxu0 0
    %6365 = vmatpush2.bf16.msra.mxu0 0
    %6366 = vmatprep.subr.bf16.mxu0 0
    %6367 = vmatpush2.bf16.msra.mxu0 0
    %6368 = vmatprep.subr.bf16.mxu0 0
    %6369 = vmatpush2.bf16.msra.mxu0 0
    %6370 = vmatprep.subr.bf16.mxu0 0
    %6371 = vmatpush2.bf16.msra.mxu0 0
    %6372 = vmatprep.mubr.bf16.mxu0 0
    %6373 = vmatmul.mubr.bf16.gmra.mxu0 %v6266
    %v6374 = vpop.f32.mrf.mxu0
    %v6375 = vadd.f32 %v6290, %v6374
    %v6376 = vpop.f32.mrf.mxu0
    %v6377 = vpop.f32.mrf.mxu0
    %v6378 = vadd.f32 %v6290, %v6377
    %v6379 = vpop.f32.mrf.mxu0
    %6380 = vdwg.mxu0
    %v6381 = vadd.f32 %v6076, %v6375
    %v6382 = vadd.f32 %v6077, %v6378
    %6383 = vst.msk [vmem:[#allocation5] sm:$0xff] %vm71, %v6381
    %6384 = vst.msk [vmem:[#allocation5 + $0x8] sm:$0xff] %vm71, %v6382
    // Predicated region
    $region62: #{stacked_encoder.1} parent=1 // pred_check
      _
    $region63: #{stacked_encoder.1} parent=1 // pred_check_branch
      %6386 = sbr.rel (0) target = $region65
    $region64: #{stacked_encoder.1} parent=1 // pred_region
      %s6388 = ssub.s32 256, 256
      %6389 = vsyncadd [#allocation4], %s6388
      %s6390 = sshll.u32 [#allocation5], 4
      %s6391 = int_to_ptr.vmem [resolvable:$true] %s6390
      %6396 = dma.vmem_to_hbm [thread:$0]  %s6391, 256, %s14, [#allocation4], 128, 128, 8
    $region65: #{stacked_encoder.1} parent=1 // pred_fallthru
      _
    // Predicated region
    $region66: #{stacked_encoder.1} parent=1 // pred_check
      _
    $region67: #{stacked_encoder.1} parent=1 // pred_check_branch
      %6398 = sbr.rel (0) target = $region69
    $region68: #{stacked_encoder.1} parent=1 // pred_region
      %6399 = dma.done [#allocation4], 256
    $region69: #{stacked_encoder.1} parent=1 // pred_fallthru
      _
    %6400 = vsyncpa [#allocation3], 1
    %6401 = vsyncpa [#allocation4], 1

</llo_original>
